<compile_context>
chip_gen: v7x
topology: tpu7x:2x2x1
jax: 0.10.0
libtpu: 0.0.40
codegen_flags: <defaults>
</compile_context>

<pallas_src>
import functools
import numpy as np

import jax
import jax.numpy as jnp
from jax import lax
from jax.experimental import pallas as pl
from jax.experimental.pallas import tpu as pltpu

_VMEM_LIMIT = 32 * 1024 * 1024   # safe on v5e/v6e/v7x at these toy shapes
_LN_EPS = 1e-6
_NEG_INF = -1e9


# ----------------------------- in-kernel helpers -----------------------------

def _layer_norm(z, g_ref, b_ref, eps=_LN_EPS):
    """JayParks LayerNormalization: unbiased std, divide by (std + eps)."""
    n = z.shape[-1]
    mean = jnp.mean(z, axis=-1, keepdims=True)
    var = jnp.sum((z - mean) ** 2, axis=-1, keepdims=True) / (n - 1)
    return g_ref[...] * ((z - mean) / (jnp.sqrt(var) + eps)) + b_ref[...]


def _ffn(a, w1_ref, b1_ref, w2_ref, b2_ref):
    """Position-wise FFN: (x @ w1 + b1).relu() @ w2 + b2 (bf16 MXU, f32 acc)."""
    h = jnp.dot(a.astype(jnp.bfloat16), w1_ref[...],
                preferred_element_type=jnp.float32) + b1_ref[...]
    h = jnp.maximum(h, 0.0)
    return jnp.dot(h.astype(jnp.bfloat16), w2_ref[...],
                   preferred_element_type=jnp.float32) + b2_ref[...]


def _attention(q, k, v, mask, wo_ref, bo_ref, prob_ref, *, n_heads, d_k, d_v, scale):
    """All-head scaled dot-product attention + output projection.

    q: (Lq, H*d_k) f32, k: (Lk, H*d_k) f32, v: (Lk, H*d_v) f32.
    mask: None, (Lq, Lk) bool or (1, Lk) bool (broadcast).  Returns (Lq, D) f32.
    The output projection is accumulated per head (no concat of sub-128-lane
    head slices); K is contracted on d_k directly (no K transpose).
    """
    lq = q.shape[0]
    lk = k.shape[0]
    d_model = wo_ref.shape[1]
    out = jnp.zeros((lq, d_model), jnp.float32) + bo_ref[...]
    for h in range(n_heads):   # static unroll; see head-batching note at top
        qh = q[:, h * d_k:(h + 1) * d_k].astype(jnp.bfloat16)
        kh = k[:, h * d_k:(h + 1) * d_k].astype(jnp.bfloat16)
        vh = v[:, h * d_v:(h + 1) * d_v].astype(jnp.bfloat16)
        s = lax.dot_general(qh, kh, (((1,), (1,)), ((), ())),
                            preferred_element_type=jnp.float32) * scale
        if mask is not None:
            s = jnp.where(mask, _NEG_INF, s)
        s = s - jnp.max(s, axis=-1, keepdims=True)
        e = jnp.exp(s)
        p = e * pl.reciprocal(jnp.sum(e, axis=-1, keepdims=True), approx=True)
        if prob_ref is not None:   # lane-dense (Lq, H*Lk) bf16 store
            prob_ref[:, h * lk:(h + 1) * lk] = p.astype(prob_ref.dtype)
        ctx = jnp.dot(p.astype(jnp.bfloat16), vh,
                      preferred_element_type=jnp.float32)          # (Lq, d_v)
        out = out + jnp.dot(ctx.astype(jnp.bfloat16),
                            wo_ref[h * d_v:(h + 1) * d_v, :],
                            preferred_element_type=jnp.float32)    # (Lq, D)
    return out


# ----------------------------- fused layer kernels -----------------------------

def _encoder_layer_kernel(x_ref,
                          wqkv_ref, bqkv_ref, wo_ref, bo_ref, g1_ref, be1_ref,
                          w1_ref, b1_ref, w2_ref, b2_ref, g2_ref, be2_ref,
                          o_ref, *prob_refs,
                          n_heads, d_k, d_v, scale, with_probs):
    """Whole encoder layer for one batch element (no attn mask, per reference)."""
    p_ref = prob_refs[0] if with_probs else None
    hdk = n_heads * d_k
    x_bf = x_ref[...]                                # (L, D) bf16
    x = x_bf.astype(jnp.float32)                     # residual in f32

    qkv = jnp.dot(x_bf, wqkv_ref[...],
                  preferred_element_type=jnp.float32) + bqkv_ref[...]
    attn = _attention(qkv[:, :hdk], qkv[:, hdk:2 * hdk], qkv[:, 2 * hdk:],
                      None, wo_ref, bo_ref, p_ref,
                      n_heads=n_heads, d_k=d_k, d_v=d_v, scale=scale)
    a = _layer_norm(attn + x, g1_ref, be1_ref)
    y = _layer_norm(_ffn(a, w1_ref, b1_ref, w2_ref, b2_ref) + a, g2_ref, be2_ref)
    o_ref[...] = y.astype(o_ref.dtype)


def _decoder_layer_kernel(x_ref, enc_ref, dpad_ref, epad_ref,
                          sa_wqkv_ref, sa_bqkv_ref, sa_wo_ref, sa_bo_ref,
                          sa_g_ref, sa_be_ref,
                          ca_wq_ref, ca_bq_ref, ca_wkv_ref, ca_bkv_ref,
                          ca_wo_ref, ca_bo_ref, ca_g_ref, ca_be_ref,
                          w1_ref, b1_ref, w2_ref, b2_ref, g2_ref, be2_ref,
                          o_ref, *prob_refs,
                          n_heads, d_k, d_v, scale, with_probs):
    """Whole decoder layer for one batch element: masked self-attn +
    cross-attn over encoder outputs + FFN, all with residual/LN."""
    sp_ref = prob_refs[0] if with_probs else None
    cp_ref = prob_refs[1] if with_probs else None
    hdk = n_heads * d_k
    x_bf = x_ref[...]                                # (Ld, D) bf16
    x = x_bf.astype(jnp.float32)
    enc_bf = enc_ref[...]                            # (Ls, D) bf16
    ld = x_bf.shape[0]

    # Masks built in-kernel from (1, L) pad rows + iota (VPU compares only);
    # no (L, L) mask tensor is ever shipped through HBM.
    row = lax.broadcasted_iota(jnp.int32, (ld, ld), 0)
    col = lax.broadcasted_iota(jnp.int32, (ld, ld), 1)
    self_mask = jnp.logical_or(dpad_ref[...] > 0.5, col > row)   # (Ld, Ld)
    enc_mask = epad_ref[...] > 0.5                                # (1, Ls)

    # --- masked self-attention ---
    qkv = jnp.dot(x_bf, sa_wqkv_ref[...],
                  preferred_element_type=jnp.float32) + sa_bqkv_ref[...]
    attn = _attention(qkv[:, :hdk], qkv[:, hdk:2 * hdk], qkv[:, 2 * hdk:],
                      self_mask, sa_wo_ref, sa_bo_ref, sp_ref,
                      n_heads=n_heads, d_k=d_k, d_v=d_v, scale=scale)
    a1 = _layer_norm(attn + x, sa_g_ref, sa_be_ref)

    # --- encoder-decoder cross-attention ---
    q = jnp.dot(a1.astype(jnp.bfloat16), ca_wq_ref[...],
                preferred_element_type=jnp.float32) + ca_bq_ref[...]
    kv = jnp.dot(enc_bf, ca_wkv_ref[...],
                 preferred_element_type=jnp.float32) + ca_bkv_ref[...]
    attn2 = _attention(q, kv[:, :hdk], kv[:, hdk:],
                       enc_mask, ca_wo_ref, ca_bo_ref, cp_ref,
                       n_heads=n_heads, d_k=d_k, d_v=d_v, scale=scale)
    a2 = _layer_norm(attn2 + a1, ca_g_ref, ca_be_ref)

    # --- position-wise FFN ---
    y = _layer_norm(_ffn(a2, w1_ref, b1_ref, w2_ref, b2_ref) + a2, g2_ref, be2_ref)
    o_ref[...] = y.astype(o_ref.dtype)


def _proj_kernel(x_ref, w_ref, o_ref):
    o_ref[...] = jnp.dot(x_ref[...], w_ref[...], preferred_element_type=jnp.float32)


# ----------------------------- kernel wrappers -----------------------------

def _rep_spec(shape):
    """Full-array block replicated across the batch grid (weights/biases)."""
    nd = len(shape)
    return pl.BlockSpec(tuple(shape), lambda i, _n=nd: (0,) * _n)


def _bytes_of(args, out_bytes):
    return int(sum(int(a.size) * a.dtype.itemsize for a in args) + out_bytes)


def encoder_layer_call(lp, x_bf, cfg, return_probs):
    B, L, D = x_bf.shape
    H, dk, dv, dff = cfg["n_heads"], cfg["d_k"], cfg["d_v"], cfg["d_ff"]
    hdk, hdv = H * dk, H * dv
    dqkv = 2 * hdk + hdv
    sa, ffn = lp["self_attn"], lp["ffn"]

    args = (x_bf, sa["wqkv"], sa["bqkv"], sa["wo"], sa["bo"], sa["g"], sa["b"],
            ffn["w1"], ffn["b1"], ffn["w2"], ffn["b2"], ffn["g"], ffn["b"])
    in_specs = [pl.BlockSpec((None, L, D), lambda i: (i, 0, 0))]
    in_specs += [_rep_spec(a.shape) for a in args[1:]]

    if return_probs:
        out_shape = (jax.ShapeDtypeStruct((B, L, D), jnp.bfloat16),
                     jax.ShapeDtypeStruct((B, L, H * L), jnp.bfloat16))
        out_specs = (pl.BlockSpec((None, L, D), lambda i: (i, 0, 0)),
                     pl.BlockSpec((None, L, H * L), lambda i: (i, 0, 0)))
    else:
        out_shape = jax.ShapeDtypeStruct((B, L, D), jnp.bfloat16)
        out_specs = pl.BlockSpec((None, L, D), lambda i: (i, 0, 0))

    flops = 2 * B * L * (D * dqkv + H * L * (dk + dv) + hdv * D + 2 * D * dff)
    cost = pl.CostEstimate(flops=int(flops),
                           transcendentals=int(B * H * L * L),
                           bytes_accessed=_bytes_of(args, B * L * D * 2))
    kernel = functools.partial(_encoder_layer_kernel, n_heads=H, d_k=dk, d_v=dv,
                               scale=1.0 / float(np.sqrt(dk)),
                               with_probs=return_probs)
    res = pl.pallas_call(
        kernel, out_shape=out_shape, grid=(B,),
        in_specs=in_specs, out_specs=out_specs,
        compiler_params=pltpu.CompilerParams(
            dimension_semantics=("parallel",), vmem_limit_bytes=_VMEM_LIMIT),
        cost_estimate=cost,
    )(*args)

    if return_probs:
        y, p = res
        probs = p.reshape(B, L, H, L).transpose(0, 2, 1, 3).astype(jnp.float32)
        return y, probs
    return res, None


def decoder_layer_call(lp, x_bf, enc_bf, dec_kpad, enc_kpad, cfg, return_probs):
    B, Ld, D = x_bf.shape
    Ls = enc_bf.shape[1]
    H, dk, dv, dff = cfg["n_heads"], cfg["d_k"], cfg["d_v"], cfg["d_ff"]
    hdk, hdv = H * dk, H * dv
    sa, ca, ffn = lp["self_attn"], lp["enc_attn"], lp["ffn"]

    args = (x_bf, enc_bf, dec_kpad, enc_kpad,
            sa["wqkv"], sa["bqkv"], sa["wo"], sa["bo"], sa["g"], sa["b"],
            ca["wq"], ca["bq"], ca["wkv"], ca["bkv"], ca["wo"], ca["bo"],
            ca["g"], ca["b"],
            ffn["w1"], ffn["b1"], ffn["w2"], ffn["b2"], ffn["g"], ffn["b"])
    in_specs = [pl.BlockSpec((None, Ld, D), lambda i: (i, 0, 0)),
                pl.BlockSpec((None, Ls, D), lambda i: (i, 0, 0)),
                pl.BlockSpec((None, 1, Ld), lambda i: (i, 0, 0)),
                pl.BlockSpec((None, 1, Ls), lambda i: (i, 0, 0))]
    in_specs += [_rep_spec(a.shape) for a in args[4:]]

    if return_probs:
        out_shape = (jax.ShapeDtypeStruct((B, Ld, D), jnp.bfloat16),
                     jax.ShapeDtypeStruct((B, Ld, H * Ld), jnp.bfloat16),
                     jax.ShapeDtypeStruct((B, Ld, H * Ls), jnp.bfloat16))
        out_specs = (pl.BlockSpec((None, Ld, D), lambda i: (i, 0, 0)),
                     pl.BlockSpec((None, Ld, H * Ld), lambda i: (i, 0, 0)),
                     pl.BlockSpec((None, Ld, H * Ls), lambda i: (i, 0, 0)))
    else:
        out_shape = jax.ShapeDtypeStruct((B, Ld, D), jnp.bfloat16)
        out_specs = pl.BlockSpec((None, Ld, D), lambda i: (i, 0, 0))

    flops = 2 * B * (Ld * D * (2 * hdk + hdv)
                     + H * Ld * Ld * (dk + dv) + Ld * hdv * D
                     + Ld * D * hdk + Ls * D * (hdk + hdv)
                     + H * Ld * Ls * (dk + dv) + Ld * hdv * D
                     + 2 * Ld * D * dff)
    cost = pl.CostEstimate(flops=int(flops),
                           transcendentals=int(B * H * Ld * (Ld + Ls)),
                           bytes_accessed=_bytes_of(args, B * Ld * D * 2))
    kernel = functools.partial(_decoder_layer_kernel, n_heads=H, d_k=dk, d_v=dv,
                               scale=1.0 / float(np.sqrt(dk)),
                               with_probs=return_probs)
    res = pl.pallas_call(
        kernel, out_shape=out_shape, grid=(B,),
        in_specs=in_specs, out_specs=out_specs,
        compiler_params=pltpu.CompilerParams(
            dimension_semantics=("parallel",), vmem_limit_bytes=_VMEM_LIMIT),
        cost_estimate=cost,
    )(*args)

    if return_probs:
        y, sp, cp = res
        self_p = sp.reshape(B, Ld, H, Ld).transpose(0, 2, 1, 3).astype(jnp.float32)
        enc_p = cp.reshape(B, Ld, H, Ls).transpose(0, 2, 1, 3).astype(jnp.float32)
        return y, self_p, enc_p
    return res, None, None


def final_projection(x_bf, w_bf):
    """Final target projection (Linear, bias=False): flattened (B*L, D) @ (D, V)."""
    B, L, D = x_bf.shape
    V = w_bf.shape[1]
    x2 = x_bf.reshape(B * L, D)   # lane-dense rows, single grid step
    cost = pl.CostEstimate(
        flops=int(2 * B * L * D * V), transcendentals=0,
        bytes_accessed=_bytes_of((x2, w_bf), B * L * V * 4))
    return pl.pallas_call(
        _proj_kernel,
        out_shape=jax.ShapeDtypeStruct((B * L, V), jnp.float32),
        grid=(1,),
        in_specs=[pl.BlockSpec((B * L, D), lambda i: (0, 0)),
                  pl.BlockSpec((D, V), lambda i: (0, 0))],
        out_specs=pl.BlockSpec((B * L, V), lambda i: (0, 0)),
        compiler_params=pltpu.CompilerParams(vmem_limit_bytes=_VMEM_LIMIT),
        cost_estimate=cost,
    )(x2, w_bf)


# ----------------------------- model glue (JAX) -----------------------------

def build_pos_table(max_pos, d_model):
    pos = np.arange(max_pos, dtype=np.float64)[:, None]
    j = np.arange(d_model, dtype=np.float64)[None, :]
    angle = pos / np.power(10000.0, 2.0 * (j // 2) / d_model)
    table = np.zeros((max_pos, d_model), dtype=np.float64)
    table[:, 0::2] = np.sin(angle[:, 0::2])
    table[:, 1::2] = np.cos(angle[:, 1::2])
    table = np.concatenate([np.zeros((1, d_model)), table], axis=0)  # pad row 0
    return jnp.asarray(table, jnp.float32)


def pos_encoding(table, lengths, max_len):
    # input_pos[b, t] = t+1 if t < len_b else 0 (pad row)
    t = jnp.arange(max_len)[None, :]
    input_pos = jnp.where(t < lengths[:, None], t + 1, 0)
    return table[input_pos]


def transformer_forward(prep, cfg, enc_inputs, enc_inputs_len,
                        dec_inputs, dec_inputs_len, return_attn=False):
    B, Ls = enc_inputs.shape
    Ld = dec_inputs.shape[1]

    # ---- Encoder (reference quirk: pos flag == return_attn; attn_mask=None) ----
    enc_x = prep["src_emb"][enc_inputs]                     # (B, Ls, D) f32 gather
    if return_attn:   # positional encoding only added when return_attn is True
        enc_x = enc_x + pos_encoding(prep["pos_table_src"], enc_inputs_len, Ls)
    enc_x = enc_x.astype(jnp.bfloat16)                      # bf16 transport
    enc_self_attns = []
    for lp in prep["enc_layers"]:
        enc_x, a = encoder_layer_call(lp, enc_x, cfg, return_attn)
        if return_attn:   # probs only materialized when requested
            enc_self_attns.append(a)

    # ---- Decoder ----
    dec_x = prep["tgt_emb"][dec_inputs]
    dec_x = dec_x + pos_encoding(prep["pos_table_tgt"], dec_inputs_len, Ld)
    dec_x = dec_x.astype(jnp.bfloat16)

    # Only O(B*L) pad rows go to HBM; pad+causal masks are rebuilt in-kernel.
    dec_kpad = (dec_inputs == 0).astype(jnp.float32).reshape(B, 1, Ld)
    enc_kpad = (enc_inputs == 0).astype(jnp.float32).reshape(B, 1, Ls)

    dec_self_attns, dec_enc_attns = [], []
    for lp in prep["dec_layers"]:
        dec_x, sa, ea = decoder_layer_call(lp, dec_x, enc_x, dec_kpad, enc_kpad,
                                           cfg, return_attn)
        if return_attn:
            dec_self_attns.append(sa)
            dec_enc_attns.append(ea)

    # ---- Final projection (Linear, bias=False) ----
    logits = final_projection(dec_x, prep["tgt_proj_w"])     # (B*Ld, V) f32
    return logits, enc_self_attns, dec_self_attns, dec_enc_attns


# ----------------------------- parameters -----------------------------

def init_params(key, cfg):
    """Logical (PyTorch-equivalent) f32 parameters."""
    D, d_ff, H = cfg["d_model"], cfg["d_ff"], cfg["n_heads"]
    d_k, d_v = cfg["d_k"], cfg["d_v"]
    keys = iter(jax.random.split(key, 256))

    def dense(kin, kout):
        return (0.1 * jax.random.normal(next(keys), (kin, kout), jnp.float32),
                0.01 * jax.random.normal(next(keys), (kout,), jnp.float32))

    def mha_params():
        wq, bq = dense(D, H * d_k)
        wk, bk = dense(D, H * d_k)
        wv, bv = dense(D, H * d_v)
        wo, bo = dense(H * d_v, D)
        return dict(wq=wq, bq=bq, wk=wk, bk=bk, wv=wv, bv=bv, wo=wo, bo=bo,
                    ln_g=jnp.ones((D,), jnp.float32),
                    ln_b=jnp.zeros((D,), jnp.float32))

    def ffn_params():
        w1, b1 = dense(D, d_ff)
        w2, b2 = dense(d_ff, D)
        return dict(w1=w1, b1=b1, w2=w2, b2=b2,
                    ln_g=jnp.ones((D,), jnp.float32),
                    ln_b=jnp.zeros((D,), jnp.float32))

    def emb(vocab):
        e = 0.1 * jax.random.normal(next(keys), (vocab, D), jnp.float32)
        return e.at[0].set(0.0)   # padding_idx = 0

    return dict(
        src_emb=emb(cfg["src_vocab_size"]),
        tgt_emb=emb(cfg["tgt_vocab_size"]),
        pos_table_src=build_pos_table(cfg["max_src_seq_len"] * 10, D),
        pos_table_tgt=build_pos_table(cfg["max_tgt_seq_len"] * 10, D),
        enc_layers=[dict(self_attn=mha_params(), ffn=ffn_params())
                    for _ in range(cfg["n_layers"])],
        dec_layers=[dict(self_attn=mha_params(), enc_attn=mha_params(),
                         ffn=ffn_params())
                    for _ in range(cfg["n_layers"])],
        tgt_proj_w=0.1 * jax.random.normal(next(keys),
                                           (D, cfg["tgt_vocab_size"]),
                                           jnp.float32),
    )


def prepare_params(params, cfg):
    """One-time conversion to the kernel layout (done OUTSIDE jit, so no
    per-step concat/cast HBM copies): fused Q|K|V and K|V bf16 weight slabs,
    (1, n) f32 bias/LN rows, bf16 projection weight."""
    del cfg

    def _row(v):
        return v.reshape(1, -1).astype(jnp.float32)

    def self_attn(p):
        return dict(
            wqkv=jnp.concatenate([p["wq"], p["wk"], p["wv"]], axis=1).astype(jnp.bfloat16),
            bqkv=_row(jnp.concatenate([p["bq"], p["bk"], p["bv"]])),
            wo=p["wo"].astype(jnp.bfloat16), bo=_row(p["bo"]),
            g=_row(p["ln_g"]), b=_row(p["ln_b"]))

    def cross_attn(p):
        return dict(
            wq=p["wq"].astype(jnp.bfloat16), bq=_row(p["bq"]),
            wkv=jnp.concatenate([p["wk"], p["wv"]], axis=1).astype(jnp.bfloat16),
            bkv=_row(jnp.concatenate([p["bk"], p["bv"]])),
            wo=p["wo"].astype(jnp.bfloat16), bo=_row(p["bo"]),
            g=_row(p["ln_g"]), b=_row(p["ln_b"]))

    def ffn(p):
        return dict(w1=p["w1"].astype(jnp.bfloat16), b1=_row(p["b1"]),
                    w2=p["w2"].astype(jnp.bfloat16), b2=_row(p["b2"]),
                    g=_row(p["ln_g"]), b=_row(p["ln_b"]))

    return dict(
        src_emb=params["src_emb"], tgt_emb=params["tgt_emb"],
        pos_table_src=params["pos_table_src"],
        pos_table_tgt=params["pos_table_tgt"],
        enc_layers=[dict(self_attn=self_attn(l["self_attn"]), ffn=ffn(l["ffn"]))
                    for l in params["enc_layers"]],
        dec_layers=[dict(self_attn=self_attn(l["self_attn"]),
                         enc_attn=cross_attn(l["enc_attn"]), ffn=ffn(l["ffn"]))
                    for l in params["dec_layers"]],
        tgt_proj_w=params["tgt_proj_w"].astype(jnp.bfloat16),
    )


# ----------------------------- main -----------------------------

if __name__ == "__main__":
    cfg = dict(n_layers=2, d_k=8, d_v=8, d_model=32, d_ff=64, n_heads=4,
               max_src_seq_len=8, max_tgt_seq_len=8,
               src_vocab_size=11, tgt_vocab_size=13)

    key = jax.random.PRNGKey(0)
    kp, ke, kd = jax.random.split(key, 3)
    params = init_params(kp, cfg)
    prep = prepare_params(params, cfg)   # one-time fusion/cast, outside jit

    B, Ls, Ld = 2, 8, 8
    enc_inputs_len = jnp.array([8, 6], jnp.int32)
    dec_inputs_len = jnp.array([8, 5], jnp.int32)

    enc_tok = jax.random.randint(ke, (B, Ls), 1, cfg["src_vocab_size"], jnp.int32)
    dec_tok = jax.random.randint(kd, (B, Ld), 1, cfg["tgt_vocab_size"], jnp.int32)
    # zero-pad beyond the given lengths (pad id = 0)
    enc_inputs = jnp.where(jnp.arange(Ls)[None, :] < enc_inputs_len[:, None],
                           enc_tok, 0)
    dec_inputs = jnp.where(jnp.arange(Ld)[None, :] < dec_inputs_len[:, None],
                           dec_tok, 0)

    @jax.jit
    def fwd(p, ei, el, di, dl):
        return transformer_forward(p, cfg, ei, el, di, dl, return_attn=False)

    logits, enc_attns, dec_self_attns, dec_enc_attns = fwd(
        prep, enc_inputs, enc_inputs_len, dec_inputs, dec_inputs_len)

    logits = jax.block_until_ready(logits)
    assert logits.shape == (B * Ld, cfg["tgt_vocab_size"])
    assert bool(jnp.all(jnp.isfinite(logits)))
    print("KERNEL_OK")
</pallas_src>

<mosaic_0001>
module attributes {stable_mosaic.version = 11 : i64} {
  func.func @_encoder_layer_kernel(%arg0: i32, %arg1: memref<1x8x32xbf16, #tpu.memory_space<vmem>>, %arg2: memref<32x96xbf16, #tpu.memory_space<vmem>>, %arg3: memref<1x96xf32, #tpu.memory_space<vmem>>, %arg4: memref<32x32xbf16, #tpu.memory_space<vmem>>, %arg5: memref<1x32xf32, #tpu.memory_space<vmem>>, %arg6: memref<1x32xf32, #tpu.memory_space<vmem>>, %arg7: memref<1x32xf32, #tpu.memory_space<vmem>>, %arg8: memref<32x64xbf16, #tpu.memory_space<vmem>>, %arg9: memref<1x64xf32, #tpu.memory_space<vmem>>, %arg10: memref<64x32xbf16, #tpu.memory_space<vmem>>, %arg11: memref<1x32xf32, #tpu.memory_space<vmem>>, %arg12: memref<1x32xf32, #tpu.memory_space<vmem>>, %arg13: memref<1x32xf32, #tpu.memory_space<vmem>>, %arg14: memref<1x8x32xbf16, #tpu.memory_space<vmem>>) attributes {dimension_semantics = [#tpu.dimension_semantics<parallel>], iteration_bounds = array<i64: 2>, scalar_prefetch = 0 : i64, scratch_operands = 0 : i64, tpu.core_type = #tpu.core_type<tc>, window_params = [{transform_indices = @transform_0, window_bounds = array<i64: 1, 8, 32>}, {pipeline_mode = #tpu.pipeline_mode<synchronous>, transform_indices = @transform_1, window_bounds = array<i64: 32, 96>}, {pipeline_mode = #tpu.pipeline_mode<synchronous>, transform_indices = @transform_2, window_bounds = array<i64: 1, 96>}, {pipeline_mode = #tpu.pipeline_mode<synchronous>, transform_indices = @transform_3, window_bounds = array<i64: 32, 32>}, {pipeline_mode = #tpu.pipeline_mode<synchronous>, transform_indices = @transform_4, window_bounds = array<i64: 1, 32>}, {pipeline_mode = #tpu.pipeline_mode<synchronous>, transform_indices = @transform_5, window_bounds = array<i64: 1, 32>}, {pipeline_mode = #tpu.pipeline_mode<synchronous>, transform_indices = @transform_6, window_bounds = array<i64: 1, 32>}, {pipeline_mode = #tpu.pipeline_mode<synchronous>, transform_indices = @transform_7, window_bounds = array<i64: 32, 64>}, {pipeline_mode = #tpu.pipeline_mode<synchronous>, transform_indices = @transform_8, window_bounds = array<i64: 1, 64>}, {pipeline_mode = #tpu.pipeline_mode<synchronous>, transform_indices = @transform_9, window_bounds = array<i64: 64, 32>}, {pipeline_mode = #tpu.pipeline_mode<synchronous>, transform_indices = @transform_10, window_bounds = array<i64: 1, 32>}, {pipeline_mode = #tpu.pipeline_mode<synchronous>, transform_indices = @transform_11, window_bounds = array<i64: 1, 32>}, {pipeline_mode = #tpu.pipeline_mode<synchronous>, transform_indices = @transform_12, window_bounds = array<i64: 1, 32>}, {transform_indices = @transform_13, window_bounds = array<i64: 1, 8, 32>}]} {
    %c0 = arith.constant 0 : index
    %c0_0 = arith.constant 0 : index
    %c0_1 = arith.constant 0 : index
    %0 = vector.load %arg1[%c0, %c0_0, %c0_1] : memref<1x8x32xbf16, #tpu.memory_space<vmem>>, vector<1x8x32xbf16>
    %1 = vector.shape_cast %0 : vector<1x8x32xbf16> to vector<8x32xbf16>
    %2 = arith.extf %1 : vector<8x32xbf16> to vector<8x32xf32>
    %c0_2 = arith.constant 0 : index
    %c0_3 = arith.constant 0 : index
    %3 = vector.load %arg2[%c0_2, %c0_3] : memref<32x96xbf16, #tpu.memory_space<vmem>>, vector<32x96xbf16>
    %cst = arith.constant dense<0.000000e+00> : vector<8x96xf32>
    %4 = tpu.matmul %1, %3, %cst {dimension_numbers = #tpu.dot_dimension_numbers<[1], [0], [0], [1], [0, 0, 1, 1], [], []>} : vector<8x32xbf16>, vector<32x96xbf16>, vector<8x96xf32> -> vector<8x96xf32>
    %c0_4 = arith.constant 0 : index
    %c0_5 = arith.constant 0 : index
    %5 = vector.load %arg3[%c0_4, %c0_5] : memref<1x96xf32, #tpu.memory_space<vmem>>, vector<1x96xf32>
    %6 = vector.broadcast %5 : vector<1x96xf32> to vector<8x96xf32>
    %7 = arith.addf %4, %6 : vector<8x96xf32>
    %8 = vector.extract_strided_slice %7 {offsets = [0, 0], sizes = [8, 32], strides = [1, 1]} : vector<8x96xf32> to vector<8x32xf32>
    %9 = vector.extract_strided_slice %7 {offsets = [0, 32], sizes = [8, 32], strides = [1, 1]} : vector<8x96xf32> to vector<8x32xf32>
    %10 = vector.extract_strided_slice %7 {offsets = [0, 64], sizes = [8, 32], strides = [1, 1]} : vector<8x96xf32> to vector<8x32xf32>
    %cst_6 = arith.constant 0.000000e+00 : f32
    %11 = vector.broadcast %cst_6 : f32 to vector<8x32xf32>
    %c0_7 = arith.constant 0 : index
    %c0_8 = arith.constant 0 : index
    %12 = vector.load %arg5[%c0_7, %c0_8] : memref<1x32xf32, #tpu.memory_space<vmem>>, vector<1x32xf32>
    %13 = vector.broadcast %12 : vector<1x32xf32> to vector<8x32xf32>
    %14 = arith.addf %11, %13 : vector<8x32xf32>
    %15 = vector.extract_strided_slice %8 {offsets = [0, 0], sizes = [8, 8], strides = [1, 1]} : vector<8x32xf32> to vector<8x8xf32>
    %16 = arith.truncf %15 : vector<8x8xf32> to vector<8x8xbf16>
    %17 = vector.extract_strided_slice %9 {offsets = [0, 0], sizes = [8, 8], strides = [1, 1]} : vector<8x32xf32> to vector<8x8xf32>
    %18 = arith.truncf %17 : vector<8x8xf32> to vector<8x8xbf16>
    %19 = vector.extract_strided_slice %10 {offsets = [0, 0], sizes = [8, 8], strides = [1, 1]} : vector<8x32xf32> to vector<8x8xf32>
    %20 = arith.truncf %19 : vector<8x8xf32> to vector<8x8xbf16>
    %cst_9 = arith.constant dense<0.000000e+00> : vector<8x8xf32>
    %21 = tpu.matmul %16, %18, %cst_9 {dimension_numbers = #tpu.dot_dimension_numbers<[1], [1], [0], [0], [0, 0, 1, 0], [], []>} : vector<8x8xbf16>, vector<8x8xbf16>, vector<8x8xf32> -> vector<8x8xf32>
    %cst_10 = arith.constant 0.353553385 : f32
    %22 = vector.broadcast %cst_10 : f32 to vector<8x8xf32>
    %23 = arith.mulf %21, %22 : vector<8x8xf32>
    %cst_11 = arith.constant dense<0xFF800000> : vector<8xf32>
    %24 = vector.multi_reduction <maximumf>, %23, %cst_11 [1] : vector<8x8xf32> to vector<8xf32>
    %25 = vector.shape_cast %24 : vector<8xf32> to vector<8x1xf32>
    %26 = vector.broadcast %25 : vector<8x1xf32> to vector<8x8xf32>
    %27 = arith.subf %23, %26 : vector<8x8xf32>
    %28 = math.exp %27 : vector<8x8xf32>
    %cst_12 = arith.constant dense<0.000000e+00> : vector<8xf32>
    %29 = vector.multi_reduction <add>, %28, %cst_12 [1] : vector<8x8xf32> to vector<8xf32>
    %30 = vector.shape_cast %29 : vector<8xf32> to vector<8x1xf32>
    %31 = tpu.reciprocal %30 {approx = true} : vector<8x1xf32> -> vector<8x1xf32>
    %32 = vector.broadcast %31 : vector<8x1xf32> to vector<8x8xf32>
    %33 = arith.mulf %28, %32 : vector<8x8xf32>
    %34 = arith.truncf %33 : vector<8x8xf32> to vector<8x8xbf16>
    %cst_13 = arith.constant dense<0.000000e+00> : vector<8x8xf32>
    %35 = tpu.matmul %34, %20, %cst_13 {dimension_numbers = #tpu.dot_dimension_numbers<[1], [0], [0], [1], [0, 0, 1, 1], [], []>} : vector<8x8xbf16>, vector<8x8xbf16>, vector<8x8xf32> -> vector<8x8xf32>
    %36 = arith.truncf %35 : vector<8x8xf32> to vector<8x8xbf16>
    %c0_14 = arith.constant 0 : index
    %c0_15 = arith.constant 0 : index
    %37 = vector.load %arg4[%c0_14, %c0_15] : memref<32x32xbf16, #tpu.memory_space<vmem>>, vector<8x32xbf16>
    %cst_16 = arith.constant dense<0.000000e+00> : vector<8x32xf32>
    %38 = tpu.matmul %36, %37, %cst_16 {dimension_numbers = #tpu.dot_dimension_numbers<[1], [0], [0], [1], [0, 0, 1, 1], [], []>} : vector<8x8xbf16>, vector<8x32xbf16>, vector<8x32xf32> -> vector<8x32xf32>
    %39 = arith.addf %14, %38 : vector<8x32xf32>
    %40 = vector.extract_strided_slice %8 {offsets = [0, 8], sizes = [8, 8], strides = [1, 1]} : vector<8x32xf32> to vector<8x8xf32>
    %41 = arith.truncf %40 : vector<8x8xf32> to vector<8x8xbf16>
    %42 = vector.extract_strided_slice %9 {offsets = [0, 8], sizes = [8, 8], strides = [1, 1]} : vector<8x32xf32> to vector<8x8xf32>
    %43 = arith.truncf %42 : vector<8x8xf32> to vector<8x8xbf16>
    %44 = vector.extract_strided_slice %10 {offsets = [0, 8], sizes = [8, 8], strides = [1, 1]} : vector<8x32xf32> to vector<8x8xf32>
    %45 = arith.truncf %44 : vector<8x8xf32> to vector<8x8xbf16>
    %cst_17 = arith.constant dense<0.000000e+00> : vector<8x8xf32>
    %46 = tpu.matmul %41, %43, %cst_17 {dimension_numbers = #tpu.dot_dimension_numbers<[1], [1], [0], [0], [0, 0, 1, 0], [], []>} : vector<8x8xbf16>, vector<8x8xbf16>, vector<8x8xf32> -> vector<8x8xf32>
    %cst_18 = arith.constant 0.353553385 : f32
    %47 = vector.broadcast %cst_18 : f32 to vector<8x8xf32>
    %48 = arith.mulf %46, %47 : vector<8x8xf32>
    %cst_19 = arith.constant dense<0xFF800000> : vector<8xf32>
    %49 = vector.multi_reduction <maximumf>, %48, %cst_19 [1] : vector<8x8xf32> to vector<8xf32>
    %50 = vector.shape_cast %49 : vector<8xf32> to vector<8x1xf32>
    %51 = vector.broadcast %50 : vector<8x1xf32> to vector<8x8xf32>
    %52 = arith.subf %48, %51 : vector<8x8xf32>
    %53 = math.exp %52 : vector<8x8xf32>
    %cst_20 = arith.constant dense<0.000000e+00> : vector<8xf32>
    %54 = vector.multi_reduction <add>, %53, %cst_20 [1] : vector<8x8xf32> to vector<8xf32>
    %55 = vector.shape_cast %54 : vector<8xf32> to vector<8x1xf32>
    %56 = tpu.reciprocal %55 {approx = true} : vector<8x1xf32> -> vector<8x1xf32>
    %57 = vector.broadcast %56 : vector<8x1xf32> to vector<8x8xf32>
    %58 = arith.mulf %53, %57 : vector<8x8xf32>
    %59 = arith.truncf %58 : vector<8x8xf32> to vector<8x8xbf16>
    %cst_21 = arith.constant dense<0.000000e+00> : vector<8x8xf32>
    %60 = tpu.matmul %59, %45, %cst_21 {dimension_numbers = #tpu.dot_dimension_numbers<[1], [0], [0], [1], [0, 0, 1, 1], [], []>} : vector<8x8xbf16>, vector<8x8xbf16>, vector<8x8xf32> -> vector<8x8xf32>
    %61 = arith.truncf %60 : vector<8x8xf32> to vector<8x8xbf16>
    %c8 = arith.constant 8 : index
    %c0_22 = arith.constant 0 : index
    %62 = vector.load %arg4[%c8, %c0_22] : memref<32x32xbf16, #tpu.memory_space<vmem>>, vector<8x32xbf16>
    %cst_23 = arith.constant dense<0.000000e+00> : vector<8x32xf32>
    %63 = tpu.matmul %61, %62, %cst_23 {dimension_numbers = #tpu.dot_dimension_numbers<[1], [0], [0], [1], [0, 0, 1, 1], [], []>} : vector<8x8xbf16>, vector<8x32xbf16>, vector<8x32xf32> -> vector<8x32xf32>
    %64 = arith.addf %39, %63 : vector<8x32xf32>
    %65 = vector.extract_strided_slice %8 {offsets = [0, 16], sizes = [8, 8], strides = [1, 1]} : vector<8x32xf32> to vector<8x8xf32>
    %66 = arith.truncf %65 : vector<8x8xf32> to vector<8x8xbf16>
    %67 = vector.extract_strided_slice %9 {offsets = [0, 16], sizes = [8, 8], strides = [1, 1]} : vector<8x32xf32> to vector<8x8xf32>
    %68 = arith.truncf %67 : vector<8x8xf32> to vector<8x8xbf16>
    %69 = vector.extract_strided_slice %10 {offsets = [0, 16], sizes = [8, 8], strides = [1, 1]} : vector<8x32xf32> to vector<8x8xf32>
    %70 = arith.truncf %69 : vector<8x8xf32> to vector<8x8xbf16>
    %cst_24 = arith.constant dense<0.000000e+00> : vector<8x8xf32>
    %71 = tpu.matmul %66, %68, %cst_24 {dimension_numbers = #tpu.dot_dimension_numbers<[1], [1], [0], [0], [0, 0, 1, 0], [], []>} : vector<8x8xbf16>, vector<8x8xbf16>, vector<8x8xf32> -> vector<8x8xf32>
    %cst_25 = arith.constant 0.353553385 : f32
    %72 = vector.broadcast %cst_25 : f32 to vector<8x8xf32>
    %73 = arith.mulf %71, %72 : vector<8x8xf32>
    %cst_26 = arith.constant dense<0xFF800000> : vector<8xf32>
    %74 = vector.multi_reduction <maximumf>, %73, %cst_26 [1] : vector<8x8xf32> to vector<8xf32>
    %75 = vector.shape_cast %74 : vector<8xf32> to vector<8x1xf32>
    %76 = vector.broadcast %75 : vector<8x1xf32> to vector<8x8xf32>
    %77 = arith.subf %73, %76 : vector<8x8xf32>
    %78 = math.exp %77 : vector<8x8xf32>
    %cst_27 = arith.constant dense<0.000000e+00> : vector<8xf32>
    %79 = vector.multi_reduction <add>, %78, %cst_27 [1] : vector<8x8xf32> to vector<8xf32>
    %80 = vector.shape_cast %79 : vector<8xf32> to vector<8x1xf32>
    %81 = tpu.reciprocal %80 {approx = true} : vector<8x1xf32> -> vector<8x1xf32>
    %82 = vector.broadcast %81 : vector<8x1xf32> to vector<8x8xf32>
    %83 = arith.mulf %78, %82 : vector<8x8xf32>
    %84 = arith.truncf %83 : vector<8x8xf32> to vector<8x8xbf16>
    %cst_28 = arith.constant dense<0.000000e+00> : vector<8x8xf32>
    %85 = tpu.matmul %84, %70, %cst_28 {dimension_numbers = #tpu.dot_dimension_numbers<[1], [0], [0], [1], [0, 0, 1, 1], [], []>} : vector<8x8xbf16>, vector<8x8xbf16>, vector<8x8xf32> -> vector<8x8xf32>
    %86 = arith.truncf %85 : vector<8x8xf32> to vector<8x8xbf16>
    %c16 = arith.constant 16 : index
    %c0_29 = arith.constant 0 : index
    %87 = vector.load %arg4[%c16, %c0_29] : memref<32x32xbf16, #tpu.memory_space<vmem>>, vector<8x32xbf16>
    %cst_30 = arith.constant dense<0.000000e+00> : vector<8x32xf32>
    %88 = tpu.matmul %86, %87, %cst_30 {dimension_numbers = #tpu.dot_dimension_numbers<[1], [0], [0], [1], [0, 0, 1, 1], [], []>} : vector<8x8xbf16>, vector<8x32xbf16>, vector<8x32xf32> -> vector<8x32xf32>
    %89 = arith.addf %64, %88 : vector<8x32xf32>
    %90 = vector.extract_strided_slice %8 {offsets = [0, 24], sizes = [8, 8], strides = [1, 1]} : vector<8x32xf32> to vector<8x8xf32>
    %91 = arith.truncf %90 : vector<8x8xf32> to vector<8x8xbf16>
    %92 = vector.extract_strided_slice %9 {offsets = [0, 24], sizes = [8, 8], strides = [1, 1]} : vector<8x32xf32> to vector<8x8xf32>
    %93 = arith.truncf %92 : vector<8x8xf32> to vector<8x8xbf16>
    %94 = vector.extract_strided_slice %10 {offsets = [0, 24], sizes = [8, 8], strides = [1, 1]} : vector<8x32xf32> to vector<8x8xf32>
    %95 = arith.truncf %94 : vector<8x8xf32> to vector<8x8xbf16>
    %cst_31 = arith.constant dense<0.000000e+00> : vector<8x8xf32>
    %96 = tpu.matmul %91, %93, %cst_31 {dimension_numbers = #tpu.dot_dimension_numbers<[1], [1], [0], [0], [0, 0, 1, 0], [], []>} : vector<8x8xbf16>, vector<8x8xbf16>, vector<8x8xf32> -> vector<8x8xf32>
    %cst_32 = arith.constant 0.353553385 : f32
    %97 = vector.broadcast %cst_32 : f32 to vector<8x8xf32>
    %98 = arith.mulf %96, %97 : vector<8x8xf32>
    %cst_33 = arith.constant dense<0xFF800000> : vector<8xf32>
    %99 = vector.multi_reduction <maximumf>, %98, %cst_33 [1] : vector<8x8xf32> to vector<8xf32>
    %100 = vector.shape_cast %99 : vector<8xf32> to vector<8x1xf32>
    %101 = vector.broadcast %100 : vector<8x1xf32> to vector<8x8xf32>
    %102 = arith.subf %98, %101 : vector<8x8xf32>
    %103 = math.exp %102 : vector<8x8xf32>
    %cst_34 = arith.constant dense<0.000000e+00> : vector<8xf32>
    %104 = vector.multi_reduction <add>, %103, %cst_34 [1] : vector<8x8xf32> to vector<8xf32>
    %105 = vector.shape_cast %104 : vector<8xf32> to vector<8x1xf32>
    %106 = tpu.reciprocal %105 {approx = true} : vector<8x1xf32> -> vector<8x1xf32>
    %107 = vector.broadcast %106 : vector<8x1xf32> to vector<8x8xf32>
    %108 = arith.mulf %103, %107 : vector<8x8xf32>
    %109 = arith.truncf %108 : vector<8x8xf32> to vector<8x8xbf16>
    %cst_35 = arith.constant dense<0.000000e+00> : vector<8x8xf32>
    %110 = tpu.matmul %109, %95, %cst_35 {dimension_numbers = #tpu.dot_dimension_numbers<[1], [0], [0], [1], [0, 0, 1, 1], [], []>} : vector<8x8xbf16>, vector<8x8xbf16>, vector<8x8xf32> -> vector<8x8xf32>
    %111 = arith.truncf %110 : vector<8x8xf32> to vector<8x8xbf16>
    %c24 = arith.constant 24 : index
    %c0_36 = arith.constant 0 : index
    %112 = vector.load %arg4[%c24, %c0_36] : memref<32x32xbf16, #tpu.memory_space<vmem>>, vector<8x32xbf16>
    %cst_37 = arith.constant dense<0.000000e+00> : vector<8x32xf32>
    %113 = tpu.matmul %111, %112, %cst_37 {dimension_numbers = #tpu.dot_dimension_numbers<[1], [0], [0], [1], [0, 0, 1, 1], [], []>} : vector<8x8xbf16>, vector<8x32xbf16>, vector<8x32xf32> -> vector<8x32xf32>
    %114 = arith.addf %89, %113 : vector<8x32xf32>
    %115 = arith.addf %114, %2 : vector<8x32xf32>
    %cst_38 = arith.constant dense<0.000000e+00> : vector<8xf32>
    %116 = vector.multi_reduction <add>, %115, %cst_38 [1] : vector<8x32xf32> to vector<8xf32>
    %117 = vector.shape_cast %116 : vector<8xf32> to vector<8x1xf32>
    %cst_39 = arith.constant 3.200000e+01 : f32
    %118 = vector.broadcast %cst_39 : f32 to vector<8x1xf32>
    %119 = arith.divf %117, %118 : vector<8x1xf32>
    %120 = vector.broadcast %119 : vector<8x1xf32> to vector<8x32xf32>
    %121 = arith.subf %115, %120 : vector<8x32xf32>
    %122 = arith.mulf %121, %121 : vector<8x32xf32>
    %cst_40 = arith.constant dense<0.000000e+00> : vector<8xf32>
    %123 = vector.multi_reduction <add>, %122, %cst_40 [1] : vector<8x32xf32> to vector<8xf32>
    %124 = vector.shape_cast %123 : vector<8xf32> to vector<8x1xf32>
    %cst_41 = arith.constant 3.100000e+01 : f32
    %125 = vector.broadcast %cst_41 : f32 to vector<8x1xf32>
    %126 = arith.divf %124, %125 : vector<8x1xf32>
    %c0_42 = arith.constant 0 : index
    %c0_43 = arith.constant 0 : index
    %127 = vector.load %arg6[%c0_42, %c0_43] : memref<1x32xf32, #tpu.memory_space<vmem>>, vector<1x32xf32>
    %128 = vector.broadcast %119 : vector<8x1xf32> to vector<8x32xf32>
    %129 = arith.subf %115, %128 : vector<8x32xf32>
    %130 = math.sqrt %126 : vector<8x1xf32>
    %cst_44 = arith.constant 9.99999997E-7 : f32
    %131 = vector.broadcast %cst_44 : f32 to vector<8x1xf32>
    %132 = arith.addf %130, %131 : vector<8x1xf32>
    %133 = vector.broadcast %132 : vector<8x1xf32> to vector<8x32xf32>
    %134 = arith.divf %129, %133 : vector<8x32xf32>
    %135 = vector.broadcast %127 : vector<1x32xf32> to vector<8x32xf32>
    %136 = arith.mulf %135, %134 : vector<8x32xf32>
    %c0_45 = arith.constant 0 : index
    %c0_46 = arith.constant 0 : index
    %137 = vector.load %arg7[%c0_45, %c0_46] : memref<1x32xf32, #tpu.memory_space<vmem>>, vector<1x32xf32>
    %138 = vector.broadcast %137 : vector<1x32xf32> to vector<8x32xf32>
    %139 = arith.addf %136, %138 : vector<8x32xf32>
    %140 = arith.truncf %139 : vector<8x32xf32> to vector<8x32xbf16>
    %c0_47 = arith.constant 0 : index
    %c0_48 = arith.constant 0 : index
    %141 = vector.load %arg8[%c0_47, %c0_48] : memref<32x64xbf16, #tpu.memory_space<vmem>>, vector<32x64xbf16>
    %cst_49 = arith.constant dense<0.000000e+00> : vector<8x64xf32>
    %142 = tpu.matmul %140, %141, %cst_49 {dimension_numbers = #tpu.dot_dimension_numbers<[1], [0], [0], [1], [0, 0, 1, 1], [], []>} : vector<8x32xbf16>, vector<32x64xbf16>, vector<8x64xf32> -> vector<8x64xf32>
    %c0_50 = arith.constant 0 : index
    %c0_51 = arith.constant 0 : index
    %143 = vector.load %arg9[%c0_50, %c0_51] : memref<1x64xf32, #tpu.memory_space<vmem>>, vector<1x64xf32>
    %144 = vector.broadcast %143 : vector<1x64xf32> to vector<8x64xf32>
    %145 = arith.addf %142, %144 : vector<8x64xf32>
    %cst_52 = arith.constant 0.000000e+00 : f32
    %146 = vector.broadcast %cst_52 : f32 to vector<8x64xf32>
    %147 = arith.maximumf %145, %146 : vector<8x64xf32>
    %148 = arith.truncf %147 : vector<8x64xf32> to vector<8x64xbf16>
    %c0_53 = arith.constant 0 : index
    %c0_54 = arith.constant 0 : index
    %149 = vector.load %arg10[%c0_53, %c0_54] : memref<64x32xbf16, #tpu.memory_space<vmem>>, vector<64x32xbf16>
    %cst_55 = arith.constant dense<0.000000e+00> : vector<8x32xf32>
    %150 = tpu.matmul %148, %149, %cst_55 {dimension_numbers = #tpu.dot_dimension_numbers<[1], [0], [0], [1], [0, 0, 1, 1], [], []>} : vector<8x64xbf16>, vector<64x32xbf16>, vector<8x32xf32> -> vector<8x32xf32>
    %c0_56 = arith.constant 0 : index
    %c0_57 = arith.constant 0 : index
    %151 = vector.load %arg11[%c0_56, %c0_57] : memref<1x32xf32, #tpu.memory_space<vmem>>, vector<1x32xf32>
    %152 = vector.broadcast %151 : vector<1x32xf32> to vector<8x32xf32>
    %153 = arith.addf %150, %152 : vector<8x32xf32>
    %154 = arith.addf %153, %139 : vector<8x32xf32>
    %cst_58 = arith.constant dense<0.000000e+00> : vector<8xf32>
    %155 = vector.multi_reduction <add>, %154, %cst_58 [1] : vector<8x32xf32> to vector<8xf32>
    %156 = vector.shape_cast %155 : vector<8xf32> to vector<8x1xf32>
    %cst_59 = arith.constant 3.200000e+01 : f32
    %157 = vector.broadcast %cst_59 : f32 to vector<8x1xf32>
    %158 = arith.divf %156, %157 : vector<8x1xf32>
    %159 = vector.broadcast %158 : vector<8x1xf32> to vector<8x32xf32>
    %160 = arith.subf %154, %159 : vector<8x32xf32>
    %161 = arith.mulf %160, %160 : vector<8x32xf32>
    %cst_60 = arith.constant dense<0.000000e+00> : vector<8xf32>
    %162 = vector.multi_reduction <add>, %161, %cst_60 [1] : vector<8x32xf32> to vector<8xf32>
    %163 = vector.shape_cast %162 : vector<8xf32> to vector<8x1xf32>
    %cst_61 = arith.constant 3.100000e+01 : f32
    %164 = vector.broadcast %cst_61 : f32 to vector<8x1xf32>
    %165 = arith.divf %163, %164 : vector<8x1xf32>
    %c0_62 = arith.constant 0 : index
    %c0_63 = arith.constant 0 : index
    %166 = vector.load %arg12[%c0_62, %c0_63] : memref<1x32xf32, #tpu.memory_space<vmem>>, vector<1x32xf32>
    %167 = vector.broadcast %158 : vector<8x1xf32> to vector<8x32xf32>
    %168 = arith.subf %154, %167 : vector<8x32xf32>
    %169 = math.sqrt %165 : vector<8x1xf32>
    %cst_64 = arith.constant 9.99999997E-7 : f32
    %170 = vector.broadcast %cst_64 : f32 to vector<8x1xf32>
    %171 = arith.addf %169, %170 : vector<8x1xf32>
    %172 = vector.broadcast %171 : vector<8x1xf32> to vector<8x32xf32>
    %173 = arith.divf %168, %172 : vector<8x32xf32>
    %174 = vector.broadcast %166 : vector<1x32xf32> to vector<8x32xf32>
    %175 = arith.mulf %174, %173 : vector<8x32xf32>
    %c0_65 = arith.constant 0 : index
    %c0_66 = arith.constant 0 : index
    %176 = vector.load %arg13[%c0_65, %c0_66] : memref<1x32xf32, #tpu.memory_space<vmem>>, vector<1x32xf32>
    %177 = vector.broadcast %176 : vector<1x32xf32> to vector<8x32xf32>
    %178 = arith.addf %175, %177 : vector<8x32xf32>
    %179 = arith.truncf %178 : vector<8x32xf32> to vector<8x32xbf16>
    %c0_67 = arith.constant 0 : index
    %c0_68 = arith.constant 0 : index
    %c0_69 = arith.constant 0 : index
    %180 = vector.load %arg14[%c0_67, %c0_68, %c0_69] : memref<1x8x32xbf16, #tpu.memory_space<vmem>>, vector<1x8x32xbf16>
    %181 = vector.shape_cast %180 : vector<1x8x32xbf16> to vector<8x32xbf16>
    %182 = vector.shape_cast %179 : vector<8x32xbf16> to vector<1x8x32xbf16>
    tpu.vector_store %arg14[%c0_67, %c0_68, %c0_69], %182 {strides = array<i32>} : memref<1x8x32xbf16, #tpu.memory_space<vmem>>, vector<1x8x32xbf16>,
    return
  }
  func.func @transform_0(%arg0: i32) -> (i32, i32, i32) {
    %c0_i32 = arith.constant 0 : i32
    %c0_i32_0 = arith.constant 0 : i32
    %c0_i32_1 = arith.constant 0 : i32
    return %arg0, %c0_i32, %c0_i32_0 : i32, i32, i32
  }
  func.func @transform_1(%arg0: i32) -> (i32, i32) {
    %c0_i32 = arith.constant 0 : i32
    %c0_i32_0 = arith.constant 0 : i32
    %c0_i32_1 = arith.constant 0 : i32
    return %c0_i32, %c0_i32_0 : i32, i32
  }
  func.func @transform_2(%arg0: i32) -> (i32, i32) {
    %c0_i32 = arith.constant 0 : i32
    %c0_i32_0 = arith.constant 0 : i32
    %c0_i32_1 = arith.constant 0 : i32
    return %c0_i32, %c0_i32_0 : i32, i32
  }
  func.func @transform_3(%arg0: i32) -> (i32, i32) {
    %c0_i32 = arith.constant 0 : i32
    %c0_i32_0 = arith.constant 0 : i32
    %c0_i32_1 = arith.constant 0 : i32
    return %c0_i32, %c0_i32_0 : i32, i32
  }
  func.func @transform_4(%arg0: i32) -> (i32, i32) {
    %c0_i32 = arith.constant 0 : i32
    %c0_i32_0 = arith.constant 0 : i32
    %c0_i32_1 = arith.constant 0 : i32
    return %c0_i32, %c0_i32_0 : i32, i32
  }
  func.func @transform_5(%arg0: i32) -> (i32, i32) {
    %c0_i32 = arith.constant 0 : i32
    %c0_i32_0 = arith.constant 0 : i32
    %c0_i32_1 = arith.constant 0 : i32
    return %c0_i32, %c0_i32_0 : i32, i32
  }
  func.func @transform_6(%arg0: i32) -> (i32, i32) {
    %c0_i32 = arith.constant 0 : i32
    %c0_i32_0 = arith.constant 0 : i32
    %c0_i32_1 = arith.constant 0 : i32
    return %c0_i32, %c0_i32_0 : i32, i32
  }
  func.func @transform_7(%arg0: i32) -> (i32, i32) {
    %c0_i32 = arith.constant 0 : i32
    %c0_i32_0 = arith.constant 0 : i32
    %c0_i32_1 = arith.constant 0 : i32
    return %c0_i32, %c0_i32_0 : i32, i32
  }
  func.func @transform_8(%arg0: i32) -> (i32, i32) {
    %c0_i32 = arith.constant 0 : i32
    %c0_i32_0 = arith.constant 0 : i32
    %c0_i32_1 = arith.constant 0 : i32
    return %c0_i32, %c0_i32_0 : i32, i32
  }
  func.func @transform_9(%arg0: i32) -> (i32, i32) {
    %c0_i32 = arith.constant 0 : i32
    %c0_i32_0 = arith.constant 0 : i32
    %c0_i32_1 = arith.constant 0 : i32
    return %c0_i32, %c0_i32_0 : i32, i32
  }
  func.func @transform_10(%arg0: i32) -> (i32, i32) {
    %c0_i32 = arith.constant 0 : i32
    %c0_i32_0 = arith.constant 0 : i32
    %c0_i32_1 = arith.constant 0 : i32
    return %c0_i32, %c0_i32_0 : i32, i32
  }
  func.func @transform_11(%arg0: i32) -> (i32, i32) {
    %c0_i32 = arith.constant 0 : i32
    %c0_i32_0 = arith.constant 0 : i32
    %c0_i32_1 = arith.constant 0 : i32
    return %c0_i32, %c0_i32_0 : i32, i32
  }
  func.func @transform_12(%arg0: i32) -> (i32, i32) {
    %c0_i32 = arith.constant 0 : i32
    %c0_i32_0 = arith.constant 0 : i32
    %c0_i32_1 = arith.constant 0 : i32
    return %c0_i32, %c0_i32_0 : i32, i32
  }
  func.func @transform_13(%arg0: i32) -> (i32, i32, i32) {
    %c0_i32 = arith.constant 0 : i32
    %c0_i32_0 = arith.constant 0 : i32
    %c0_i32_1 = arith.constant 0 : i32
    return %arg0, %c0_i32, %c0_i32_0 : i32, i32, i32
  }
}

module attributes {stable_mosaic.version = 11 : i64} {
  func.func @_proj_kernel(%arg0: i32, %arg1: memref<16x32xbf16, #tpu.memory_space<vmem>>, %arg2: memref<32x13xbf16, #tpu.memory_space<vmem>>, %arg3: memref<16x13xf32, #tpu.memory_space<vmem>>) attributes {dimension_semantics = [#tpu.dimension_semantics<arbitrary>], iteration_bounds = array<i64: 1>, scalar_prefetch = 0 : i64, scratch_operands = 0 : i64, tpu.core_type = #tpu.core_type<tc>, window_params = [{pipeline_mode = #tpu.pipeline_mode<synchronous>, transform_indices = @transform_0, window_bounds = array<i64: 16, 32>}, {pipeline_mode = #tpu.pipeline_mode<synchronous>, transform_indices = @transform_1, window_bounds = array<i64: 32, 13>}, {pipeline_mode = #tpu.pipeline_mode<synchronous>, transform_indices = @transform_2, window_bounds = array<i64: 16, 13>}]} {
    %c0 = arith.constant 0 : index
    %c0_0 = arith.constant 0 : index
    %0 = vector.load %arg1[%c0, %c0_0] : memref<16x32xbf16, #tpu.memory_space<vmem>>, vector<16x32xbf16>
    %c0_1 = arith.constant 0 : index
    %c0_2 = arith.constant 0 : index
    %1 = vector.load %arg2[%c0_1, %c0_2] : memref<32x13xbf16, #tpu.memory_space<vmem>>, vector<32x13xbf16>
    %cst = arith.constant dense<0.000000e+00> : vector<16x13xf32>
    %2 = tpu.matmul %0, %1, %cst {dimension_numbers = #tpu.dot_dimension_numbers<[1], [0], [0], [1], [0, 0, 1, 1], [], []>} : vector<16x32xbf16>, vector<32x13xbf16>, vector<16x13xf32> -> vector<16x13xf32>
    %c0_3 = arith.constant 0 : index
    %c0_4 = arith.constant 0 : index
    %3 = vector.load %arg3[%c0_3, %c0_4] : memref<16x13xf32, #tpu.memory_space<vmem>>, vector<16x13xf32>
    tpu.vector_store %arg3[%c0_3, %c0_4], %2 {strides = array<i32>} : memref<16x13xf32, #tpu.memory_space<vmem>>, vector<16x13xf32>,
    return
  }
  func.func @transform_0(%arg0: i32) -> (i32, i32) {
    %c0_i32 = arith.constant 0 : i32
    %c0_i32_0 = arith.constant 0 : i32
    %c0_i32_1 = arith.constant 0 : i32
    return %c0_i32, %c0_i32_0 : i32, i32
  }
  func.func @transform_1(%arg0: i32) -> (i32, i32) {
    %c0_i32 = arith.constant 0 : i32
    %c0_i32_0 = arith.constant 0 : i32
    %c0_i32_1 = arith.constant 0 : i32
    return %c0_i32, %c0_i32_0 : i32, i32
  }
  func.func @transform_2(%arg0: i32) -> (i32, i32) {
    %c0_i32 = arith.constant 0 : i32
    %c0_i32_0 = arith.constant 0 : i32
    %c0_i32_1 = arith.constant 0 : i32
    return %c0_i32, %c0_i32_0 : i32, i32
  }
}

module attributes {stable_mosaic.version = 11 : i64} {
  func.func @_decoder_layer_kernel(%arg0: i32, %arg1: memref<1x8x32xbf16, #tpu.memory_space<vmem>>, %arg2: memref<1x8x32xbf16, #tpu.memory_space<vmem>>, %arg3: memref<1x1x8xf32, #tpu.memory_space<vmem>>, %arg4: memref<1x1x8xf32, #tpu.memory_space<vmem>>, %arg5: memref<32x96xbf16, #tpu.memory_space<vmem>>, %arg6: memref<1x96xf32, #tpu.memory_space<vmem>>, %arg7: memref<32x32xbf16, #tpu.memory_space<vmem>>, %arg8: memref<1x32xf32, #tpu.memory_space<vmem>>, %arg9: memref<1x32xf32, #tpu.memory_space<vmem>>, %arg10: memref<1x32xf32, #tpu.memory_space<vmem>>, %arg11: memref<32x32xbf16, #tpu.memory_space<vmem>>, %arg12: memref<1x32xf32, #tpu.memory_space<vmem>>, %arg13: memref<32x64xbf16, #tpu.memory_space<vmem>>, %arg14: memref<1x64xf32, #tpu.memory_space<vmem>>, %arg15: memref<32x32xbf16, #tpu.memory_space<vmem>>, %arg16: memref<1x32xf32, #tpu.memory_space<vmem>>, %arg17: memref<1x32xf32, #tpu.memory_space<vmem>>, %arg18: memref<1x32xf32, #tpu.memory_space<vmem>>, %arg19: memref<32x64xbf16, #tpu.memory_space<vmem>>, %arg20: memref<1x64xf32, #tpu.memory_space<vmem>>, %arg21: memref<64x32xbf16, #tpu.memory_space<vmem>>, %arg22: memref<1x32xf32, #tpu.memory_space<vmem>>, %arg23: memref<1x32xf32, #tpu.memory_space<vmem>>, %arg24: memref<1x32xf32, #tpu.memory_space<vmem>>, %arg25: memref<1x8x32xbf16, #tpu.memory_space<vmem>>) attributes {dimension_semantics = [#tpu.dimension_semantics<parallel>], iteration_bounds = array<i64: 2>, scalar_prefetch = 0 : i64, scratch_operands = 0 : i64, tpu.core_type = #tpu.core_type<tc>, window_params = [{transform_indices = @transform_0, window_bounds = array<i64: 1, 8, 32>}, {transform_indices = @transform_1, window_bounds = array<i64: 1, 8, 32>}, {transform_indices = @transform_2, window_bounds = array<i64: 1, 1, 8>}, {transform_indices = @transform_3, window_bounds = array<i64: 1, 1, 8>}, {pipeline_mode = #tpu.pipeline_mode<synchronous>, transform_indices = @transform_4, window_bounds = array<i64: 32, 96>}, {pipeline_mode = #tpu.pipeline_mode<synchronous>, transform_indices = @transform_5, window_bounds = array<i64: 1, 96>}, {pipeline_mode = #tpu.pipeline_mode<synchronous>, transform_indices = @transform_6, window_bounds = array<i64: 32, 32>}, {pipeline_mode = #tpu.pipeline_mode<synchronous>, transform_indices = @transform_7, window_bounds = array<i64: 1, 32>}, {pipeline_mode = #tpu.pipeline_mode<synchronous>, transform_indices = @transform_8, window_bounds = array<i64: 1, 32>}, {pipeline_mode = #tpu.pipeline_mode<synchronous>, transform_indices = @transform_9, window_bounds = array<i64: 1, 32>}, {pipeline_mode = #tpu.pipeline_mode<synchronous>, transform_indices = @transform_10, window_bounds = array<i64: 32, 32>}, {pipeline_mode = #tpu.pipeline_mode<synchronous>, transform_indices = @transform_11, window_bounds = array<i64: 1, 32>}, {pipeline_mode = #tpu.pipeline_mode<synchronous>, transform_indices = @transform_12, window_bounds = array<i64: 32, 64>}, {pipeline_mode = #tpu.pipeline_mode<synchronous>, transform_indices = @transform_13, window_bounds = array<i64: 1, 64>}, {pipeline_mode = #tpu.pipeline_mode<synchronous>, transform_indices = @transform_14, window_bounds = array<i64: 32, 32>}, {pipeline_mode = #tpu.pipeline_mode<synchronous>, transform_indices = @transform_15, window_bounds = array<i64: 1, 32>}, {pipeline_mode = #tpu.pipeline_mode<synchronous>, transform_indices = @transform_16, window_bounds = array<i64: 1, 32>}, {pipeline_mode = #tpu.pipeline_mode<synchronous>, transform_indices = @transform_17, window_bounds = array<i64: 1, 32>}, {pipeline_mode = #tpu.pipeline_mode<synchronous>, transform_indices = @transform_18, window_bounds = array<i64: 32, 64>}, {pipeline_mode = #tpu.pipeline_mode<synchronous>, transform_indices = @transform_19, window_bounds = array<i64: 1, 64>}, {pipeline_mode = #tpu.pipeline_mode<synchronous>, transform_indices = @transform_20, window_bounds = array<i64: 64, 32>}, {pipeline_mode = #tpu.pipeline_mode<synchronous>, transform_indices = @transform_21, window_bounds = array<i64: 1, 32>}, {pipeline_mode = #tpu.pipeline_mode<synchronous>, transform_indices = @transform_22, window_bounds = array<i64: 1, 32>}, {pipeline_mode = #tpu.pipeline_mode<synchronous>, transform_indices = @transform_23, window_bounds = array<i64: 1, 32>}, {transform_indices = @transform_24, window_bounds = array<i64: 1, 8, 32>}]} {
    %c0 = arith.constant 0 : index
    %c0_0 = arith.constant 0 : index
    %c0_1 = arith.constant 0 : index
    %0 = vector.load %arg1[%c0, %c0_0, %c0_1] : memref<1x8x32xbf16, #tpu.memory_space<vmem>>, vector<1x8x32xbf16>
    %1 = vector.shape_cast %0 : vector<1x8x32xbf16> to vector<8x32xbf16>
    %2 = arith.extf %1 : vector<8x32xbf16> to vector<8x32xf32>
    %c0_2 = arith.constant 0 : index
    %c0_3 = arith.constant 0 : index
    %c0_4 = arith.constant 0 : index
    %3 = vector.load %arg2[%c0_2, %c0_3, %c0_4] : memref<1x8x32xbf16, #tpu.memory_space<vmem>>, vector<1x8x32xbf16>
    %4 = vector.shape_cast %3 : vector<1x8x32xbf16> to vector<8x32xbf16>
    %5 = tpu.iota {dimensions = array<i32: 0>} : vector<8x8xi32>
    %6 = tpu.iota {dimensions = array<i32: 1>} : vector<8x8xi32>
    %c0_5 = arith.constant 0 : index
    %c0_6 = arith.constant 0 : index
    %c0_7 = arith.constant 0 : index
    %7 = vector.load %arg3[%c0_5, %c0_6, %c0_7] : memref<1x1x8xf32, #tpu.memory_space<vmem>>, vector<1x1x8xf32>
    %8 = vector.shape_cast %7 : vector<1x1x8xf32> to vector<1x8xf32>
    %cst = arith.constant 5.000000e-01 : f32
    %9 = vector.broadcast %cst : f32 to vector<1x8xf32>
    %10 = arith.cmpf ogt, %8, %9 : vector<1x8xf32>
    %11 = arith.cmpi sgt, %6, %5 : vector<8x8xi32>
    %12 = vector.broadcast %10 : vector<1x8xi1> to vector<8x8xi1>
    %13 = arith.ori %12, %11 : vector<8x8xi1>
    %c0_8 = arith.constant 0 : index
    %c0_9 = arith.constant 0 : index
    %c0_10 = arith.constant 0 : index
    %14 = vector.load %arg4[%c0_8, %c0_9, %c0_10] : memref<1x1x8xf32, #tpu.memory_space<vmem>>, vector<1x1x8xf32>
    %15 = vector.shape_cast %14 : vector<1x1x8xf32> to vector<1x8xf32>
    %cst_11 = arith.constant 5.000000e-01 : f32
    %16 = vector.broadcast %cst_11 : f32 to vector<1x8xf32>
    %17 = arith.cmpf ogt, %15, %16 : vector<1x8xf32>
    %c0_12 = arith.constant 0 : index
    %c0_13 = arith.constant 0 : index
    %18 = vector.load %arg5[%c0_12, %c0_13] : memref<32x96xbf16, #tpu.memory_space<vmem>>, vector<32x96xbf16>
    %cst_14 = arith.constant dense<0.000000e+00> : vector<8x96xf32>
    %19 = tpu.matmul %1, %18, %cst_14 {dimension_numbers = #tpu.dot_dimension_numbers<[1], [0], [0], [1], [0, 0, 1, 1], [], []>} : vector<8x32xbf16>, vector<32x96xbf16>, vector<8x96xf32> -> vector<8x96xf32>
    %c0_15 = arith.constant 0 : index
    %c0_16 = arith.constant 0 : index
    %20 = vector.load %arg6[%c0_15, %c0_16] : memref<1x96xf32, #tpu.memory_space<vmem>>, vector<1x96xf32>
    %21 = vector.broadcast %20 : vector<1x96xf32> to vector<8x96xf32>
    %22 = arith.addf %19, %21 : vector<8x96xf32>
    %23 = vector.extract_strided_slice %22 {offsets = [0, 0], sizes = [8, 32], strides = [1, 1]} : vector<8x96xf32> to vector<8x32xf32>
    %24 = vector.extract_strided_slice %22 {offsets = [0, 32], sizes = [8, 32], strides = [1, 1]} : vector<8x96xf32> to vector<8x32xf32>
    %25 = vector.extract_strided_slice %22 {offsets = [0, 64], sizes = [8, 32], strides = [1, 1]} : vector<8x96xf32> to vector<8x32xf32>
    %cst_17 = arith.constant 0.000000e+00 : f32
    %26 = vector.broadcast %cst_17 : f32 to vector<8x32xf32>
    %c0_18 = arith.constant 0 : index
    %c0_19 = arith.constant 0 : index
    %27 = vector.load %arg8[%c0_18, %c0_19] : memref<1x32xf32, #tpu.memory_space<vmem>>, vector<1x32xf32>
    %28 = vector.broadcast %27 : vector<1x32xf32> to vector<8x32xf32>
    %29 = arith.addf %26, %28 : vector<8x32xf32>
    %30 = vector.extract_strided_slice %23 {offsets = [0, 0], sizes = [8, 8], strides = [1, 1]} : vector<8x32xf32> to vector<8x8xf32>
    %31 = arith.truncf %30 : vector<8x8xf32> to vector<8x8xbf16>
    %32 = vector.extract_strided_slice %24 {offsets = [0, 0], sizes = [8, 8], strides = [1, 1]} : vector<8x32xf32> to vector<8x8xf32>
    %33 = arith.truncf %32 : vector<8x8xf32> to vector<8x8xbf16>
    %34 = vector.extract_strided_slice %25 {offsets = [0, 0], sizes = [8, 8], strides = [1, 1]} : vector<8x32xf32> to vector<8x8xf32>
    %35 = arith.truncf %34 : vector<8x8xf32> to vector<8x8xbf16>
    %cst_20 = arith.constant dense<0.000000e+00> : vector<8x8xf32>
    %36 = tpu.matmul %31, %33, %cst_20 {dimension_numbers = #tpu.dot_dimension_numbers<[1], [1], [0], [0], [0, 0, 1, 0], [], []>} : vector<8x8xbf16>, vector<8x8xbf16>, vector<8x8xf32> -> vector<8x8xf32>
    %cst_21 = arith.constant 0.353553385 : f32
    %37 = vector.broadcast %cst_21 : f32 to vector<8x8xf32>
    %38 = arith.mulf %36, %37 : vector<8x8xf32>
    %cst_22 = arith.constant -1.000000e+09 : f32
    %39 = vector.broadcast %cst_22 : f32 to vector<8x8xf32>
    %40 = arith.select %13, %39, %38 : vector<8x8xi1>, vector<8x8xf32>
    %cst_23 = arith.constant dense<0xFF800000> : vector<8xf32>
    %41 = vector.multi_reduction <maximumf>, %40, %cst_23 [1] : vector<8x8xf32> to vector<8xf32>
    %42 = vector.shape_cast %41 : vector<8xf32> to vector<8x1xf32>
    %43 = vector.broadcast %42 : vector<8x1xf32> to vector<8x8xf32>
    %44 = arith.subf %40, %43 : vector<8x8xf32>
    %45 = math.exp %44 : vector<8x8xf32>
    %cst_24 = arith.constant dense<0.000000e+00> : vector<8xf32>
    %46 = vector.multi_reduction <add>, %45, %cst_24 [1] : vector<8x8xf32> to vector<8xf32>
    %47 = vector.shape_cast %46 : vector<8xf32> to vector<8x1xf32>
    %48 = tpu.reciprocal %47 {approx = true} : vector<8x1xf32> -> vector<8x1xf32>
    %49 = vector.broadcast %48 : vector<8x1xf32> to vector<8x8xf32>
    %50 = arith.mulf %45, %49 : vector<8x8xf32>
    %51 = arith.truncf %50 : vector<8x8xf32> to vector<8x8xbf16>
    %cst_25 = arith.constant dense<0.000000e+00> : vector<8x8xf32>
    %52 = tpu.matmul %51, %35, %cst_25 {dimension_numbers = #tpu.dot_dimension_numbers<[1], [0], [0], [1], [0, 0, 1, 1], [], []>} : vector<8x8xbf16>, vector<8x8xbf16>, vector<8x8xf32> -> vector<8x8xf32>
    %53 = arith.truncf %52 : vector<8x8xf32> to vector<8x8xbf16>
    %c0_26 = arith.constant 0 : index
    %c0_27 = arith.constant 0 : index
    %54 = vector.load %arg7[%c0_26, %c0_27] : memref<32x32xbf16, #tpu.memory_space<vmem>>, vector<8x32xbf16>
    %cst_28 = arith.constant dense<0.000000e+00> : vector<8x32xf32>
    %55 = tpu.matmul %53, %54, %cst_28 {dimension_numbers = #tpu.dot_dimension_numbers<[1], [0], [0], [1], [0, 0, 1, 1], [], []>} : vector<8x8xbf16>, vector<8x32xbf16>, vector<8x32xf32> -> vector<8x32xf32>
    %56 = arith.addf %29, %55 : vector<8x32xf32>
    %57 = vector.extract_strided_slice %23 {offsets = [0, 8], sizes = [8, 8], strides = [1, 1]} : vector<8x32xf32> to vector<8x8xf32>
    %58 = arith.truncf %57 : vector<8x8xf32> to vector<8x8xbf16>
    %59 = vector.extract_strided_slice %24 {offsets = [0, 8], sizes = [8, 8], strides = [1, 1]} : vector<8x32xf32> to vector<8x8xf32>
    %60 = arith.truncf %59 : vector<8x8xf32> to vector<8x8xbf16>
    %61 = vector.extract_strided_slice %25 {offsets = [0, 8], sizes = [8, 8], strides = [1, 1]} : vector<8x32xf32> to vector<8x8xf32>
    %62 = arith.truncf %61 : vector<8x8xf32> to vector<8x8xbf16>
    %cst_29 = arith.constant dense<0.000000e+00> : vector<8x8xf32>
    %63 = tpu.matmul %58, %60, %cst_29 {dimension_numbers = #tpu.dot_dimension_numbers<[1], [1], [0], [0], [0, 0, 1, 0], [], []>} : vector<8x8xbf16>, vector<8x8xbf16>, vector<8x8xf32> -> vector<8x8xf32>
    %cst_30 = arith.constant 0.353553385 : f32
    %64 = vector.broadcast %cst_30 : f32 to vector<8x8xf32>
    %65 = arith.mulf %63, %64 : vector<8x8xf32>
    %cst_31 = arith.constant -1.000000e+09 : f32
    %66 = vector.broadcast %cst_31 : f32 to vector<8x8xf32>
    %67 = arith.select %13, %66, %65 : vector<8x8xi1>, vector<8x8xf32>
    %cst_32 = arith.constant dense<0xFF800000> : vector<8xf32>
    %68 = vector.multi_reduction <maximumf>, %67, %cst_32 [1] : vector<8x8xf32> to vector<8xf32>
    %69 = vector.shape_cast %68 : vector<8xf32> to vector<8x1xf32>
    %70 = vector.broadcast %69 : vector<8x1xf32> to vector<8x8xf32>
    %71 = arith.subf %67, %70 : vector<8x8xf32>
    %72 = math.exp %71 : vector<8x8xf32>
    %cst_33 = arith.constant dense<0.000000e+00> : vector<8xf32>
    %73 = vector.multi_reduction <add>, %72, %cst_33 [1] : vector<8x8xf32> to vector<8xf32>
    %74 = vector.shape_cast %73 : vector<8xf32> to vector<8x1xf32>
    %75 = tpu.reciprocal %74 {approx = true} : vector<8x1xf32> -> vector<8x1xf32>
    %76 = vector.broadcast %75 : vector<8x1xf32> to vector<8x8xf32>
    %77 = arith.mulf %72, %76 : vector<8x8xf32>
    %78 = arith.truncf %77 : vector<8x8xf32> to vector<8x8xbf16>
    %cst_34 = arith.constant dense<0.000000e+00> : vector<8x8xf32>
    %79 = tpu.matmul %78, %62, %cst_34 {dimension_numbers = #tpu.dot_dimension_numbers<[1], [0], [0], [1], [0, 0, 1, 1], [], []>} : vector<8x8xbf16>, vector<8x8xbf16>, vector<8x8xf32> -> vector<8x8xf32>
    %80 = arith.truncf %79 : vector<8x8xf32> to vector<8x8xbf16>
    %c8 = arith.constant 8 : index
    %c0_35 = arith.constant 0 : index
    %81 = vector.load %arg7[%c8, %c0_35] : memref<32x32xbf16, #tpu.memory_space<vmem>>, vector<8x32xbf16>
    %cst_36 = arith.constant dense<0.000000e+00> : vector<8x32xf32>
    %82 = tpu.matmul %80, %81, %cst_36 {dimension_numbers = #tpu.dot_dimension_numbers<[1], [0], [0], [1], [0, 0, 1, 1], [], []>} : vector<8x8xbf16>, vector<8x32xbf16>, vector<8x32xf32> -> vector<8x32xf32>
    %83 = arith.addf %56, %82 : vector<8x32xf32>
    %84 = vector.extract_strided_slice %23 {offsets = [0, 16], sizes = [8, 8], strides = [1, 1]} : vector<8x32xf32> to vector<8x8xf32>
    %85 = arith.truncf %84 : vector<8x8xf32> to vector<8x8xbf16>
    %86 = vector.extract_strided_slice %24 {offsets = [0, 16], sizes = [8, 8], strides = [1, 1]} : vector<8x32xf32> to vector<8x8xf32>
    %87 = arith.truncf %86 : vector<8x8xf32> to vector<8x8xbf16>
    %88 = vector.extract_strided_slice %25 {offsets = [0, 16], sizes = [8, 8], strides = [1, 1]} : vector<8x32xf32> to vector<8x8xf32>
    %89 = arith.truncf %88 : vector<8x8xf32> to vector<8x8xbf16>
    %cst_37 = arith.constant dense<0.000000e+00> : vector<8x8xf32>
    %90 = tpu.matmul %85, %87, %cst_37 {dimension_numbers = #tpu.dot_dimension_numbers<[1], [1], [0], [0], [0, 0, 1, 0], [], []>} : vector<8x8xbf16>, vector<8x8xbf16>, vector<8x8xf32> -> vector<8x8xf32>
    %cst_38 = arith.constant 0.353553385 : f32
    %91 = vector.broadcast %cst_38 : f32 to vector<8x8xf32>
    %92 = arith.mulf %90, %91 : vector<8x8xf32>
    %cst_39 = arith.constant -1.000000e+09 : f32
    %93 = vector.broadcast %cst_39 : f32 to vector<8x8xf32>
    %94 = arith.select %13, %93, %92 : vector<8x8xi1>, vector<8x8xf32>
    %cst_40 = arith.constant dense<0xFF800000> : vector<8xf32>
    %95 = vector.multi_reduction <maximumf>, %94, %cst_40 [1] : vector<8x8xf32> to vector<8xf32>
    %96 = vector.shape_cast %95 : vector<8xf32> to vector<8x1xf32>
    %97 = vector.broadcast %96 : vector<8x1xf32> to vector<8x8xf32>
    %98 = arith.subf %94, %97 : vector<8x8xf32>
    %99 = math.exp %98 : vector<8x8xf32>
    %cst_41 = arith.constant dense<0.000000e+00> : vector<8xf32>
    %100 = vector.multi_reduction <add>, %99, %cst_41 [1] : vector<8x8xf32> to vector<8xf32>
    %101 = vector.shape_cast %100 : vector<8xf32> to vector<8x1xf32>
    %102 = tpu.reciprocal %101 {approx = true} : vector<8x1xf32> -> vector<8x1xf32>
    %103 = vector.broadcast %102 : vector<8x1xf32> to vector<8x8xf32>
    %104 = arith.mulf %99, %103 : vector<8x8xf32>
    %105 = arith.truncf %104 : vector<8x8xf32> to vector<8x8xbf16>
    %cst_42 = arith.constant dense<0.000000e+00> : vector<8x8xf32>
    %106 = tpu.matmul %105, %89, %cst_42 {dimension_numbers = #tpu.dot_dimension_numbers<[1], [0], [0], [1], [0, 0, 1, 1], [], []>} : vector<8x8xbf16>, vector<8x8xbf16>, vector<8x8xf32> -> vector<8x8xf32>
    %107 = arith.truncf %106 : vector<8x8xf32> to vector<8x8xbf16>
    %c16 = arith.constant 16 : index
    %c0_43 = arith.constant 0 : index
    %108 = vector.load %arg7[%c16, %c0_43] : memref<32x32xbf16, #tpu.memory_space<vmem>>, vector<8x32xbf16>
    %cst_44 = arith.constant dense<0.000000e+00> : vector<8x32xf32>
    %109 = tpu.matmul %107, %108, %cst_44 {dimension_numbers = #tpu.dot_dimension_numbers<[1], [0], [0], [1], [0, 0, 1, 1], [], []>} : vector<8x8xbf16>, vector<8x32xbf16>, vector<8x32xf32> -> vector<8x32xf32>
    %110 = arith.addf %83, %109 : vector<8x32xf32>
    %111 = vector.extract_strided_slice %23 {offsets = [0, 24], sizes = [8, 8], strides = [1, 1]} : vector<8x32xf32> to vector<8x8xf32>
    %112 = arith.truncf %111 : vector<8x8xf32> to vector<8x8xbf16>
    %113 = vector.extract_strided_slice %24 {offsets = [0, 24], sizes = [8, 8], strides = [1, 1]} : vector<8x32xf32> to vector<8x8xf32>
    %114 = arith.truncf %113 : vector<8x8xf32> to vector<8x8xbf16>
    %115 = vector.extract_strided_slice %25 {offsets = [0, 24], sizes = [8, 8], strides = [1, 1]} : vector<8x32xf32> to vector<8x8xf32>
    %116 = arith.truncf %115 : vector<8x8xf32> to vector<8x8xbf16>
    %cst_45 = arith.constant dense<0.000000e+00> : vector<8x8xf32>
    %117 = tpu.matmul %112, %114, %cst_45 {dimension_numbers = #tpu.dot_dimension_numbers<[1], [1], [0], [0], [0, 0, 1, 0], [], []>} : vector<8x8xbf16>, vector<8x8xbf16>, vector<8x8xf32> -> vector<8x8xf32>
    %cst_46 = arith.constant 0.353553385 : f32
    %118 = vector.broadcast %cst_46 : f32 to vector<8x8xf32>
    %119 = arith.mulf %117, %118 : vector<8x8xf32>
    %cst_47 = arith.constant -1.000000e+09 : f32
    %120 = vector.broadcast %cst_47 : f32 to vector<8x8xf32>
    %121 = arith.select %13, %120, %119 : vector<8x8xi1>, vector<8x8xf32>
    %cst_48 = arith.constant dense<0xFF800000> : vector<8xf32>
    %122 = vector.multi_reduction <maximumf>, %121, %cst_48 [1] : vector<8x8xf32> to vector<8xf32>
    %123 = vector.shape_cast %122 : vector<8xf32> to vector<8x1xf32>
    %124 = vector.broadcast %123 : vector<8x1xf32> to vector<8x8xf32>
    %125 = arith.subf %121, %124 : vector<8x8xf32>
    %126 = math.exp %125 : vector<8x8xf32>
    %cst_49 = arith.constant dense<0.000000e+00> : vector<8xf32>
    %127 = vector.multi_reduction <add>, %126, %cst_49 [1] : vector<8x8xf32> to vector<8xf32>
    %128 = vector.shape_cast %127 : vector<8xf32> to vector<8x1xf32>
    %129 = tpu.reciprocal %128 {approx = true} : vector<8x1xf32> -> vector<8x1xf32>
    %130 = vector.broadcast %129 : vector<8x1xf32> to vector<8x8xf32>
    %131 = arith.mulf %126, %130 : vector<8x8xf32>
    %132 = arith.truncf %131 : vector<8x8xf32> to vector<8x8xbf16>
    %cst_50 = arith.constant dense<0.000000e+00> : vector<8x8xf32>
    %133 = tpu.matmul %132, %116, %cst_50 {dimension_numbers = #tpu.dot_dimension_numbers<[1], [0], [0], [1], [0, 0, 1, 1], [], []>} : vector<8x8xbf16>, vector<8x8xbf16>, vector<8x8xf32> -> vector<8x8xf32>
    %134 = arith.truncf %133 : vector<8x8xf32> to vector<8x8xbf16>
    %c24 = arith.constant 24 : index
    %c0_51 = arith.constant 0 : index
    %135 = vector.load %arg7[%c24, %c0_51] : memref<32x32xbf16, #tpu.memory_space<vmem>>, vector<8x32xbf16>
    %cst_52 = arith.constant dense<0.000000e+00> : vector<8x32xf32>
    %136 = tpu.matmul %134, %135, %cst_52 {dimension_numbers = #tpu.dot_dimension_numbers<[1], [0], [0], [1], [0, 0, 1, 1], [], []>} : vector<8x8xbf16>, vector<8x32xbf16>, vector<8x32xf32> -> vector<8x32xf32>
    %137 = arith.addf %110, %136 : vector<8x32xf32>
    %138 = arith.addf %137, %2 : vector<8x32xf32>
    %cst_53 = arith.constant dense<0.000000e+00> : vector<8xf32>
    %139 = vector.multi_reduction <add>, %138, %cst_53 [1] : vector<8x32xf32> to vector<8xf32>
    %140 = vector.shape_cast %139 : vector<8xf32> to vector<8x1xf32>
    %cst_54 = arith.constant 3.200000e+01 : f32
    %141 = vector.broadcast %cst_54 : f32 to vector<8x1xf32>
    %142 = arith.divf %140, %141 : vector<8x1xf32>
    %143 = vector.broadcast %142 : vector<8x1xf32> to vector<8x32xf32>
    %144 = arith.subf %138, %143 : vector<8x32xf32>
    %145 = arith.mulf %144, %144 : vector<8x32xf32>
    %cst_55 = arith.constant dense<0.000000e+00> : vector<8xf32>
    %146 = vector.multi_reduction <add>, %145, %cst_55 [1] : vector<8x32xf32> to vector<8xf32>
    %147 = vector.shape_cast %146 : vector<8xf32> to vector<8x1xf32>
    %cst_56 = arith.constant 3.100000e+01 : f32
    %148 = vector.broadcast %cst_56 : f32 to vector<8x1xf32>
    %149 = arith.divf %147, %148 : vector<8x1xf32>
    %c0_57 = arith.constant 0 : index
    %c0_58 = arith.constant 0 : index
    %150 = vector.load %arg9[%c0_57, %c0_58] : memref<1x32xf32, #tpu.memory_space<vmem>>, vector<1x32xf32>
    %151 = vector.broadcast %142 : vector<8x1xf32> to vector<8x32xf32>
    %152 = arith.subf %138, %151 : vector<8x32xf32>
    %153 = math.sqrt %149 : vector<8x1xf32>
    %cst_59 = arith.constant 9.99999997E-7 : f32
    %154 = vector.broadcast %cst_59 : f32 to vector<8x1xf32>
    %155 = arith.addf %153, %154 : vector<8x1xf32>
    %156 = vector.broadcast %155 : vector<8x1xf32> to vector<8x32xf32>
    %157 = arith.divf %152, %156 : vector<8x32xf32>
    %158 = vector.broadcast %150 : vector<1x32xf32> to vector<8x32xf32>
    %159 = arith.mulf %158, %157 : vector<8x32xf32>
    %c0_60 = arith.constant 0 : index
    %c0_61 = arith.constant 0 : index
    %160 = vector.load %arg10[%c0_60, %c0_61] : memref<1x32xf32, #tpu.memory_space<vmem>>, vector<1x32xf32>
    %161 = vector.broadcast %160 : vector<1x32xf32> to vector<8x32xf32>
    %162 = arith.addf %159, %161 : vector<8x32xf32>
    %163 = arith.truncf %162 : vector<8x32xf32> to vector<8x32xbf16>
    %c0_62 = arith.constant 0 : index
    %c0_63 = arith.constant 0 : index
    %164 = vector.load %arg11[%c0_62, %c0_63] : memref<32x32xbf16, #tpu.memory_space<vmem>>, vector<32x32xbf16>
    %cst_64 = arith.constant dense<0.000000e+00> : vector<8x32xf32>
    %165 = tpu.matmul %163, %164, %cst_64 {dimension_numbers = #tpu.dot_dimension_numbers<[1], [0], [0], [1], [0, 0, 1, 1], [], []>} : vector<8x32xbf16>, vector<32x32xbf16>, vector<8x32xf32> -> vector<8x32xf32>
    %c0_65 = arith.constant 0 : index
    %c0_66 = arith.constant 0 : index
    %166 = vector.load %arg12[%c0_65, %c0_66] : memref<1x32xf32, #tpu.memory_space<vmem>>, vector<1x32xf32>
    %167 = vector.broadcast %166 : vector<1x32xf32> to vector<8x32xf32>
    %168 = arith.addf %165, %167 : vector<8x32xf32>
    %c0_67 = arith.constant 0 : index
    %c0_68 = arith.constant 0 : index
    %169 = vector.load %arg13[%c0_67, %c0_68] : memref<32x64xbf16, #tpu.memory_space<vmem>>, vector<32x64xbf16>
    %cst_69 = arith.constant dense<0.000000e+00> : vector<8x64xf32>
    %170 = tpu.matmul %4, %169, %cst_69 {dimension_numbers = #tpu.dot_dimension_numbers<[1], [0], [0], [1], [0, 0, 1, 1], [], []>} : vector<8x32xbf16>, vector<32x64xbf16>, vector<8x64xf32> -> vector<8x64xf32>
    %c0_70 = arith.constant 0 : index
    %c0_71 = arith.constant 0 : index
    %171 = vector.load %arg14[%c0_70, %c0_71] : memref<1x64xf32, #tpu.memory_space<vmem>>, vector<1x64xf32>
    %172 = vector.broadcast %171 : vector<1x64xf32> to vector<8x64xf32>
    %173 = arith.addf %170, %172 : vector<8x64xf32>
    %174 = vector.extract_strided_slice %173 {offsets = [0, 0], sizes = [8, 32], strides = [1, 1]} : vector<8x64xf32> to vector<8x32xf32>
    %175 = vector.extract_strided_slice %173 {offsets = [0, 32], sizes = [8, 32], strides = [1, 1]} : vector<8x64xf32> to vector<8x32xf32>
    %cst_72 = arith.constant 0.000000e+00 : f32
    %176 = vector.broadcast %cst_72 : f32 to vector<8x32xf32>
    %c0_73 = arith.constant 0 : index
    %c0_74 = arith.constant 0 : index
    %177 = vector.load %arg16[%c0_73, %c0_74] : memref<1x32xf32, #tpu.memory_space<vmem>>, vector<1x32xf32>
    %178 = vector.broadcast %177 : vector<1x32xf32> to vector<8x32xf32>
    %179 = arith.addf %176, %178 : vector<8x32xf32>
    %180 = vector.extract_strided_slice %168 {offsets = [0, 0], sizes = [8, 8], strides = [1, 1]} : vector<8x32xf32> to vector<8x8xf32>
    %181 = arith.truncf %180 : vector<8x8xf32> to vector<8x8xbf16>
    %182 = vector.extract_strided_slice %174 {offsets = [0, 0], sizes = [8, 8], strides = [1, 1]} : vector<8x32xf32> to vector<8x8xf32>
    %183 = arith.truncf %182 : vector<8x8xf32> to vector<8x8xbf16>
    %184 = vector.extract_strided_slice %175 {offsets = [0, 0], sizes = [8, 8], strides = [1, 1]} : vector<8x32xf32> to vector<8x8xf32>
    %185 = arith.truncf %184 : vector<8x8xf32> to vector<8x8xbf16>
    %cst_75 = arith.constant dense<0.000000e+00> : vector<8x8xf32>
    %186 = tpu.matmul %181, %183, %cst_75 {dimension_numbers = #tpu.dot_dimension_numbers<[1], [1], [0], [0], [0, 0, 1, 0], [], []>} : vector<8x8xbf16>, vector<8x8xbf16>, vector<8x8xf32> -> vector<8x8xf32>
    %cst_76 = arith.constant 0.353553385 : f32
    %187 = vector.broadcast %cst_76 : f32 to vector<8x8xf32>
    %188 = arith.mulf %186, %187 : vector<8x8xf32>
    %cst_77 = arith.constant -1.000000e+09 : f32
    %189 = vector.shape_cast %17 : vector<1x8xi1> to vector<1x8xi1>
    %190 = vector.broadcast %189 : vector<1x8xi1> to vector<8x8xi1>
    %191 = vector.broadcast %cst_77 : f32 to vector<8x8xf32>
    %192 = arith.select %190, %191, %188 : vector<8x8xi1>, vector<8x8xf32>
    %cst_78 = arith.constant dense<0xFF800000> : vector<8xf32>
    %193 = vector.multi_reduction <maximumf>, %192, %cst_78 [1] : vector<8x8xf32> to vector<8xf32>
    %194 = vector.shape_cast %193 : vector<8xf32> to vector<8x1xf32>
    %195 = vector.broadcast %194 : vector<8x1xf32> to vector<8x8xf32>
    %196 = arith.subf %192, %195 : vector<8x8xf32>
    %197 = math.exp %196 : vector<8x8xf32>
    %cst_79 = arith.constant dense<0.000000e+00> : vector<8xf32>
    %198 = vector.multi_reduction <add>, %197, %cst_79 [1] : vector<8x8xf32> to vector<8xf32>
    %199 = vector.shape_cast %198 : vector<8xf32> to vector<8x1xf32>
    %200 = tpu.reciprocal %199 {approx = true} : vector<8x1xf32> -> vector<8x1xf32>
    %201 = vector.broadcast %200 : vector<8x1xf32> to vector<8x8xf32>
    %202 = arith.mulf %197, %201 : vector<8x8xf32>
    %203 = arith.truncf %202 : vector<8x8xf32> to vector<8x8xbf16>
    %cst_80 = arith.constant dense<0.000000e+00> : vector<8x8xf32>
    %204 = tpu.matmul %203, %185, %cst_80 {dimension_numbers = #tpu.dot_dimension_numbers<[1], [0], [0], [1], [0, 0, 1, 1], [], []>} : vector<8x8xbf16>, vector<8x8xbf16>, vector<8x8xf32> -> vector<8x8xf32>
    %205 = arith.truncf %204 : vector<8x8xf32> to vector<8x8xbf16>
    %c0_81 = arith.constant 0 : index
    %c0_82 = arith.constant 0 : index
    %206 = vector.load %arg15[%c0_81, %c0_82] : memref<32x32xbf16, #tpu.memory_space<vmem>>, vector<8x32xbf16>
    %cst_83 = arith.constant dense<0.000000e+00> : vector<8x32xf32>
    %207 = tpu.matmul %205, %206, %cst_83 {dimension_numbers = #tpu.dot_dimension_numbers<[1], [0], [0], [1], [0, 0, 1, 1], [], []>} : vector<8x8xbf16>, vector<8x32xbf16>, vector<8x32xf32> -> vector<8x32xf32>
    %208 = arith.addf %179, %207 : vector<8x32xf32>
    %209 = vector.extract_strided_slice %168 {offsets = [0, 8], sizes = [8, 8], strides = [1, 1]} : vector<8x32xf32> to vector<8x8xf32>
    %210 = arith.truncf %209 : vector<8x8xf32> to vector<8x8xbf16>
    %211 = vector.extract_strided_slice %174 {offsets = [0, 8], sizes = [8, 8], strides = [1, 1]} : vector<8x32xf32> to vector<8x8xf32>
    %212 = arith.truncf %211 : vector<8x8xf32> to vector<8x8xbf16>
    %213 = vector.extract_strided_slice %175 {offsets = [0, 8], sizes = [8, 8], strides = [1, 1]} : vector<8x32xf32> to vector<8x8xf32>
    %214 = arith.truncf %213 : vector<8x8xf32> to vector<8x8xbf16>
    %cst_84 = arith.constant dense<0.000000e+00> : vector<8x8xf32>
    %215 = tpu.matmul %210, %212, %cst_84 {dimension_numbers = #tpu.dot_dimension_numbers<[1], [1], [0], [0], [0, 0, 1, 0], [], []>} : vector<8x8xbf16>, vector<8x8xbf16>, vector<8x8xf32> -> vector<8x8xf32>
    %cst_85 = arith.constant 0.353553385 : f32
    %216 = vector.broadcast %cst_85 : f32 to vector<8x8xf32>
    %217 = arith.mulf %215, %216 : vector<8x8xf32>
    %cst_86 = arith.constant -1.000000e+09 : f32
    %218 = vector.shape_cast %17 : vector<1x8xi1> to vector<1x8xi1>
    %219 = vector.broadcast %218 : vector<1x8xi1> to vector<8x8xi1>
    %220 = vector.broadcast %cst_86 : f32 to vector<8x8xf32>
    %221 = arith.select %219, %220, %217 : vector<8x8xi1>, vector<8x8xf32>
    %cst_87 = arith.constant dense<0xFF800000> : vector<8xf32>
    %222 = vector.multi_reduction <maximumf>, %221, %cst_87 [1] : vector<8x8xf32> to vector<8xf32>
    %223 = vector.shape_cast %222 : vector<8xf32> to vector<8x1xf32>
    %224 = vector.broadcast %223 : vector<8x1xf32> to vector<8x8xf32>
    %225 = arith.subf %221, %224 : vector<8x8xf32>
    %226 = math.exp %225 : vector<8x8xf32>
    %cst_88 = arith.constant dense<0.000000e+00> : vector<8xf32>
    %227 = vector.multi_reduction <add>, %226, %cst_88 [1] : vector<8x8xf32> to vector<8xf32>
    %228 = vector.shape_cast %227 : vector<8xf32> to vector<8x1xf32>
    %229 = tpu.reciprocal %228 {approx = true} : vector<8x1xf32> -> vector<8x1xf32>
    %230 = vector.broadcast %229 : vector<8x1xf32> to vector<8x8xf32>
    %231 = arith.mulf %226, %230 : vector<8x8xf32>
    %232 = arith.truncf %231 : vector<8x8xf32> to vector<8x8xbf16>
    %cst_89 = arith.constant dense<0.000000e+00> : vector<8x8xf32>
    %233 = tpu.matmul %232, %214, %cst_89 {dimension_numbers = #tpu.dot_dimension_numbers<[1], [0], [0], [1], [0, 0, 1, 1], [], []>} : vector<8x8xbf16>, vector<8x8xbf16>, vector<8x8xf32> -> vector<8x8xf32>
    %234 = arith.truncf %233 : vector<8x8xf32> to vector<8x8xbf16>
    %c8_90 = arith.constant 8 : index
    %c0_91 = arith.constant 0 : index
    %235 = vector.load %arg15[%c8_90, %c0_91] : memref<32x32xbf16, #tpu.memory_space<vmem>>, vector<8x32xbf16>
    %cst_92 = arith.constant dense<0.000000e+00> : vector<8x32xf32>
    %236 = tpu.matmul %234, %235, %cst_92 {dimension_numbers = #tpu.dot_dimension_numbers<[1], [0], [0], [1], [0, 0, 1, 1], [], []>} : vector<8x8xbf16>, vector<8x32xbf16>, vector<8x32xf32> -> vector<8x32xf32>
    %237 = arith.addf %208, %236 : vector<8x32xf32>
    %238 = vector.extract_strided_slice %168 {offsets = [0, 16], sizes = [8, 8], strides = [1, 1]} : vector<8x32xf32> to vector<8x8xf32>
    %239 = arith.truncf %238 : vector<8x8xf32> to vector<8x8xbf16>
    %240 = vector.extract_strided_slice %174 {offsets = [0, 16], sizes = [8, 8], strides = [1, 1]} : vector<8x32xf32> to vector<8x8xf32>
    %241 = arith.truncf %240 : vector<8x8xf32> to vector<8x8xbf16>
    %242 = vector.extract_strided_slice %175 {offsets = [0, 16], sizes = [8, 8], strides = [1, 1]} : vector<8x32xf32> to vector<8x8xf32>
    %243 = arith.truncf %242 : vector<8x8xf32> to vector<8x8xbf16>
    %cst_93 = arith.constant dense<0.000000e+00> : vector<8x8xf32>
    %244 = tpu.matmul %239, %241, %cst_93 {dimension_numbers = #tpu.dot_dimension_numbers<[1], [1], [0], [0], [0, 0, 1, 0], [], []>} : vector<8x8xbf16>, vector<8x8xbf16>, vector<8x8xf32> -> vector<8x8xf32>
    %cst_94 = arith.constant 0.353553385 : f32
    %245 = vector.broadcast %cst_94 : f32 to vector<8x8xf32>
    %246 = arith.mulf %244, %245 : vector<8x8xf32>
    %cst_95 = arith.constant -1.000000e+09 : f32
    %247 = vector.shape_cast %17 : vector<1x8xi1> to vector<1x8xi1>
    %248 = vector.broadcast %247 : vector<1x8xi1> to vector<8x8xi1>
    %249 = vector.broadcast %cst_95 : f32 to vector<8x8xf32>
    %250 = arith.select %248, %249, %246 : vector<8x8xi1>, vector<8x8xf32>
    %cst_96 = arith.constant dense<0xFF800000> : vector<8xf32>
    %251 = vector.multi_reduction <maximumf>, %250, %cst_96 [1] : vector<8x8xf32> to vector<8xf32>
    %252 = vector.shape_cast %251 : vector<8xf32> to vector<8x1xf32>
    %253 = vector.broadcast %252 : vector<8x1xf32> to vector<8x8xf32>
    %254 = arith.subf %250, %253 : vector<8x8xf32>
    %255 = math.exp %254 : vector<8x8xf32>
    %cst_97 = arith.constant dense<0.000000e+00> : vector<8xf32>
    %256 = vector.multi_reduction <add>, %255, %cst_97 [1] : vector<8x8xf32> to vector<8xf32>
    %257 = vector.shape_cast %256 : vector<8xf32> to vector<8x1xf32>
    %258 = tpu.reciprocal %257 {approx = true} : vector<8x1xf32> -> vector<8x1xf32>
    %259 = vector.broadcast %258 : vector<8x1xf32> to vector<8x8xf32>
    %260 = arith.mulf %255, %259 : vector<8x8xf32>
    %261 = arith.truncf %260 : vector<8x8xf32> to vector<8x8xbf16>
    %cst_98 = arith.constant dense<0.000000e+00> : vector<8x8xf32>
    %262 = tpu.matmul %261, %243, %cst_98 {dimension_numbers = #tpu.dot_dimension_numbers<[1], [0], [0], [1], [0, 0, 1, 1], [], []>} : vector<8x8xbf16>, vector<8x8xbf16>, vector<8x8xf32> -> vector<8x8xf32>
    %263 = arith.truncf %262 : vector<8x8xf32> to vector<8x8xbf16>
    %c16_99 = arith.constant 16 : index
    %c0_100 = arith.constant 0 : index
    %264 = vector.load %arg15[%c16_99, %c0_100] : memref<32x32xbf16, #tpu.memory_space<vmem>>, vector<8x32xbf16>
    %cst_101 = arith.constant dense<0.000000e+00> : vector<8x32xf32>
    %265 = tpu.matmul %263, %264, %cst_101 {dimension_numbers = #tpu.dot_dimension_numbers<[1], [0], [0], [1], [0, 0, 1, 1], [], []>} : vector<8x8xbf16>, vector<8x32xbf16>, vector<8x32xf32> -> vector<8x32xf32>
    %266 = arith.addf %237, %265 : vector<8x32xf32>
    %267 = vector.extract_strided_slice %168 {offsets = [0, 24], sizes = [8, 8], strides = [1, 1]} : vector<8x32xf32> to vector<8x8xf32>
    %268 = arith.truncf %267 : vector<8x8xf32> to vector<8x8xbf16>
    %269 = vector.extract_strided_slice %174 {offsets = [0, 24], sizes = [8, 8], strides = [1, 1]} : vector<8x32xf32> to vector<8x8xf32>
    %270 = arith.truncf %269 : vector<8x8xf32> to vector<8x8xbf16>
    %271 = vector.extract_strided_slice %175 {offsets = [0, 24], sizes = [8, 8], strides = [1, 1]} : vector<8x32xf32> to vector<8x8xf32>
    %272 = arith.truncf %271 : vector<8x8xf32> to vector<8x8xbf16>
    %cst_102 = arith.constant dense<0.000000e+00> : vector<8x8xf32>
    %273 = tpu.matmul %268, %270, %cst_102 {dimension_numbers = #tpu.dot_dimension_numbers<[1], [1], [0], [0], [0, 0, 1, 0], [], []>} : vector<8x8xbf16>, vector<8x8xbf16>, vector<8x8xf32> -> vector<8x8xf32>
    %cst_103 = arith.constant 0.353553385 : f32
    %274 = vector.broadcast %cst_103 : f32 to vector<8x8xf32>
    %275 = arith.mulf %273, %274 : vector<8x8xf32>
    %cst_104 = arith.constant -1.000000e+09 : f32
    %276 = vector.shape_cast %17 : vector<1x8xi1> to vector<1x8xi1>
    %277 = vector.broadcast %276 : vector<1x8xi1> to vector<8x8xi1>
    %278 = vector.broadcast %cst_104 : f32 to vector<8x8xf32>
    %279 = arith.select %277, %278, %275 : vector<8x8xi1>, vector<8x8xf32>
    %cst_105 = arith.constant dense<0xFF800000> : vector<8xf32>
    %280 = vector.multi_reduction <maximumf>, %279, %cst_105 [1] : vector<8x8xf32> to vector<8xf32>
    %281 = vector.shape_cast %280 : vector<8xf32> to vector<8x1xf32>
    %282 = vector.broadcast %281 : vector<8x1xf32> to vector<8x8xf32>
    %283 = arith.subf %279, %282 : vector<8x8xf32>
    %284 = math.exp %283 : vector<8x8xf32>
    %cst_106 = arith.constant dense<0.000000e+00> : vector<8xf32>
    %285 = vector.multi_reduction <add>, %284, %cst_106 [1] : vector<8x8xf32> to vector<8xf32>
    %286 = vector.shape_cast %285 : vector<8xf32> to vector<8x1xf32>
    %287 = tpu.reciprocal %286 {approx = true} : vector<8x1xf32> -> vector<8x1xf32>
    %288 = vector.broadcast %287 : vector<8x1xf32> to vector<8x8xf32>
    %289 = arith.mulf %284, %288 : vector<8x8xf32>
    %290 = arith.truncf %289 : vector<8x8xf32> to vector<8x8xbf16>
    %cst_107 = arith.constant dense<0.000000e+00> : vector<8x8xf32>
    %291 = tpu.matmul %290, %272, %cst_107 {dimension_numbers = #tpu.dot_dimension_numbers<[1], [0], [0], [1], [0, 0, 1, 1], [], []>} : vector<8x8xbf16>, vector<8x8xbf16>, vector<8x8xf32> -> vector<8x8xf32>
    %292 = arith.truncf %291 : vector<8x8xf32> to vector<8x8xbf16>
    %c24_108 = arith.constant 24 : index
    %c0_109 = arith.constant 0 : index
    %293 = vector.load %arg15[%c24_108, %c0_109] : memref<32x32xbf16, #tpu.memory_space<vmem>>, vector<8x32xbf16>
    %cst_110 = arith.constant dense<0.000000e+00> : vector<8x32xf32>
    %294 = tpu.matmul %292, %293, %cst_110 {dimension_numbers = #tpu.dot_dimension_numbers<[1], [0], [0], [1], [0, 0, 1, 1], [], []>} : vector<8x8xbf16>, vector<8x32xbf16>, vector<8x32xf32> -> vector<8x32xf32>
    %295 = arith.addf %266, %294 : vector<8x32xf32>
    %296 = arith.addf %295, %162 : vector<8x32xf32>
    %cst_111 = arith.constant dense<0.000000e+00> : vector<8xf32>
    %297 = vector.multi_reduction <add>, %296, %cst_111 [1] : vector<8x32xf32> to vector<8xf32>
    %298 = vector.shape_cast %297 : vector<8xf32> to vector<8x1xf32>
    %cst_112 = arith.constant 3.200000e+01 : f32
    %299 = vector.broadcast %cst_112 : f32 to vector<8x1xf32>
    %300 = arith.divf %298, %299 : vector<8x1xf32>
    %301 = vector.broadcast %300 : vector<8x1xf32> to vector<8x32xf32>
    %302 = arith.subf %296, %301 : vector<8x32xf32>
    %303 = arith.mulf %302, %302 : vector<8x32xf32>
    %cst_113 = arith.constant dense<0.000000e+00> : vector<8xf32>
    %304 = vector.multi_reduction <add>, %303, %cst_113 [1] : vector<8x32xf32> to vector<8xf32>
    %305 = vector.shape_cast %304 : vector<8xf32> to vector<8x1xf32>
    %cst_114 = arith.constant 3.100000e+01 : f32
    %306 = vector.broadcast %cst_114 : f32 to vector<8x1xf32>
    %307 = arith.divf %305, %306 : vector<8x1xf32>
    %c0_115 = arith.constant 0 : index
    %c0_116 = arith.constant 0 : index
    %308 = vector.load %arg17[%c0_115, %c0_116] : memref<1x32xf32, #tpu.memory_space<vmem>>, vector<1x32xf32>
    %309 = vector.broadcast %300 : vector<8x1xf32> to vector<8x32xf32>
    %310 = arith.subf %296, %309 : vector<8x32xf32>
    %311 = math.sqrt %307 : vector<8x1xf32>
    %cst_117 = arith.constant 9.99999997E-7 : f32
    %312 = vector.broadcast %cst_117 : f32 to vector<8x1xf32>
    %313 = arith.addf %311, %312 : vector<8x1xf32>
    %314 = vector.broadcast %313 : vector<8x1xf32> to vector<8x32xf32>
    %315 = arith.divf %310, %314 : vector<8x32xf32>
    %316 = vector.broadcast %308 : vector<1x32xf32> to vector<8x32xf32>
    %317 = arith.mulf %316, %315 : vector<8x32xf32>
    %c0_118 = arith.constant 0 : index
    %c0_119 = arith.constant 0 : index
    %318 = vector.load %arg18[%c0_118, %c0_119] : memref<1x32xf32, #tpu.memory_space<vmem>>, vector<1x32xf32>
    %319 = vector.broadcast %318 : vector<1x32xf32> to vector<8x32xf32>
    %320 = arith.addf %317, %319 : vector<8x32xf32>
    %321 = arith.truncf %320 : vector<8x32xf32> to vector<8x32xbf16>
    %c0_120 = arith.constant 0 : index
    %c0_121 = arith.constant 0 : index
    %322 = vector.load %arg19[%c0_120, %c0_121] : memref<32x64xbf16, #tpu.memory_space<vmem>>, vector<32x64xbf16>
    %cst_122 = arith.constant dense<0.000000e+00> : vector<8x64xf32>
    %323 = tpu.matmul %321, %322, %cst_122 {dimension_numbers = #tpu.dot_dimension_numbers<[1], [0], [0], [1], [0, 0, 1, 1], [], []>} : vector<8x32xbf16>, vector<32x64xbf16>, vector<8x64xf32> -> vector<8x64xf32>
    %c0_123 = arith.constant 0 : index
    %c0_124 = arith.constant 0 : index
    %324 = vector.load %arg20[%c0_123, %c0_124] : memref<1x64xf32, #tpu.memory_space<vmem>>, vector<1x64xf32>
    %325 = vector.broadcast %324 : vector<1x64xf32> to vector<8x64xf32>
    %326 = arith.addf %323, %325 : vector<8x64xf32>
    %cst_125 = arith.constant 0.000000e+00 : f32
    %327 = vector.broadcast %cst_125 : f32 to vector<8x64xf32>
    %328 = arith.maximumf %326, %327 : vector<8x64xf32>
    %329 = arith.truncf %328 : vector<8x64xf32> to vector<8x64xbf16>
    %c0_126 = arith.constant 0 : index
    %c0_127 = arith.constant 0 : index
    %330 = vector.load %arg21[%c0_126, %c0_127] : memref<64x32xbf16, #tpu.memory_space<vmem>>, vector<64x32xbf16>
    %cst_128 = arith.constant dense<0.000000e+00> : vector<8x32xf32>
    %331 = tpu.matmul %329, %330, %cst_128 {dimension_numbers = #tpu.dot_dimension_numbers<[1], [0], [0], [1], [0, 0, 1, 1], [], []>} : vector<8x64xbf16>, vector<64x32xbf16>, vector<8x32xf32> -> vector<8x32xf32>
    %c0_129 = arith.constant 0 : index
    %c0_130 = arith.constant 0 : index
    %332 = vector.load %arg22[%c0_129, %c0_130] : memref<1x32xf32, #tpu.memory_space<vmem>>, vector<1x32xf32>
    %333 = vector.broadcast %332 : vector<1x32xf32> to vector<8x32xf32>
    %334 = arith.addf %331, %333 : vector<8x32xf32>
    %335 = arith.addf %334, %320 : vector<8x32xf32>
    %cst_131 = arith.constant dense<0.000000e+00> : vector<8xf32>
    %336 = vector.multi_reduction <add>, %335, %cst_131 [1] : vector<8x32xf32> to vector<8xf32>
    %337 = vector.shape_cast %336 : vector<8xf32> to vector<8x1xf32>
    %cst_132 = arith.constant 3.200000e+01 : f32
    %338 = vector.broadcast %cst_132 : f32 to vector<8x1xf32>
    %339 = arith.divf %337, %338 : vector<8x1xf32>
    %340 = vector.broadcast %339 : vector<8x1xf32> to vector<8x32xf32>
    %341 = arith.subf %335, %340 : vector<8x32xf32>
    %342 = arith.mulf %341, %341 : vector<8x32xf32>
    %cst_133 = arith.constant dense<0.000000e+00> : vector<8xf32>
    %343 = vector.multi_reduction <add>, %342, %cst_133 [1] : vector<8x32xf32> to vector<8xf32>
    %344 = vector.shape_cast %343 : vector<8xf32> to vector<8x1xf32>
    %cst_134 = arith.constant 3.100000e+01 : f32
    %345 = vector.broadcast %cst_134 : f32 to vector<8x1xf32>
    %346 = arith.divf %344, %345 : vector<8x1xf32>
    %c0_135 = arith.constant 0 : index
    %c0_136 = arith.constant 0 : index
    %347 = vector.load %arg23[%c0_135, %c0_136] : memref<1x32xf32, #tpu.memory_space<vmem>>, vector<1x32xf32>
    %348 = vector.broadcast %339 : vector<8x1xf32> to vector<8x32xf32>
    %349 = arith.subf %335, %348 : vector<8x32xf32>
    %350 = math.sqrt %346 : vector<8x1xf32>
    %cst_137 = arith.constant 9.99999997E-7 : f32
    %351 = vector.broadcast %cst_137 : f32 to vector<8x1xf32>
    %352 = arith.addf %350, %351 : vector<8x1xf32>
    %353 = vector.broadcast %352 : vector<8x1xf32> to vector<8x32xf32>
    %354 = arith.divf %349, %353 : vector<8x32xf32>
    %355 = vector.broadcast %347 : vector<1x32xf32> to vector<8x32xf32>
    %356 = arith.mulf %355, %354 : vector<8x32xf32>
    %c0_138 = arith.constant 0 : index
    %c0_139 = arith.constant 0 : index
    %357 = vector.load %arg24[%c0_138, %c0_139] : memref<1x32xf32, #tpu.memory_space<vmem>>, vector<1x32xf32>
    %358 = vector.broadcast %357 : vector<1x32xf32> to vector<8x32xf32>
    %359 = arith.addf %356, %358 : vector<8x32xf32>
    %360 = arith.truncf %359 : vector<8x32xf32> to vector<8x32xbf16>
    %c0_140 = arith.constant 0 : index
    %c0_141 = arith.constant 0 : index
    %c0_142 = arith.constant 0 : index
    %361 = vector.load %arg25[%c0_140, %c0_141, %c0_142] : memref<1x8x32xbf16, #tpu.memory_space<vmem>>, vector<1x8x32xbf16>
    %362 = vector.shape_cast %361 : vector<1x8x32xbf16> to vector<8x32xbf16>
    %363 = vector.shape_cast %360 : vector<8x32xbf16> to vector<1x8x32xbf16>
    tpu.vector_store %arg25[%c0_140, %c0_141, %c0_142], %363 {strides = array<i32>} : memref<1x8x32xbf16, #tpu.memory_space<vmem>>, vector<1x8x32xbf16>,
    return
  }
  func.func @transform_0(%arg0: i32) -> (i32, i32, i32) {
    %c0_i32 = arith.constant 0 : i32
    %c0_i32_0 = arith.constant 0 : i32
    %c0_i32_1 = arith.constant 0 : i32
    return %arg0, %c0_i32, %c0_i32_0 : i32, i32, i32
  }
  func.func @transform_1(%arg0: i32) -> (i32, i32, i32) {
    %c0_i32 = arith.constant 0 : i32
    %c0_i32_0 = arith.constant 0 : i32
    %c0_i32_1 = arith.constant 0 : i32
    return %arg0, %c0_i32, %c0_i32_0 : i32, i32, i32
  }
  func.func @transform_2(%arg0: i32) -> (i32, i32, i32) {
    %c0_i32 = arith.constant 0 : i32
    %c0_i32_0 = arith.constant 0 : i32
    %c0_i32_1 = arith.constant 0 : i32
    return %arg0, %c0_i32, %c0_i32_0 : i32, i32, i32
  }
  func.func @transform_3(%arg0: i32) -> (i32, i32, i32) {
    %c0_i32 = arith.constant 0 : i32
    %c0_i32_0 = arith.constant 0 : i32
    %c0_i32_1 = arith.constant 0 : i32
    return %arg0, %c0_i32, %c0_i32_0 : i32, i32, i32
  }
  func.func @transform_4(%arg0: i32) -> (i32, i32) {
    %c0_i32 = arith.constant 0 : i32
    %c0_i32_0 = arith.constant 0 : i32
    %c0_i32_1 = arith.constant 0 : i32
    return %c0_i32, %c0_i32_0 : i32, i32
  }
  func.func @transform_5(%arg0: i32) -> (i32, i32) {
    %c0_i32 = arith.constant 0 : i32
    %c0_i32_0 = arith.constant 0 : i32
    %c0_i32_1 = arith.constant 0 : i32
    return %c0_i32, %c0_i32_0 : i32, i32
  }
  func.func @transform_6(%arg0: i32) -> (i32, i32) {
    %c0_i32 = arith.constant 0 : i32
    %c0_i32_0 = arith.constant 0 : i32
    %c0_i32_1 = arith.constant 0 : i32
    return %c0_i32, %c0_i32_0 : i32, i32
  }
  func.func @transform_7(%arg0: i32) -> (i32, i32) {
    %c0_i32 = arith.constant 0 : i32
    %c0_i32_0 = arith.constant 0 : i32
    %c0_i32_1 = arith.constant 0 : i32
    return %c0_i32, %c0_i32_0 : i32, i32
  }
  func.func @transform_8(%arg0: i32) -> (i32, i32) {
    %c0_i32 = arith.constant 0 : i32
    %c0_i32_0 = arith.constant 0 : i32
    %c0_i32_1 = arith.constant 0 : i32
    return %c0_i32, %c0_i32_0 : i32, i32
  }
  func.func @transform_9(%arg0: i32) -> (i32, i32) {
    %c0_i32 = arith.constant 0 : i32
    %c0_i32_0 = arith.constant 0 : i32
    %c0_i32_1 = arith.constant 0 : i32
    return %c0_i32, %c0_i32_0 : i32, i32
  }
  func.func @transform_10(%arg0: i32) -> (i32, i32) {
    %c0_i32 = arith.constant 0 : i32
    %c0_i32_0 = arith.constant 0 : i32
    %c0_i32_1 = arith.constant 0 : i32
    return %c0_i32, %c0_i32_0 : i32, i32
  }
  func.func @transform_11(%arg0: i32) -> (i32, i32) {
    %c0_i32 = arith.constant 0 : i32
    %c0_i32_0 = arith.constant 0 : i32
    %c0_i32_1 = arith.constant 0 : i32
    return %c0_i32, %c0_i32_0 : i32, i32
  }
  func.func @transform_12(%arg0: i32) -> (i32, i32) {
    %c0_i32 = arith.constant 0 : i32
    %c0_i32_0 = arith.constant 0 : i32
    %c0_i32_1 = arith.constant 0 : i32
    return %c0_i32, %c0_i32_0 : i32, i32
  }
  func.func @transform_13(%arg0: i32) -> (i32, i32) {
    %c0_i32 = arith.constant 0 : i32
    %c0_i32_0 = arith.constant 0 : i32
    %c0_i32_1 = arith.constant 0 : i32
    return %c0_i32, %c0_i32_0 : i32, i32
  }
  func.func @transform_14(%arg0: i32) -> (i32, i32) {
    %c0_i32 = arith.constant 0 : i32
    %c0_i32_0 = arith.constant 0 : i32
    %c0_i32_1 = arith.constant 0 : i32
    return %c0_i32, %c0_i32_0 : i32, i32
  }
  func.func @transform_15(%arg0: i32) -> (i32, i32) {
    %c0_i32 = arith.constant 0 : i32
    %c0_i32_0 = arith.constant 0 : i32
    %c0_i32_1 = arith.constant 0 : i32
    return %c0_i32, %c0_i32_0 : i32, i32
  }
  func.func @transform_16(%arg0: i32) -> (i32, i32) {
    %c0_i32 = arith.constant 0 : i32
    %c0_i32_0 = arith.constant 0 : i32
    %c0_i32_1 = arith.constant 0 : i32
    return %c0_i32, %c0_i32_0 : i32, i32
  }
  func.func @transform_17(%arg0: i32) -> (i32, i32) {
    %c0_i32 = arith.constant 0 : i32
    %c0_i32_0 = arith.constant 0 : i32
    %c0_i32_1 = arith.constant 0 : i32
    return %c0_i32, %c0_i32_0 : i32, i32
  }
  func.func @transform_18(%arg0: i32) -> (i32, i32) {
    %c0_i32 = arith.constant 0 : i32
    %c0_i32_0 = arith.constant 0 : i32
    %c0_i32_1 = arith.constant 0 : i32
    return %c0_i32, %c0_i32_0 : i32, i32
  }
  func.func @transform_19(%arg0: i32) -> (i32, i32) {
    %c0_i32 = arith.constant 0 : i32
    %c0_i32_0 = arith.constant 0 : i32
    %c0_i32_1 = arith.constant 0 : i32
    return %c0_i32, %c0_i32_0 : i32, i32
  }
  func.func @transform_20(%arg0: i32) -> (i32, i32) {
    %c0_i32 = arith.constant 0 : i32
    %c0_i32_0 = arith.constant 0 : i32
    %c0_i32_1 = arith.constant 0 : i32
    return %c0_i32, %c0_i32_0 : i32, i32
  }
  func.func @transform_21(%arg0: i32) -> (i32, i32) {
    %c0_i32 = arith.constant 0 : i32
    %c0_i32_0 = arith.constant 0 : i32
    %c0_i32_1 = arith.constant 0 : i32
    return %c0_i32, %c0_i32_0 : i32, i32
  }
  func.func @transform_22(%arg0: i32) -> (i32, i32) {
    %c0_i32 = arith.constant 0 : i32
    %c0_i32_0 = arith.constant 0 : i32
    %c0_i32_1 = arith.constant 0 : i32
    return %c0_i32, %c0_i32_0 : i32, i32
  }
  func.func @transform_23(%arg0: i32) -> (i32, i32) {
    %c0_i32 = arith.constant 0 : i32
    %c0_i32_0 = arith.constant 0 : i32
    %c0_i32_1 = arith.constant 0 : i32
    return %c0_i32, %c0_i32_0 : i32, i32
  }
  func.func @transform_24(%arg0: i32) -> (i32, i32, i32) {
    %c0_i32 = arith.constant 0 : i32
    %c0_i32_0 = arith.constant 0 : i32
    %c0_i32_1 = arith.constant 0 : i32
    return %arg0, %c0_i32, %c0_i32_0 : i32, i32, i32
  }
}

module attributes {stable_mosaic.version = 11 : i64} {
  func.func @_decoder_layer_kernel(%arg0: i32, %arg1: memref<1x8x32xbf16, #tpu.memory_space<vmem>>, %arg2: memref<1x8x32xbf16, #tpu.memory_space<vmem>>, %arg3: memref<1x1x8xf32, #tpu.memory_space<vmem>>, %arg4: memref<1x1x8xf32, #tpu.memory_space<vmem>>, %arg5: memref<32x96xbf16, #tpu.memory_space<vmem>>, %arg6: memref<1x96xf32, #tpu.memory_space<vmem>>, %arg7: memref<32x32xbf16, #tpu.memory_space<vmem>>, %arg8: memref<1x32xf32, #tpu.memory_space<vmem>>, %arg9: memref<1x32xf32, #tpu.memory_space<vmem>>, %arg10: memref<1x32xf32, #tpu.memory_space<vmem>>, %arg11: memref<32x32xbf16, #tpu.memory_space<vmem>>, %arg12: memref<1x32xf32, #tpu.memory_space<vmem>>, %arg13: memref<32x64xbf16, #tpu.memory_space<vmem>>, %arg14: memref<1x64xf32, #tpu.memory_space<vmem>>, %arg15: memref<32x32xbf16, #tpu.memory_space<vmem>>, %arg16: memref<1x32xf32, #tpu.memory_space<vmem>>, %arg17: memref<1x32xf32, #tpu.memory_space<vmem>>, %arg18: memref<1x32xf32, #tpu.memory_space<vmem>>, %arg19: memref<32x64xbf16, #tpu.memory_space<vmem>>, %arg20: memref<1x64xf32, #tpu.memory_space<vmem>>, %arg21: memref<64x32xbf16, #tpu.memory_space<vmem>>, %arg22: memref<1x32xf32, #tpu.memory_space<vmem>>, %arg23: memref<1x32xf32, #tpu.memory_space<vmem>>, %arg24: memref<1x32xf32, #tpu.memory_space<vmem>>, %arg25: memref<1x8x32xbf16, #tpu.memory_space<vmem>>) attributes {dimension_semantics = [#tpu.dimension_semantics<parallel>], iteration_bounds = array<i64: 2>, scalar_prefetch = 0 : i64, scratch_operands = 0 : i64, tpu.core_type = #tpu.core_type<tc>, window_params = [{transform_indices = @transform_0, window_bounds = array<i64: 1, 8, 32>}, {transform_indices = @transform_1, window_bounds = array<i64: 1, 8, 32>}, {transform_indices = @transform_2, window_bounds = array<i64: 1, 1, 8>}, {transform_indices = @transform_3, window_bounds = array<i64: 1, 1, 8>}, {pipeline_mode = #tpu.pipeline_mode<synchronous>, transform_indices = @transform_4, window_bounds = array<i64: 32, 96>}, {pipeline_mode = #tpu.pipeline_mode<synchronous>, transform_indices = @transform_5, window_bounds = array<i64: 1, 96>}, {pipeline_mode = #tpu.pipeline_mode<synchronous>, transform_indices = @transform_6, window_bounds = array<i64: 32, 32>}, {pipeline_mode = #tpu.pipeline_mode<synchronous>, transform_indices = @transform_7, window_bounds = array<i64: 1, 32>}, {pipeline_mode = #tpu.pipeline_mode<synchronous>, transform_indices = @transform_8, window_bounds = array<i64: 1, 32>}, {pipeline_mode = #tpu.pipeline_mode<synchronous>, transform_indices = @transform_9, window_bounds = array<i64: 1, 32>}, {pipeline_mode = #tpu.pipeline_mode<synchronous>, transform_indices = @transform_10, window_bounds = array<i64: 32, 32>}, {pipeline_mode = #tpu.pipeline_mode<synchronous>, transform_indices = @transform_11, window_bounds = array<i64: 1, 32>}, {pipeline_mode = #tpu.pipeline_mode<synchronous>, transform_indices = @transform_12, window_bounds = array<i64: 32, 64>}, {pipeline_mode = #tpu.pipeline_mode<synchronous>, transform_indices = @transform_13, window_bounds = array<i64: 1, 64>}, {pipeline_mode = #tpu.pipeline_mode<synchronous>, transform_indices = @transform_14, window_bounds = array<i64: 32, 32>}, {pipeline_mode = #tpu.pipeline_mode<synchronous>, transform_indices = @transform_15, window_bounds = array<i64: 1, 32>}, {pipeline_mode = #tpu.pipeline_mode<synchronous>, transform_indices = @transform_16, window_bounds = array<i64: 1, 32>}, {pipeline_mode = #tpu.pipeline_mode<synchronous>, transform_indices = @transform_17, window_bounds = array<i64: 1, 32>}, {pipeline_mode = #tpu.pipeline_mode<synchronous>, transform_indices = @transform_18, window_bounds = array<i64: 32, 64>}, {pipeline_mode = #tpu.pipeline_mode<synchronous>, transform_indices = @transform_19, window_bounds = array<i64: 1, 64>}, {pipeline_mode = #tpu.pipeline_mode<synchronous>, transform_indices = @transform_20, window_bounds = array<i64: 64, 32>}, {pipeline_mode = #tpu.pipeline_mode<synchronous>, transform_indices = @transform_21, window_bounds = array<i64: 1, 32>}, {pipeline_mode = #tpu.pipeline_mode<synchronous>, transform_indices = @transform_22, window_bounds = array<i64: 1, 32>}, {pipeline_mode = #tpu.pipeline_mode<synchronous>, transform_indices = @transform_23, window_bounds = array<i64: 1, 32>}, {transform_indices = @transform_24, window_bounds = array<i64: 1, 8, 32>}]} {
    %c0 = arith.constant 0 : index
    %c0_0 = arith.constant 0 : index
    %c0_1 = arith.constant 0 : index
    %0 = vector.load %arg1[%c0, %c0_0, %c0_1] : memref<1x8x32xbf16, #tpu.memory_space<vmem>>, vector<1x8x32xbf16>
    %1 = vector.shape_cast %0 : vector<1x8x32xbf16> to vector<8x32xbf16>
    %2 = arith.extf %1 : vector<8x32xbf16> to vector<8x32xf32>
    %c0_2 = arith.constant 0 : index
    %c0_3 = arith.constant 0 : index
    %c0_4 = arith.constant 0 : index
    %3 = vector.load %arg2[%c0_2, %c0_3, %c0_4] : memref<1x8x32xbf16, #tpu.memory_space<vmem>>, vector<1x8x32xbf16>
    %4 = vector.shape_cast %3 : vector<1x8x32xbf16> to vector<8x32xbf16>
    %5 = tpu.iota {dimensions = array<i32: 0>} : vector<8x8xi32>
    %6 = tpu.iota {dimensions = array<i32: 1>} : vector<8x8xi32>
    %c0_5 = arith.constant 0 : index
    %c0_6 = arith.constant 0 : index
    %c0_7 = arith.constant 0 : index
    %7 = vector.load %arg3[%c0_5, %c0_6, %c0_7] : memref<1x1x8xf32, #tpu.memory_space<vmem>>, vector<1x1x8xf32>
    %8 = vector.shape_cast %7 : vector<1x1x8xf32> to vector<1x8xf32>
    %cst = arith.constant 5.000000e-01 : f32
    %9 = vector.broadcast %cst : f32 to vector<1x8xf32>
    %10 = arith.cmpf ogt, %8, %9 : vector<1x8xf32>
    %11 = arith.cmpi sgt, %6, %5 : vector<8x8xi32>
    %12 = vector.broadcast %10 : vector<1x8xi1> to vector<8x8xi1>
    %13 = arith.ori %12, %11 : vector<8x8xi1>
    %c0_8 = arith.constant 0 : index
    %c0_9 = arith.constant 0 : index
    %c0_10 = arith.constant 0 : index
    %14 = vector.load %arg4[%c0_8, %c0_9, %c0_10] : memref<1x1x8xf32, #tpu.memory_space<vmem>>, vector<1x1x8xf32>
    %15 = vector.shape_cast %14 : vector<1x1x8xf32> to vector<1x8xf32>
    %cst_11 = arith.constant 5.000000e-01 : f32
    %16 = vector.broadcast %cst_11 : f32 to vector<1x8xf32>
    %17 = arith.cmpf ogt, %15, %16 : vector<1x8xf32>
    %c0_12 = arith.constant 0 : index
    %c0_13 = arith.constant 0 : index
    %18 = vector.load %arg5[%c0_12, %c0_13] : memref<32x96xbf16, #tpu.memory_space<vmem>>, vector<32x96xbf16>
    %cst_14 = arith.constant dense<0.000000e+00> : vector<8x96xf32>
    %19 = tpu.matmul %1, %18, %cst_14 {dimension_numbers = #tpu.dot_dimension_numbers<[1], [0], [0], [1], [0, 0, 1, 1], [], []>} : vector<8x32xbf16>, vector<32x96xbf16>, vector<8x96xf32> -> vector<8x96xf32>
    %c0_15 = arith.constant 0 : index
    %c0_16 = arith.constant 0 : index
    %20 = vector.load %arg6[%c0_15, %c0_16] : memref<1x96xf32, #tpu.memory_space<vmem>>, vector<1x96xf32>
    %21 = vector.broadcast %20 : vector<1x96xf32> to vector<8x96xf32>
    %22 = arith.addf %19, %21 : vector<8x96xf32>
    %23 = vector.extract_strided_slice %22 {offsets = [0, 0], sizes = [8, 32], strides = [1, 1]} : vector<8x96xf32> to vector<8x32xf32>
    %24 = vector.extract_strided_slice %22 {offsets = [0, 32], sizes = [8, 32], strides = [1, 1]} : vector<8x96xf32> to vector<8x32xf32>
    %25 = vector.extract_strided_slice %22 {offsets = [0, 64], sizes = [8, 32], strides = [1, 1]} : vector<8x96xf32> to vector<8x32xf32>
    %cst_17 = arith.constant 0.000000e+00 : f32
    %26 = vector.broadcast %cst_17 : f32 to vector<8x32xf32>
    %c0_18 = arith.constant 0 : index
    %c0_19 = arith.constant 0 : index
    %27 = vector.load %arg8[%c0_18, %c0_19] : memref<1x32xf32, #tpu.memory_space<vmem>>, vector<1x32xf32>
    %28 = vector.broadcast %27 : vector<1x32xf32> to vector<8x32xf32>
    %29 = arith.addf %26, %28 : vector<8x32xf32>
    %30 = vector.extract_strided_slice %23 {offsets = [0, 0], sizes = [8, 8], strides = [1, 1]} : vector<8x32xf32> to vector<8x8xf32>
    %31 = arith.truncf %30 : vector<8x8xf32> to vector<8x8xbf16>
    %32 = vector.extract_strided_slice %24 {offsets = [0, 0], sizes = [8, 8], strides = [1, 1]} : vector<8x32xf32> to vector<8x8xf32>
    %33 = arith.truncf %32 : vector<8x8xf32> to vector<8x8xbf16>
    %34 = vector.extract_strided_slice %25 {offsets = [0, 0], sizes = [8, 8], strides = [1, 1]} : vector<8x32xf32> to vector<8x8xf32>
    %35 = arith.truncf %34 : vector<8x8xf32> to vector<8x8xbf16>
    %cst_20 = arith.constant dense<0.000000e+00> : vector<8x8xf32>
    %36 = tpu.matmul %31, %33, %cst_20 {dimension_numbers = #tpu.dot_dimension_numbers<[1], [1], [0], [0], [0, 0, 1, 0], [], []>} : vector<8x8xbf16>, vector<8x8xbf16>, vector<8x8xf32> -> vector<8x8xf32>
    %cst_21 = arith.constant 0.353553385 : f32
    %37 = vector.broadcast %cst_21 : f32 to vector<8x8xf32>
    %38 = arith.mulf %36, %37 : vector<8x8xf32>
    %cst_22 = arith.constant -1.000000e+09 : f32
    %39 = vector.broadcast %cst_22 : f32 to vector<8x8xf32>
    %40 = arith.select %13, %39, %38 : vector<8x8xi1>, vector<8x8xf32>
    %cst_23 = arith.constant dense<0xFF800000> : vector<8xf32>
    %41 = vector.multi_reduction <maximumf>, %40, %cst_23 [1] : vector<8x8xf32> to vector<8xf32>
    %42 = vector.shape_cast %41 : vector<8xf32> to vector<8x1xf32>
    %43 = vector.broadcast %42 : vector<8x1xf32> to vector<8x8xf32>
    %44 = arith.subf %40, %43 : vector<8x8xf32>
    %45 = math.exp %44 : vector<8x8xf32>
    %cst_24 = arith.constant dense<0.000000e+00> : vector<8xf32>
    %46 = vector.multi_reduction <add>, %45, %cst_24 [1] : vector<8x8xf32> to vector<8xf32>
    %47 = vector.shape_cast %46 : vector<8xf32> to vector<8x1xf32>
    %48 = tpu.reciprocal %47 {approx = true} : vector<8x1xf32> -> vector<8x1xf32>
    %49 = vector.broadcast %48 : vector<8x1xf32> to vector<8x8xf32>
    %50 = arith.mulf %45, %49 : vector<8x8xf32>
    %51 = arith.truncf %50 : vector<8x8xf32> to vector<8x8xbf16>
    %cst_25 = arith.constant dense<0.000000e+00> : vector<8x8xf32>
    %52 = tpu.matmul %51, %35, %cst_25 {dimension_numbers = #tpu.dot_dimension_numbers<[1], [0], [0], [1], [0, 0, 1, 1], [], []>} : vector<8x8xbf16>, vector<8x8xbf16>, vector<8x8xf32> -> vector<8x8xf32>
    %53 = arith.truncf %52 : vector<8x8xf32> to vector<8x8xbf16>
    %c0_26 = arith.constant 0 : index
    %c0_27 = arith.constant 0 : index
    %54 = vector.load %arg7[%c0_26, %c0_27] : memref<32x32xbf16, #tpu.memory_space<vmem>>, vector<8x32xbf16>
    %cst_28 = arith.constant dense<0.000000e+00> : vector<8x32xf32>
    %55 = tpu.matmul %53, %54, %cst_28 {dimension_numbers = #tpu.dot_dimension_numbers<[1], [0], [0], [1], [0, 0, 1, 1], [], []>} : vector<8x8xbf16>, vector<8x32xbf16>, vector<8x32xf32> -> vector<8x32xf32>
    %56 = arith.addf %29, %55 : vector<8x32xf32>
    %57 = vector.extract_strided_slice %23 {offsets = [0, 8], sizes = [8, 8], strides = [1, 1]} : vector<8x32xf32> to vector<8x8xf32>
    %58 = arith.truncf %57 : vector<8x8xf32> to vector<8x8xbf16>
    %59 = vector.extract_strided_slice %24 {offsets = [0, 8], sizes = [8, 8], strides = [1, 1]} : vector<8x32xf32> to vector<8x8xf32>
    %60 = arith.truncf %59 : vector<8x8xf32> to vector<8x8xbf16>
    %61 = vector.extract_strided_slice %25 {offsets = [0, 8], sizes = [8, 8], strides = [1, 1]} : vector<8x32xf32> to vector<8x8xf32>
    %62 = arith.truncf %61 : vector<8x8xf32> to vector<8x8xbf16>
    %cst_29 = arith.constant dense<0.000000e+00> : vector<8x8xf32>
    %63 = tpu.matmul %58, %60, %cst_29 {dimension_numbers = #tpu.dot_dimension_numbers<[1], [1], [0], [0], [0, 0, 1, 0], [], []>} : vector<8x8xbf16>, vector<8x8xbf16>, vector<8x8xf32> -> vector<8x8xf32>
    %cst_30 = arith.constant 0.353553385 : f32
    %64 = vector.broadcast %cst_30 : f32 to vector<8x8xf32>
    %65 = arith.mulf %63, %64 : vector<8x8xf32>
    %cst_31 = arith.constant -1.000000e+09 : f32
    %66 = vector.broadcast %cst_31 : f32 to vector<8x8xf32>
    %67 = arith.select %13, %66, %65 : vector<8x8xi1>, vector<8x8xf32>
    %cst_32 = arith.constant dense<0xFF800000> : vector<8xf32>
    %68 = vector.multi_reduction <maximumf>, %67, %cst_32 [1] : vector<8x8xf32> to vector<8xf32>
    %69 = vector.shape_cast %68 : vector<8xf32> to vector<8x1xf32>
    %70 = vector.broadcast %69 : vector<8x1xf32> to vector<8x8xf32>
    %71 = arith.subf %67, %70 : vector<8x8xf32>
    %72 = math.exp %71 : vector<8x8xf32>
    %cst_33 = arith.constant dense<0.000000e+00> : vector<8xf32>
    %73 = vector.multi_reduction <add>, %72, %cst_33 [1] : vector<8x8xf32> to vector<8xf32>
    %74 = vector.shape_cast %73 : vector<8xf32> to vector<8x1xf32>
    %75 = tpu.reciprocal %74 {approx = true} : vector<8x1xf32> -> vector<8x1xf32>
    %76 = vector.broadcast %75 : vector<8x1xf32> to vector<8x8xf32>
    %77 = arith.mulf %72, %76 : vector<8x8xf32>
    %78 = arith.truncf %77 : vector<8x8xf32> to vector<8x8xbf16>
    %cst_34 = arith.constant dense<0.000000e+00> : vector<8x8xf32>
    %79 = tpu.matmul %78, %62, %cst_34 {dimension_numbers = #tpu.dot_dimension_numbers<[1], [0], [0], [1], [0, 0, 1, 1], [], []>} : vector<8x8xbf16>, vector<8x8xbf16>, vector<8x8xf32> -> vector<8x8xf32>
    %80 = arith.truncf %79 : vector<8x8xf32> to vector<8x8xbf16>
    %c8 = arith.constant 8 : index
    %c0_35 = arith.constant 0 : index
    %81 = vector.load %arg7[%c8, %c0_35] : memref<32x32xbf16, #tpu.memory_space<vmem>>, vector<8x32xbf16>
    %cst_36 = arith.constant dense<0.000000e+00> : vector<8x32xf32>
    %82 = tpu.matmul %80, %81, %cst_36 {dimension_numbers = #tpu.dot_dimension_numbers<[1], [0], [0], [1], [0, 0, 1, 1], [], []>} : vector<8x8xbf16>, vector<8x32xbf16>, vector<8x32xf32> -> vector<8x32xf32>
    %83 = arith.addf %56, %82 : vector<8x32xf32>
    %84 = vector.extract_strided_slice %23 {offsets = [0, 16], sizes = [8, 8], strides = [1, 1]} : vector<8x32xf32> to vector<8x8xf32>
    %85 = arith.truncf %84 : vector<8x8xf32> to vector<8x8xbf16>
    %86 = vector.extract_strided_slice %24 {offsets = [0, 16], sizes = [8, 8], strides = [1, 1]} : vector<8x32xf32> to vector<8x8xf32>
    %87 = arith.truncf %86 : vector<8x8xf32> to vector<8x8xbf16>
    %88 = vector.extract_strided_slice %25 {offsets = [0, 16], sizes = [8, 8], strides = [1, 1]} : vector<8x32xf32> to vector<8x8xf32>
    %89 = arith.truncf %88 : vector<8x8xf32> to vector<8x8xbf16>
    %cst_37 = arith.constant dense<0.000000e+00> : vector<8x8xf32>
    %90 = tpu.matmul %85, %87, %cst_37 {dimension_numbers = #tpu.dot_dimension_numbers<[1], [1], [0], [0], [0, 0, 1, 0], [], []>} : vector<8x8xbf16>, vector<8x8xbf16>, vector<8x8xf32> -> vector<8x8xf32>
    %cst_38 = arith.constant 0.353553385 : f32
    %91 = vector.broadcast %cst_38 : f32 to vector<8x8xf32>
    %92 = arith.mulf %90, %91 : vector<8x8xf32>
    %cst_39 = arith.constant -1.000000e+09 : f32
    %93 = vector.broadcast %cst_39 : f32 to vector<8x8xf32>
    %94 = arith.select %13, %93, %92 : vector<8x8xi1>, vector<8x8xf32>
    %cst_40 = arith.constant dense<0xFF800000> : vector<8xf32>
    %95 = vector.multi_reduction <maximumf>, %94, %cst_40 [1] : vector<8x8xf32> to vector<8xf32>
    %96 = vector.shape_cast %95 : vector<8xf32> to vector<8x1xf32>
    %97 = vector.broadcast %96 : vector<8x1xf32> to vector<8x8xf32>
    %98 = arith.subf %94, %97 : vector<8x8xf32>
    %99 = math.exp %98 : vector<8x8xf32>
    %cst_41 = arith.constant dense<0.000000e+00> : vector<8xf32>
    %100 = vector.multi_reduction <add>, %99, %cst_41 [1] : vector<8x8xf32> to vector<8xf32>
    %101 = vector.shape_cast %100 : vector<8xf32> to vector<8x1xf32>
    %102 = tpu.reciprocal %101 {approx = true} : vector<8x1xf32> -> vector<8x1xf32>
    %103 = vector.broadcast %102 : vector<8x1xf32> to vector<8x8xf32>
    %104 = arith.mulf %99, %103 : vector<8x8xf32>
    %105 = arith.truncf %104 : vector<8x8xf32> to vector<8x8xbf16>
    %cst_42 = arith.constant dense<0.000000e+00> : vector<8x8xf32>
    %106 = tpu.matmul %105, %89, %cst_42 {dimension_numbers = #tpu.dot_dimension_numbers<[1], [0], [0], [1], [0, 0, 1, 1], [], []>} : vector<8x8xbf16>, vector<8x8xbf16>, vector<8x8xf32> -> vector<8x8xf32>
    %107 = arith.truncf %106 : vector<8x8xf32> to vector<8x8xbf16>
    %c16 = arith.constant 16 : index
    %c0_43 = arith.constant 0 : index
    %108 = vector.load %arg7[%c16, %c0_43] : memref<32x32xbf16, #tpu.memory_space<vmem>>, vector<8x32xbf16>
    %cst_44 = arith.constant dense<0.000000e+00> : vector<8x32xf32>
    %109 = tpu.matmul %107, %108, %cst_44 {dimension_numbers = #tpu.dot_dimension_numbers<[1], [0], [0], [1], [0, 0, 1, 1], [], []>} : vector<8x8xbf16>, vector<8x32xbf16>, vector<8x32xf32> -> vector<8x32xf32>
    %110 = arith.addf %83, %109 : vector<8x32xf32>
    %111 = vector.extract_strided_slice %23 {offsets = [0, 24], sizes = [8, 8], strides = [1, 1]} : vector<8x32xf32> to vector<8x8xf32>
    %112 = arith.truncf %111 : vector<8x8xf32> to vector<8x8xbf16>
    %113 = vector.extract_strided_slice %24 {offsets = [0, 24], sizes = [8, 8], strides = [1, 1]} : vector<8x32xf32> to vector<8x8xf32>
    %114 = arith.truncf %113 : vector<8x8xf32> to vector<8x8xbf16>
    %115 = vector.extract_strided_slice %25 {offsets = [0, 24], sizes = [8, 8], strides = [1, 1]} : vector<8x32xf32> to vector<8x8xf32>
    %116 = arith.truncf %115 : vector<8x8xf32> to vector<8x8xbf16>
    %cst_45 = arith.constant dense<0.000000e+00> : vector<8x8xf32>
    %117 = tpu.matmul %112, %114, %cst_45 {dimension_numbers = #tpu.dot_dimension_numbers<[1], [1], [0], [0], [0, 0, 1, 0], [], []>} : vector<8x8xbf16>, vector<8x8xbf16>, vector<8x8xf32> -> vector<8x8xf32>
    %cst_46 = arith.constant 0.353553385 : f32
    %118 = vector.broadcast %cst_46 : f32 to vector<8x8xf32>
    %119 = arith.mulf %117, %118 : vector<8x8xf32>
    %cst_47 = arith.constant -1.000000e+09 : f32
    %120 = vector.broadcast %cst_47 : f32 to vector<8x8xf32>
    %121 = arith.select %13, %120, %119 : vector<8x8xi1>, vector<8x8xf32>
    %cst_48 = arith.constant dense<0xFF800000> : vector<8xf32>
    %122 = vector.multi_reduction <maximumf>, %121, %cst_48 [1] : vector<8x8xf32> to vector<8xf32>
    %123 = vector.shape_cast %122 : vector<8xf32> to vector<8x1xf32>
    %124 = vector.broadcast %123 : vector<8x1xf32> to vector<8x8xf32>
    %125 = arith.subf %121, %124 : vector<8x8xf32>
    %126 = math.exp %125 : vector<8x8xf32>
    %cst_49 = arith.constant dense<0.000000e+00> : vector<8xf32>
    %127 = vector.multi_reduction <add>, %126, %cst_49 [1] : vector<8x8xf32> to vector<8xf32>
    %128 = vector.shape_cast %127 : vector<8xf32> to vector<8x1xf32>
    %129 = tpu.reciprocal %128 {approx = true} : vector<8x1xf32> -> vector<8x1xf32>
    %130 = vector.broadcast %129 : vector<8x1xf32> to vector<8x8xf32>
    %131 = arith.mulf %126, %130 : vector<8x8xf32>
    %132 = arith.truncf %131 : vector<8x8xf32> to vector<8x8xbf16>
    %cst_50 = arith.constant dense<0.000000e+00> : vector<8x8xf32>
    %133 = tpu.matmul %132, %116, %cst_50 {dimension_numbers = #tpu.dot_dimension_numbers<[1], [0], [0], [1], [0, 0, 1, 1], [], []>} : vector<8x8xbf16>, vector<8x8xbf16>, vector<8x8xf32> -> vector<8x8xf32>
    %134 = arith.truncf %133 : vector<8x8xf32> to vector<8x8xbf16>
    %c24 = arith.constant 24 : index
    %c0_51 = arith.constant 0 : index
    %135 = vector.load %arg7[%c24, %c0_51] : memref<32x32xbf16, #tpu.memory_space<vmem>>, vector<8x32xbf16>
    %cst_52 = arith.constant dense<0.000000e+00> : vector<8x32xf32>
    %136 = tpu.matmul %134, %135, %cst_52 {dimension_numbers = #tpu.dot_dimension_numbers<[1], [0], [0], [1], [0, 0, 1, 1], [], []>} : vector<8x8xbf16>, vector<8x32xbf16>, vector<8x32xf32> -> vector<8x32xf32>
    %137 = arith.addf %110, %136 : vector<8x32xf32>
    %138 = arith.addf %137, %2 : vector<8x32xf32>
    %cst_53 = arith.constant dense<0.000000e+00> : vector<8xf32>
    %139 = vector.multi_reduction <add>, %138, %cst_53 [1] : vector<8x32xf32> to vector<8xf32>
    %140 = vector.shape_cast %139 : vector<8xf32> to vector<8x1xf32>
    %cst_54 = arith.constant 3.200000e+01 : f32
    %141 = vector.broadcast %cst_54 : f32 to vector<8x1xf32>
    %142 = arith.divf %140, %141 : vector<8x1xf32>
    %143 = vector.broadcast %142 : vector<8x1xf32> to vector<8x32xf32>
    %144 = arith.subf %138, %143 : vector<8x32xf32>
    %145 = arith.mulf %144, %144 : vector<8x32xf32>
    %cst_55 = arith.constant dense<0.000000e+00> : vector<8xf32>
    %146 = vector.multi_reduction <add>, %145, %cst_55 [1] : vector<8x32xf32> to vector<8xf32>
    %147 = vector.shape_cast %146 : vector<8xf32> to vector<8x1xf32>
    %cst_56 = arith.constant 3.100000e+01 : f32
    %148 = vector.broadcast %cst_56 : f32 to vector<8x1xf32>
    %149 = arith.divf %147, %148 : vector<8x1xf32>
    %c0_57 = arith.constant 0 : index
    %c0_58 = arith.constant 0 : index
    %150 = vector.load %arg9[%c0_57, %c0_58] : memref<1x32xf32, #tpu.memory_space<vmem>>, vector<1x32xf32>
    %151 = vector.broadcast %142 : vector<8x1xf32> to vector<8x32xf32>
    %152 = arith.subf %138, %151 : vector<8x32xf32>
    %153 = math.sqrt %149 : vector<8x1xf32>
    %cst_59 = arith.constant 9.99999997E-7 : f32
    %154 = vector.broadcast %cst_59 : f32 to vector<8x1xf32>
    %155 = arith.addf %153, %154 : vector<8x1xf32>
    %156 = vector.broadcast %155 : vector<8x1xf32> to vector<8x32xf32>
    %157 = arith.divf %152, %156 : vector<8x32xf32>
    %158 = vector.broadcast %150 : vector<1x32xf32> to vector<8x32xf32>
    %159 = arith.mulf %158, %157 : vector<8x32xf32>
    %c0_60 = arith.constant 0 : index
    %c0_61 = arith.constant 0 : index
    %160 = vector.load %arg10[%c0_60, %c0_61] : memref<1x32xf32, #tpu.memory_space<vmem>>, vector<1x32xf32>
    %161 = vector.broadcast %160 : vector<1x32xf32> to vector<8x32xf32>
    %162 = arith.addf %159, %161 : vector<8x32xf32>
    %163 = arith.truncf %162 : vector<8x32xf32> to vector<8x32xbf16>
    %c0_62 = arith.constant 0 : index
    %c0_63 = arith.constant 0 : index
    %164 = vector.load %arg11[%c0_62, %c0_63] : memref<32x32xbf16, #tpu.memory_space<vmem>>, vector<32x32xbf16>
    %cst_64 = arith.constant dense<0.000000e+00> : vector<8x32xf32>
    %165 = tpu.matmul %163, %164, %cst_64 {dimension_numbers = #tpu.dot_dimension_numbers<[1], [0], [0], [1], [0, 0, 1, 1], [], []>} : vector<8x32xbf16>, vector<32x32xbf16>, vector<8x32xf32> -> vector<8x32xf32>
    %c0_65 = arith.constant 0 : index
    %c0_66 = arith.constant 0 : index
    %166 = vector.load %arg12[%c0_65, %c0_66] : memref<1x32xf32, #tpu.memory_space<vmem>>, vector<1x32xf32>
    %167 = vector.broadcast %166 : vector<1x32xf32> to vector<8x32xf32>
    %168 = arith.addf %165, %167 : vector<8x32xf32>
    %c0_67 = arith.constant 0 : index
    %c0_68 = arith.constant 0 : index
    %169 = vector.load %arg13[%c0_67, %c0_68] : memref<32x64xbf16, #tpu.memory_space<vmem>>, vector<32x64xbf16>
    %cst_69 = arith.constant dense<0.000000e+00> : vector<8x64xf32>
    %170 = tpu.matmul %4, %169, %cst_69 {dimension_numbers = #tpu.dot_dimension_numbers<[1], [0], [0], [1], [0, 0, 1, 1], [], []>} : vector<8x32xbf16>, vector<32x64xbf16>, vector<8x64xf32> -> vector<8x64xf32>
    %c0_70 = arith.constant 0 : index
    %c0_71 = arith.constant 0 : index
    %171 = vector.load %arg14[%c0_70, %c0_71] : memref<1x64xf32, #tpu.memory_space<vmem>>, vector<1x64xf32>
    %172 = vector.broadcast %171 : vector<1x64xf32> to vector<8x64xf32>
    %173 = arith.addf %170, %172 : vector<8x64xf32>
    %174 = vector.extract_strided_slice %173 {offsets = [0, 0], sizes = [8, 32], strides = [1, 1]} : vector<8x64xf32> to vector<8x32xf32>
    %175 = vector.extract_strided_slice %173 {offsets = [0, 32], sizes = [8, 32], strides = [1, 1]} : vector<8x64xf32> to vector<8x32xf32>
    %cst_72 = arith.constant 0.000000e+00 : f32
    %176 = vector.broadcast %cst_72 : f32 to vector<8x32xf32>
    %c0_73 = arith.constant 0 : index
    %c0_74 = arith.constant 0 : index
    %177 = vector.load %arg16[%c0_73, %c0_74] : memref<1x32xf32, #tpu.memory_space<vmem>>, vector<1x32xf32>
    %178 = vector.broadcast %177 : vector<1x32xf32> to vector<8x32xf32>
    %179 = arith.addf %176, %178 : vector<8x32xf32>
    %180 = vector.extract_strided_slice %168 {offsets = [0, 0], sizes = [8, 8], strides = [1, 1]} : vector<8x32xf32> to vector<8x8xf32>
    %181 = arith.truncf %180 : vector<8x8xf32> to vector<8x8xbf16>
    %182 = vector.extract_strided_slice %174 {offsets = [0, 0], sizes = [8, 8], strides = [1, 1]} : vector<8x32xf32> to vector<8x8xf32>
    %183 = arith.truncf %182 : vector<8x8xf32> to vector<8x8xbf16>
    %184 = vector.extract_strided_slice %175 {offsets = [0, 0], sizes = [8, 8], strides = [1, 1]} : vector<8x32xf32> to vector<8x8xf32>
    %185 = arith.truncf %184 : vector<8x8xf32> to vector<8x8xbf16>
    %cst_75 = arith.constant dense<0.000000e+00> : vector<8x8xf32>
    %186 = tpu.matmul %181, %183, %cst_75 {dimension_numbers = #tpu.dot_dimension_numbers<[1], [1], [0], [0], [0, 0, 1, 0], [], []>} : vector<8x8xbf16>, vector<8x8xbf16>, vector<8x8xf32> -> vector<8x8xf32>
    %cst_76 = arith.constant 0.353553385 : f32
    %187 = vector.broadcast %cst_76 : f32 to vector<8x8xf32>
    %188 = arith.mulf %186, %187 : vector<8x8xf32>
    %cst_77 = arith.constant -1.000000e+09 : f32
    %189 = vector.shape_cast %17 : vector<1x8xi1> to vector<1x8xi1>
    %190 = vector.broadcast %189 : vector<1x8xi1> to vector<8x8xi1>
    %191 = vector.broadcast %cst_77 : f32 to vector<8x8xf32>
    %192 = arith.select %190, %191, %188 : vector<8x8xi1>, vector<8x8xf32>
    %cst_78 = arith.constant dense<0xFF800000> : vector<8xf32>
    %193 = vector.multi_reduction <maximumf>, %192, %cst_78 [1] : vector<8x8xf32> to vector<8xf32>
    %194 = vector.shape_cast %193 : vector<8xf32> to vector<8x1xf32>
    %195 = vector.broadcast %194 : vector<8x1xf32> to vector<8x8xf32>
    %196 = arith.subf %192, %195 : vector<8x8xf32>
    %197 = math.exp %196 : vector<8x8xf32>
    %cst_79 = arith.constant dense<0.000000e+00> : vector<8xf32>
    %198 = vector.multi_reduction <add>, %197, %cst_79 [1] : vector<8x8xf32> to vector<8xf32>
    %199 = vector.shape_cast %198 : vector<8xf32> to vector<8x1xf32>
    %200 = tpu.reciprocal %199 {approx = true} : vector<8x1xf32> -> vector<8x1xf32>
    %201 = vector.broadcast %200 : vector<8x1xf32> to vector<8x8xf32>
    %202 = arith.mulf %197, %201 : vector<8x8xf32>
    %203 = arith.truncf %202 : vector<8x8xf32> to vector<8x8xbf16>
    %cst_80 = arith.constant dense<0.000000e+00> : vector<8x8xf32>
    %204 = tpu.matmul %203, %185, %cst_80 {dimension_numbers = #tpu.dot_dimension_numbers<[1], [0], [0], [1], [0, 0, 1, 1], [], []>} : vector<8x8xbf16>, vector<8x8xbf16>, vector<8x8xf32> -> vector<8x8xf32>
    %205 = arith.truncf %204 : vector<8x8xf32> to vector<8x8xbf16>
    %c0_81 = arith.constant 0 : index
    %c0_82 = arith.constant 0 : index
    %206 = vector.load %arg15[%c0_81, %c0_82] : memref<32x32xbf16, #tpu.memory_space<vmem>>, vector<8x32xbf16>
    %cst_83 = arith.constant dense<0.000000e+00> : vector<8x32xf32>
    %207 = tpu.matmul %205, %206, %cst_83 {dimension_numbers = #tpu.dot_dimension_numbers<[1], [0], [0], [1], [0, 0, 1, 1], [], []>} : vector<8x8xbf16>, vector<8x32xbf16>, vector<8x32xf32> -> vector<8x32xf32>
    %208 = arith.addf %179, %207 : vector<8x32xf32>
    %209 = vector.extract_strided_slice %168 {offsets = [0, 8], sizes = [8, 8], strides = [1, 1]} : vector<8x32xf32> to vector<8x8xf32>
    %210 = arith.truncf %209 : vector<8x8xf32> to vector<8x8xbf16>
    %211 = vector.extract_strided_slice %174 {offsets = [0, 8], sizes = [8, 8], strides = [1, 1]} : vector<8x32xf32> to vector<8x8xf32>
    %212 = arith.truncf %211 : vector<8x8xf32> to vector<8x8xbf16>
    %213 = vector.extract_strided_slice %175 {offsets = [0, 8], sizes = [8, 8], strides = [1, 1]} : vector<8x32xf32> to vector<8x8xf32>
    %214 = arith.truncf %213 : vector<8x8xf32> to vector<8x8xbf16>
    %cst_84 = arith.constant dense<0.000000e+00> : vector<8x8xf32>
    %215 = tpu.matmul %210, %212, %cst_84 {dimension_numbers = #tpu.dot_dimension_numbers<[1], [1], [0], [0], [0, 0, 1, 0], [], []>} : vector<8x8xbf16>, vector<8x8xbf16>, vector<8x8xf32> -> vector<8x8xf32>
    %cst_85 = arith.constant 0.353553385 : f32
    %216 = vector.broadcast %cst_85 : f32 to vector<8x8xf32>
    %217 = arith.mulf %215, %216 : vector<8x8xf32>
    %cst_86 = arith.constant -1.000000e+09 : f32
    %218 = vector.shape_cast %17 : vector<1x8xi1> to vector<1x8xi1>
    %219 = vector.broadcast %218 : vector<1x8xi1> to vector<8x8xi1>
    %220 = vector.broadcast %cst_86 : f32 to vector<8x8xf32>
    %221 = arith.select %219, %220, %217 : vector<8x8xi1>, vector<8x8xf32>
    %cst_87 = arith.constant dense<0xFF800000> : vector<8xf32>
    %222 = vector.multi_reduction <maximumf>, %221, %cst_87 [1] : vector<8x8xf32> to vector<8xf32>
    %223 = vector.shape_cast %222 : vector<8xf32> to vector<8x1xf32>
    %224 = vector.broadcast %223 : vector<8x1xf32> to vector<8x8xf32>
    %225 = arith.subf %221, %224 : vector<8x8xf32>
    %226 = math.exp %225 : vector<8x8xf32>
    %cst_88 = arith.constant dense<0.000000e+00> : vector<8xf32>
    %227 = vector.multi_reduction <add>, %226, %cst_88 [1] : vector<8x8xf32> to vector<8xf32>
    %228 = vector.shape_cast %227 : vector<8xf32> to vector<8x1xf32>
    %229 = tpu.reciprocal %228 {approx = true} : vector<8x1xf32> -> vector<8x1xf32>
    %230 = vector.broadcast %229 : vector<8x1xf32> to vector<8x8xf32>
    %231 = arith.mulf %226, %230 : vector<8x8xf32>
    %232 = arith.truncf %231 : vector<8x8xf32> to vector<8x8xbf16>
    %cst_89 = arith.constant dense<0.000000e+00> : vector<8x8xf32>
    %233 = tpu.matmul %232, %214, %cst_89 {dimension_numbers = #tpu.dot_dimension_numbers<[1], [0], [0], [1], [0, 0, 1, 1], [], []>} : vector<8x8xbf16>, vector<8x8xbf16>, vector<8x8xf32> -> vector<8x8xf32>
    %234 = arith.truncf %233 : vector<8x8xf32> to vector<8x8xbf16>
    %c8_90 = arith.constant 8 : index
    %c0_91 = arith.constant 0 : index
    %235 = vector.load %arg15[%c8_90, %c0_91] : memref<32x32xbf16, #tpu.memory_space<vmem>>, vector<8x32xbf16>
    %cst_92 = arith.constant dense<0.000000e+00> : vector<8x32xf32>
    %236 = tpu.matmul %234, %235, %cst_92 {dimension_numbers = #tpu.dot_dimension_numbers<[1], [0], [0], [1], [0, 0, 1, 1], [], []>} : vector<8x8xbf16>, vector<8x32xbf16>, vector<8x32xf32> -> vector<8x32xf32>
    %237 = arith.addf %208, %236 : vector<8x32xf32>
    %238 = vector.extract_strided_slice %168 {offsets = [0, 16], sizes = [8, 8], strides = [1, 1]} : vector<8x32xf32> to vector<8x8xf32>
    %239 = arith.truncf %238 : vector<8x8xf32> to vector<8x8xbf16>
    %240 = vector.extract_strided_slice %174 {offsets = [0, 16], sizes = [8, 8], strides = [1, 1]} : vector<8x32xf32> to vector<8x8xf32>
    %241 = arith.truncf %240 : vector<8x8xf32> to vector<8x8xbf16>
    %242 = vector.extract_strided_slice %175 {offsets = [0, 16], sizes = [8, 8], strides = [1, 1]} : vector<8x32xf32> to vector<8x8xf32>
    %243 = arith.truncf %242 : vector<8x8xf32> to vector<8x8xbf16>
    %cst_93 = arith.constant dense<0.000000e+00> : vector<8x8xf32>
    %244 = tpu.matmul %239, %241, %cst_93 {dimension_numbers = #tpu.dot_dimension_numbers<[1], [1], [0], [0], [0, 0, 1, 0], [], []>} : vector<8x8xbf16>, vector<8x8xbf16>, vector<8x8xf32> -> vector<8x8xf32>
    %cst_94 = arith.constant 0.353553385 : f32
    %245 = vector.broadcast %cst_94 : f32 to vector<8x8xf32>
    %246 = arith.mulf %244, %245 : vector<8x8xf32>
    %cst_95 = arith.constant -1.000000e+09 : f32
    %247 = vector.shape_cast %17 : vector<1x8xi1> to vector<1x8xi1>
    %248 = vector.broadcast %247 : vector<1x8xi1> to vector<8x8xi1>
    %249 = vector.broadcast %cst_95 : f32 to vector<8x8xf32>
    %250 = arith.select %248, %249, %246 : vector<8x8xi1>, vector<8x8xf32>
    %cst_96 = arith.constant dense<0xFF800000> : vector<8xf32>
    %251 = vector.multi_reduction <maximumf>, %250, %cst_96 [1] : vector<8x8xf32> to vector<8xf32>
    %252 = vector.shape_cast %251 : vector<8xf32> to vector<8x1xf32>
    %253 = vector.broadcast %252 : vector<8x1xf32> to vector<8x8xf32>
    %254 = arith.subf %250, %253 : vector<8x8xf32>
    %255 = math.exp %254 : vector<8x8xf32>
    %cst_97 = arith.constant dense<0.000000e+00> : vector<8xf32>
    %256 = vector.multi_reduction <add>, %255, %cst_97 [1] : vector<8x8xf32> to vector<8xf32>
    %257 = vector.shape_cast %256 : vector<8xf32> to vector<8x1xf32>
    %258 = tpu.reciprocal %257 {approx = true} : vector<8x1xf32> -> vector<8x1xf32>
    %259 = vector.broadcast %258 : vector<8x1xf32> to vector<8x8xf32>
    %260 = arith.mulf %255, %259 : vector<8x8xf32>
    %261 = arith.truncf %260 : vector<8x8xf32> to vector<8x8xbf16>
    %cst_98 = arith.constant dense<0.000000e+00> : vector<8x8xf32>
    %262 = tpu.matmul %261, %243, %cst_98 {dimension_numbers = #tpu.dot_dimension_numbers<[1], [0], [0], [1], [0, 0, 1, 1], [], []>} : vector<8x8xbf16>, vector<8x8xbf16>, vector<8x8xf32> -> vector<8x8xf32>
    %263 = arith.truncf %262 : vector<8x8xf32> to vector<8x8xbf16>
    %c16_99 = arith.constant 16 : index
    %c0_100 = arith.constant 0 : index
    %264 = vector.load %arg15[%c16_99, %c0_100] : memref<32x32xbf16, #tpu.memory_space<vmem>>, vector<8x32xbf16>
    %cst_101 = arith.constant dense<0.000000e+00> : vector<8x32xf32>
    %265 = tpu.matmul %263, %264, %cst_101 {dimension_numbers = #tpu.dot_dimension_numbers<[1], [0], [0], [1], [0, 0, 1, 1], [], []>} : vector<8x8xbf16>, vector<8x32xbf16>, vector<8x32xf32> -> vector<8x32xf32>
    %266 = arith.addf %237, %265 : vector<8x32xf32>
    %267 = vector.extract_strided_slice %168 {offsets = [0, 24], sizes = [8, 8], strides = [1, 1]} : vector<8x32xf32> to vector<8x8xf32>
    %268 = arith.truncf %267 : vector<8x8xf32> to vector<8x8xbf16>
    %269 = vector.extract_strided_slice %174 {offsets = [0, 24], sizes = [8, 8], strides = [1, 1]} : vector<8x32xf32> to vector<8x8xf32>
    %270 = arith.truncf %269 : vector<8x8xf32> to vector<8x8xbf16>
    %271 = vector.extract_strided_slice %175 {offsets = [0, 24], sizes = [8, 8], strides = [1, 1]} : vector<8x32xf32> to vector<8x8xf32>
    %272 = arith.truncf %271 : vector<8x8xf32> to vector<8x8xbf16>
    %cst_102 = arith.constant dense<0.000000e+00> : vector<8x8xf32>
    %273 = tpu.matmul %268, %270, %cst_102 {dimension_numbers = #tpu.dot_dimension_numbers<[1], [1], [0], [0], [0, 0, 1, 0], [], []>} : vector<8x8xbf16>, vector<8x8xbf16>, vector<8x8xf32> -> vector<8x8xf32>
    %cst_103 = arith.constant 0.353553385 : f32
    %274 = vector.broadcast %cst_103 : f32 to vector<8x8xf32>
    %275 = arith.mulf %273, %274 : vector<8x8xf32>
    %cst_104 = arith.constant -1.000000e+09 : f32
    %276 = vector.shape_cast %17 : vector<1x8xi1> to vector<1x8xi1>
    %277 = vector.broadcast %276 : vector<1x8xi1> to vector<8x8xi1>
    %278 = vector.broadcast %cst_104 : f32 to vector<8x8xf32>
    %279 = arith.select %277, %278, %275 : vector<8x8xi1>, vector<8x8xf32>
    %cst_105 = arith.constant dense<0xFF800000> : vector<8xf32>
    %280 = vector.multi_reduction <maximumf>, %279, %cst_105 [1] : vector<8x8xf32> to vector<8xf32>
    %281 = vector.shape_cast %280 : vector<8xf32> to vector<8x1xf32>
    %282 = vector.broadcast %281 : vector<8x1xf32> to vector<8x8xf32>
    %283 = arith.subf %279, %282 : vector<8x8xf32>
    %284 = math.exp %283 : vector<8x8xf32>
    %cst_106 = arith.constant dense<0.000000e+00> : vector<8xf32>
    %285 = vector.multi_reduction <add>, %284, %cst_106 [1] : vector<8x8xf32> to vector<8xf32>
    %286 = vector.shape_cast %285 : vector<8xf32> to vector<8x1xf32>
    %287 = tpu.reciprocal %286 {approx = true} : vector<8x1xf32> -> vector<8x1xf32>
    %288 = vector.broadcast %287 : vector<8x1xf32> to vector<8x8xf32>
    %289 = arith.mulf %284, %288 : vector<8x8xf32>
    %290 = arith.truncf %289 : vector<8x8xf32> to vector<8x8xbf16>
    %cst_107 = arith.constant dense<0.000000e+00> : vector<8x8xf32>
    %291 = tpu.matmul %290, %272, %cst_107 {dimension_numbers = #tpu.dot_dimension_numbers<[1], [0], [0], [1], [0, 0, 1, 1], [], []>} : vector<8x8xbf16>, vector<8x8xbf16>, vector<8x8xf32> -> vector<8x8xf32>
    %292 = arith.truncf %291 : vector<8x8xf32> to vector<8x8xbf16>
    %c24_108 = arith.constant 24 : index
    %c0_109 = arith.constant 0 : index
    %293 = vector.load %arg15[%c24_108, %c0_109] : memref<32x32xbf16, #tpu.memory_space<vmem>>, vector<8x32xbf16>
    %cst_110 = arith.constant dense<0.000000e+00> : vector<8x32xf32>
    %294 = tpu.matmul %292, %293, %cst_110 {dimension_numbers = #tpu.dot_dimension_numbers<[1], [0], [0], [1], [0, 0, 1, 1], [], []>} : vector<8x8xbf16>, vector<8x32xbf16>, vector<8x32xf32> -> vector<8x32xf32>
    %295 = arith.addf %266, %294 : vector<8x32xf32>
    %296 = arith.addf %295, %162 : vector<8x32xf32>
    %cst_111 = arith.constant dense<0.000000e+00> : vector<8xf32>
    %297 = vector.multi_reduction <add>, %296, %cst_111 [1] : vector<8x32xf32> to vector<8xf32>
    %298 = vector.shape_cast %297 : vector<8xf32> to vector<8x1xf32>
    %cst_112 = arith.constant 3.200000e+01 : f32
    %299 = vector.broadcast %cst_112 : f32 to vector<8x1xf32>
    %300 = arith.divf %298, %299 : vector<8x1xf32>
    %301 = vector.broadcast %300 : vector<8x1xf32> to vector<8x32xf32>
    %302 = arith.subf %296, %301 : vector<8x32xf32>
    %303 = arith.mulf %302, %302 : vector<8x32xf32>
    %cst_113 = arith.constant dense<0.000000e+00> : vector<8xf32>
    %304 = vector.multi_reduction <add>, %303, %cst_113 [1] : vector<8x32xf32> to vector<8xf32>
    %305 = vector.shape_cast %304 : vector<8xf32> to vector<8x1xf32>
    %cst_114 = arith.constant 3.100000e+01 : f32
    %306 = vector.broadcast %cst_114 : f32 to vector<8x1xf32>
    %307 = arith.divf %305, %306 : vector<8x1xf32>
    %c0_115 = arith.constant 0 : index
    %c0_116 = arith.constant 0 : index
    %308 = vector.load %arg17[%c0_115, %c0_116] : memref<1x32xf32, #tpu.memory_space<vmem>>, vector<1x32xf32>
    %309 = vector.broadcast %300 : vector<8x1xf32> to vector<8x32xf32>
    %310 = arith.subf %296, %309 : vector<8x32xf32>
    %311 = math.sqrt %307 : vector<8x1xf32>
    %cst_117 = arith.constant 9.99999997E-7 : f32
    %312 = vector.broadcast %cst_117 : f32 to vector<8x1xf32>
    %313 = arith.addf %311, %312 : vector<8x1xf32>
    %314 = vector.broadcast %313 : vector<8x1xf32> to vector<8x32xf32>
    %315 = arith.divf %310, %314 : vector<8x32xf32>
    %316 = vector.broadcast %308 : vector<1x32xf32> to vector<8x32xf32>
    %317 = arith.mulf %316, %315 : vector<8x32xf32>
    %c0_118 = arith.constant 0 : index
    %c0_119 = arith.constant 0 : index
    %318 = vector.load %arg18[%c0_118, %c0_119] : memref<1x32xf32, #tpu.memory_space<vmem>>, vector<1x32xf32>
    %319 = vector.broadcast %318 : vector<1x32xf32> to vector<8x32xf32>
    %320 = arith.addf %317, %319 : vector<8x32xf32>
    %321 = arith.truncf %320 : vector<8x32xf32> to vector<8x32xbf16>
    %c0_120 = arith.constant 0 : index
    %c0_121 = arith.constant 0 : index
    %322 = vector.load %arg19[%c0_120, %c0_121] : memref<32x64xbf16, #tpu.memory_space<vmem>>, vector<32x64xbf16>
    %cst_122 = arith.constant dense<0.000000e+00> : vector<8x64xf32>
    %323 = tpu.matmul %321, %322, %cst_122 {dimension_numbers = #tpu.dot_dimension_numbers<[1], [0], [0], [1], [0, 0, 1, 1], [], []>} : vector<8x32xbf16>, vector<32x64xbf16>, vector<8x64xf32> -> vector<8x64xf32>
    %c0_123 = arith.constant 0 : index
    %c0_124 = arith.constant 0 : index
    %324 = vector.load %arg20[%c0_123, %c0_124] : memref<1x64xf32, #tpu.memory_space<vmem>>, vector<1x64xf32>
    %325 = vector.broadcast %324 : vector<1x64xf32> to vector<8x64xf32>
    %326 = arith.addf %323, %325 : vector<8x64xf32>
    %cst_125 = arith.constant 0.000000e+00 : f32
    %327 = vector.broadcast %cst_125 : f32 to vector<8x64xf32>
    %328 = arith.maximumf %326, %327 : vector<8x64xf32>
    %329 = arith.truncf %328 : vector<8x64xf32> to vector<8x64xbf16>
    %c0_126 = arith.constant 0 : index
    %c0_127 = arith.constant 0 : index
    %330 = vector.load %arg21[%c0_126, %c0_127] : memref<64x32xbf16, #tpu.memory_space<vmem>>, vector<64x32xbf16>
    %cst_128 = arith.constant dense<0.000000e+00> : vector<8x32xf32>
    %331 = tpu.matmul %329, %330, %cst_128 {dimension_numbers = #tpu.dot_dimension_numbers<[1], [0], [0], [1], [0, 0, 1, 1], [], []>} : vector<8x64xbf16>, vector<64x32xbf16>, vector<8x32xf32> -> vector<8x32xf32>
    %c0_129 = arith.constant 0 : index
    %c0_130 = arith.constant 0 : index
    %332 = vector.load %arg22[%c0_129, %c0_130] : memref<1x32xf32, #tpu.memory_space<vmem>>, vector<1x32xf32>
    %333 = vector.broadcast %332 : vector<1x32xf32> to vector<8x32xf32>
    %334 = arith.addf %331, %333 : vector<8x32xf32>
    %335 = arith.addf %334, %320 : vector<8x32xf32>
    %cst_131 = arith.constant dense<0.000000e+00> : vector<8xf32>
    %336 = vector.multi_reduction <add>, %335, %cst_131 [1] : vector<8x32xf32> to vector<8xf32>
    %337 = vector.shape_cast %336 : vector<8xf32> to vector<8x1xf32>
    %cst_132 = arith.constant 3.200000e+01 : f32
    %338 = vector.broadcast %cst_132 : f32 to vector<8x1xf32>
    %339 = arith.divf %337, %338 : vector<8x1xf32>
    %340 = vector.broadcast %339 : vector<8x1xf32> to vector<8x32xf32>
    %341 = arith.subf %335, %340 : vector<8x32xf32>
    %342 = arith.mulf %341, %341 : vector<8x32xf32>
    %cst_133 = arith.constant dense<0.000000e+00> : vector<8xf32>
    %343 = vector.multi_reduction <add>, %342, %cst_133 [1] : vector<8x32xf32> to vector<8xf32>
    %344 = vector.shape_cast %343 : vector<8xf32> to vector<8x1xf32>
    %cst_134 = arith.constant 3.100000e+01 : f32
    %345 = vector.broadcast %cst_134 : f32 to vector<8x1xf32>
    %346 = arith.divf %344, %345 : vector<8x1xf32>
    %c0_135 = arith.constant 0 : index
    %c0_136 = arith.constant 0 : index
    %347 = vector.load %arg23[%c0_135, %c0_136] : memref<1x32xf32, #tpu.memory_space<vmem>>, vector<1x32xf32>
    %348 = vector.broadcast %339 : vector<8x1xf32> to vector<8x32xf32>
    %349 = arith.subf %335, %348 : vector<8x32xf32>
    %350 = math.sqrt %346 : vector<8x1xf32>
    %cst_137 = arith.constant 9.99999997E-7 : f32
    %351 = vector.broadcast %cst_137 : f32 to vector<8x1xf32>
    %352 = arith.addf %350, %351 : vector<8x1xf32>
    %353 = vector.broadcast %352 : vector<8x1xf32> to vector<8x32xf32>
    %354 = arith.divf %349, %353 : vector<8x32xf32>
    %355 = vector.broadcast %347 : vector<1x32xf32> to vector<8x32xf32>
    %356 = arith.mulf %355, %354 : vector<8x32xf32>
    %c0_138 = arith.constant 0 : index
    %c0_139 = arith.constant 0 : index
    %357 = vector.load %arg24[%c0_138, %c0_139] : memref<1x32xf32, #tpu.memory_space<vmem>>, vector<1x32xf32>
    %358 = vector.broadcast %357 : vector<1x32xf32> to vector<8x32xf32>
    %359 = arith.addf %356, %358 : vector<8x32xf32>
    %360 = arith.truncf %359 : vector<8x32xf32> to vector<8x32xbf16>
    %c0_140 = arith.constant 0 : index
    %c0_141 = arith.constant 0 : index
    %c0_142 = arith.constant 0 : index
    %361 = vector.load %arg25[%c0_140, %c0_141, %c0_142] : memref<1x8x32xbf16, #tpu.memory_space<vmem>>, vector<1x8x32xbf16>
    %362 = vector.shape_cast %361 : vector<1x8x32xbf16> to vector<8x32xbf16>
    %363 = vector.shape_cast %360 : vector<8x32xbf16> to vector<1x8x32xbf16>
    tpu.vector_store %arg25[%c0_140, %c0_141, %c0_142], %363 {strides = array<i32>} : memref<1x8x32xbf16, #tpu.memory_space<vmem>>, vector<1x8x32xbf16>,
    return
  }
  func.func @transform_0(%arg0: i32) -> (i32, i32, i32) {
    %c0_i32 = arith.constant 0 : i32
    %c0_i32_0 = arith.constant 0 : i32
    %c0_i32_1 = arith.constant 0 : i32
    return %arg0, %c0_i32, %c0_i32_0 : i32, i32, i32
  }
  func.func @transform_1(%arg0: i32) -> (i32, i32, i32) {
    %c0_i32 = arith.constant 0 : i32
    %c0_i32_0 = arith.constant 0 : i32
    %c0_i32_1 = arith.constant 0 : i32
    return %arg0, %c0_i32, %c0_i32_0 : i32, i32, i32
  }
  func.func @transform_2(%arg0: i32) -> (i32, i32, i32) {
    %c0_i32 = arith.constant 0 : i32
    %c0_i32_0 = arith.constant 0 : i32
    %c0_i32_1 = arith.constant 0 : i32
    return %arg0, %c0_i32, %c0_i32_0 : i32, i32, i32
  }
  func.func @transform_3(%arg0: i32) -> (i32, i32, i32) {
    %c0_i32 = arith.constant 0 : i32
    %c0_i32_0 = arith.constant 0 : i32
    %c0_i32_1 = arith.constant 0 : i32
    return %arg0, %c0_i32, %c0_i32_0 : i32, i32, i32
  }
  func.func @transform_4(%arg0: i32) -> (i32, i32) {
    %c0_i32 = arith.constant 0 : i32
    %c0_i32_0 = arith.constant 0 : i32
    %c0_i32_1 = arith.constant 0 : i32
    return %c0_i32, %c0_i32_0 : i32, i32
  }
  func.func @transform_5(%arg0: i32) -> (i32, i32) {
    %c0_i32 = arith.constant 0 : i32
    %c0_i32_0 = arith.constant 0 : i32
    %c0_i32_1 = arith.constant 0 : i32
    return %c0_i32, %c0_i32_0 : i32, i32
  }
  func.func @transform_6(%arg0: i32) -> (i32, i32) {
    %c0_i32 = arith.constant 0 : i32
    %c0_i32_0 = arith.constant 0 : i32
    %c0_i32_1 = arith.constant 0 : i32
    return %c0_i32, %c0_i32_0 : i32, i32
  }
  func.func @transform_7(%arg0: i32) -> (i32, i32) {
    %c0_i32 = arith.constant 0 : i32
    %c0_i32_0 = arith.constant 0 : i32
    %c0_i32_1 = arith.constant 0 : i32
    return %c0_i32, %c0_i32_0 : i32, i32
  }
  func.func @transform_8(%arg0: i32) -> (i32, i32) {
    %c0_i32 = arith.constant 0 : i32
    %c0_i32_0 = arith.constant 0 : i32
    %c0_i32_1 = arith.constant 0 : i32
    return %c0_i32, %c0_i32_0 : i32, i32
  }
  func.func @transform_9(%arg0: i32) -> (i32, i32) {
    %c0_i32 = arith.constant 0 : i32
    %c0_i32_0 = arith.constant 0 : i32
    %c0_i32_1 = arith.constant 0 : i32
    return %c0_i32, %c0_i32_0 : i32, i32
  }
  func.func @transform_10(%arg0: i32) -> (i32, i32) {
    %c0_i32 = arith.constant 0 : i32
    %c0_i32_0 = arith.constant 0 : i32
    %c0_i32_1 = arith.constant 0 : i32
    return %c0_i32, %c0_i32_0 : i32, i32
  }
  func.func @transform_11(%arg0: i32) -> (i32, i32) {
    %c0_i32 = arith.constant 0 : i32
    %c0_i32_0 = arith.constant 0 : i32
    %c0_i32_1 = arith.constant 0 : i32
    return %c0_i32, %c0_i32_0 : i32, i32
  }
  func.func @transform_12(%arg0: i32) -> (i32, i32) {
    %c0_i32 = arith.constant 0 : i32
    %c0_i32_0 = arith.constant 0 : i32
    %c0_i32_1 = arith.constant 0 : i32
    return %c0_i32, %c0_i32_0 : i32, i32
  }
  func.func @transform_13(%arg0: i32) -> (i32, i32) {
    %c0_i32 = arith.constant 0 : i32
    %c0_i32_0 = arith.constant 0 : i32
    %c0_i32_1 = arith.constant 0 : i32
    return %c0_i32, %c0_i32_0 : i32, i32
  }
  func.func @transform_14(%arg0: i32) -> (i32, i32) {
    %c0_i32 = arith.constant 0 : i32
    %c0_i32_0 = arith.constant 0 : i32
    %c0_i32_1 = arith.constant 0 : i32
    return %c0_i32, %c0_i32_0 : i32, i32
  }
  func.func @transform_15(%arg0: i32) -> (i32, i32) {
    %c0_i32 = arith.constant 0 : i32
    %c0_i32_0 = arith.constant 0 : i32
    %c0_i32_1 = arith.constant 0 : i32
    return %c0_i32, %c0_i32_0 : i32, i32
  }
  func.func @transform_16(%arg0: i32) -> (i32, i32) {
    %c0_i32 = arith.constant 0 : i32
    %c0_i32_0 = arith.constant 0 : i32
    %c0_i32_1 = arith.constant 0 : i32
    return %c0_i32, %c0_i32_0 : i32, i32
  }
  func.func @transform_17(%arg0: i32) -> (i32, i32) {
    %c0_i32 = arith.constant 0 : i32
    %c0_i32_0 = arith.constant 0 : i32
    %c0_i32_1 = arith.constant 0 : i32
    return %c0_i32, %c0_i32_0 : i32, i32
  }
  func.func @transform_18(%arg0: i32) -> (i32, i32) {
    %c0_i32 = arith.constant 0 : i32
    %c0_i32_0 = arith.constant 0 : i32
    %c0_i32_1 = arith.constant 0 : i32
    return %c0_i32, %c0_i32_0 : i32, i32
  }
  func.func @transform_19(%arg0: i32) -> (i32, i32) {
    %c0_i32 = arith.constant 0 : i32
    %c0_i32_0 = arith.constant 0 : i32
    %c0_i32_1 = arith.constant 0 : i32
    return %c0_i32, %c0_i32_0 : i32, i32
  }
  func.func @transform_20(%arg0: i32) -> (i32, i32) {
    %c0_i32 = arith.constant 0 : i32
    %c0_i32_0 = arith.constant 0 : i32
    %c0_i32_1 = arith.constant 0 : i32
    return %c0_i32, %c0_i32_0 : i32, i32
  }
  func.func @transform_21(%arg0: i32) -> (i32, i32) {
    %c0_i32 = arith.constant 0 : i32
    %c0_i32_0 = arith.constant 0 : i32
    %c0_i32_1 = arith.constant 0 : i32
    return %c0_i32, %c0_i32_0 : i32, i32
  }
  func.func @transform_22(%arg0: i32) -> (i32, i32) {
    %c0_i32 = arith.constant 0 : i32
    %c0_i32_0 = arith.constant 0 : i32
    %c0_i32_1 = arith.constant 0 : i32
    return %c0_i32, %c0_i32_0 : i32, i32
  }
  func.func @transform_23(%arg0: i32) -> (i32, i32) {
    %c0_i32 = arith.constant 0 : i32
    %c0_i32_0 = arith.constant 0 : i32
    %c0_i32_1 = arith.constant 0 : i32
    return %c0_i32, %c0_i32_0 : i32, i32
  }
  func.func @transform_24(%arg0: i32) -> (i32, i32, i32) {
    %c0_i32 = arith.constant 0 : i32
    %c0_i32_0 = arith.constant 0 : i32
    %c0_i32_1 = arith.constant 0 : i32
    return %arg0, %c0_i32, %c0_i32_0 : i32, i32, i32
  }
}

</mosaic_0001>

<llo_original>
// kernel: fwd.9
$region0: #{fwd.9}
  #allocation0 [shape = 'u32[]', space=smem, size = 0x4, offset = 0x4, fixed_abs, tag = 'smem constant byte address 0x4 - core index']
  #allocation1 [shape = 'u32[144,128]{1,0:T(1,128)}', space=vmem, size = 0x12000, scoped, tag = 'internal scratch']
  %s0 = inlined_call_operand.vmem [shape: bf16[16,32], index: 0, kind: input, shape index: {}]
  %s1 = inlined_call_operand.vmem [shape: bf16[32,13], index: 1, kind: input, shape index: {}]
  %s2 = inlined_call_operand.hbm [shape: f32[16,13], index: 2, kind: output, shape index: {}]
  %s3 = sld [smem:[#allocation0]]
  $region18: #{fwd.9} parent=0
    _
  %s5 = ssub.s32 1, %s3
  %s6 = scalar_select 0, %s5, %s3
  $region1: #{fwd.9} parent=0
    #allocation2 [shape = 'u8[8192]{0}', space=vmem, size = 0x2000, scoped, tag = 'output window, operand 0, single buffered']
    #allocation3 [shape = 's32[1]{0}', space=sflag, size = 0x4, scoped, tag = 'scoped memory for fwd.9']
    %7 = vsyncpa [#allocation3], 0
    // Predicated region
    $region2: #{fwd.9} parent=1 // pred_check
      _
    $region3: #{fwd.9} parent=1 // pred_check_branch
      %9 = sbr.rel (0) target = $region5
    $region4: #{fwd.9} parent=1 // pred_region
      _
    $region5: #{fwd.9} parent=1 // pred_fallthru
      _
    // Predicated region
    $region6: #{fwd.9} parent=1 // pred_check
      _
    $region7: #{fwd.9} parent=1 // pred_check_branch
      %11 = sbr.rel (0) target = $region9
    $region8: #{fwd.9} parent=1 // pred_region
      _
    $region9: #{fwd.9} parent=1 // pred_fallthru
      _
    %v13 = vld [vmem:[%s0] sm:$0xf]
    %v14 = vld [vmem:[%s0 + $0x4] sm:$0xf]
    %v15 = vld [vmem:[%s1] sm:$0xf]
    %v16 = vld [vmem:[%s1 + $0x4] sm:$0xf]
    %v17 = vld [vmem:[%s1 + $0x8] sm:$0xf]
    %v18 = vld [vmem:[%s1 + $0xc] sm:$0xf]
    %v21 = vunpack.c.l.b16 %v13
    %v22 = vunpack.c.l.b16 %v14
    %v23 = vpack.c.b16 %v22, %v21
    %v28 = vunpack.c.l.b16 %v15
    %v29 = vunpack.c.l.b16 %v16
    %v30 = vunpack.c.l.b16 %v17
    %v31 = vunpack.c.l.b16 %v18
    %v32 = vpack.c.b16 %v29, %v28
    %v33 = vpack.c.b16 %v31, %v30
    %vm36 = vcmask 261120
    %v38 = vsel %vm36, %v23, 0
    %40 = vmatprep.subr.bf16.mxu0 0
    %41 = vmatpush1.bf16.msra.mxu0 %v32
    %42 = vmatprep.subr.bf16.mxu0 0
    %43 = vmatpush1.bf16.msra.mxu0 %v33
    %44 = vmatprep.subr.bf16.mxu0 0
    %45 = vmatpush1.bf16.msra.mxu0 0
    %46 = vmatprep.subr.bf16.mxu0 0
    %47 = vmatpush1.bf16.msra.mxu0 0
    %48 = vmatprep.subr.bf16.mxu0 0
    %49 = vmatpush1.bf16.msra.mxu0 0
    %50 = vmatprep.subr.bf16.mxu0 0
    %51 = vmatpush1.bf16.msra.mxu0 0
    %52 = vmatprep.subr.bf16.mxu0 0
    %53 = vmatpush1.bf16.msra.mxu0 0
    %54 = vmatprep.subr.bf16.mxu0 0
    %55 = vmatpush1.bf16.msra.mxu0 0
    %56 = vmatprep.subr.bf16.mxu0 0
    %57 = vmatpush1.bf16.msra.mxu0 0
    %58 = vmatprep.subr.bf16.mxu0 0
    %59 = vmatpush1.bf16.msra.mxu0 0
    %60 = vmatprep.subr.bf16.mxu0 0
    %61 = vmatpush1.bf16.msra.mxu0 0
    %62 = vmatprep.subr.bf16.mxu0 0
    %63 = vmatpush1.bf16.msra.mxu0 0
    %64 = vmatprep.subr.bf16.mxu0 0
    %65 = vmatpush1.bf16.msra.mxu0 0
    %66 = vmatprep.subr.bf16.mxu0 0
    %67 = vmatpush1.bf16.msra.mxu0 0
    %68 = vmatprep.subr.bf16.mxu0 0
    %69 = vmatpush1.bf16.msra.mxu0 0
    %70 = vmatprep.subr.bf16.mxu0 0
    %71 = vmatpush1.bf16.msra.mxu0 0
    %72 = vmatprep.mubr.bf16.mxu0 0
    %73 = vmatmul.mubr.bf16.gmra.mrb[0].mxu0 %v38
    %v74 = vpop.f32.mrb[0].mxu0
    %v75 = vadd.f32 0.0, %v74
    %v76 = vpop.f32.mrb[0].mxu0
    %v77 = vpop.f32.mrb[0].mxu0
    %v78 = vadd.f32 0.0, %v77
    %v79 = vpop.f32.mrb[0].mxu0
    %80 = vdwg.mxu0
    %vm81 = vcmask 105472
    %82 = vst.msk [vmem:[#allocation2] sm:$0xff] %vm81, %v75
    %83 = vst.msk [vmem:[#allocation2 + $0x8] sm:$0xff] %vm81, %v78
    // Predicated region
    $region10: #{fwd.9} parent=1 // pred_check
      _
    $region11: #{fwd.9} parent=1 // pred_check_branch
      %85 = sbr.rel (0) target = $region13
    $region12: #{fwd.9} parent=1 // pred_region
      %s87 = ssub.s32 256, 256
      %88 = vsyncadd [#allocation3], %s87
      %s89 = sshll.u32 [#allocation2], 4
      %s90 = int_to_ptr.vmem [resolvable:$true] %s89
      %95 = dma.vmem_to_hbm [thread:$0]  %s90, 256, %s2, [#allocation3], 128, 128, 8
    $region13: #{fwd.9} parent=1 // pred_fallthru
      _
    // Predicated region
    $region14: #{fwd.9} parent=1 // pred_check
      _
    $region15: #{fwd.9} parent=1 // pred_check_branch
      %97 = sbr.rel (0) target = $region17
    $region16: #{fwd.9} parent=1 // pred_region
      %98 = dma.done [#allocation3], 256
    $region17: #{fwd.9} parent=1 // pred_fallthru
      _
    %99 = vsyncpa [#allocation3], 1

// kernel: fwd.5
$region0: #{fwd.5}
  #allocation0 [shape = 'u32[]', space=smem, size = 0x4, offset = 0x4, fixed_abs, tag = 'smem constant byte address 0x4 - core index']
  #allocation1 [shape = 'u32[144,128]{1,0:T(1,128)}', space=vmem, size = 0x12000, scoped, tag = 'internal scratch']
  %s0 = inlined_call_operand.vmem [shape: bf16[2,8,32], index: 0, kind: input, shape index: {}]
  %s1 = inlined_call_operand.vmem [shape: bf16[32,96], index: 1, kind: input, shape index: {}]
  %s2 = inlined_call_operand.vmem [shape: f32[1,96], index: 2, kind: input, shape index: {}]
  %s3 = inlined_call_operand.vmem [shape: bf16[32,32], index: 3, kind: input, shape index: {}]
  %s4 = inlined_call_operand.vmem [shape: f32[1,32], index: 4, kind: input, shape index: {}]
  %s5 = inlined_call_operand.vmem [shape: f32[1,32], index: 5, kind: input, shape index: {}]
  %s6 = inlined_call_operand.vmem [shape: f32[1,32], index: 6, kind: input, shape index: {}]
  %s7 = inlined_call_operand.vmem [shape: bf16[32,64], index: 7, kind: input, shape index: {}]
  %s8 = inlined_call_operand.vmem [shape: f32[1,64], index: 8, kind: input, shape index: {}]
  %s9 = inlined_call_operand.vmem [shape: bf16[64,32], index: 9, kind: input, shape index: {}]
  %s10 = inlined_call_operand.vmem [shape: f32[1,32], index: 10, kind: input, shape index: {}]
  %s11 = inlined_call_operand.vmem [shape: f32[1,32], index: 11, kind: input, shape index: {}]
  %s12 = inlined_call_operand.vmem [shape: f32[1,32], index: 12, kind: input, shape index: {}]
  %s13 = inlined_call_operand.vmem [shape: bf16[2,8,32], index: 13, kind: output, shape index: {}]
  %s14 = sld [smem:[#allocation0]]
  $region85: #{fwd.5} parent=0
    _
  %s16 = ssub.s32 1, %s14
  %s17 = scalar_select 0, %s16, %s14
  loop: start=0, step=1, limit=4
  $region2: #{fwd.5} parent=0 // loop_pre_header
    _
  $region3: #{fwd.5} parent=0 // loop_header
    %s19 = sphi 0, %s23
    %p20 = scmp.ge.s32.totalorder %s19, 4
    %s29 = sphi 0, %s31
    %s32 = sphi 0, %s29
    %s33 = sphi 0, %s32
    %s49 = sphi 0, %s33
    %s53 = sphi 0, %s53
    %s55 = sphi 0, %s53
    %s56 = sphi 0, %s55
    %s70 = sphi 0, %s56
    %s74 = sphi 0, %s74
    %s76 = sphi 0, %s74
    %s77 = sphi 0, %s76
    %s91 = sphi 0, %s77
    %s95 = sphi 0, %s95
    %s97 = sphi 0, %s95
    %s98 = sphi 0, %s97
    %s112 = sphi 0, %s98
    %s116 = sphi 0, %s116
    %s118 = sphi 0, %s116
    %s119 = sphi 0, %s118
    %s133 = sphi 0, %s119
    %s137 = sphi 0, %s137
    %s139 = sphi 0, %s137
    %s140 = sphi 0, %s139
    %s154 = sphi 0, %s140
    %s158 = sphi 0, %s158
    %s160 = sphi 0, %s158
    %s161 = sphi 0, %s160
    %s175 = sphi 0, %s161
    %s179 = sphi 0, %s179
    %s181 = sphi 0, %s179
    %s182 = sphi 0, %s181
    %s196 = sphi 0, %s182
    %s200 = sphi 0, %s200
    %s202 = sphi 0, %s200
    %s203 = sphi 0, %s202
    %s217 = sphi 0, %s203
    %s221 = sphi 0, %s221
    %s223 = sphi 0, %s221
    %s224 = sphi 0, %s223
    %s238 = sphi 0, %s224
    %s242 = sphi 0, %s242
    %s244 = sphi 0, %s242
    %s245 = sphi 0, %s244
    %s259 = sphi 0, %s245
    %s263 = sphi 0, %s263
    %s265 = sphi 0, %s263
    %s266 = sphi 0, %s265
    %s280 = sphi 0, %s266
    %s284 = sphi 0, %s284
    %s286 = sphi 0, %s284
    %s287 = sphi 0, %s286
    %s301 = sphi 0, %s287
    %s307 = sphi 0, %s309
    %s310 = sphi 0, %s307
    %s311 = sphi 0, %s310
    %s327 = sphi 0, %s311
  $region4: #{fwd.5} parent=0 // loop_header_branch
    %22 = sbr.rel (%p20) target = $region8
  $region5: #{fwd.5} parent=0 // loop_body
    %s24 = ssub.s32 %s19, 1
    %s25 = ssub.s32 %s19, 2
    %s26 = sadd.s32 %s19, 1
    %s27 = ssub.s32 %s19, %s26
    %p28 = scmp.eq.s32.totalorder %s27, 0
    %s30 = sadd.s32 %s29, 1
    %s31 = scalar_select %p28, %s29, %s30
    %p34 = pneg %p28
    %p35 = scmp.eq.s32.totalorder %s19, 1
    %p36 = por %p34, %p35
    %p37 = scmp.ne.s32.totalorder %s29, %s32
    %p38 = scmp.eq.s32.totalorder %s19, 0
    %p39 = por %p37, %p38
    %p40 = scmp.ne.s32.totalorder %s29, %s32
    %p41 = scmp.eq.s32.totalorder %s24, 1
    %p42 = por %p40, %p41
    %p43 = scmp.ne.s32.totalorder %s32, %s33
    %p44 = scmp.eq.s32.totalorder %s24, 0
    %p45 = por %p43, %p44
    %p46 = scmp.ne.s32.totalorder %s32, %s33
    %p47 = scmp.eq.s32.totalorder %s25, 1
    %p48 = por %p46, %p47
    %p50 = scmp.ne.s32.totalorder %s33, %s49
    %p51 = scmp.eq.s32.totalorder %s25, 0
    %p52 = por %p50, %p51
    %s54 = sadd.s32 %s53, 1
    %p57 = scmp.eq.s32.totalorder %s19, 1
    %p58 = scmp.ne.s32.totalorder %s53, %s55
    %p59 = scmp.eq.s32.totalorder %s19, 0
    %p60 = por %p58, %p59
    %p61 = scmp.ne.s32.totalorder %s53, %s55
    %p62 = scmp.eq.s32.totalorder %s24, 1
    %p63 = por %p61, %p62
    %p64 = scmp.ne.s32.totalorder %s55, %s56
    %p65 = scmp.eq.s32.totalorder %s24, 0
    %p66 = por %p64, %p65
    %p67 = scmp.ne.s32.totalorder %s55, %s56
    %p68 = scmp.eq.s32.totalorder %s25, 1
    %p69 = por %p67, %p68
    %p71 = scmp.ne.s32.totalorder %s56, %s70
    %p72 = scmp.eq.s32.totalorder %s25, 0
    %p73 = por %p71, %p72
    %s75 = sadd.s32 %s74, 1
    %p78 = scmp.eq.s32.totalorder %s19, 1
    %p79 = scmp.ne.s32.totalorder %s74, %s76
    %p80 = scmp.eq.s32.totalorder %s19, 0
    %p81 = por %p79, %p80
    %p82 = scmp.ne.s32.totalorder %s74, %s76
    %p83 = scmp.eq.s32.totalorder %s24, 1
    %p84 = por %p82, %p83
    %p85 = scmp.ne.s32.totalorder %s76, %s77
    %p86 = scmp.eq.s32.totalorder %s24, 0
    %p87 = por %p85, %p86
    %p88 = scmp.ne.s32.totalorder %s76, %s77
    %p89 = scmp.eq.s32.totalorder %s25, 1
    %p90 = por %p88, %p89
    %p92 = scmp.ne.s32.totalorder %s77, %s91
    %p93 = scmp.eq.s32.totalorder %s25, 0
    %p94 = por %p92, %p93
    %s96 = sadd.s32 %s95, 1
    %p99 = scmp.eq.s32.totalorder %s19, 1
    %p100 = scmp.ne.s32.totalorder %s95, %s97
    %p101 = scmp.eq.s32.totalorder %s19, 0
    %p102 = por %p100, %p101
    %p103 = scmp.ne.s32.totalorder %s95, %s97
    %p104 = scmp.eq.s32.totalorder %s24, 1
    %p105 = por %p103, %p104
    %p106 = scmp.ne.s32.totalorder %s97, %s98
    %p107 = scmp.eq.s32.totalorder %s24, 0
    %p108 = por %p106, %p107
    %p109 = scmp.ne.s32.totalorder %s97, %s98
    %p110 = scmp.eq.s32.totalorder %s25, 1
    %p111 = por %p109, %p110
    %p113 = scmp.ne.s32.totalorder %s98, %s112
    %p114 = scmp.eq.s32.totalorder %s25, 0
    %p115 = por %p113, %p114
    %s117 = sadd.s32 %s116, 1
    %p120 = scmp.eq.s32.totalorder %s19, 1
    %p121 = scmp.ne.s32.totalorder %s116, %s118
    %p122 = scmp.eq.s32.totalorder %s19, 0
    %p123 = por %p121, %p122
    %p124 = scmp.ne.s32.totalorder %s116, %s118
    %p125 = scmp.eq.s32.totalorder %s24, 1
    %p126 = por %p124, %p125
    %p127 = scmp.ne.s32.totalorder %s118, %s119
    %p128 = scmp.eq.s32.totalorder %s24, 0
    %p129 = por %p127, %p128
    %p130 = scmp.ne.s32.totalorder %s118, %s119
    %p131 = scmp.eq.s32.totalorder %s25, 1
    %p132 = por %p130, %p131
    %p134 = scmp.ne.s32.totalorder %s119, %s133
    %p135 = scmp.eq.s32.totalorder %s25, 0
    %p136 = por %p134, %p135
    %s138 = sadd.s32 %s137, 1
    %p141 = scmp.eq.s32.totalorder %s19, 1
    %p142 = scmp.ne.s32.totalorder %s137, %s139
    %p143 = scmp.eq.s32.totalorder %s19, 0
    %p144 = por %p142, %p143
    %p145 = scmp.ne.s32.totalorder %s137, %s139
    %p146 = scmp.eq.s32.totalorder %s24, 1
    %p147 = por %p145, %p146
    %p148 = scmp.ne.s32.totalorder %s139, %s140
    %p149 = scmp.eq.s32.totalorder %s24, 0
    %p150 = por %p148, %p149
    %p151 = scmp.ne.s32.totalorder %s139, %s140
    %p152 = scmp.eq.s32.totalorder %s25, 1
    %p153 = por %p151, %p152
    %p155 = scmp.ne.s32.totalorder %s140, %s154
    %p156 = scmp.eq.s32.totalorder %s25, 0
    %p157 = por %p155, %p156
    %s159 = sadd.s32 %s158, 1
    %p162 = scmp.eq.s32.totalorder %s19, 1
    %p163 = scmp.ne.s32.totalorder %s158, %s160
    %p164 = scmp.eq.s32.totalorder %s19, 0
    %p165 = por %p163, %p164
    %p166 = scmp.ne.s32.totalorder %s158, %s160
    %p167 = scmp.eq.s32.totalorder %s24, 1
    %p168 = por %p166, %p167
    %p169 = scmp.ne.s32.totalorder %s160, %s161
    %p170 = scmp.eq.s32.totalorder %s24, 0
    %p171 = por %p169, %p170
    %p172 = scmp.ne.s32.totalorder %s160, %s161
    %p173 = scmp.eq.s32.totalorder %s25, 1
    %p174 = por %p172, %p173
    %p176 = scmp.ne.s32.totalorder %s161, %s175
    %p177 = scmp.eq.s32.totalorder %s25, 0
    %p178 = por %p176, %p177
    %s180 = sadd.s32 %s179, 1
    %p183 = scmp.eq.s32.totalorder %s19, 1
    %p184 = scmp.ne.s32.totalorder %s179, %s181
    %p185 = scmp.eq.s32.totalorder %s19, 0
    %p186 = por %p184, %p185
    %p187 = scmp.ne.s32.totalorder %s179, %s181
    %p188 = scmp.eq.s32.totalorder %s24, 1
    %p189 = por %p187, %p188
    %p190 = scmp.ne.s32.totalorder %s181, %s182
    %p191 = scmp.eq.s32.totalorder %s24, 0
    %p192 = por %p190, %p191
    %p193 = scmp.ne.s32.totalorder %s181, %s182
    %p194 = scmp.eq.s32.totalorder %s25, 1
    %p195 = por %p193, %p194
    %p197 = scmp.ne.s32.totalorder %s182, %s196
    %p198 = scmp.eq.s32.totalorder %s25, 0
    %p199 = por %p197, %p198
    %s201 = sadd.s32 %s200, 1
    %p204 = scmp.eq.s32.totalorder %s19, 1
    %p205 = scmp.ne.s32.totalorder %s200, %s202
    %p206 = scmp.eq.s32.totalorder %s19, 0
    %p207 = por %p205, %p206
    %p208 = scmp.ne.s32.totalorder %s200, %s202
    %p209 = scmp.eq.s32.totalorder %s24, 1
    %p210 = por %p208, %p209
    %p211 = scmp.ne.s32.totalorder %s202, %s203
    %p212 = scmp.eq.s32.totalorder %s24, 0
    %p213 = por %p211, %p212
    %p214 = scmp.ne.s32.totalorder %s202, %s203
    %p215 = scmp.eq.s32.totalorder %s25, 1
    %p216 = por %p214, %p215
    %p218 = scmp.ne.s32.totalorder %s203, %s217
    %p219 = scmp.eq.s32.totalorder %s25, 0
    %p220 = por %p218, %p219
    %s222 = sadd.s32 %s221, 1
    %p225 = scmp.eq.s32.totalorder %s19, 1
    %p226 = scmp.ne.s32.totalorder %s221, %s223
    %p227 = scmp.eq.s32.totalorder %s19, 0
    %p228 = por %p226, %p227
    %p229 = scmp.ne.s32.totalorder %s221, %s223
    %p230 = scmp.eq.s32.totalorder %s24, 1
    %p231 = por %p229, %p230
    %p232 = scmp.ne.s32.totalorder %s223, %s224
    %p233 = scmp.eq.s32.totalorder %s24, 0
    %p234 = por %p232, %p233
    %p235 = scmp.ne.s32.totalorder %s223, %s224
    %p236 = scmp.eq.s32.totalorder %s25, 1
    %p237 = por %p235, %p236
    %p239 = scmp.ne.s32.totalorder %s224, %s238
    %p240 = scmp.eq.s32.totalorder %s25, 0
    %p241 = por %p239, %p240
    %s243 = sadd.s32 %s242, 1
    %p246 = scmp.eq.s32.totalorder %s19, 1
    %p247 = scmp.ne.s32.totalorder %s242, %s244
    %p248 = scmp.eq.s32.totalorder %s19, 0
    %p249 = por %p247, %p248
    %p250 = scmp.ne.s32.totalorder %s242, %s244
    %p251 = scmp.eq.s32.totalorder %s24, 1
    %p252 = por %p250, %p251
    %p253 = scmp.ne.s32.totalorder %s244, %s245
    %p254 = scmp.eq.s32.totalorder %s24, 0
    %p255 = por %p253, %p254
    %p256 = scmp.ne.s32.totalorder %s244, %s245
    %p257 = scmp.eq.s32.totalorder %s25, 1
    %p258 = por %p256, %p257
    %p260 = scmp.ne.s32.totalorder %s245, %s259
    %p261 = scmp.eq.s32.totalorder %s25, 0
    %p262 = por %p260, %p261
    %s264 = sadd.s32 %s263, 1
    %p267 = scmp.eq.s32.totalorder %s19, 1
    %p268 = scmp.ne.s32.totalorder %s263, %s265
    %p269 = scmp.eq.s32.totalorder %s19, 0
    %p270 = por %p268, %p269
    %p271 = scmp.ne.s32.totalorder %s263, %s265
    %p272 = scmp.eq.s32.totalorder %s24, 1
    %p273 = por %p271, %p272
    %p274 = scmp.ne.s32.totalorder %s265, %s266
    %p275 = scmp.eq.s32.totalorder %s24, 0
    %p276 = por %p274, %p275
    %p277 = scmp.ne.s32.totalorder %s265, %s266
    %p278 = scmp.eq.s32.totalorder %s25, 1
    %p279 = por %p277, %p278
    %p281 = scmp.ne.s32.totalorder %s266, %s280
    %p282 = scmp.eq.s32.totalorder %s25, 0
    %p283 = por %p281, %p282
    %s285 = sadd.s32 %s284, 1
    %p288 = scmp.eq.s32.totalorder %s19, 1
    %p289 = scmp.ne.s32.totalorder %s284, %s286
    %p290 = scmp.eq.s32.totalorder %s19, 0
    %p291 = por %p289, %p290
    %p292 = scmp.ne.s32.totalorder %s284, %s286
    %p293 = scmp.eq.s32.totalorder %s24, 1
    %p294 = por %p292, %p293
    %p295 = scmp.ne.s32.totalorder %s286, %s287
    %p296 = scmp.eq.s32.totalorder %s24, 0
    %p297 = por %p295, %p296
    %p298 = scmp.ne.s32.totalorder %s286, %s287
    %p299 = scmp.eq.s32.totalorder %s25, 1
    %p300 = por %p298, %p299
    %p302 = scmp.ne.s32.totalorder %s287, %s301
    %p303 = scmp.eq.s32.totalorder %s25, 0
    %p304 = por %p302, %p303
    %s305 = ssub.s32 %s19, %s26
    %p306 = scmp.eq.s32.totalorder %s305, 0
    %s308 = sadd.s32 %s307, 1
    %s309 = scalar_select %p306, %s307, %s308
    %p312 = pneg %p306
    %p313 = scmp.eq.s32.totalorder %s19, 1
    %p314 = por %p312, %p313
    %p315 = scmp.ne.s32.totalorder %s307, %s310
    %p316 = scmp.eq.s32.totalorder %s19, 0
    %p317 = por %p315, %p316
    %p318 = scmp.ne.s32.totalorder %s307, %s310
    %p319 = scmp.eq.s32.totalorder %s24, 1
    %p320 = por %p318, %p319
    %p321 = scmp.ne.s32.totalorder %s310, %s311
    %p322 = scmp.eq.s32.totalorder %s24, 0
    %p323 = por %p321, %p322
    %p324 = scmp.ne.s32.totalorder %s310, %s311
    %p325 = scmp.eq.s32.totalorder %s25, 1
    %p326 = por %p324, %p325
    %p328 = scmp.ne.s32.totalorder %s311, %s327
    %p329 = scmp.eq.s32.totalorder %s25, 0
    %p330 = por %p328, %p329
    %p331 = scmp.le.s32.totalorder 1, %s19
    %p332 = scmp.lt.s32.totalorder %s19, 3
    %p333 = pnand %p331, %p332
    %p334 = pneg %p333
    // Predicated region
    $region9: #{fwd.5} parent=5 // pred_check
      _
    $region10: #{fwd.5} parent=5 // pred_check_branch
      %336 = sbr.rel (%p333) target = $region12
    $region11: #{fwd.5} parent=5 // pred_region
      %s337 = ssub.s32 %s19, 1
      // Predicated region
      $region13: #{fwd.5} parent=11 // pred_check
        %p338 = pneg %p66
      $region14: #{fwd.5} parent=11 // pred_check_branch
        %340 = sbr.rel (%p338) target = $region16
      $region15: #{fwd.5} parent=11 // pred_region
        _
      $region16: #{fwd.5} parent=11 // pred_fallthru
        _
      // Predicated region
      $region17: #{fwd.5} parent=11 // pred_check
        %p341 = pneg %p87
      $region18: #{fwd.5} parent=11 // pred_check_branch
        %343 = sbr.rel (%p341) target = $region20
      $region19: #{fwd.5} parent=11 // pred_region
        _
      $region20: #{fwd.5} parent=11 // pred_fallthru
        _
      // Predicated region
      $region21: #{fwd.5} parent=11 // pred_check
        %p344 = pneg %p108
      $region22: #{fwd.5} parent=11 // pred_check_branch
        %346 = sbr.rel (%p344) target = $region24
      $region23: #{fwd.5} parent=11 // pred_region
        _
      $region24: #{fwd.5} parent=11 // pred_fallthru
        _
      // Predicated region
      $region25: #{fwd.5} parent=11 // pred_check
        %p347 = pneg %p129
      $region26: #{fwd.5} parent=11 // pred_check_branch
        %349 = sbr.rel (%p347) target = $region28
      $region27: #{fwd.5} parent=11 // pred_region
        _
      $region28: #{fwd.5} parent=11 // pred_fallthru
        _
      // Predicated region
      $region29: #{fwd.5} parent=11 // pred_check
        %p350 = pneg %p150
      $region30: #{fwd.5} parent=11 // pred_check_branch
        %352 = sbr.rel (%p350) target = $region32
      $region31: #{fwd.5} parent=11 // pred_region
        _
      $region32: #{fwd.5} parent=11 // pred_fallthru
        _
      // Predicated region
      $region33: #{fwd.5} parent=11 // pred_check
        %p353 = pneg %p171
      $region34: #{fwd.5} parent=11 // pred_check_branch
        %355 = sbr.rel (%p353) target = $region36
      $region35: #{fwd.5} parent=11 // pred_region
        _
      $region36: #{fwd.5} parent=11 // pred_fallthru
        _
      // Predicated region
      $region37: #{fwd.5} parent=11 // pred_check
        %p356 = pneg %p192
      $region38: #{fwd.5} parent=11 // pred_check_branch
        %358 = sbr.rel (%p356) target = $region40
      $region39: #{fwd.5} parent=11 // pred_region
        _
      $region40: #{fwd.5} parent=11 // pred_fallthru
        _
      // Predicated region
      $region41: #{fwd.5} parent=11 // pred_check
        %p359 = pneg %p213
      $region42: #{fwd.5} parent=11 // pred_check_branch
        %361 = sbr.rel (%p359) target = $region44
      $region43: #{fwd.5} parent=11 // pred_region
        _
      $region44: #{fwd.5} parent=11 // pred_fallthru
        _
      // Predicated region
      $region45: #{fwd.5} parent=11 // pred_check
        %p362 = pneg %p234
      $region46: #{fwd.5} parent=11 // pred_check_branch
        %364 = sbr.rel (%p362) target = $region48
      $region47: #{fwd.5} parent=11 // pred_region
        _
      $region48: #{fwd.5} parent=11 // pred_fallthru
        _
      // Predicated region
      $region49: #{fwd.5} parent=11 // pred_check
        %p365 = pneg %p255
      $region50: #{fwd.5} parent=11 // pred_check_branch
        %367 = sbr.rel (%p365) target = $region52
      $region51: #{fwd.5} parent=11 // pred_region
        _
      $region52: #{fwd.5} parent=11 // pred_fallthru
        _
      // Predicated region
      $region53: #{fwd.5} parent=11 // pred_check
        %p368 = pneg %p276
      $region54: #{fwd.5} parent=11 // pred_check_branch
        %370 = sbr.rel (%p368) target = $region56
      $region55: #{fwd.5} parent=11 // pred_region
        _
      $region56: #{fwd.5} parent=11 // pred_fallthru
        _
      // Predicated region
      $region57: #{fwd.5} parent=11 // pred_check
        %p371 = pneg %p297
      $region58: #{fwd.5} parent=11 // pred_check_branch
        %373 = sbr.rel (%p371) target = $region60
      $region59: #{fwd.5} parent=11 // pred_region
        _
      $region60: #{fwd.5} parent=11 // pred_fallthru
        _
    $region12: #{fwd.5} parent=5 // pred_fallthru
      _
    %p374 = scmp.lt.s32.totalorder %s19, 2
    // Predicated region
    $region61: #{fwd.5} parent=5 // pred_check
      %p375 = pneg %p374
    $region62: #{fwd.5} parent=5 // pred_check_branch
      %377 = sbr.rel (%p375) target = $region64
    $region63: #{fwd.5} parent=5 // pred_region
      // Predicated region
      $region65: #{fwd.5} parent=63 // pred_check
        %p378 = pneg %p39
      $region66: #{fwd.5} parent=63 // pred_check_branch
        %380 = sbr.rel (%p378) target = $region68
      $region67: #{fwd.5} parent=63 // pred_region
        %p381 = scmp.lt.s32.totalorder %s19, 1
        %s382 = scalar_select %p381, %s19, 1
        %s383 = smul.addr %s382, 4
        %s384 = scalar_lea.vmem %s0, %s383
      $region68: #{fwd.5} parent=63 // pred_fallthru
        _
    $region64: #{fwd.5} parent=5 // pred_fallthru
      _
    %p385 = scmp.le.s32.totalorder 1, %s19
    %p386 = scmp.lt.s32.totalorder %s19, 3
    %p387 = pnand %p385, %p386
    %p388 = pneg %p387
    // Predicated region
    $region69: #{fwd.5} parent=5 // pred_check
      _
    $region70: #{fwd.5} parent=5 // pred_check_branch
      %390 = sbr.rel (%p387) target = $region72
    $region71: #{fwd.5} parent=5 // pred_region
      %s391 = ssub.s32 %s19, 1
      %p392 = scmp.lt.s32.totalorder %s24, 1
      %s393 = scalar_select %p392, %s24, 1
      %s394 = smul.addr %s393, 4
      %s395 = scalar_lea.vmem %s0, %s394
      %p396 = pneg %p45
      %p397 = pneg %p42
      %p398 = pneg %p66
      %p399 = pneg %p63
      %p400 = pneg %p87
      %p401 = pneg %p84
      %p402 = pneg %p108
      %p403 = pneg %p105
      %p404 = pneg %p129
      %p405 = pneg %p126
      %p406 = pneg %p150
      %p407 = pneg %p147
      %p408 = pneg %p171
      %p409 = pneg %p168
      %p410 = pneg %p192
      %p411 = pneg %p189
      %p412 = pneg %p213
      %p413 = pneg %p210
      %p414 = pneg %p234
      %p415 = pneg %p231
      %p416 = pneg %p255
      %p417 = pneg %p252
      %p418 = pneg %p276
      %p419 = pneg %p273
      %p420 = pneg %p297
      %p421 = pneg %p294
      %p422 = pneg %p323
      %p423 = pneg %p320
      %p424 = scmp.lt.s32.totalorder %s24, 1
      %s425 = scalar_select %p424, %s24, 1
      %s426 = smul.addr %s425, 4
      %s427 = scalar_lea.vmem %s13, %s426
      %p428 = scmp.lt.s32.totalorder %s24, 1
      %s429 = scalar_select %p428, %s24, 1
      %s430 = smul.addr %s429, 4
      %s431 = scalar_lea.vmem %s0, %s430
      %p432 = scmp.lt.s32.totalorder %s24, 1
      %s433 = scalar_select %p432, %s24, 1
      %s434 = smul.addr %s433, 4
      %s435 = scalar_lea.vmem %s13, %s434
      %v437 = vld [vmem:[%s431] sm:$0xf]
      %v438 = vunpack.c.l.bf16 %v437
      %v439 = vld [vmem:[%s1] sm:$0xf]
      %v440 = vld [vmem:[%s1 + $0x4] sm:$0xf]
      %v441 = vld [vmem:[%s1 + $0x8] sm:$0xf]
      %v442 = vld [vmem:[%s1 + $0xc] sm:$0xf]
      %v443 = vld [vmem:[%s2] sm:$0x1]
      %v445 = vlaneseq
      %v446 = vshrl.u32 %v445, 7
      %v447 = vsub.s32 0, %v446
      %v448 = vrot.slane %v443, %v447
      %v454 = vunpack.c.l.b16 %v439
      %v455 = vunpack.c.l.b16 %v440
      %v456 = vunpack.c.l.b16 %v441
      %v457 = vunpack.c.l.b16 %v442
      %v458 = vpack.c.b16 %v455, %v454
      %v459 = vpack.c.b16 %v457, %v456
      %vm462 = vcmask 261120
      %v464 = vsel %vm462, %v437, 0
      %466 = vmatprep.subr.bf16.mxu0 0
      %467 = vmatpush1.bf16.msra.mxu0 %v458
      %468 = vmatprep.subr.bf16.mxu0 0
      %469 = vmatpush1.bf16.msra.mxu0 %v459
      %470 = vmatprep.subr.bf16.mxu0 0
      %471 = vmatpush1.bf16.msra.mxu0 0
      %472 = vmatprep.subr.bf16.mxu0 0
      %473 = vmatpush1.bf16.msra.mxu0 0
      %474 = vmatprep.subr.bf16.mxu0 0
      %475 = vmatpush1.bf16.msra.mxu0 0
      %476 = vmatprep.subr.bf16.mxu0 0
      %477 = vmatpush1.bf16.msra.mxu0 0
      %478 = vmatprep.subr.bf16.mxu0 0
      %479 = vmatpush1.bf16.msra.mxu0 0
      %480 = vmatprep.subr.bf16.mxu0 0
      %481 = vmatpush1.bf16.msra.mxu0 0
      %482 = vmatprep.subr.bf16.mxu0 0
      %483 = vmatpush1.bf16.msra.mxu0 0
      %484 = vmatprep.subr.bf16.mxu0 0
      %485 = vmatpush1.bf16.msra.mxu0 0
      %486 = vmatprep.subr.bf16.mxu0 0
      %487 = vmatpush1.bf16.msra.mxu0 0
      %488 = vmatprep.subr.bf16.mxu0 0
      %489 = vmatpush1.bf16.msra.mxu0 0
      %490 = vmatprep.subr.bf16.mxu0 0
      %491 = vmatpush1.bf16.msra.mxu0 0
      %492 = vmatprep.subr.bf16.mxu0 0
      %493 = vmatpush1.bf16.msra.mxu0 0
      %494 = vmatprep.subr.bf16.mxu0 0
      %495 = vmatpush1.bf16.msra.mxu0 0
      %496 = vmatprep.subr.bf16.mxu0 0
      %497 = vmatpush1.bf16.msra.mxu0 0
      %498 = vmatprep.mubr.bf16.mxu0 0
      %499 = vmatmul.mubr.bf16.gmra.mrb[0].mxu0 %v464
      %v500 = vpop.f32.mrb[0].mxu0
      %v501 = vadd.f32 %v448, %v500
      %v502 = vpop.f32.mrb[0].mxu0
      %v503 = vpop.f32.mrb[0].mxu0
      %v504 = vpop.f32.mrb[0].mxu0
      %505 = vdwg.mxu0
      %v506 = vld [vmem:[%s4] sm:$0x1]
      %v508 = vlaneseq
      %v509 = vshrl.u32 %v508, 7
      %v510 = vsub.s32 0, %v509
      %v511 = vrot.slane %v506, %v510
      %v513 = vadd.f32 %v511, 0.0
      %v514 = vpack.c.bf16 %v501, %v501
      %516 = vrot.lane.b32.xlu0 %v514, 96
      %v517 = vpop.permute.xlu0 %516
      %vm518 = vcmask 64512
      %v520 = vsel %vm518, %v514, 0
      %v523 = vsel %vm518, %v517, 0
      %525 = vmatprep.subr.bf16.mxu0 0
      %526 = vmatpush1.bf16.xpose.msra.mxu0 %v523
      %527 = vmatprep.subr.bf16.mxu0 0
      %528 = vmatpush1.bf16.xpose.msra.mxu0 0
      %529 = vmatprep.subr.bf16.mxu0 0
      %530 = vmatpush1.bf16.xpose.msra.mxu0 0
      %531 = vmatprep.subr.bf16.mxu0 0
      %532 = vmatpush1.bf16.xpose.msra.mxu0 0
      %533 = vmatprep.subr.bf16.mxu0 0
      %534 = vmatpush1.bf16.xpose.msra.mxu0 0
      %535 = vmatprep.subr.bf16.mxu0 0
      %536 = vmatpush1.bf16.xpose.msra.mxu0 0
      %537 = vmatprep.subr.bf16.mxu0 0
      %538 = vmatpush1.bf16.xpose.msra.mxu0 0
      %539 = vmatprep.subr.bf16.mxu0 0
      %540 = vmatpush1.bf16.xpose.msra.mxu0 0
      %541 = vmatprep.subr.bf16.mxu0 0
      %542 = vmatpush1.bf16.xpose.msra.mxu0 0
      %543 = vmatprep.subr.bf16.mxu0 0
      %544 = vmatpush1.bf16.xpose.msra.mxu0 0
      %545 = vmatprep.subr.bf16.mxu0 0
      %546 = vmatpush1.bf16.xpose.msra.mxu0 0
      %547 = vmatprep.subr.bf16.mxu0 0
      %548 = vmatpush1.bf16.xpose.msra.mxu0 0
      %549 = vmatprep.subr.bf16.mxu0 0
      %550 = vmatpush1.bf16.xpose.msra.mxu0 0
      %551 = vmatprep.subr.bf16.mxu0 0
      %552 = vmatpush1.bf16.xpose.msra.mxu0 0
      %553 = vmatprep.subr.bf16.mxu0 0
      %554 = vmatpush1.bf16.xpose.msra.mxu0 0
      %555 = vmatprep.subr.bf16.mxu0 0
      %556 = vmatpush1.bf16.xpose.msra.mxu0 0
      %557 = vmatprep.mubr.bf16.mxu0 0
      %558 = vmatmul.mubr.bf16.gmra.mrb[0].mxu0 %v520
      %v559 = vpop.f32.mrb[0].mxu0
      %v560 = vadd.f32 0.0, %v559
      %v561 = vpop.f32.mrb[0].mxu0
      %v562 = vpop.f32.mrb[0].mxu0
      %v563 = vpop.f32.mrb[0].mxu0
      %564 = vdwg.mxu0
      %v565 = vmul.f32 %v560, 0.35355338
      %v566 = vsel %vm518, %v565, -inf
      %567 = vmax.xlane.f32.xlu0 %v566
      %v568 = vpop.xlane.xlu0 %567
      %v569 = vsub.f32 %v565, %v568
      %v570 = vmul.f32 %v569, 1.442695
      %v571 = vpow.pop %v570
      %v572 = vsel %vm518, %v571, 0.0
      %573 = vadd.xlane.f32.xlu0 %v572
      %v574 = vpop.xlane.xlu0 %573
      %v575 = vrcp.pop %v574
      %v576 = vmul.f32 %v571, %v575
      %v577 = vpack.c.bf16 %v576, %v576
      %578 = vrot.lane.b32.xlu0 %v514, 64
      %v579 = vpop.permute.xlu0 %578
      %v581 = vsel %vm518, %v577, 0
      %vm583 = vcmask 1043456
      %v585 = vsel %vm583, %v579, 0
      %587 = vmatprep.subr.bf16.mxu0 0
      %588 = vmatpush1.bf16.msra.mxu0 %v585
      %589 = vmatprep.subr.bf16.mxu0 0
      %590 = vmatpush1.bf16.msra.mxu0 0
      %591 = vmatprep.subr.bf16.mxu0 0
      %592 = vmatpush1.bf16.msra.mxu0 0
      %593 = vmatprep.subr.bf16.mxu0 0
      %594 = vmatpush1.bf16.msra.mxu0 0
      %595 = vmatprep.subr.bf16.mxu0 0
      %596 = vmatpush1.bf16.msra.mxu0 0
      %597 = vmatprep.subr.bf16.mxu0 0
      %598 = vmatpush1.bf16.msra.mxu0 0
      %599 = vmatprep.subr.bf16.mxu0 0
      %600 = vmatpush1.bf16.msra.mxu0 0
      %601 = vmatprep.subr.bf16.mxu0 0
      %602 = vmatpush1.bf16.msra.mxu0 0
      %603 = vmatprep.subr.bf16.mxu0 0
      %604 = vmatpush1.bf16.msra.mxu0 0
      %605 = vmatprep.subr.bf16.mxu0 0
      %606 = vmatpush1.bf16.msra.mxu0 0
      %607 = vmatprep.subr.bf16.mxu0 0
      %608 = vmatpush1.bf16.msra.mxu0 0
      %609 = vmatprep.subr.bf16.mxu0 0
      %610 = vmatpush1.bf16.msra.mxu0 0
      %611 = vmatprep.subr.bf16.mxu0 0
      %612 = vmatpush1.bf16.msra.mxu0 0
      %613 = vmatprep.subr.bf16.mxu0 0
      %614 = vmatpush1.bf16.msra.mxu0 0
      %615 = vmatprep.subr.bf16.mxu0 0
      %616 = vmatpush1.bf16.msra.mxu0 0
      %617 = vmatprep.subr.bf16.mxu0 0
      %618 = vmatpush1.bf16.msra.mxu0 0
      %619 = vmatprep.mubr.bf16.mxu0 0
      %620 = vmatmul.mubr.bf16.gmra.mrb[0].mxu0 %v581
      %v621 = vpop.f32.mrb[0].mxu0
      %v622 = vadd.f32 0.0, %v621
      %v623 = vpop.f32.mrb[0].mxu0
      %v624 = vpop.f32.mrb[0].mxu0
      %v625 = vpop.f32.mrb[0].mxu0
      %626 = vdwg.mxu0
      %v627 = vpack.c.bf16 %v622, %v622
      %v628 = vld [vmem:[%s3] sm:$0xf]
      %v630 = vsel %vm518, %v627, 0
      %v633 = vsel %vm583, %v628, 0
      %635 = vmatprep.subr.bf16.mxu0 0
      %636 = vmatpush1.bf16.msra.mxu0 %v633
      %637 = vmatprep.subr.bf16.mxu0 0
      %638 = vmatpush1.bf16.msra.mxu0 0
      %639 = vmatprep.subr.bf16.mxu0 0
      %640 = vmatpush1.bf16.msra.mxu0 0
      %641 = vmatprep.subr.bf16.mxu0 0
      %642 = vmatpush1.bf16.msra.mxu0 0
      %643 = vmatprep.subr.bf16.mxu0 0
      %644 = vmatpush1.bf16.msra.mxu0 0
      %645 = vmatprep.subr.bf16.mxu0 0
      %646 = vmatpush1.bf16.msra.mxu0 0
      %647 = vmatprep.subr.bf16.mxu0 0
      %648 = vmatpush1.bf16.msra.mxu0 0
      %649 = vmatprep.subr.bf16.mxu0 0
      %650 = vmatpush1.bf16.msra.mxu0 0
      %651 = vmatprep.subr.bf16.mxu0 0
      %652 = vmatpush1.bf16.msra.mxu0 0
      %653 = vmatprep.subr.bf16.mxu0 0
      %654 = vmatpush1.bf16.msra.mxu0 0
      %655 = vmatprep.subr.bf16.mxu0 0
      %656 = vmatpush1.bf16.msra.mxu0 0
      %657 = vmatprep.subr.bf16.mxu0 0
      %658 = vmatpush1.bf16.msra.mxu0 0
      %659 = vmatprep.subr.bf16.mxu0 0
      %660 = vmatpush1.bf16.msra.mxu0 0
      %661 = vmatprep.subr.bf16.mxu0 0
      %662 = vmatpush1.bf16.msra.mxu0 0
      %663 = vmatprep.subr.bf16.mxu0 0
      %664 = vmatpush1.bf16.msra.mxu0 0
      %665 = vmatprep.subr.bf16.mxu0 0
      %666 = vmatpush1.bf16.msra.mxu0 0
      %667 = vmatprep.mubr.bf16.mxu0 0
      %668 = vmatmul.mubr.bf16.gmra.mrb[0].mxu0 %v630
      %v669 = vpop.f32.mrb[0].mxu0
      %v670 = vadd.f32 0.0, %v669
      %v671 = vpop.f32.mrb[0].mxu0
      %v672 = vpop.f32.mrb[0].mxu0
      %v673 = vpop.f32.mrb[0].mxu0
      %674 = vdwg.mxu0
      %v675 = vadd.f32 %v513, %v670
      %676 = vrot.lane.b32.xlu0 %v514, 120
      %v677 = vpop.permute.xlu0 %676
      %678 = vrot.lane.b32.xlu0 %v514, 88
      %v679 = vpop.permute.xlu0 %678
      %v681 = vsel %vm518, %v677, 0
      %v684 = vsel %vm518, %v679, 0
      %686 = vmatprep.subr.bf16.mxu0 0
      %687 = vmatpush1.bf16.xpose.msra.mxu0 %v684
      %688 = vmatprep.subr.bf16.mxu0 0
      %689 = vmatpush1.bf16.xpose.msra.mxu0 0
      %690 = vmatprep.subr.bf16.mxu0 0
      %691 = vmatpush1.bf16.xpose.msra.mxu0 0
      %692 = vmatprep.subr.bf16.mxu0 0
      %693 = vmatpush1.bf16.xpose.msra.mxu0 0
      %694 = vmatprep.subr.bf16.mxu0 0
      %695 = vmatpush1.bf16.xpose.msra.mxu0 0
      %696 = vmatprep.subr.bf16.mxu0 0
      %697 = vmatpush1.bf16.xpose.msra.mxu0 0
      %698 = vmatprep.subr.bf16.mxu0 0
      %699 = vmatpush1.bf16.xpose.msra.mxu0 0
      %700 = vmatprep.subr.bf16.mxu0 0
      %701 = vmatpush1.bf16.xpose.msra.mxu0 0
      %702 = vmatprep.subr.bf16.mxu0 0
      %703 = vmatpush1.bf16.xpose.msra.mxu0 0
      %704 = vmatprep.subr.bf16.mxu0 0
      %705 = vmatpush1.bf16.xpose.msra.mxu0 0
      %706 = vmatprep.subr.bf16.mxu0 0
      %707 = vmatpush1.bf16.xpose.msra.mxu0 0
      %708 = vmatprep.subr.bf16.mxu0 0
      %709 = vmatpush1.bf16.xpose.msra.mxu0 0
      %710 = vmatprep.subr.bf16.mxu0 0
      %711 = vmatpush1.bf16.xpose.msra.mxu0 0
      %712 = vmatprep.subr.bf16.mxu0 0
      %713 = vmatpush1.bf16.xpose.msra.mxu0 0
      %714 = vmatprep.subr.bf16.mxu0 0
      %715 = vmatpush1.bf16.xpose.msra.mxu0 0
      %716 = vmatprep.subr.bf16.mxu0 0
      %717 = vmatpush1.bf16.xpose.msra.mxu0 0
      %718 = vmatprep.mubr.bf16.mxu0 0
      %719 = vmatmul.mubr.bf16.gmra.mrb[0].mxu0 %v681
      %v720 = vpop.f32.mrb[0].mxu0
      %v721 = vadd.f32 0.0, %v720
      %v722 = vpop.f32.mrb[0].mxu0
      %v723 = vpop.f32.mrb[0].mxu0
      %v724 = vpop.f32.mrb[0].mxu0
      %725 = vdwg.mxu0
      %v726 = vmul.f32 %v721, 0.35355338
      %v727 = vsel %vm518, %v726, -inf
      %728 = vmax.xlane.f32.xlu0 %v727
      %v729 = vpop.xlane.xlu0 %728
      %v730 = vsub.f32 %v726, %v729
      %v731 = vmul.f32 %v730, 1.442695
      %v732 = vpow.pop %v731
      %v733 = vsel %vm518, %v732, 0.0
      %734 = vadd.xlane.f32.xlu0 %v733
      %v735 = vpop.xlane.xlu0 %734
      %v736 = vrcp.pop %v735
      %v737 = vmul.f32 %v732, %v736
      %v738 = vpack.c.bf16 %v737, %v737
      %739 = vrot.lane.b32.xlu0 %v514, 56
      %v740 = vpop.permute.xlu0 %739
      %v742 = vsel %vm518, %v738, 0
      %v745 = vsel %vm583, %v740, 0
      %747 = vmatprep.subr.bf16.mxu0 0
      %748 = vmatpush1.bf16.msra.mxu0 %v745
      %749 = vmatprep.subr.bf16.mxu0 0
      %750 = vmatpush1.bf16.msra.mxu0 0
      %751 = vmatprep.subr.bf16.mxu0 0
      %752 = vmatpush1.bf16.msra.mxu0 0
      %753 = vmatprep.subr.bf16.mxu0 0
      %754 = vmatpush1.bf16.msra.mxu0 0
      %755 = vmatprep.subr.bf16.mxu0 0
      %756 = vmatpush1.bf16.msra.mxu0 0
      %757 = vmatprep.subr.bf16.mxu0 0
      %758 = vmatpush1.bf16.msra.mxu0 0
      %759 = vmatprep.subr.bf16.mxu0 0
      %760 = vmatpush1.bf16.msra.mxu0 0
      %761 = vmatprep.subr.bf16.mxu0 0
      %762 = vmatpush1.bf16.msra.mxu0 0
      %763 = vmatprep.subr.bf16.mxu0 0
      %764 = vmatpush1.bf16.msra.mxu0 0
      %765 = vmatprep.subr.bf16.mxu0 0
      %766 = vmatpush1.bf16.msra.mxu0 0
      %767 = vmatprep.subr.bf16.mxu0 0
      %768 = vmatpush1.bf16.msra.mxu0 0
      %769 = vmatprep.subr.bf16.mxu0 0
      %770 = vmatpush1.bf16.msra.mxu0 0
      %771 = vmatprep.subr.bf16.mxu0 0
      %772 = vmatpush1.bf16.msra.mxu0 0
      %773 = vmatprep.subr.bf16.mxu0 0
      %774 = vmatpush1.bf16.msra.mxu0 0
      %775 = vmatprep.subr.bf16.mxu0 0
      %776 = vmatpush1.bf16.msra.mxu0 0
      %777 = vmatprep.subr.bf16.mxu0 0
      %778 = vmatpush1.bf16.msra.mxu0 0
      %779 = vmatprep.mubr.bf16.mxu0 0
      %780 = vmatmul.mubr.bf16.gmra.mrb[0].mxu0 %v742
      %v781 = vpop.f32.mrb[0].mxu0
      %v782 = vadd.f32 0.0, %v781
      %v783 = vpop.f32.mrb[0].mxu0
      %v784 = vpop.f32.mrb[0].mxu0
      %v785 = vpop.f32.mrb[0].mxu0
      %786 = vdwg.mxu0
      %v787 = vpack.c.bf16 %v782, %v782
      %v788 = vld [vmem:[%s3 + $0x4] sm:$0xf]
      %v790 = vsel %vm518, %v787, 0
      %v793 = vsel %vm583, %v788, 0
      %795 = vmatprep.subr.bf16.mxu0 0
      %796 = vmatpush1.bf16.msra.mxu0 %v793
      %797 = vmatprep.subr.bf16.mxu0 0
      %798 = vmatpush1.bf16.msra.mxu0 0
      %799 = vmatprep.subr.bf16.mxu0 0
      %800 = vmatpush1.bf16.msra.mxu0 0
      %801 = vmatprep.subr.bf16.mxu0 0
      %802 = vmatpush1.bf16.msra.mxu0 0
      %803 = vmatprep.subr.bf16.mxu0 0
      %804 = vmatpush1.bf16.msra.mxu0 0
      %805 = vmatprep.subr.bf16.mxu0 0
      %806 = vmatpush1.bf16.msra.mxu0 0
      %807 = vmatprep.subr.bf16.mxu0 0
      %808 = vmatpush1.bf16.msra.mxu0 0
      %809 = vmatprep.subr.bf16.mxu0 0
      %810 = vmatpush1.bf16.msra.mxu0 0
      %811 = vmatprep.subr.bf16.mxu0 0
      %812 = vmatpush1.bf16.msra.mxu0 0
      %813 = vmatprep.subr.bf16.mxu0 0
      %814 = vmatpush1.bf16.msra.mxu0 0
      %815 = vmatprep.subr.bf16.mxu0 0
      %816 = vmatpush1.bf16.msra.mxu0 0
      %817 = vmatprep.subr.bf16.mxu0 0
      %818 = vmatpush1.bf16.msra.mxu0 0
      %819 = vmatprep.subr.bf16.mxu0 0
      %820 = vmatpush1.bf16.msra.mxu0 0
      %821 = vmatprep.subr.bf16.mxu0 0
      %822 = vmatpush1.bf16.msra.mxu0 0
      %823 = vmatprep.subr.bf16.mxu0 0
      %824 = vmatpush1.bf16.msra.mxu0 0
      %825 = vmatprep.subr.bf16.mxu0 0
      %826 = vmatpush1.bf16.msra.mxu0 0
      %827 = vmatprep.mubr.bf16.mxu0 0
      %828 = vmatmul.mubr.bf16.gmra.mrb[0].mxu0 %v790
      %v829 = vpop.f32.mrb[0].mxu0
      %v830 = vadd.f32 0.0, %v829
      %v831 = vpop.f32.mrb[0].mxu0
      %v832 = vpop.f32.mrb[0].mxu0
      %v833 = vpop.f32.mrb[0].mxu0
      %834 = vdwg.mxu0
      %v835 = vadd.f32 %v675, %v830
      %836 = vrot.lane.b32.xlu0 %v514, 112
      %v837 = vpop.permute.xlu0 %836
      %838 = vrot.lane.b32.xlu0 %v514, 80
      %v839 = vpop.permute.xlu0 %838
      %v841 = vsel %vm518, %v837, 0
      %v844 = vsel %vm518, %v839, 0
      %846 = vmatprep.subr.bf16.mxu0 0
      %847 = vmatpush1.bf16.xpose.msra.mxu0 %v844
      %848 = vmatprep.subr.bf16.mxu0 0
      %849 = vmatpush1.bf16.xpose.msra.mxu0 0
      %850 = vmatprep.subr.bf16.mxu0 0
      %851 = vmatpush1.bf16.xpose.msra.mxu0 0
      %852 = vmatprep.subr.bf16.mxu0 0
      %853 = vmatpush1.bf16.xpose.msra.mxu0 0
      %854 = vmatprep.subr.bf16.mxu0 0
      %855 = vmatpush1.bf16.xpose.msra.mxu0 0
      %856 = vmatprep.subr.bf16.mxu0 0
      %857 = vmatpush1.bf16.xpose.msra.mxu0 0
      %858 = vmatprep.subr.bf16.mxu0 0
      %859 = vmatpush1.bf16.xpose.msra.mxu0 0
      %860 = vmatprep.subr.bf16.mxu0 0
      %861 = vmatpush1.bf16.xpose.msra.mxu0 0
      %862 = vmatprep.subr.bf16.mxu0 0
      %863 = vmatpush1.bf16.xpose.msra.mxu0 0
      %864 = vmatprep.subr.bf16.mxu0 0
      %865 = vmatpush1.bf16.xpose.msra.mxu0 0
      %866 = vmatprep.subr.bf16.mxu0 0
      %867 = vmatpush1.bf16.xpose.msra.mxu0 0
      %868 = vmatprep.subr.bf16.mxu0 0
      %869 = vmatpush1.bf16.xpose.msra.mxu0 0
      %870 = vmatprep.subr.bf16.mxu0 0
      %871 = vmatpush1.bf16.xpose.msra.mxu0 0
      %872 = vmatprep.subr.bf16.mxu0 0
      %873 = vmatpush1.bf16.xpose.msra.mxu0 0
      %874 = vmatprep.subr.bf16.mxu0 0
      %875 = vmatpush1.bf16.xpose.msra.mxu0 0
      %876 = vmatprep.subr.bf16.mxu0 0
      %877 = vmatpush1.bf16.xpose.msra.mxu0 0
      %878 = vmatprep.mubr.bf16.mxu0 0
      %879 = vmatmul.mubr.bf16.gmra.mrb[0].mxu0 %v841
      %v880 = vpop.f32.mrb[0].mxu0
      %v881 = vadd.f32 0.0, %v880
      %v882 = vpop.f32.mrb[0].mxu0
      %v883 = vpop.f32.mrb[0].mxu0
      %v884 = vpop.f32.mrb[0].mxu0
      %885 = vdwg.mxu0
      %v886 = vmul.f32 %v881, 0.35355338
      %v887 = vsel %vm518, %v886, -inf
      %888 = vmax.xlane.f32.xlu0 %v887
      %v889 = vpop.xlane.xlu0 %888
      %v890 = vsub.f32 %v886, %v889
      %v891 = vmul.f32 %v890, 1.442695
      %v892 = vpow.pop %v891
      %v893 = vsel %vm518, %v892, 0.0
      %894 = vadd.xlane.f32.xlu0 %v893
      %v895 = vpop.xlane.xlu0 %894
      %v896 = vrcp.pop %v895
      %v897 = vmul.f32 %v892, %v896
      %v898 = vpack.c.bf16 %v897, %v897
      %899 = vrot.lane.b32.xlu0 %v514, 48
      %v900 = vpop.permute.xlu0 %899
      %v902 = vsel %vm518, %v898, 0
      %v905 = vsel %vm583, %v900, 0
      %907 = vmatprep.subr.bf16.mxu0 0
      %908 = vmatpush1.bf16.msra.mxu0 %v905
      %909 = vmatprep.subr.bf16.mxu0 0
      %910 = vmatpush1.bf16.msra.mxu0 0
      %911 = vmatprep.subr.bf16.mxu0 0
      %912 = vmatpush1.bf16.msra.mxu0 0
      %913 = vmatprep.subr.bf16.mxu0 0
      %914 = vmatpush1.bf16.msra.mxu0 0
      %915 = vmatprep.subr.bf16.mxu0 0
      %916 = vmatpush1.bf16.msra.mxu0 0
      %917 = vmatprep.subr.bf16.mxu0 0
      %918 = vmatpush1.bf16.msra.mxu0 0
      %919 = vmatprep.subr.bf16.mxu0 0
      %920 = vmatpush1.bf16.msra.mxu0 0
      %921 = vmatprep.subr.bf16.mxu0 0
      %922 = vmatpush1.bf16.msra.mxu0 0
      %923 = vmatprep.subr.bf16.mxu0 0
      %924 = vmatpush1.bf16.msra.mxu0 0
      %925 = vmatprep.subr.bf16.mxu0 0
      %926 = vmatpush1.bf16.msra.mxu0 0
      %927 = vmatprep.subr.bf16.mxu0 0
      %928 = vmatpush1.bf16.msra.mxu0 0
      %929 = vmatprep.subr.bf16.mxu0 0
      %930 = vmatpush1.bf16.msra.mxu0 0
      %931 = vmatprep.subr.bf16.mxu0 0
      %932 = vmatpush1.bf16.msra.mxu0 0
      %933 = vmatprep.subr.bf16.mxu0 0
      %934 = vmatpush1.bf16.msra.mxu0 0
      %935 = vmatprep.subr.bf16.mxu0 0
      %936 = vmatpush1.bf16.msra.mxu0 0
      %937 = vmatprep.subr.bf16.mxu0 0
      %938 = vmatpush1.bf16.msra.mxu0 0
      %939 = vmatprep.mubr.bf16.mxu0 0
      %940 = vmatmul.mubr.bf16.gmra.mrb[0].mxu0 %v902
      %v941 = vpop.f32.mrb[0].mxu0
      %v942 = vadd.f32 0.0, %v941
      %v943 = vpop.f32.mrb[0].mxu0
      %v944 = vpop.f32.mrb[0].mxu0
      %v945 = vpop.f32.mrb[0].mxu0
      %946 = vdwg.mxu0
      %v947 = vpack.c.bf16 %v942, %v942
      %v948 = vld [vmem:[%s3 + $0x8] sm:$0xf]
      %v950 = vsel %vm518, %v947, 0
      %v953 = vsel %vm583, %v948, 0
      %955 = vmatprep.subr.bf16.mxu0 0
      %956 = vmatpush1.bf16.msra.mxu0 %v953
      %957 = vmatprep.subr.bf16.mxu0 0
      %958 = vmatpush1.bf16.msra.mxu0 0
      %959 = vmatprep.subr.bf16.mxu0 0
      %960 = vmatpush1.bf16.msra.mxu0 0
      %961 = vmatprep.subr.bf16.mxu0 0
      %962 = vmatpush1.bf16.msra.mxu0 0
      %963 = vmatprep.subr.bf16.mxu0 0
      %964 = vmatpush1.bf16.msra.mxu0 0
      %965 = vmatprep.subr.bf16.mxu0 0
      %966 = vmatpush1.bf16.msra.mxu0 0
      %967 = vmatprep.subr.bf16.mxu0 0
      %968 = vmatpush1.bf16.msra.mxu0 0
      %969 = vmatprep.subr.bf16.mxu0 0
      %970 = vmatpush1.bf16.msra.mxu0 0
      %971 = vmatprep.subr.bf16.mxu0 0
      %972 = vmatpush1.bf16.msra.mxu0 0
      %973 = vmatprep.subr.bf16.mxu0 0
      %974 = vmatpush1.bf16.msra.mxu0 0
      %975 = vmatprep.subr.bf16.mxu0 0
      %976 = vmatpush1.bf16.msra.mxu0 0
      %977 = vmatprep.subr.bf16.mxu0 0
      %978 = vmatpush1.bf16.msra.mxu0 0
      %979 = vmatprep.subr.bf16.mxu0 0
      %980 = vmatpush1.bf16.msra.mxu0 0
      %981 = vmatprep.subr.bf16.mxu0 0
      %982 = vmatpush1.bf16.msra.mxu0 0
      %983 = vmatprep.subr.bf16.mxu0 0
      %984 = vmatpush1.bf16.msra.mxu0 0
      %985 = vmatprep.subr.bf16.mxu0 0
      %986 = vmatpush1.bf16.msra.mxu0 0
      %987 = vmatprep.mubr.bf16.mxu0 0
      %988 = vmatmul.mubr.bf16.gmra.mrb[0].mxu0 %v950
      %v989 = vpop.f32.mrb[0].mxu0
      %v990 = vadd.f32 0.0, %v989
      %v991 = vpop.f32.mrb[0].mxu0
      %v992 = vpop.f32.mrb[0].mxu0
      %v993 = vpop.f32.mrb[0].mxu0
      %994 = vdwg.mxu0
      %v995 = vadd.f32 %v835, %v990
      %996 = vrot.lane.b32.xlu0 %v514, 104
      %v997 = vpop.permute.xlu0 %996
      %998 = vrot.lane.b32.xlu0 %v514, 72
      %v999 = vpop.permute.xlu0 %998
      %v1001 = vsel %vm518, %v997, 0
      %v1004 = vsel %vm518, %v999, 0
      %1006 = vmatprep.subr.bf16.mxu0 0
      %1007 = vmatpush1.bf16.xpose.msra.mxu0 %v1004
      %1008 = vmatprep.subr.bf16.mxu0 0
      %1009 = vmatpush1.bf16.xpose.msra.mxu0 0
      %1010 = vmatprep.subr.bf16.mxu0 0
      %1011 = vmatpush1.bf16.xpose.msra.mxu0 0
      %1012 = vmatprep.subr.bf16.mxu0 0
      %1013 = vmatpush1.bf16.xpose.msra.mxu0 0
      %1014 = vmatprep.subr.bf16.mxu0 0
      %1015 = vmatpush1.bf16.xpose.msra.mxu0 0
      %1016 = vmatprep.subr.bf16.mxu0 0
      %1017 = vmatpush1.bf16.xpose.msra.mxu0 0
      %1018 = vmatprep.subr.bf16.mxu0 0
      %1019 = vmatpush1.bf16.xpose.msra.mxu0 0
      %1020 = vmatprep.subr.bf16.mxu0 0
      %1021 = vmatpush1.bf16.xpose.msra.mxu0 0
      %1022 = vmatprep.subr.bf16.mxu0 0
      %1023 = vmatpush1.bf16.xpose.msra.mxu0 0
      %1024 = vmatprep.subr.bf16.mxu0 0
      %1025 = vmatpush1.bf16.xpose.msra.mxu0 0
      %1026 = vmatprep.subr.bf16.mxu0 0
      %1027 = vmatpush1.bf16.xpose.msra.mxu0 0
      %1028 = vmatprep.subr.bf16.mxu0 0
      %1029 = vmatpush1.bf16.xpose.msra.mxu0 0
      %1030 = vmatprep.subr.bf16.mxu0 0
      %1031 = vmatpush1.bf16.xpose.msra.mxu0 0
      %1032 = vmatprep.subr.bf16.mxu0 0
      %1033 = vmatpush1.bf16.xpose.msra.mxu0 0
      %1034 = vmatprep.subr.bf16.mxu0 0
      %1035 = vmatpush1.bf16.xpose.msra.mxu0 0
      %1036 = vmatprep.subr.bf16.mxu0 0
      %1037 = vmatpush1.bf16.xpose.msra.mxu0 0
      %1038 = vmatprep.mubr.bf16.mxu0 0
      %1039 = vmatmul.mubr.bf16.gmra.mrb[0].mxu0 %v1001
      %v1040 = vpop.f32.mrb[0].mxu0
      %v1041 = vadd.f32 0.0, %v1040
      %v1042 = vpop.f32.mrb[0].mxu0
      %v1043 = vpop.f32.mrb[0].mxu0
      %v1044 = vpop.f32.mrb[0].mxu0
      %1045 = vdwg.mxu0
      %v1046 = vmul.f32 %v1041, 0.35355338
      %v1047 = vsel %vm518, %v1046, -inf
      %1048 = vmax.xlane.f32.xlu0 %v1047
      %v1049 = vpop.xlane.xlu0 %1048
      %v1050 = vsub.f32 %v1046, %v1049
      %v1051 = vmul.f32 %v1050, 1.442695
      %v1052 = vpow.pop %v1051
      %v1053 = vsel %vm518, %v1052, 0.0
      %1054 = vadd.xlane.f32.xlu0 %v1053
      %v1055 = vpop.xlane.xlu0 %1054
      %v1056 = vrcp.pop %v1055
      %v1057 = vmul.f32 %v1052, %v1056
      %v1058 = vpack.c.bf16 %v1057, %v1057
      %1059 = vrot.lane.b32.xlu0 %v514, 40
      %v1060 = vpop.permute.xlu0 %1059
      %v1062 = vsel %vm518, %v1058, 0
      %v1065 = vsel %vm583, %v1060, 0
      %1067 = vmatprep.subr.bf16.mxu0 0
      %1068 = vmatpush1.bf16.msra.mxu0 %v1065
      %1069 = vmatprep.subr.bf16.mxu0 0
      %1070 = vmatpush1.bf16.msra.mxu0 0
      %1071 = vmatprep.subr.bf16.mxu0 0
      %1072 = vmatpush1.bf16.msra.mxu0 0
      %1073 = vmatprep.subr.bf16.mxu0 0
      %1074 = vmatpush1.bf16.msra.mxu0 0
      %1075 = vmatprep.subr.bf16.mxu0 0
      %1076 = vmatpush1.bf16.msra.mxu0 0
      %1077 = vmatprep.subr.bf16.mxu0 0
      %1078 = vmatpush1.bf16.msra.mxu0 0
      %1079 = vmatprep.subr.bf16.mxu0 0
      %1080 = vmatpush1.bf16.msra.mxu0 0
      %1081 = vmatprep.subr.bf16.mxu0 0
      %1082 = vmatpush1.bf16.msra.mxu0 0
      %1083 = vmatprep.subr.bf16.mxu0 0
      %1084 = vmatpush1.bf16.msra.mxu0 0
      %1085 = vmatprep.subr.bf16.mxu0 0
      %1086 = vmatpush1.bf16.msra.mxu0 0
      %1087 = vmatprep.subr.bf16.mxu0 0
      %1088 = vmatpush1.bf16.msra.mxu0 0
      %1089 = vmatprep.subr.bf16.mxu0 0
      %1090 = vmatpush1.bf16.msra.mxu0 0
      %1091 = vmatprep.subr.bf16.mxu0 0
      %1092 = vmatpush1.bf16.msra.mxu0 0
      %1093 = vmatprep.subr.bf16.mxu0 0
      %1094 = vmatpush1.bf16.msra.mxu0 0
      %1095 = vmatprep.subr.bf16.mxu0 0
      %1096 = vmatpush1.bf16.msra.mxu0 0
      %1097 = vmatprep.subr.bf16.mxu0 0
      %1098 = vmatpush1.bf16.msra.mxu0 0
      %1099 = vmatprep.mubr.bf16.mxu0 0
      %1100 = vmatmul.mubr.bf16.gmra.mrb[0].mxu0 %v1062
      %v1101 = vpop.f32.mrb[0].mxu0
      %v1102 = vadd.f32 0.0, %v1101
      %v1103 = vpop.f32.mrb[0].mxu0
      %v1104 = vpop.f32.mrb[0].mxu0
      %v1105 = vpop.f32.mrb[0].mxu0
      %1106 = vdwg.mxu0
      %v1107 = vpack.c.bf16 %v1102, %v1102
      %v1108 = vld [vmem:[%s3 + $0xc] sm:$0xf]
      %v1110 = vsel %vm518, %v1107, 0
      %v1113 = vsel %vm583, %v1108, 0
      %1115 = vmatprep.subr.bf16.mxu0 0
      %1116 = vmatpush1.bf16.msra.mxu0 %v1113
      %1117 = vmatprep.subr.bf16.mxu0 0
      %1118 = vmatpush1.bf16.msra.mxu0 0
      %1119 = vmatprep.subr.bf16.mxu0 0
      %1120 = vmatpush1.bf16.msra.mxu0 0
      %1121 = vmatprep.subr.bf16.mxu0 0
      %1122 = vmatpush1.bf16.msra.mxu0 0
      %1123 = vmatprep.subr.bf16.mxu0 0
      %1124 = vmatpush1.bf16.msra.mxu0 0
      %1125 = vmatprep.subr.bf16.mxu0 0
      %1126 = vmatpush1.bf16.msra.mxu0 0
      %1127 = vmatprep.subr.bf16.mxu0 0
      %1128 = vmatpush1.bf16.msra.mxu0 0
      %1129 = vmatprep.subr.bf16.mxu0 0
      %1130 = vmatpush1.bf16.msra.mxu0 0
      %1131 = vmatprep.subr.bf16.mxu0 0
      %1132 = vmatpush1.bf16.msra.mxu0 0
      %1133 = vmatprep.subr.bf16.mxu0 0
      %1134 = vmatpush1.bf16.msra.mxu0 0
      %1135 = vmatprep.subr.bf16.mxu0 0
      %1136 = vmatpush1.bf16.msra.mxu0 0
      %1137 = vmatprep.subr.bf16.mxu0 0
      %1138 = vmatpush1.bf16.msra.mxu0 0
      %1139 = vmatprep.subr.bf16.mxu0 0
      %1140 = vmatpush1.bf16.msra.mxu0 0
      %1141 = vmatprep.subr.bf16.mxu0 0
      %1142 = vmatpush1.bf16.msra.mxu0 0
      %1143 = vmatprep.subr.bf16.mxu0 0
      %1144 = vmatpush1.bf16.msra.mxu0 0
      %1145 = vmatprep.subr.bf16.mxu0 0
      %1146 = vmatpush1.bf16.msra.mxu0 0
      %1147 = vmatprep.mubr.bf16.mxu0 0
      %1148 = vmatmul.mubr.bf16.gmra.mrb[0].mxu0 %v1110
      %v1149 = vpop.f32.mrb[0].mxu0
      %v1150 = vadd.f32 0.0, %v1149
      %v1151 = vpop.f32.mrb[0].mxu0
      %v1152 = vpop.f32.mrb[0].mxu0
      %v1153 = vpop.f32.mrb[0].mxu0
      %1154 = vdwg.mxu0
      %v1155 = vadd.f32 %v995, %v1150
      %v1156 = vadd.f32 %v1155, %v438
      %v1157 = vsel %vm462, %v1156, 0.0
      %1158 = vadd.xlane.f32.xlu0 %v1157
      %v1159 = vpop.xlane.xlu0 %1158
      %v1160 = vrcp.pop 32.0
      %v1161 = vmul.f32 %v1159, %v1160
      %v1162 = vsub.f32 %v1156, %v1161
      %v1163 = vmul.f32 %v1162, %v1162
      %v1164 = vsel %vm462, %v1163, 0.0
      %1165 = vadd.xlane.f32.xlu0 %v1164
      %v1166 = vpop.xlane.xlu0 %1165
      %v1167 = vrcp.pop 31.0
      %v1168 = vmul.f32 %v1166, %v1167
      %v1169 = vld [vmem:[%s5] sm:$0x1]
      %v1170 = vrsqrt.pop %v1168
      %v1171 = vmul.f32 %v1168, %v1170
      %vm1172 = vcmp.eq.f32.partialorder %v1168, inf
      %v1173 = vsel %vm1172, %v1168, %v1171
      %vm1174 = vcmp.eq.f32.partialorder %v1168, 0.0
      %v1175 = vand.u32 %v1168, 2147483648
      %v1176 = vsel %vm1174, %v1175, %v1173
      %v1177 = vadd.f32 %v1176, 1e-06
      %v1178 = vrcp.pop %v1177
      %v1179 = vmul.f32 %v1162, %v1178
      %v1181 = vlaneseq
      %v1182 = vshrl.u32 %v1181, 7
      %v1183 = vsub.s32 0, %v1182
      %v1184 = vrot.slane %v1169, %v1183
      %v1186 = vmul.f32 %v1184, %v1179
      %v1187 = vld [vmem:[%s6] sm:$0x1]
      %v1189 = vlaneseq
      %v1190 = vshrl.u32 %v1189, 7
      %v1191 = vsub.s32 0, %v1190
      %v1192 = vrot.slane %v1187, %v1191
      %v1194 = vadd.f32 %v1186, %v1192
      %v1195 = vpack.c.bf16 %v1194, %v1194
      %v1196 = vld [vmem:[%s7] sm:$0xf]
      %v1197 = vld [vmem:[%s7 + $0x4] sm:$0xf]
      %v1198 = vld [vmem:[%s7 + $0x8] sm:$0xf]
      %v1199 = vld [vmem:[%s7 + $0xc] sm:$0xf]
      %v1200 = vld [vmem:[%s8] sm:$0x1]
      %v1202 = vlaneseq
      %v1203 = vshrl.u32 %v1202, 7
      %v1204 = vsub.s32 0, %v1203
      %v1205 = vrot.slane %v1200, %v1204
      %v1211 = vunpack.c.l.b16 %v1196
      %v1212 = vunpack.c.l.b16 %v1197
      %v1213 = vunpack.c.l.b16 %v1198
      %v1214 = vunpack.c.l.b16 %v1199
      %v1215 = vpack.c.b16 %v1212, %v1211
      %v1216 = vpack.c.b16 %v1214, %v1213
      %v1220 = vsel %vm462, %v1195, 0
      %1222 = vmatprep.subr.bf16.mxu0 0
      %1223 = vmatpush1.bf16.msra.mxu0 %v1215
      %1224 = vmatprep.subr.bf16.mxu0 0
      %1225 = vmatpush1.bf16.msra.mxu0 %v1216
      %1226 = vmatprep.subr.bf16.mxu0 0
      %1227 = vmatpush1.bf16.msra.mxu0 0
      %1228 = vmatprep.subr.bf16.mxu0 0
      %1229 = vmatpush1.bf16.msra.mxu0 0
      %1230 = vmatprep.subr.bf16.mxu0 0
      %1231 = vmatpush1.bf16.msra.mxu0 0
      %1232 = vmatprep.subr.bf16.mxu0 0
      %1233 = vmatpush1.bf16.msra.mxu0 0
      %1234 = vmatprep.subr.bf16.mxu0 0
      %1235 = vmatpush1.bf16.msra.mxu0 0
      %1236 = vmatprep.subr.bf16.mxu0 0
      %1237 = vmatpush1.bf16.msra.mxu0 0
      %1238 = vmatprep.subr.bf16.mxu0 0
      %1239 = vmatpush1.bf16.msra.mxu0 0
      %1240 = vmatprep.subr.bf16.mxu0 0
      %1241 = vmatpush1.bf16.msra.mxu0 0
      %1242 = vmatprep.subr.bf16.mxu0 0
      %1243 = vmatpush1.bf16.msra.mxu0 0
      %1244 = vmatprep.subr.bf16.mxu0 0
      %1245 = vmatpush1.bf16.msra.mxu0 0
      %1246 = vmatprep.subr.bf16.mxu0 0
      %1247 = vmatpush1.bf16.msra.mxu0 0
      %1248 = vmatprep.subr.bf16.mxu0 0
      %1249 = vmatpush1.bf16.msra.mxu0 0
      %1250 = vmatprep.subr.bf16.mxu0 0
      %1251 = vmatpush1.bf16.msra.mxu0 0
      %1252 = vmatprep.subr.bf16.mxu0 0
      %1253 = vmatpush1.bf16.msra.mxu0 0
      %1254 = vmatprep.mubr.bf16.mxu0 0
      %1255 = vmatmul.mubr.bf16.gmra.mrb[0].mxu0 %v1220
      %v1256 = vpop.f32.mrb[0].mxu0
      %v1257 = vadd.f32 %v1205, %v1256
      %v1258 = vpop.f32.mrb[0].mxu0
      %v1259 = vpop.f32.mrb[0].mxu0
      %v1260 = vpop.f32.mrb[0].mxu0
      %1261 = vdwg.mxu0
      %v1262 = vmax.f32 %v1257, 0.0
      %v1263 = vpack.c.bf16 %v1262, %v1262
      %v1264 = vld [vmem:[%s9] sm:$0xf]
      %v1265 = vld [vmem:[%s9 + $0x4] sm:$0xf]
      %v1266 = vld [vmem:[%s9 + $0x8] sm:$0xf]
      %v1267 = vld [vmem:[%s9 + $0xc] sm:$0xf]
      %v1268 = vld [vmem:[%s9 + $0x10] sm:$0xf]
      %v1269 = vld [vmem:[%s9 + $0x14] sm:$0xf]
      %v1270 = vld [vmem:[%s9 + $0x18] sm:$0xf]
      %v1271 = vld [vmem:[%s9 + $0x1c] sm:$0xf]
      %v1272 = vld [vmem:[%s10] sm:$0x1]
      %v1274 = vlaneseq
      %v1275 = vshrl.u32 %v1274, 7
      %v1276 = vsub.s32 0, %v1275
      %v1277 = vrot.slane %v1272, %v1276
      %v1287 = vunpack.c.l.b16 %v1264
      %v1288 = vunpack.c.l.b16 %v1265
      %v1289 = vunpack.c.l.b16 %v1266
      %v1290 = vunpack.c.l.b16 %v1267
      %v1291 = vunpack.c.l.b16 %v1268
      %v1292 = vunpack.c.l.b16 %v1269
      %v1293 = vunpack.c.l.b16 %v1270
      %v1294 = vunpack.c.l.b16 %v1271
      %v1295 = vpack.c.b16 %v1288, %v1287
      %v1296 = vpack.c.b16 %v1290, %v1289
      %v1297 = vpack.c.b16 %v1292, %v1291
      %v1298 = vpack.c.b16 %v1294, %v1293
      %vm1303 = vcmask 523264
      %v1305 = vsel %vm1303, %v1263, 0
      %1307 = vmatprep.subr.bf16.mxu0 0
      %1308 = vmatpush1.bf16.msra.mxu0 %v1295
      %1309 = vmatprep.subr.bf16.mxu0 0
      %1310 = vmatpush1.bf16.msra.mxu0 %v1296
      %1311 = vmatprep.subr.bf16.mxu0 0
      %1312 = vmatpush1.bf16.msra.mxu0 %v1297
      %1313 = vmatprep.subr.bf16.mxu0 0
      %1314 = vmatpush1.bf16.msra.mxu0 %v1298
      %1315 = vmatprep.subr.bf16.mxu0 0
      %1316 = vmatpush1.bf16.msra.mxu0 0
      %1317 = vmatprep.subr.bf16.mxu0 0
      %1318 = vmatpush1.bf16.msra.mxu0 0
      %1319 = vmatprep.subr.bf16.mxu0 0
      %1320 = vmatpush1.bf16.msra.mxu0 0
      %1321 = vmatprep.subr.bf16.mxu0 0
      %1322 = vmatpush1.bf16.msra.mxu0 0
      %1323 = vmatprep.subr.bf16.mxu0 0
      %1324 = vmatpush1.bf16.msra.mxu0 0
      %1325 = vmatprep.subr.bf16.mxu0 0
      %1326 = vmatpush1.bf16.msra.mxu0 0
      %1327 = vmatprep.subr.bf16.mxu0 0
      %1328 = vmatpush1.bf16.msra.mxu0 0
      %1329 = vmatprep.subr.bf16.mxu0 0
      %1330 = vmatpush1.bf16.msra.mxu0 0
      %1331 = vmatprep.subr.bf16.mxu0 0
      %1332 = vmatpush1.bf16.msra.mxu0 0
      %1333 = vmatprep.subr.bf16.mxu0 0
      %1334 = vmatpush1.bf16.msra.mxu0 0
      %1335 = vmatprep.subr.bf16.mxu0 0
      %1336 = vmatpush1.bf16.msra.mxu0 0
      %1337 = vmatprep.subr.bf16.mxu0 0
      %1338 = vmatpush1.bf16.msra.mxu0 0
      %1339 = vmatprep.mubr.bf16.mxu0 0
      %1340 = vmatmul.mubr.bf16.gmra.mrb[0].mxu0 %v1305
      %v1341 = vpop.f32.mrb[0].mxu0
      %v1342 = vadd.f32 %v1277, %v1341
      %v1343 = vpop.f32.mrb[0].mxu0
      %v1344 = vpop.f32.mrb[0].mxu0
      %v1345 = vpop.f32.mrb[0].mxu0
      %1346 = vdwg.mxu0
      %v1347 = vadd.f32 %v1342, %v1194
      %v1348 = vsel %vm462, %v1347, 0.0
      %1349 = vadd.xlane.f32.xlu0 %v1348
      %v1350 = vpop.xlane.xlu0 %1349
      %v1351 = vmul.f32 %v1350, %v1160
      %v1352 = vsub.f32 %v1347, %v1351
      %v1353 = vmul.f32 %v1352, %v1352
      %v1354 = vsel %vm462, %v1353, 0.0
      %1355 = vadd.xlane.f32.xlu0 %v1354
      %v1356 = vpop.xlane.xlu0 %1355
      %v1357 = vmul.f32 %v1356, %v1167
      %v1358 = vld [vmem:[%s11] sm:$0x1]
      %v1359 = vrsqrt.pop %v1357
      %v1360 = vmul.f32 %v1357, %v1359
      %vm1361 = vcmp.eq.f32.partialorder %v1357, inf
      %v1362 = vsel %vm1361, %v1357, %v1360
      %vm1363 = vcmp.eq.f32.partialorder %v1357, 0.0
      %v1364 = vand.u32 %v1357, 2147483648
      %v1365 = vsel %vm1363, %v1364, %v1362
      %v1366 = vadd.f32 %v1365, 1e-06
      %v1367 = vrcp.pop %v1366
      %v1368 = vmul.f32 %v1352, %v1367
      %v1370 = vlaneseq
      %v1371 = vshrl.u32 %v1370, 7
      %v1372 = vsub.s32 0, %v1371
      %v1373 = vrot.slane %v1358, %v1372
      %v1375 = vmul.f32 %v1373, %v1368
      %v1376 = vld [vmem:[%s12] sm:$0x1]
      %v1378 = vlaneseq
      %v1379 = vshrl.u32 %v1378, 7
      %v1380 = vsub.s32 0, %v1379
      %v1381 = vrot.slane %v1376, %v1380
      %v1383 = vadd.f32 %v1375, %v1381
      %v1384 = vpack.c.bf16 %v1383, %v1383
      %vm1385 = vcmask 257024
      %1386 = vst.msk [vmem:[%s435] sm:$0xf] %vm1385, %v1384
      %p1387 = scmp.lt.s32.totalorder %s24, 1
      %s1388 = scalar_select %p1387, %s24, 1
      %s1389 = smul.addr %s1388, 4
      %s1390 = scalar_lea.vmem %s13, %s1389
      // Predicated region
      $region73: #{fwd.5} parent=71 // pred_check
        %p1391 = pneg %p320
      $region74: #{fwd.5} parent=71 // pred_check_branch
        %1393 = sbr.rel (%p1391) target = $region76
      $region75: #{fwd.5} parent=71 // pred_region
        _
      $region76: #{fwd.5} parent=71 // pred_fallthru
        _
    $region72: #{fwd.5} parent=5 // pred_fallthru
      _
    %p1394 = scmp.le.s32.totalorder 2, %s19
    // Predicated region
    $region77: #{fwd.5} parent=5 // pred_check
      %p1395 = pneg %p1394
    $region78: #{fwd.5} parent=5 // pred_check_branch
      %1397 = sbr.rel (%p1395) target = $region80
    $region79: #{fwd.5} parent=5 // pred_region
      %s1398 = ssub.s32 %s19, 2
      // Predicated region
      $region81: #{fwd.5} parent=79 // pred_check
        %p1399 = pneg %p326
      $region82: #{fwd.5} parent=79 // pred_check_branch
        %1401 = sbr.rel (%p1399) target = $region84
      $region83: #{fwd.5} parent=79 // pred_region
        %p1402 = scmp.lt.s32.totalorder %s25, 1
        %s1403 = scalar_select %p1402, %s25, 1
        %s1404 = smul.addr %s1403, 4
        %s1405 = scalar_lea.vmem %s13, %s1404
      $region84: #{fwd.5} parent=79 // pred_fallthru
        _
    $region80: #{fwd.5} parent=5 // pred_fallthru
      _
  $region6: #{fwd.5} parent=0 // loop_footer
    %s23 = sadd.s32 1, %s19
  $region7: #{fwd.5} parent=0 // loop_footer_branch
    %18 = sbr.rel target = $region3
  $region8: #{fwd.5} parent=0 // loop_exit
    _

// kernel: fwd.7
$region0: #{fwd.7}
  #allocation0 [shape = 'u32[]', space=smem, size = 0x4, offset = 0x4, fixed_abs, tag = 'smem constant byte address 0x4 - core index']
  #allocation1 [shape = 'u32[144,128]{1,0:T(1,128)}', space=vmem, size = 0x12000, scoped, tag = 'internal scratch']
  %s0 = inlined_call_operand.vmem [shape: bf16[2,8,32], index: 0, kind: input, shape index: {}]
  %s1 = inlined_call_operand.vmem [shape: bf16[2,8,32], index: 1, kind: input, shape index: {}]
  %s2 = inlined_call_operand.vmem [shape: f32[2,1,8], index: 2, kind: input, shape index: {}]
  %s3 = inlined_call_operand.vmem [shape: f32[2,1,8], index: 3, kind: input, shape index: {}]
  %s4 = inlined_call_operand.vmem [shape: bf16[32,96], index: 4, kind: input, shape index: {}]
  %s5 = inlined_call_operand.vmem [shape: f32[1,96], index: 5, kind: input, shape index: {}]
  %s6 = inlined_call_operand.vmem [shape: bf16[32,32], index: 6, kind: input, shape index: {}]
  %s7 = inlined_call_operand.vmem [shape: f32[1,32], index: 7, kind: input, shape index: {}]
  %s8 = inlined_call_operand.vmem [shape: f32[1,32], index: 8, kind: input, shape index: {}]
  %s9 = inlined_call_operand.vmem [shape: f32[1,32], index: 9, kind: input, shape index: {}]
  %s10 = inlined_call_operand.vmem [shape: bf16[32,32], index: 10, kind: input, shape index: {}]
  %s11 = inlined_call_operand.vmem [shape: f32[1,32], index: 11, kind: input, shape index: {}]
  %s12 = inlined_call_operand.vmem [shape: bf16[32,64], index: 12, kind: input, shape index: {}]
  %s13 = inlined_call_operand.vmem [shape: f32[1,64], index: 13, kind: input, shape index: {}]
  %s14 = inlined_call_operand.vmem [shape: bf16[32,32], index: 14, kind: input, shape index: {}]
  %s15 = inlined_call_operand.vmem [shape: f32[1,32], index: 15, kind: input, shape index: {}]
  %s16 = inlined_call_operand.vmem [shape: f32[1,32], index: 16, kind: input, shape index: {}]
  %s17 = inlined_call_operand.vmem [shape: f32[1,32], index: 17, kind: input, shape index: {}]
  %s18 = inlined_call_operand.vmem [shape: bf16[32,64], index: 18, kind: input, shape index: {}]
  %s19 = inlined_call_operand.vmem [shape: f32[1,64], index: 19, kind: input, shape index: {}]
  %s20 = inlined_call_operand.vmem [shape: bf16[64,32], index: 20, kind: input, shape index: {}]
  %s21 = inlined_call_operand.vmem [shape: f32[1,32], index: 21, kind: input, shape index: {}]
  %s22 = inlined_call_operand.vmem [shape: f32[1,32], index: 22, kind: input, shape index: {}]
  %s23 = inlined_call_operand.vmem [shape: f32[1,32], index: 23, kind: input, shape index: {}]
  %s24 = inlined_call_operand.vmem [shape: bf16[2,8,32], index: 24, kind: output, shape index: {}]
  %s25 = sld [smem:[#allocation0]]
  $region129: #{fwd.7} parent=0
    _
  %s27 = ssub.s32 1, %s25
  %s28 = scalar_select 0, %s27, %s25
  loop: start=0, step=1, limit=4
  $region2: #{fwd.7} parent=0 // loop_pre_header
    _
  $region3: #{fwd.7} parent=0 // loop_header
    %s30 = sphi 0, %s34
    %p31 = scmp.ge.s32.totalorder %s30, 4
    %s40 = sphi 0, %s42
    %s43 = sphi 0, %s40
    %s44 = sphi 0, %s43
    %s60 = sphi 0, %s44
    %s66 = sphi 0, %s68
    %s69 = sphi 0, %s66
    %s70 = sphi 0, %s69
    %s86 = sphi 0, %s70
    %s92 = sphi 0, %s94
    %s95 = sphi 0, %s92
    %s96 = sphi 0, %s95
    %s112 = sphi 0, %s96
    %s118 = sphi 0, %s120
    %s121 = sphi 0, %s118
    %s122 = sphi 0, %s121
    %s138 = sphi 0, %s122
    %s142 = sphi 0, %s142
    %s144 = sphi 0, %s142
    %s145 = sphi 0, %s144
    %s159 = sphi 0, %s145
    %s163 = sphi 0, %s163
    %s165 = sphi 0, %s163
    %s166 = sphi 0, %s165
    %s180 = sphi 0, %s166
    %s184 = sphi 0, %s184
    %s186 = sphi 0, %s184
    %s187 = sphi 0, %s186
    %s201 = sphi 0, %s187
    %s205 = sphi 0, %s205
    %s207 = sphi 0, %s205
    %s208 = sphi 0, %s207
    %s222 = sphi 0, %s208
    %s226 = sphi 0, %s226
    %s228 = sphi 0, %s226
    %s229 = sphi 0, %s228
    %s243 = sphi 0, %s229
    %s247 = sphi 0, %s247
    %s249 = sphi 0, %s247
    %s250 = sphi 0, %s249
    %s264 = sphi 0, %s250
    %s268 = sphi 0, %s268
    %s270 = sphi 0, %s268
    %s271 = sphi 0, %s270
    %s285 = sphi 0, %s271
    %s289 = sphi 0, %s289
    %s291 = sphi 0, %s289
    %s292 = sphi 0, %s291
    %s306 = sphi 0, %s292
    %s310 = sphi 0, %s310
    %s312 = sphi 0, %s310
    %s313 = sphi 0, %s312
    %s327 = sphi 0, %s313
    %s331 = sphi 0, %s331
    %s333 = sphi 0, %s331
    %s334 = sphi 0, %s333
    %s348 = sphi 0, %s334
    %s352 = sphi 0, %s352
    %s354 = sphi 0, %s352
    %s355 = sphi 0, %s354
    %s369 = sphi 0, %s355
    %s373 = sphi 0, %s373
    %s375 = sphi 0, %s373
    %s376 = sphi 0, %s375
    %s390 = sphi 0, %s376
    %s394 = sphi 0, %s394
    %s396 = sphi 0, %s394
    %s397 = sphi 0, %s396
    %s411 = sphi 0, %s397
    %s415 = sphi 0, %s415
    %s417 = sphi 0, %s415
    %s418 = sphi 0, %s417
    %s432 = sphi 0, %s418
    %s436 = sphi 0, %s436
    %s438 = sphi 0, %s436
    %s439 = sphi 0, %s438
    %s453 = sphi 0, %s439
    %s457 = sphi 0, %s457
    %s459 = sphi 0, %s457
    %s460 = sphi 0, %s459
    %s474 = sphi 0, %s460
    %s478 = sphi 0, %s478
    %s480 = sphi 0, %s478
    %s481 = sphi 0, %s480
    %s495 = sphi 0, %s481
    %s499 = sphi 0, %s499
    %s501 = sphi 0, %s499
    %s502 = sphi 0, %s501
    %s516 = sphi 0, %s502
    %s520 = sphi 0, %s520
    %s522 = sphi 0, %s520
    %s523 = sphi 0, %s522
    %s537 = sphi 0, %s523
    %s541 = sphi 0, %s541
    %s543 = sphi 0, %s541
    %s544 = sphi 0, %s543
    %s558 = sphi 0, %s544
    %s564 = sphi 0, %s566
    %s567 = sphi 0, %s564
    %s568 = sphi 0, %s567
    %s584 = sphi 0, %s568
  $region4: #{fwd.7} parent=0 // loop_header_branch
    %33 = sbr.rel (%p31) target = $region8
  $region5: #{fwd.7} parent=0 // loop_body
    %s35 = ssub.s32 %s30, 1
    %s36 = ssub.s32 %s30, 2
    %s37 = sadd.s32 %s30, 1
    %s38 = ssub.s32 %s30, %s37
    %p39 = scmp.eq.s32.totalorder %s38, 0
    %s41 = sadd.s32 %s40, 1
    %s42 = scalar_select %p39, %s40, %s41
    %p45 = pneg %p39
    %p46 = scmp.eq.s32.totalorder %s30, 1
    %p47 = por %p45, %p46
    %p48 = scmp.ne.s32.totalorder %s40, %s43
    %p49 = scmp.eq.s32.totalorder %s30, 0
    %p50 = por %p48, %p49
    %p51 = scmp.ne.s32.totalorder %s40, %s43
    %p52 = scmp.eq.s32.totalorder %s35, 1
    %p53 = por %p51, %p52
    %p54 = scmp.ne.s32.totalorder %s43, %s44
    %p55 = scmp.eq.s32.totalorder %s35, 0
    %p56 = por %p54, %p55
    %p57 = scmp.ne.s32.totalorder %s43, %s44
    %p58 = scmp.eq.s32.totalorder %s36, 1
    %p59 = por %p57, %p58
    %p61 = scmp.ne.s32.totalorder %s44, %s60
    %p62 = scmp.eq.s32.totalorder %s36, 0
    %p63 = por %p61, %p62
    %s64 = ssub.s32 %s30, %s37
    %p65 = scmp.eq.s32.totalorder %s64, 0
    %s67 = sadd.s32 %s66, 1
    %s68 = scalar_select %p65, %s66, %s67
    %p71 = pneg %p65
    %p72 = scmp.eq.s32.totalorder %s30, 1
    %p73 = por %p71, %p72
    %p74 = scmp.ne.s32.totalorder %s66, %s69
    %p75 = scmp.eq.s32.totalorder %s30, 0
    %p76 = por %p74, %p75
    %p77 = scmp.ne.s32.totalorder %s66, %s69
    %p78 = scmp.eq.s32.totalorder %s35, 1
    %p79 = por %p77, %p78
    %p80 = scmp.ne.s32.totalorder %s69, %s70
    %p81 = scmp.eq.s32.totalorder %s35, 0
    %p82 = por %p80, %p81
    %p83 = scmp.ne.s32.totalorder %s69, %s70
    %p84 = scmp.eq.s32.totalorder %s36, 1
    %p85 = por %p83, %p84
    %p87 = scmp.ne.s32.totalorder %s70, %s86
    %p88 = scmp.eq.s32.totalorder %s36, 0
    %p89 = por %p87, %p88
    %s90 = ssub.s32 %s30, %s37
    %p91 = scmp.eq.s32.totalorder %s90, 0
    %s93 = sadd.s32 %s92, 1
    %s94 = scalar_select %p91, %s92, %s93
    %p97 = pneg %p91
    %p98 = scmp.eq.s32.totalorder %s30, 1
    %p99 = por %p97, %p98
    %p100 = scmp.ne.s32.totalorder %s92, %s95
    %p101 = scmp.eq.s32.totalorder %s30, 0
    %p102 = por %p100, %p101
    %p103 = scmp.ne.s32.totalorder %s92, %s95
    %p104 = scmp.eq.s32.totalorder %s35, 1
    %p105 = por %p103, %p104
    %p106 = scmp.ne.s32.totalorder %s95, %s96
    %p107 = scmp.eq.s32.totalorder %s35, 0
    %p108 = por %p106, %p107
    %p109 = scmp.ne.s32.totalorder %s95, %s96
    %p110 = scmp.eq.s32.totalorder %s36, 1
    %p111 = por %p109, %p110
    %p113 = scmp.ne.s32.totalorder %s96, %s112
    %p114 = scmp.eq.s32.totalorder %s36, 0
    %p115 = por %p113, %p114
    %s116 = ssub.s32 %s30, %s37
    %p117 = scmp.eq.s32.totalorder %s116, 0
    %s119 = sadd.s32 %s118, 1
    %s120 = scalar_select %p117, %s118, %s119
    %p123 = pneg %p117
    %p124 = scmp.eq.s32.totalorder %s30, 1
    %p125 = por %p123, %p124
    %p126 = scmp.ne.s32.totalorder %s118, %s121
    %p127 = scmp.eq.s32.totalorder %s30, 0
    %p128 = por %p126, %p127
    %p129 = scmp.ne.s32.totalorder %s118, %s121
    %p130 = scmp.eq.s32.totalorder %s35, 1
    %p131 = por %p129, %p130
    %p132 = scmp.ne.s32.totalorder %s121, %s122
    %p133 = scmp.eq.s32.totalorder %s35, 0
    %p134 = por %p132, %p133
    %p135 = scmp.ne.s32.totalorder %s121, %s122
    %p136 = scmp.eq.s32.totalorder %s36, 1
    %p137 = por %p135, %p136
    %p139 = scmp.ne.s32.totalorder %s122, %s138
    %p140 = scmp.eq.s32.totalorder %s36, 0
    %p141 = por %p139, %p140
    %s143 = sadd.s32 %s142, 1
    %p146 = scmp.eq.s32.totalorder %s30, 1
    %p147 = scmp.ne.s32.totalorder %s142, %s144
    %p148 = scmp.eq.s32.totalorder %s30, 0
    %p149 = por %p147, %p148
    %p150 = scmp.ne.s32.totalorder %s142, %s144
    %p151 = scmp.eq.s32.totalorder %s35, 1
    %p152 = por %p150, %p151
    %p153 = scmp.ne.s32.totalorder %s144, %s145
    %p154 = scmp.eq.s32.totalorder %s35, 0
    %p155 = por %p153, %p154
    %p156 = scmp.ne.s32.totalorder %s144, %s145
    %p157 = scmp.eq.s32.totalorder %s36, 1
    %p158 = por %p156, %p157
    %p160 = scmp.ne.s32.totalorder %s145, %s159
    %p161 = scmp.eq.s32.totalorder %s36, 0
    %p162 = por %p160, %p161
    %s164 = sadd.s32 %s163, 1
    %p167 = scmp.eq.s32.totalorder %s30, 1
    %p168 = scmp.ne.s32.totalorder %s163, %s165
    %p169 = scmp.eq.s32.totalorder %s30, 0
    %p170 = por %p168, %p169
    %p171 = scmp.ne.s32.totalorder %s163, %s165
    %p172 = scmp.eq.s32.totalorder %s35, 1
    %p173 = por %p171, %p172
    %p174 = scmp.ne.s32.totalorder %s165, %s166
    %p175 = scmp.eq.s32.totalorder %s35, 0
    %p176 = por %p174, %p175
    %p177 = scmp.ne.s32.totalorder %s165, %s166
    %p178 = scmp.eq.s32.totalorder %s36, 1
    %p179 = por %p177, %p178
    %p181 = scmp.ne.s32.totalorder %s166, %s180
    %p182 = scmp.eq.s32.totalorder %s36, 0
    %p183 = por %p181, %p182
    %s185 = sadd.s32 %s184, 1
    %p188 = scmp.eq.s32.totalorder %s30, 1
    %p189 = scmp.ne.s32.totalorder %s184, %s186
    %p190 = scmp.eq.s32.totalorder %s30, 0
    %p191 = por %p189, %p190
    %p192 = scmp.ne.s32.totalorder %s184, %s186
    %p193 = scmp.eq.s32.totalorder %s35, 1
    %p194 = por %p192, %p193
    %p195 = scmp.ne.s32.totalorder %s186, %s187
    %p196 = scmp.eq.s32.totalorder %s35, 0
    %p197 = por %p195, %p196
    %p198 = scmp.ne.s32.totalorder %s186, %s187
    %p199 = scmp.eq.s32.totalorder %s36, 1
    %p200 = por %p198, %p199
    %p202 = scmp.ne.s32.totalorder %s187, %s201
    %p203 = scmp.eq.s32.totalorder %s36, 0
    %p204 = por %p202, %p203
    %s206 = sadd.s32 %s205, 1
    %p209 = scmp.eq.s32.totalorder %s30, 1
    %p210 = scmp.ne.s32.totalorder %s205, %s207
    %p211 = scmp.eq.s32.totalorder %s30, 0
    %p212 = por %p210, %p211
    %p213 = scmp.ne.s32.totalorder %s205, %s207
    %p214 = scmp.eq.s32.totalorder %s35, 1
    %p215 = por %p213, %p214
    %p216 = scmp.ne.s32.totalorder %s207, %s208
    %p217 = scmp.eq.s32.totalorder %s35, 0
    %p218 = por %p216, %p217
    %p219 = scmp.ne.s32.totalorder %s207, %s208
    %p220 = scmp.eq.s32.totalorder %s36, 1
    %p221 = por %p219, %p220
    %p223 = scmp.ne.s32.totalorder %s208, %s222
    %p224 = scmp.eq.s32.totalorder %s36, 0
    %p225 = por %p223, %p224
    %s227 = sadd.s32 %s226, 1
    %p230 = scmp.eq.s32.totalorder %s30, 1
    %p231 = scmp.ne.s32.totalorder %s226, %s228
    %p232 = scmp.eq.s32.totalorder %s30, 0
    %p233 = por %p231, %p232
    %p234 = scmp.ne.s32.totalorder %s226, %s228
    %p235 = scmp.eq.s32.totalorder %s35, 1
    %p236 = por %p234, %p235
    %p237 = scmp.ne.s32.totalorder %s228, %s229
    %p238 = scmp.eq.s32.totalorder %s35, 0
    %p239 = por %p237, %p238
    %p240 = scmp.ne.s32.totalorder %s228, %s229
    %p241 = scmp.eq.s32.totalorder %s36, 1
    %p242 = por %p240, %p241
    %p244 = scmp.ne.s32.totalorder %s229, %s243
    %p245 = scmp.eq.s32.totalorder %s36, 0
    %p246 = por %p244, %p245
    %s248 = sadd.s32 %s247, 1
    %p251 = scmp.eq.s32.totalorder %s30, 1
    %p252 = scmp.ne.s32.totalorder %s247, %s249
    %p253 = scmp.eq.s32.totalorder %s30, 0
    %p254 = por %p252, %p253
    %p255 = scmp.ne.s32.totalorder %s247, %s249
    %p256 = scmp.eq.s32.totalorder %s35, 1
    %p257 = por %p255, %p256
    %p258 = scmp.ne.s32.totalorder %s249, %s250
    %p259 = scmp.eq.s32.totalorder %s35, 0
    %p260 = por %p258, %p259
    %p261 = scmp.ne.s32.totalorder %s249, %s250
    %p262 = scmp.eq.s32.totalorder %s36, 1
    %p263 = por %p261, %p262
    %p265 = scmp.ne.s32.totalorder %s250, %s264
    %p266 = scmp.eq.s32.totalorder %s36, 0
    %p267 = por %p265, %p266
    %s269 = sadd.s32 %s268, 1
    %p272 = scmp.eq.s32.totalorder %s30, 1
    %p273 = scmp.ne.s32.totalorder %s268, %s270
    %p274 = scmp.eq.s32.totalorder %s30, 0
    %p275 = por %p273, %p274
    %p276 = scmp.ne.s32.totalorder %s268, %s270
    %p277 = scmp.eq.s32.totalorder %s35, 1
    %p278 = por %p276, %p277
    %p279 = scmp.ne.s32.totalorder %s270, %s271
    %p280 = scmp.eq.s32.totalorder %s35, 0
    %p281 = por %p279, %p280
    %p282 = scmp.ne.s32.totalorder %s270, %s271
    %p283 = scmp.eq.s32.totalorder %s36, 1
    %p284 = por %p282, %p283
    %p286 = scmp.ne.s32.totalorder %s271, %s285
    %p287 = scmp.eq.s32.totalorder %s36, 0
    %p288 = por %p286, %p287
    %s290 = sadd.s32 %s289, 1
    %p293 = scmp.eq.s32.totalorder %s30, 1
    %p294 = scmp.ne.s32.totalorder %s289, %s291
    %p295 = scmp.eq.s32.totalorder %s30, 0
    %p296 = por %p294, %p295
    %p297 = scmp.ne.s32.totalorder %s289, %s291
    %p298 = scmp.eq.s32.totalorder %s35, 1
    %p299 = por %p297, %p298
    %p300 = scmp.ne.s32.totalorder %s291, %s292
    %p301 = scmp.eq.s32.totalorder %s35, 0
    %p302 = por %p300, %p301
    %p303 = scmp.ne.s32.totalorder %s291, %s292
    %p304 = scmp.eq.s32.totalorder %s36, 1
    %p305 = por %p303, %p304
    %p307 = scmp.ne.s32.totalorder %s292, %s306
    %p308 = scmp.eq.s32.totalorder %s36, 0
    %p309 = por %p307, %p308
    %s311 = sadd.s32 %s310, 1
    %p314 = scmp.eq.s32.totalorder %s30, 1
    %p315 = scmp.ne.s32.totalorder %s310, %s312
    %p316 = scmp.eq.s32.totalorder %s30, 0
    %p317 = por %p315, %p316
    %p318 = scmp.ne.s32.totalorder %s310, %s312
    %p319 = scmp.eq.s32.totalorder %s35, 1
    %p320 = por %p318, %p319
    %p321 = scmp.ne.s32.totalorder %s312, %s313
    %p322 = scmp.eq.s32.totalorder %s35, 0
    %p323 = por %p321, %p322
    %p324 = scmp.ne.s32.totalorder %s312, %s313
    %p325 = scmp.eq.s32.totalorder %s36, 1
    %p326 = por %p324, %p325
    %p328 = scmp.ne.s32.totalorder %s313, %s327
    %p329 = scmp.eq.s32.totalorder %s36, 0
    %p330 = por %p328, %p329
    %s332 = sadd.s32 %s331, 1
    %p335 = scmp.eq.s32.totalorder %s30, 1
    %p336 = scmp.ne.s32.totalorder %s331, %s333
    %p337 = scmp.eq.s32.totalorder %s30, 0
    %p338 = por %p336, %p337
    %p339 = scmp.ne.s32.totalorder %s331, %s333
    %p340 = scmp.eq.s32.totalorder %s35, 1
    %p341 = por %p339, %p340
    %p342 = scmp.ne.s32.totalorder %s333, %s334
    %p343 = scmp.eq.s32.totalorder %s35, 0
    %p344 = por %p342, %p343
    %p345 = scmp.ne.s32.totalorder %s333, %s334
    %p346 = scmp.eq.s32.totalorder %s36, 1
    %p347 = por %p345, %p346
    %p349 = scmp.ne.s32.totalorder %s334, %s348
    %p350 = scmp.eq.s32.totalorder %s36, 0
    %p351 = por %p349, %p350
    %s353 = sadd.s32 %s352, 1
    %p356 = scmp.eq.s32.totalorder %s30, 1
    %p357 = scmp.ne.s32.totalorder %s352, %s354
    %p358 = scmp.eq.s32.totalorder %s30, 0
    %p359 = por %p357, %p358
    %p360 = scmp.ne.s32.totalorder %s352, %s354
    %p361 = scmp.eq.s32.totalorder %s35, 1
    %p362 = por %p360, %p361
    %p363 = scmp.ne.s32.totalorder %s354, %s355
    %p364 = scmp.eq.s32.totalorder %s35, 0
    %p365 = por %p363, %p364
    %p366 = scmp.ne.s32.totalorder %s354, %s355
    %p367 = scmp.eq.s32.totalorder %s36, 1
    %p368 = por %p366, %p367
    %p370 = scmp.ne.s32.totalorder %s355, %s369
    %p371 = scmp.eq.s32.totalorder %s36, 0
    %p372 = por %p370, %p371
    %s374 = sadd.s32 %s373, 1
    %p377 = scmp.eq.s32.totalorder %s30, 1
    %p378 = scmp.ne.s32.totalorder %s373, %s375
    %p379 = scmp.eq.s32.totalorder %s30, 0
    %p380 = por %p378, %p379
    %p381 = scmp.ne.s32.totalorder %s373, %s375
    %p382 = scmp.eq.s32.totalorder %s35, 1
    %p383 = por %p381, %p382
    %p384 = scmp.ne.s32.totalorder %s375, %s376
    %p385 = scmp.eq.s32.totalorder %s35, 0
    %p386 = por %p384, %p385
    %p387 = scmp.ne.s32.totalorder %s375, %s376
    %p388 = scmp.eq.s32.totalorder %s36, 1
    %p389 = por %p387, %p388
    %p391 = scmp.ne.s32.totalorder %s376, %s390
    %p392 = scmp.eq.s32.totalorder %s36, 0
    %p393 = por %p391, %p392
    %s395 = sadd.s32 %s394, 1
    %p398 = scmp.eq.s32.totalorder %s30, 1
    %p399 = scmp.ne.s32.totalorder %s394, %s396
    %p400 = scmp.eq.s32.totalorder %s30, 0
    %p401 = por %p399, %p400
    %p402 = scmp.ne.s32.totalorder %s394, %s396
    %p403 = scmp.eq.s32.totalorder %s35, 1
    %p404 = por %p402, %p403
    %p405 = scmp.ne.s32.totalorder %s396, %s397
    %p406 = scmp.eq.s32.totalorder %s35, 0
    %p407 = por %p405, %p406
    %p408 = scmp.ne.s32.totalorder %s396, %s397
    %p409 = scmp.eq.s32.totalorder %s36, 1
    %p410 = por %p408, %p409
    %p412 = scmp.ne.s32.totalorder %s397, %s411
    %p413 = scmp.eq.s32.totalorder %s36, 0
    %p414 = por %p412, %p413
    %s416 = sadd.s32 %s415, 1
    %p419 = scmp.eq.s32.totalorder %s30, 1
    %p420 = scmp.ne.s32.totalorder %s415, %s417
    %p421 = scmp.eq.s32.totalorder %s30, 0
    %p422 = por %p420, %p421
    %p423 = scmp.ne.s32.totalorder %s415, %s417
    %p424 = scmp.eq.s32.totalorder %s35, 1
    %p425 = por %p423, %p424
    %p426 = scmp.ne.s32.totalorder %s417, %s418
    %p427 = scmp.eq.s32.totalorder %s35, 0
    %p428 = por %p426, %p427
    %p429 = scmp.ne.s32.totalorder %s417, %s418
    %p430 = scmp.eq.s32.totalorder %s36, 1
    %p431 = por %p429, %p430
    %p433 = scmp.ne.s32.totalorder %s418, %s432
    %p434 = scmp.eq.s32.totalorder %s36, 0
    %p435 = por %p433, %p434
    %s437 = sadd.s32 %s436, 1
    %p440 = scmp.eq.s32.totalorder %s30, 1
    %p441 = scmp.ne.s32.totalorder %s436, %s438
    %p442 = scmp.eq.s32.totalorder %s30, 0
    %p443 = por %p441, %p442
    %p444 = scmp.ne.s32.totalorder %s436, %s438
    %p445 = scmp.eq.s32.totalorder %s35, 1
    %p446 = por %p444, %p445
    %p447 = scmp.ne.s32.totalorder %s438, %s439
    %p448 = scmp.eq.s32.totalorder %s35, 0
    %p449 = por %p447, %p448
    %p450 = scmp.ne.s32.totalorder %s438, %s439
    %p451 = scmp.eq.s32.totalorder %s36, 1
    %p452 = por %p450, %p451
    %p454 = scmp.ne.s32.totalorder %s439, %s453
    %p455 = scmp.eq.s32.totalorder %s36, 0
    %p456 = por %p454, %p455
    %s458 = sadd.s32 %s457, 1
    %p461 = scmp.eq.s32.totalorder %s30, 1
    %p462 = scmp.ne.s32.totalorder %s457, %s459
    %p463 = scmp.eq.s32.totalorder %s30, 0
    %p464 = por %p462, %p463
    %p465 = scmp.ne.s32.totalorder %s457, %s459
    %p466 = scmp.eq.s32.totalorder %s35, 1
    %p467 = por %p465, %p466
    %p468 = scmp.ne.s32.totalorder %s459, %s460
    %p469 = scmp.eq.s32.totalorder %s35, 0
    %p470 = por %p468, %p469
    %p471 = scmp.ne.s32.totalorder %s459, %s460
    %p472 = scmp.eq.s32.totalorder %s36, 1
    %p473 = por %p471, %p472
    %p475 = scmp.ne.s32.totalorder %s460, %s474
    %p476 = scmp.eq.s32.totalorder %s36, 0
    %p477 = por %p475, %p476
    %s479 = sadd.s32 %s478, 1
    %p482 = scmp.eq.s32.totalorder %s30, 1
    %p483 = scmp.ne.s32.totalorder %s478, %s480
    %p484 = scmp.eq.s32.totalorder %s30, 0
    %p485 = por %p483, %p484
    %p486 = scmp.ne.s32.totalorder %s478, %s480
    %p487 = scmp.eq.s32.totalorder %s35, 1
    %p488 = por %p486, %p487
    %p489 = scmp.ne.s32.totalorder %s480, %s481
    %p490 = scmp.eq.s32.totalorder %s35, 0
    %p491 = por %p489, %p490
    %p492 = scmp.ne.s32.totalorder %s480, %s481
    %p493 = scmp.eq.s32.totalorder %s36, 1
    %p494 = por %p492, %p493
    %p496 = scmp.ne.s32.totalorder %s481, %s495
    %p497 = scmp.eq.s32.totalorder %s36, 0
    %p498 = por %p496, %p497
    %s500 = sadd.s32 %s499, 1
    %p503 = scmp.eq.s32.totalorder %s30, 1
    %p504 = scmp.ne.s32.totalorder %s499, %s501
    %p505 = scmp.eq.s32.totalorder %s30, 0
    %p506 = por %p504, %p505
    %p507 = scmp.ne.s32.totalorder %s499, %s501
    %p508 = scmp.eq.s32.totalorder %s35, 1
    %p509 = por %p507, %p508
    %p510 = scmp.ne.s32.totalorder %s501, %s502
    %p511 = scmp.eq.s32.totalorder %s35, 0
    %p512 = por %p510, %p511
    %p513 = scmp.ne.s32.totalorder %s501, %s502
    %p514 = scmp.eq.s32.totalorder %s36, 1
    %p515 = por %p513, %p514
    %p517 = scmp.ne.s32.totalorder %s502, %s516
    %p518 = scmp.eq.s32.totalorder %s36, 0
    %p519 = por %p517, %p518
    %s521 = sadd.s32 %s520, 1
    %p524 = scmp.eq.s32.totalorder %s30, 1
    %p525 = scmp.ne.s32.totalorder %s520, %s522
    %p526 = scmp.eq.s32.totalorder %s30, 0
    %p527 = por %p525, %p526
    %p528 = scmp.ne.s32.totalorder %s520, %s522
    %p529 = scmp.eq.s32.totalorder %s35, 1
    %p530 = por %p528, %p529
    %p531 = scmp.ne.s32.totalorder %s522, %s523
    %p532 = scmp.eq.s32.totalorder %s35, 0
    %p533 = por %p531, %p532
    %p534 = scmp.ne.s32.totalorder %s522, %s523
    %p535 = scmp.eq.s32.totalorder %s36, 1
    %p536 = por %p534, %p535
    %p538 = scmp.ne.s32.totalorder %s523, %s537
    %p539 = scmp.eq.s32.totalorder %s36, 0
    %p540 = por %p538, %p539
    %s542 = sadd.s32 %s541, 1
    %p545 = scmp.eq.s32.totalorder %s30, 1
    %p546 = scmp.ne.s32.totalorder %s541, %s543
    %p547 = scmp.eq.s32.totalorder %s30, 0
    %p548 = por %p546, %p547
    %p549 = scmp.ne.s32.totalorder %s541, %s543
    %p550 = scmp.eq.s32.totalorder %s35, 1
    %p551 = por %p549, %p550
    %p552 = scmp.ne.s32.totalorder %s543, %s544
    %p553 = scmp.eq.s32.totalorder %s35, 0
    %p554 = por %p552, %p553
    %p555 = scmp.ne.s32.totalorder %s543, %s544
    %p556 = scmp.eq.s32.totalorder %s36, 1
    %p557 = por %p555, %p556
    %p559 = scmp.ne.s32.totalorder %s544, %s558
    %p560 = scmp.eq.s32.totalorder %s36, 0
    %p561 = por %p559, %p560
    %s562 = ssub.s32 %s30, %s37
    %p563 = scmp.eq.s32.totalorder %s562, 0
    %s565 = sadd.s32 %s564, 1
    %s566 = scalar_select %p563, %s564, %s565
    %p569 = pneg %p563
    %p570 = scmp.eq.s32.totalorder %s30, 1
    %p571 = por %p569, %p570
    %p572 = scmp.ne.s32.totalorder %s564, %s567
    %p573 = scmp.eq.s32.totalorder %s30, 0
    %p574 = por %p572, %p573
    %p575 = scmp.ne.s32.totalorder %s564, %s567
    %p576 = scmp.eq.s32.totalorder %s35, 1
    %p577 = por %p575, %p576
    %p578 = scmp.ne.s32.totalorder %s567, %s568
    %p579 = scmp.eq.s32.totalorder %s35, 0
    %p580 = por %p578, %p579
    %p581 = scmp.ne.s32.totalorder %s567, %s568
    %p582 = scmp.eq.s32.totalorder %s36, 1
    %p583 = por %p581, %p582
    %p585 = scmp.ne.s32.totalorder %s568, %s584
    %p586 = scmp.eq.s32.totalorder %s36, 0
    %p587 = por %p585, %p586
    %p588 = scmp.le.s32.totalorder 1, %s30
    %p589 = scmp.lt.s32.totalorder %s30, 3
    %p590 = pnand %p588, %p589
    %p591 = pneg %p590
    // Predicated region
    $region9: #{fwd.7} parent=5 // pred_check
      _
    $region10: #{fwd.7} parent=5 // pred_check_branch
      %593 = sbr.rel (%p590) target = $region12
    $region11: #{fwd.7} parent=5 // pred_region
      %s594 = ssub.s32 %s30, 1
      // Predicated region
      $region13: #{fwd.7} parent=11 // pred_check
        %p595 = pneg %p155
      $region14: #{fwd.7} parent=11 // pred_check_branch
        %597 = sbr.rel (%p595) target = $region16
      $region15: #{fwd.7} parent=11 // pred_region
        _
      $region16: #{fwd.7} parent=11 // pred_fallthru
        _
      // Predicated region
      $region17: #{fwd.7} parent=11 // pred_check
        %p598 = pneg %p176
      $region18: #{fwd.7} parent=11 // pred_check_branch
        %600 = sbr.rel (%p598) target = $region20
      $region19: #{fwd.7} parent=11 // pred_region
        _
      $region20: #{fwd.7} parent=11 // pred_fallthru
        _
      // Predicated region
      $region21: #{fwd.7} parent=11 // pred_check
        %p601 = pneg %p197
      $region22: #{fwd.7} parent=11 // pred_check_branch
        %603 = sbr.rel (%p601) target = $region24
      $region23: #{fwd.7} parent=11 // pred_region
        _
      $region24: #{fwd.7} parent=11 // pred_fallthru
        _
      // Predicated region
      $region25: #{fwd.7} parent=11 // pred_check
        %p604 = pneg %p218
      $region26: #{fwd.7} parent=11 // pred_check_branch
        %606 = sbr.rel (%p604) target = $region28
      $region27: #{fwd.7} parent=11 // pred_region
        _
      $region28: #{fwd.7} parent=11 // pred_fallthru
        _
      // Predicated region
      $region29: #{fwd.7} parent=11 // pred_check
        %p607 = pneg %p239
      $region30: #{fwd.7} parent=11 // pred_check_branch
        %609 = sbr.rel (%p607) target = $region32
      $region31: #{fwd.7} parent=11 // pred_region
        _
      $region32: #{fwd.7} parent=11 // pred_fallthru
        _
      // Predicated region
      $region33: #{fwd.7} parent=11 // pred_check
        %p610 = pneg %p260
      $region34: #{fwd.7} parent=11 // pred_check_branch
        %612 = sbr.rel (%p610) target = $region36
      $region35: #{fwd.7} parent=11 // pred_region
        _
      $region36: #{fwd.7} parent=11 // pred_fallthru
        _
      // Predicated region
      $region37: #{fwd.7} parent=11 // pred_check
        %p613 = pneg %p281
      $region38: #{fwd.7} parent=11 // pred_check_branch
        %615 = sbr.rel (%p613) target = $region40
      $region39: #{fwd.7} parent=11 // pred_region
        _
      $region40: #{fwd.7} parent=11 // pred_fallthru
        _
      // Predicated region
      $region41: #{fwd.7} parent=11 // pred_check
        %p616 = pneg %p302
      $region42: #{fwd.7} parent=11 // pred_check_branch
        %618 = sbr.rel (%p616) target = $region44
      $region43: #{fwd.7} parent=11 // pred_region
        _
      $region44: #{fwd.7} parent=11 // pred_fallthru
        _
      // Predicated region
      $region45: #{fwd.7} parent=11 // pred_check
        %p619 = pneg %p323
      $region46: #{fwd.7} parent=11 // pred_check_branch
        %621 = sbr.rel (%p619) target = $region48
      $region47: #{fwd.7} parent=11 // pred_region
        _
      $region48: #{fwd.7} parent=11 // pred_fallthru
        _
      // Predicated region
      $region49: #{fwd.7} parent=11 // pred_check
        %p622 = pneg %p344
      $region50: #{fwd.7} parent=11 // pred_check_branch
        %624 = sbr.rel (%p622) target = $region52
      $region51: #{fwd.7} parent=11 // pred_region
        _
      $region52: #{fwd.7} parent=11 // pred_fallthru
        _
      // Predicated region
      $region53: #{fwd.7} parent=11 // pred_check
        %p625 = pneg %p365
      $region54: #{fwd.7} parent=11 // pred_check_branch
        %627 = sbr.rel (%p625) target = $region56
      $region55: #{fwd.7} parent=11 // pred_region
        _
      $region56: #{fwd.7} parent=11 // pred_fallthru
        _
      // Predicated region
      $region57: #{fwd.7} parent=11 // pred_check
        %p628 = pneg %p386
      $region58: #{fwd.7} parent=11 // pred_check_branch
        %630 = sbr.rel (%p628) target = $region60
      $region59: #{fwd.7} parent=11 // pred_region
        _
      $region60: #{fwd.7} parent=11 // pred_fallthru
        _
      // Predicated region
      $region61: #{fwd.7} parent=11 // pred_check
        %p631 = pneg %p407
      $region62: #{fwd.7} parent=11 // pred_check_branch
        %633 = sbr.rel (%p631) target = $region64
      $region63: #{fwd.7} parent=11 // pred_region
        _
      $region64: #{fwd.7} parent=11 // pred_fallthru
        _
      // Predicated region
      $region65: #{fwd.7} parent=11 // pred_check
        %p634 = pneg %p428
      $region66: #{fwd.7} parent=11 // pred_check_branch
        %636 = sbr.rel (%p634) target = $region68
      $region67: #{fwd.7} parent=11 // pred_region
        _
      $region68: #{fwd.7} parent=11 // pred_fallthru
        _
      // Predicated region
      $region69: #{fwd.7} parent=11 // pred_check
        %p637 = pneg %p449
      $region70: #{fwd.7} parent=11 // pred_check_branch
        %639 = sbr.rel (%p637) target = $region72
      $region71: #{fwd.7} parent=11 // pred_region
        _
      $region72: #{fwd.7} parent=11 // pred_fallthru
        _
      // Predicated region
      $region73: #{fwd.7} parent=11 // pred_check
        %p640 = pneg %p470
      $region74: #{fwd.7} parent=11 // pred_check_branch
        %642 = sbr.rel (%p640) target = $region76
      $region75: #{fwd.7} parent=11 // pred_region
        _
      $region76: #{fwd.7} parent=11 // pred_fallthru
        _
      // Predicated region
      $region77: #{fwd.7} parent=11 // pred_check
        %p643 = pneg %p491
      $region78: #{fwd.7} parent=11 // pred_check_branch
        %645 = sbr.rel (%p643) target = $region80
      $region79: #{fwd.7} parent=11 // pred_region
        _
      $region80: #{fwd.7} parent=11 // pred_fallthru
        _
      // Predicated region
      $region81: #{fwd.7} parent=11 // pred_check
        %p646 = pneg %p512
      $region82: #{fwd.7} parent=11 // pred_check_branch
        %648 = sbr.rel (%p646) target = $region84
      $region83: #{fwd.7} parent=11 // pred_region
        _
      $region84: #{fwd.7} parent=11 // pred_fallthru
        _
      // Predicated region
      $region85: #{fwd.7} parent=11 // pred_check
        %p649 = pneg %p533
      $region86: #{fwd.7} parent=11 // pred_check_branch
        %651 = sbr.rel (%p649) target = $region88
      $region87: #{fwd.7} parent=11 // pred_region
        _
      $region88: #{fwd.7} parent=11 // pred_fallthru
        _
      // Predicated region
      $region89: #{fwd.7} parent=11 // pred_check
        %p652 = pneg %p554
      $region90: #{fwd.7} parent=11 // pred_check_branch
        %654 = sbr.rel (%p652) target = $region92
      $region91: #{fwd.7} parent=11 // pred_region
        _
      $region92: #{fwd.7} parent=11 // pred_fallthru
        _
    $region12: #{fwd.7} parent=5 // pred_fallthru
      _
    %p655 = scmp.lt.s32.totalorder %s30, 2
    // Predicated region
    $region93: #{fwd.7} parent=5 // pred_check
      %p656 = pneg %p655
    $region94: #{fwd.7} parent=5 // pred_check_branch
      %658 = sbr.rel (%p656) target = $region96
    $region95: #{fwd.7} parent=5 // pred_region
      // Predicated region
      $region97: #{fwd.7} parent=95 // pred_check
        %p659 = pneg %p50
      $region98: #{fwd.7} parent=95 // pred_check_branch
        %661 = sbr.rel (%p659) target = $region100
      $region99: #{fwd.7} parent=95 // pred_region
        %p662 = scmp.lt.s32.totalorder %s30, 1
        %s663 = scalar_select %p662, %s30, 1
        %s664 = smul.addr %s663, 4
        %s665 = scalar_lea.vmem %s0, %s664
      $region100: #{fwd.7} parent=95 // pred_fallthru
        _
      // Predicated region
      $region101: #{fwd.7} parent=95 // pred_check
        %p666 = pneg %p76
      $region102: #{fwd.7} parent=95 // pred_check_branch
        %668 = sbr.rel (%p666) target = $region104
      $region103: #{fwd.7} parent=95 // pred_region
        %p669 = scmp.lt.s32.totalorder %s30, 1
        %s670 = scalar_select %p669, %s30, 1
        %s671 = smul.addr %s670, 4
        %s672 = scalar_lea.vmem %s1, %s671
      $region104: #{fwd.7} parent=95 // pred_fallthru
        _
      // Predicated region
      $region105: #{fwd.7} parent=95 // pred_check
        %p673 = pneg %p102
      $region106: #{fwd.7} parent=95 // pred_check_branch
        %675 = sbr.rel (%p673) target = $region108
      $region107: #{fwd.7} parent=95 // pred_region
        %p676 = scmp.lt.s32.totalorder %s30, 1
        %s677 = scalar_select %p676, %s30, 1
        %s678 = scalar_lea.vmem %s2, %s677
      $region108: #{fwd.7} parent=95 // pred_fallthru
        _
      // Predicated region
      $region109: #{fwd.7} parent=95 // pred_check
        %p679 = pneg %p128
      $region110: #{fwd.7} parent=95 // pred_check_branch
        %681 = sbr.rel (%p679) target = $region112
      $region111: #{fwd.7} parent=95 // pred_region
        %p682 = scmp.lt.s32.totalorder %s30, 1
        %s683 = scalar_select %p682, %s30, 1
        %s684 = scalar_lea.vmem %s3, %s683
      $region112: #{fwd.7} parent=95 // pred_fallthru
        _
    $region96: #{fwd.7} parent=5 // pred_fallthru
      _
    %p685 = scmp.le.s32.totalorder 1, %s30
    %p686 = scmp.lt.s32.totalorder %s30, 3
    %p687 = pnand %p685, %p686
    %p688 = pneg %p687
    // Predicated region
    $region113: #{fwd.7} parent=5 // pred_check
      _
    $region114: #{fwd.7} parent=5 // pred_check_branch
      %690 = sbr.rel (%p687) target = $region116
    $region115: #{fwd.7} parent=5 // pred_region
      %s691 = ssub.s32 %s30, 1
      %p692 = scmp.lt.s32.totalorder %s35, 1
      %s693 = scalar_select %p692, %s35, 1
      %s694 = smul.addr %s693, 4
      %s695 = scalar_lea.vmem %s0, %s694
      %p696 = pneg %p56
      %p697 = pneg %p53
      %p698 = scmp.lt.s32.totalorder %s35, 1
      %s699 = scalar_select %p698, %s35, 1
      %s700 = smul.addr %s699, 4
      %s701 = scalar_lea.vmem %s1, %s700
      %p702 = pneg %p82
      %p703 = pneg %p79
      %p704 = scmp.lt.s32.totalorder %s35, 1
      %s705 = scalar_select %p704, %s35, 1
      %s706 = scalar_lea.vmem %s2, %s705
      %p707 = pneg %p108
      %p708 = pneg %p105
      %p709 = scmp.lt.s32.totalorder %s35, 1
      %s710 = scalar_select %p709, %s35, 1
      %s711 = scalar_lea.vmem %s3, %s710
      %p712 = pneg %p134
      %p713 = pneg %p131
      %p714 = pneg %p155
      %p715 = pneg %p152
      %p716 = pneg %p176
      %p717 = pneg %p173
      %p718 = pneg %p197
      %p719 = pneg %p194
      %p720 = pneg %p218
      %p721 = pneg %p215
      %p722 = pneg %p239
      %p723 = pneg %p236
      %p724 = pneg %p260
      %p725 = pneg %p257
      %p726 = pneg %p281
      %p727 = pneg %p278
      %p728 = pneg %p302
      %p729 = pneg %p299
      %p730 = pneg %p323
      %p731 = pneg %p320
      %p732 = pneg %p344
      %p733 = pneg %p341
      %p734 = pneg %p365
      %p735 = pneg %p362
      %p736 = pneg %p386
      %p737 = pneg %p383
      %p738 = pneg %p407
      %p739 = pneg %p404
      %p740 = pneg %p428
      %p741 = pneg %p425
      %p742 = pneg %p449
      %p743 = pneg %p446
      %p744 = pneg %p470
      %p745 = pneg %p467
      %p746 = pneg %p491
      %p747 = pneg %p488
      %p748 = pneg %p512
      %p749 = pneg %p509
      %p750 = pneg %p533
      %p751 = pneg %p530
      %p752 = pneg %p554
      %p753 = pneg %p551
      %p754 = pneg %p580
      %p755 = pneg %p577
      %p756 = scmp.lt.s32.totalorder %s35, 1
      %s757 = scalar_select %p756, %s35, 1
      %s758 = smul.addr %s757, 4
      %s759 = scalar_lea.vmem %s24, %s758
      %p760 = scmp.lt.s32.totalorder %s35, 1
      %s761 = scalar_select %p760, %s35, 1
      %s762 = smul.addr %s761, 4
      %s763 = scalar_lea.vmem %s0, %s762
      %p764 = scmp.lt.s32.totalorder %s35, 1
      %s765 = scalar_select %p764, %s35, 1
      %s766 = smul.addr %s765, 4
      %s767 = scalar_lea.vmem %s1, %s766
      %p768 = scmp.lt.s32.totalorder %s35, 1
      %s769 = scalar_select %p768, %s35, 1
      %s770 = scalar_lea.vmem %s2, %s769
      %p771 = scmp.lt.s32.totalorder %s35, 1
      %s772 = scalar_select %p771, %s35, 1
      %s773 = scalar_lea.vmem %s3, %s772
      %p774 = scmp.lt.s32.totalorder %s35, 1
      %s775 = scalar_select %p774, %s35, 1
      %s776 = smul.addr %s775, 4
      %s777 = scalar_lea.vmem %s24, %s776
      %v779 = vld [vmem:[%s763] sm:$0xf]
      %v780 = vunpack.c.l.bf16 %v779
      %v781 = vld [vmem:[%s767] sm:$0xf]
      %v782 = vlaneseq
      %v783 = vshrl.u32 %v782, 7
      %v784 = vlaneseq
      %v785 = vand.u32 %v784, 127
      %v786 = vld [vmem:[%s770] sm:$0x1]
      %vm787 = vcmp.gt.f32.partialorder %v786, 0.5
      %vm788 = vcmp.gt.s32.totalorder %v785, %v783
      %v789 = vsel %vm787, 1, 0
      %v790 = vlaneseq
      %v791 = vshrl.u32 %v790, 7
      %v792 = vsub.s32 0, %v791
      %v793 = vrot.slane %v789, %v792
      %vm794 = vcmp.eq.s32.totalorder %v793, 1
      %vm795 = vmor %vm794, %vm788
      %v796 = vld [vmem:[%s773] sm:$0x1]
      %vm797 = vcmp.gt.f32.partialorder %v796, 0.5
      %v798 = vld [vmem:[%s4] sm:$0xf]
      %v799 = vld [vmem:[%s4 + $0x4] sm:$0xf]
      %v800 = vld [vmem:[%s4 + $0x8] sm:$0xf]
      %v801 = vld [vmem:[%s4 + $0xc] sm:$0xf]
      %v802 = vld [vmem:[%s5] sm:$0x1]
      %v804 = vlaneseq
      %v805 = vshrl.u32 %v804, 7
      %v806 = vsub.s32 0, %v805
      %v807 = vrot.slane %v802, %v806
      %v813 = vunpack.c.l.b16 %v798
      %v814 = vunpack.c.l.b16 %v799
      %v815 = vunpack.c.l.b16 %v800
      %v816 = vunpack.c.l.b16 %v801
      %v817 = vpack.c.b16 %v814, %v813
      %v818 = vpack.c.b16 %v816, %v815
      %vm821 = vcmask 261120
      %v823 = vsel %vm821, %v779, 0
      %825 = vmatprep.subr.bf16.mxu0 0
      %826 = vmatpush1.bf16.msra.mxu0 %v817
      %827 = vmatprep.subr.bf16.mxu0 0
      %828 = vmatpush1.bf16.msra.mxu0 %v818
      %829 = vmatprep.subr.bf16.mxu0 0
      %830 = vmatpush1.bf16.msra.mxu0 0
      %831 = vmatprep.subr.bf16.mxu0 0
      %832 = vmatpush1.bf16.msra.mxu0 0
      %833 = vmatprep.subr.bf16.mxu0 0
      %834 = vmatpush1.bf16.msra.mxu0 0
      %835 = vmatprep.subr.bf16.mxu0 0
      %836 = vmatpush1.bf16.msra.mxu0 0
      %837 = vmatprep.subr.bf16.mxu0 0
      %838 = vmatpush1.bf16.msra.mxu0 0
      %839 = vmatprep.subr.bf16.mxu0 0
      %840 = vmatpush1.bf16.msra.mxu0 0
      %841 = vmatprep.subr.bf16.mxu0 0
      %842 = vmatpush1.bf16.msra.mxu0 0
      %843 = vmatprep.subr.bf16.mxu0 0
      %844 = vmatpush1.bf16.msra.mxu0 0
      %845 = vmatprep.subr.bf16.mxu0 0
      %846 = vmatpush1.bf16.msra.mxu0 0
      %847 = vmatprep.subr.bf16.mxu0 0
      %848 = vmatpush1.bf16.msra.mxu0 0
      %849 = vmatprep.subr.bf16.mxu0 0
      %850 = vmatpush1.bf16.msra.mxu0 0
      %851 = vmatprep.subr.bf16.mxu0 0
      %852 = vmatpush1.bf16.msra.mxu0 0
      %853 = vmatprep.subr.bf16.mxu0 0
      %854 = vmatpush1.bf16.msra.mxu0 0
      %855 = vmatprep.subr.bf16.mxu0 0
      %856 = vmatpush1.bf16.msra.mxu0 0
      %857 = vmatprep.mubr.bf16.mxu0 0
      %858 = vmatmul.mubr.bf16.gmra.mrb[0].mxu0 %v823
      %v859 = vpop.f32.mrb[0].mxu0
      %v860 = vadd.f32 %v807, %v859
      %v861 = vpop.f32.mrb[0].mxu0
      %v862 = vpop.f32.mrb[0].mxu0
      %v863 = vpop.f32.mrb[0].mxu0
      %864 = vdwg.mxu0
      %v865 = vld [vmem:[%s7] sm:$0x1]
      %v867 = vlaneseq
      %v868 = vshrl.u32 %v867, 7
      %v869 = vsub.s32 0, %v868
      %v870 = vrot.slane %v865, %v869
      %v872 = vadd.f32 %v870, 0.0
      %v873 = vpack.c.bf16 %v860, %v860
      %875 = vrot.lane.b32.xlu0 %v873, 96
      %v876 = vpop.permute.xlu0 %875
      %vm877 = vcmask 64512
      %v879 = vsel %vm877, %v873, 0
      %v882 = vsel %vm877, %v876, 0
      %884 = vmatprep.subr.bf16.mxu0 0
      %885 = vmatpush1.bf16.xpose.msra.mxu0 %v882
      %886 = vmatprep.subr.bf16.mxu0 0
      %887 = vmatpush1.bf16.xpose.msra.mxu0 0
      %888 = vmatprep.subr.bf16.mxu0 0
      %889 = vmatpush1.bf16.xpose.msra.mxu0 0
      %890 = vmatprep.subr.bf16.mxu0 0
      %891 = vmatpush1.bf16.xpose.msra.mxu0 0
      %892 = vmatprep.subr.bf16.mxu0 0
      %893 = vmatpush1.bf16.xpose.msra.mxu0 0
      %894 = vmatprep.subr.bf16.mxu0 0
      %895 = vmatpush1.bf16.xpose.msra.mxu0 0
      %896 = vmatprep.subr.bf16.mxu0 0
      %897 = vmatpush1.bf16.xpose.msra.mxu0 0
      %898 = vmatprep.subr.bf16.mxu0 0
      %899 = vmatpush1.bf16.xpose.msra.mxu0 0
      %900 = vmatprep.subr.bf16.mxu0 0
      %901 = vmatpush1.bf16.xpose.msra.mxu0 0
      %902 = vmatprep.subr.bf16.mxu0 0
      %903 = vmatpush1.bf16.xpose.msra.mxu0 0
      %904 = vmatprep.subr.bf16.mxu0 0
      %905 = vmatpush1.bf16.xpose.msra.mxu0 0
      %906 = vmatprep.subr.bf16.mxu0 0
      %907 = vmatpush1.bf16.xpose.msra.mxu0 0
      %908 = vmatprep.subr.bf16.mxu0 0
      %909 = vmatpush1.bf16.xpose.msra.mxu0 0
      %910 = vmatprep.subr.bf16.mxu0 0
      %911 = vmatpush1.bf16.xpose.msra.mxu0 0
      %912 = vmatprep.subr.bf16.mxu0 0
      %913 = vmatpush1.bf16.xpose.msra.mxu0 0
      %914 = vmatprep.subr.bf16.mxu0 0
      %915 = vmatpush1.bf16.xpose.msra.mxu0 0
      %916 = vmatprep.mubr.bf16.mxu0 0
      %917 = vmatmul.mubr.bf16.gmra.mrb[0].mxu0 %v879
      %v918 = vpop.f32.mrb[0].mxu0
      %v919 = vadd.f32 0.0, %v918
      %v920 = vpop.f32.mrb[0].mxu0
      %v921 = vpop.f32.mrb[0].mxu0
      %v922 = vpop.f32.mrb[0].mxu0
      %923 = vdwg.mxu0
      %v924 = vmul.f32 %v919, 0.35355338
      %v925 = vsel %vm795, -1e+09, %v924
      %v926 = vsel %vm877, %v925, -inf
      %927 = vmax.xlane.f32.xlu0 %v926
      %v928 = vpop.xlane.xlu0 %927
      %v929 = vsub.f32 %v925, %v928
      %v930 = vmul.f32 %v929, 1.442695
      %v931 = vpow.pop %v930
      %v932 = vsel %vm877, %v931, 0.0
      %933 = vadd.xlane.f32.xlu0 %v932
      %v934 = vpop.xlane.xlu0 %933
      %v935 = vrcp.pop %v934
      %v936 = vmul.f32 %v931, %v935
      %v937 = vpack.c.bf16 %v936, %v936
      %938 = vrot.lane.b32.xlu0 %v873, 64
      %v939 = vpop.permute.xlu0 %938
      %v941 = vsel %vm877, %v937, 0
      %vm943 = vcmask 1043456
      %v945 = vsel %vm943, %v939, 0
      %947 = vmatprep.subr.bf16.mxu0 0
      %948 = vmatpush1.bf16.msra.mxu0 %v945
      %949 = vmatprep.subr.bf16.mxu0 0
      %950 = vmatpush1.bf16.msra.mxu0 0
      %951 = vmatprep.subr.bf16.mxu0 0
      %952 = vmatpush1.bf16.msra.mxu0 0
      %953 = vmatprep.subr.bf16.mxu0 0
      %954 = vmatpush1.bf16.msra.mxu0 0
      %955 = vmatprep.subr.bf16.mxu0 0
      %956 = vmatpush1.bf16.msra.mxu0 0
      %957 = vmatprep.subr.bf16.mxu0 0
      %958 = vmatpush1.bf16.msra.mxu0 0
      %959 = vmatprep.subr.bf16.mxu0 0
      %960 = vmatpush1.bf16.msra.mxu0 0
      %961 = vmatprep.subr.bf16.mxu0 0
      %962 = vmatpush1.bf16.msra.mxu0 0
      %963 = vmatprep.subr.bf16.mxu0 0
      %964 = vmatpush1.bf16.msra.mxu0 0
      %965 = vmatprep.subr.bf16.mxu0 0
      %966 = vmatpush1.bf16.msra.mxu0 0
      %967 = vmatprep.subr.bf16.mxu0 0
      %968 = vmatpush1.bf16.msra.mxu0 0
      %969 = vmatprep.subr.bf16.mxu0 0
      %970 = vmatpush1.bf16.msra.mxu0 0
      %971 = vmatprep.subr.bf16.mxu0 0
      %972 = vmatpush1.bf16.msra.mxu0 0
      %973 = vmatprep.subr.bf16.mxu0 0
      %974 = vmatpush1.bf16.msra.mxu0 0
      %975 = vmatprep.subr.bf16.mxu0 0
      %976 = vmatpush1.bf16.msra.mxu0 0
      %977 = vmatprep.subr.bf16.mxu0 0
      %978 = vmatpush1.bf16.msra.mxu0 0
      %979 = vmatprep.mubr.bf16.mxu0 0
      %980 = vmatmul.mubr.bf16.gmra.mrb[0].mxu0 %v941
      %v981 = vpop.f32.mrb[0].mxu0
      %v982 = vadd.f32 0.0, %v981
      %v983 = vpop.f32.mrb[0].mxu0
      %v984 = vpop.f32.mrb[0].mxu0
      %v985 = vpop.f32.mrb[0].mxu0
      %986 = vdwg.mxu0
      %v987 = vpack.c.bf16 %v982, %v982
      %v988 = vld [vmem:[%s6] sm:$0xf]
      %v990 = vsel %vm877, %v987, 0
      %v993 = vsel %vm943, %v988, 0
      %995 = vmatprep.subr.bf16.mxu0 0
      %996 = vmatpush1.bf16.msra.mxu0 %v993
      %997 = vmatprep.subr.bf16.mxu0 0
      %998 = vmatpush1.bf16.msra.mxu0 0
      %999 = vmatprep.subr.bf16.mxu0 0
      %1000 = vmatpush1.bf16.msra.mxu0 0
      %1001 = vmatprep.subr.bf16.mxu0 0
      %1002 = vmatpush1.bf16.msra.mxu0 0
      %1003 = vmatprep.subr.bf16.mxu0 0
      %1004 = vmatpush1.bf16.msra.mxu0 0
      %1005 = vmatprep.subr.bf16.mxu0 0
      %1006 = vmatpush1.bf16.msra.mxu0 0
      %1007 = vmatprep.subr.bf16.mxu0 0
      %1008 = vmatpush1.bf16.msra.mxu0 0
      %1009 = vmatprep.subr.bf16.mxu0 0
      %1010 = vmatpush1.bf16.msra.mxu0 0
      %1011 = vmatprep.subr.bf16.mxu0 0
      %1012 = vmatpush1.bf16.msra.mxu0 0
      %1013 = vmatprep.subr.bf16.mxu0 0
      %1014 = vmatpush1.bf16.msra.mxu0 0
      %1015 = vmatprep.subr.bf16.mxu0 0
      %1016 = vmatpush1.bf16.msra.mxu0 0
      %1017 = vmatprep.subr.bf16.mxu0 0
      %1018 = vmatpush1.bf16.msra.mxu0 0
      %1019 = vmatprep.subr.bf16.mxu0 0
      %1020 = vmatpush1.bf16.msra.mxu0 0
      %1021 = vmatprep.subr.bf16.mxu0 0
      %1022 = vmatpush1.bf16.msra.mxu0 0
      %1023 = vmatprep.subr.bf16.mxu0 0
      %1024 = vmatpush1.bf16.msra.mxu0 0
      %1025 = vmatprep.subr.bf16.mxu0 0
      %1026 = vmatpush1.bf16.msra.mxu0 0
      %1027 = vmatprep.mubr.bf16.mxu0 0
      %1028 = vmatmul.mubr.bf16.gmra.mrb[0].mxu0 %v990
      %v1029 = vpop.f32.mrb[0].mxu0
      %v1030 = vadd.f32 0.0, %v1029
      %v1031 = vpop.f32.mrb[0].mxu0
      %v1032 = vpop.f32.mrb[0].mxu0
      %v1033 = vpop.f32.mrb[0].mxu0
      %1034 = vdwg.mxu0
      %v1035 = vadd.f32 %v872, %v1030
      %1036 = vrot.lane.b32.xlu0 %v873, 120
      %v1037 = vpop.permute.xlu0 %1036
      %1038 = vrot.lane.b32.xlu0 %v873, 88
      %v1039 = vpop.permute.xlu0 %1038
      %v1041 = vsel %vm877, %v1037, 0
      %v1044 = vsel %vm877, %v1039, 0
      %1046 = vmatprep.subr.bf16.mxu0 0
      %1047 = vmatpush1.bf16.xpose.msra.mxu0 %v1044
      %1048 = vmatprep.subr.bf16.mxu0 0
      %1049 = vmatpush1.bf16.xpose.msra.mxu0 0
      %1050 = vmatprep.subr.bf16.mxu0 0
      %1051 = vmatpush1.bf16.xpose.msra.mxu0 0
      %1052 = vmatprep.subr.bf16.mxu0 0
      %1053 = vmatpush1.bf16.xpose.msra.mxu0 0
      %1054 = vmatprep.subr.bf16.mxu0 0
      %1055 = vmatpush1.bf16.xpose.msra.mxu0 0
      %1056 = vmatprep.subr.bf16.mxu0 0
      %1057 = vmatpush1.bf16.xpose.msra.mxu0 0
      %1058 = vmatprep.subr.bf16.mxu0 0
      %1059 = vmatpush1.bf16.xpose.msra.mxu0 0
      %1060 = vmatprep.subr.bf16.mxu0 0
      %1061 = vmatpush1.bf16.xpose.msra.mxu0 0
      %1062 = vmatprep.subr.bf16.mxu0 0
      %1063 = vmatpush1.bf16.xpose.msra.mxu0 0
      %1064 = vmatprep.subr.bf16.mxu0 0
      %1065 = vmatpush1.bf16.xpose.msra.mxu0 0
      %1066 = vmatprep.subr.bf16.mxu0 0
      %1067 = vmatpush1.bf16.xpose.msra.mxu0 0
      %1068 = vmatprep.subr.bf16.mxu0 0
      %1069 = vmatpush1.bf16.xpose.msra.mxu0 0
      %1070 = vmatprep.subr.bf16.mxu0 0
      %1071 = vmatpush1.bf16.xpose.msra.mxu0 0
      %1072 = vmatprep.subr.bf16.mxu0 0
      %1073 = vmatpush1.bf16.xpose.msra.mxu0 0
      %1074 = vmatprep.subr.bf16.mxu0 0
      %1075 = vmatpush1.bf16.xpose.msra.mxu0 0
      %1076 = vmatprep.subr.bf16.mxu0 0
      %1077 = vmatpush1.bf16.xpose.msra.mxu0 0
      %1078 = vmatprep.mubr.bf16.mxu0 0
      %1079 = vmatmul.mubr.bf16.gmra.mrb[0].mxu0 %v1041
      %v1080 = vpop.f32.mrb[0].mxu0
      %v1081 = vadd.f32 0.0, %v1080
      %v1082 = vpop.f32.mrb[0].mxu0
      %v1083 = vpop.f32.mrb[0].mxu0
      %v1084 = vpop.f32.mrb[0].mxu0
      %1085 = vdwg.mxu0
      %v1086 = vmul.f32 %v1081, 0.35355338
      %v1087 = vsel %vm795, -1e+09, %v1086
      %v1088 = vsel %vm877, %v1087, -inf
      %1089 = vmax.xlane.f32.xlu0 %v1088
      %v1090 = vpop.xlane.xlu0 %1089
      %v1091 = vsub.f32 %v1087, %v1090
      %v1092 = vmul.f32 %v1091, 1.442695
      %v1093 = vpow.pop %v1092
      %v1094 = vsel %vm877, %v1093, 0.0
      %1095 = vadd.xlane.f32.xlu0 %v1094
      %v1096 = vpop.xlane.xlu0 %1095
      %v1097 = vrcp.pop %v1096
      %v1098 = vmul.f32 %v1093, %v1097
      %v1099 = vpack.c.bf16 %v1098, %v1098
      %1100 = vrot.lane.b32.xlu0 %v873, 56
      %v1101 = vpop.permute.xlu0 %1100
      %v1103 = vsel %vm877, %v1099, 0
      %v1106 = vsel %vm943, %v1101, 0
      %1108 = vmatprep.subr.bf16.mxu0 0
      %1109 = vmatpush1.bf16.msra.mxu0 %v1106
      %1110 = vmatprep.subr.bf16.mxu0 0
      %1111 = vmatpush1.bf16.msra.mxu0 0
      %1112 = vmatprep.subr.bf16.mxu0 0
      %1113 = vmatpush1.bf16.msra.mxu0 0
      %1114 = vmatprep.subr.bf16.mxu0 0
      %1115 = vmatpush1.bf16.msra.mxu0 0
      %1116 = vmatprep.subr.bf16.mxu0 0
      %1117 = vmatpush1.bf16.msra.mxu0 0
      %1118 = vmatprep.subr.bf16.mxu0 0
      %1119 = vmatpush1.bf16.msra.mxu0 0
      %1120 = vmatprep.subr.bf16.mxu0 0
      %1121 = vmatpush1.bf16.msra.mxu0 0
      %1122 = vmatprep.subr.bf16.mxu0 0
      %1123 = vmatpush1.bf16.msra.mxu0 0
      %1124 = vmatprep.subr.bf16.mxu0 0
      %1125 = vmatpush1.bf16.msra.mxu0 0
      %1126 = vmatprep.subr.bf16.mxu0 0
      %1127 = vmatpush1.bf16.msra.mxu0 0
      %1128 = vmatprep.subr.bf16.mxu0 0
      %1129 = vmatpush1.bf16.msra.mxu0 0
      %1130 = vmatprep.subr.bf16.mxu0 0
      %1131 = vmatpush1.bf16.msra.mxu0 0
      %1132 = vmatprep.subr.bf16.mxu0 0
      %1133 = vmatpush1.bf16.msra.mxu0 0
      %1134 = vmatprep.subr.bf16.mxu0 0
      %1135 = vmatpush1.bf16.msra.mxu0 0
      %1136 = vmatprep.subr.bf16.mxu0 0
      %1137 = vmatpush1.bf16.msra.mxu0 0
      %1138 = vmatprep.subr.bf16.mxu0 0
      %1139 = vmatpush1.bf16.msra.mxu0 0
      %1140 = vmatprep.mubr.bf16.mxu0 0
      %1141 = vmatmul.mubr.bf16.gmra.mrb[0].mxu0 %v1103
      %v1142 = vpop.f32.mrb[0].mxu0
      %v1143 = vadd.f32 0.0, %v1142
      %v1144 = vpop.f32.mrb[0].mxu0
      %v1145 = vpop.f32.mrb[0].mxu0
      %v1146 = vpop.f32.mrb[0].mxu0
      %1147 = vdwg.mxu0
      %v1148 = vpack.c.bf16 %v1143, %v1143
      %v1149 = vld [vmem:[%s6 + $0x4] sm:$0xf]
      %v1151 = vsel %vm877, %v1148, 0
      %v1154 = vsel %vm943, %v1149, 0
      %1156 = vmatprep.subr.bf16.mxu0 0
      %1157 = vmatpush1.bf16.msra.mxu0 %v1154
      %1158 = vmatprep.subr.bf16.mxu0 0
      %1159 = vmatpush1.bf16.msra.mxu0 0
      %1160 = vmatprep.subr.bf16.mxu0 0
      %1161 = vmatpush1.bf16.msra.mxu0 0
      %1162 = vmatprep.subr.bf16.mxu0 0
      %1163 = vmatpush1.bf16.msra.mxu0 0
      %1164 = vmatprep.subr.bf16.mxu0 0
      %1165 = vmatpush1.bf16.msra.mxu0 0
      %1166 = vmatprep.subr.bf16.mxu0 0
      %1167 = vmatpush1.bf16.msra.mxu0 0
      %1168 = vmatprep.subr.bf16.mxu0 0
      %1169 = vmatpush1.bf16.msra.mxu0 0
      %1170 = vmatprep.subr.bf16.mxu0 0
      %1171 = vmatpush1.bf16.msra.mxu0 0
      %1172 = vmatprep.subr.bf16.mxu0 0
      %1173 = vmatpush1.bf16.msra.mxu0 0
      %1174 = vmatprep.subr.bf16.mxu0 0
      %1175 = vmatpush1.bf16.msra.mxu0 0
      %1176 = vmatprep.subr.bf16.mxu0 0
      %1177 = vmatpush1.bf16.msra.mxu0 0
      %1178 = vmatprep.subr.bf16.mxu0 0
      %1179 = vmatpush1.bf16.msra.mxu0 0
      %1180 = vmatprep.subr.bf16.mxu0 0
      %1181 = vmatpush1.bf16.msra.mxu0 0
      %1182 = vmatprep.subr.bf16.mxu0 0
      %1183 = vmatpush1.bf16.msra.mxu0 0
      %1184 = vmatprep.subr.bf16.mxu0 0
      %1185 = vmatpush1.bf16.msra.mxu0 0
      %1186 = vmatprep.subr.bf16.mxu0 0
      %1187 = vmatpush1.bf16.msra.mxu0 0
      %1188 = vmatprep.mubr.bf16.mxu0 0
      %1189 = vmatmul.mubr.bf16.gmra.mrb[0].mxu0 %v1151
      %v1190 = vpop.f32.mrb[0].mxu0
      %v1191 = vadd.f32 0.0, %v1190
      %v1192 = vpop.f32.mrb[0].mxu0
      %v1193 = vpop.f32.mrb[0].mxu0
      %v1194 = vpop.f32.mrb[0].mxu0
      %1195 = vdwg.mxu0
      %v1196 = vadd.f32 %v1035, %v1191
      %1197 = vrot.lane.b32.xlu0 %v873, 112
      %v1198 = vpop.permute.xlu0 %1197
      %1199 = vrot.lane.b32.xlu0 %v873, 80
      %v1200 = vpop.permute.xlu0 %1199
      %v1202 = vsel %vm877, %v1198, 0
      %v1205 = vsel %vm877, %v1200, 0
      %1207 = vmatprep.subr.bf16.mxu0 0
      %1208 = vmatpush1.bf16.xpose.msra.mxu0 %v1205
      %1209 = vmatprep.subr.bf16.mxu0 0
      %1210 = vmatpush1.bf16.xpose.msra.mxu0 0
      %1211 = vmatprep.subr.bf16.mxu0 0
      %1212 = vmatpush1.bf16.xpose.msra.mxu0 0
      %1213 = vmatprep.subr.bf16.mxu0 0
      %1214 = vmatpush1.bf16.xpose.msra.mxu0 0
      %1215 = vmatprep.subr.bf16.mxu0 0
      %1216 = vmatpush1.bf16.xpose.msra.mxu0 0
      %1217 = vmatprep.subr.bf16.mxu0 0
      %1218 = vmatpush1.bf16.xpose.msra.mxu0 0
      %1219 = vmatprep.subr.bf16.mxu0 0
      %1220 = vmatpush1.bf16.xpose.msra.mxu0 0
      %1221 = vmatprep.subr.bf16.mxu0 0
      %1222 = vmatpush1.bf16.xpose.msra.mxu0 0
      %1223 = vmatprep.subr.bf16.mxu0 0
      %1224 = vmatpush1.bf16.xpose.msra.mxu0 0
      %1225 = vmatprep.subr.bf16.mxu0 0
      %1226 = vmatpush1.bf16.xpose.msra.mxu0 0
      %1227 = vmatprep.subr.bf16.mxu0 0
      %1228 = vmatpush1.bf16.xpose.msra.mxu0 0
      %1229 = vmatprep.subr.bf16.mxu0 0
      %1230 = vmatpush1.bf16.xpose.msra.mxu0 0
      %1231 = vmatprep.subr.bf16.mxu0 0
      %1232 = vmatpush1.bf16.xpose.msra.mxu0 0
      %1233 = vmatprep.subr.bf16.mxu0 0
      %1234 = vmatpush1.bf16.xpose.msra.mxu0 0
      %1235 = vmatprep.subr.bf16.mxu0 0
      %1236 = vmatpush1.bf16.xpose.msra.mxu0 0
      %1237 = vmatprep.subr.bf16.mxu0 0
      %1238 = vmatpush1.bf16.xpose.msra.mxu0 0
      %1239 = vmatprep.mubr.bf16.mxu0 0
      %1240 = vmatmul.mubr.bf16.gmra.mrb[0].mxu0 %v1202
      %v1241 = vpop.f32.mrb[0].mxu0
      %v1242 = vadd.f32 0.0, %v1241
      %v1243 = vpop.f32.mrb[0].mxu0
      %v1244 = vpop.f32.mrb[0].mxu0
      %v1245 = vpop.f32.mrb[0].mxu0
      %1246 = vdwg.mxu0
      %v1247 = vmul.f32 %v1242, 0.35355338
      %v1248 = vsel %vm795, -1e+09, %v1247
      %v1249 = vsel %vm877, %v1248, -inf
      %1250 = vmax.xlane.f32.xlu0 %v1249
      %v1251 = vpop.xlane.xlu0 %1250
      %v1252 = vsub.f32 %v1248, %v1251
      %v1253 = vmul.f32 %v1252, 1.442695
      %v1254 = vpow.pop %v1253
      %v1255 = vsel %vm877, %v1254, 0.0
      %1256 = vadd.xlane.f32.xlu0 %v1255
      %v1257 = vpop.xlane.xlu0 %1256
      %v1258 = vrcp.pop %v1257
      %v1259 = vmul.f32 %v1254, %v1258
      %v1260 = vpack.c.bf16 %v1259, %v1259
      %1261 = vrot.lane.b32.xlu0 %v873, 48
      %v1262 = vpop.permute.xlu0 %1261
      %v1264 = vsel %vm877, %v1260, 0
      %v1267 = vsel %vm943, %v1262, 0
      %1269 = vmatprep.subr.bf16.mxu0 0
      %1270 = vmatpush1.bf16.msra.mxu0 %v1267
      %1271 = vmatprep.subr.bf16.mxu0 0
      %1272 = vmatpush1.bf16.msra.mxu0 0
      %1273 = vmatprep.subr.bf16.mxu0 0
      %1274 = vmatpush1.bf16.msra.mxu0 0
      %1275 = vmatprep.subr.bf16.mxu0 0
      %1276 = vmatpush1.bf16.msra.mxu0 0
      %1277 = vmatprep.subr.bf16.mxu0 0
      %1278 = vmatpush1.bf16.msra.mxu0 0
      %1279 = vmatprep.subr.bf16.mxu0 0
      %1280 = vmatpush1.bf16.msra.mxu0 0
      %1281 = vmatprep.subr.bf16.mxu0 0
      %1282 = vmatpush1.bf16.msra.mxu0 0
      %1283 = vmatprep.subr.bf16.mxu0 0
      %1284 = vmatpush1.bf16.msra.mxu0 0
      %1285 = vmatprep.subr.bf16.mxu0 0
      %1286 = vmatpush1.bf16.msra.mxu0 0
      %1287 = vmatprep.subr.bf16.mxu0 0
      %1288 = vmatpush1.bf16.msra.mxu0 0
      %1289 = vmatprep.subr.bf16.mxu0 0
      %1290 = vmatpush1.bf16.msra.mxu0 0
      %1291 = vmatprep.subr.bf16.mxu0 0
      %1292 = vmatpush1.bf16.msra.mxu0 0
      %1293 = vmatprep.subr.bf16.mxu0 0
      %1294 = vmatpush1.bf16.msra.mxu0 0
      %1295 = vmatprep.subr.bf16.mxu0 0
      %1296 = vmatpush1.bf16.msra.mxu0 0
      %1297 = vmatprep.subr.bf16.mxu0 0
      %1298 = vmatpush1.bf16.msra.mxu0 0
      %1299 = vmatprep.subr.bf16.mxu0 0
      %1300 = vmatpush1.bf16.msra.mxu0 0
      %1301 = vmatprep.mubr.bf16.mxu0 0
      %1302 = vmatmul.mubr.bf16.gmra.mrb[0].mxu0 %v1264
      %v1303 = vpop.f32.mrb[0].mxu0
      %v1304 = vadd.f32 0.0, %v1303
      %v1305 = vpop.f32.mrb[0].mxu0
      %v1306 = vpop.f32.mrb[0].mxu0
      %v1307 = vpop.f32.mrb[0].mxu0
      %1308 = vdwg.mxu0
      %v1309 = vpack.c.bf16 %v1304, %v1304
      %v1310 = vld [vmem:[%s6 + $0x8] sm:$0xf]
      %v1312 = vsel %vm877, %v1309, 0
      %v1315 = vsel %vm943, %v1310, 0
      %1317 = vmatprep.subr.bf16.mxu0 0
      %1318 = vmatpush1.bf16.msra.mxu0 %v1315
      %1319 = vmatprep.subr.bf16.mxu0 0
      %1320 = vmatpush1.bf16.msra.mxu0 0
      %1321 = vmatprep.subr.bf16.mxu0 0
      %1322 = vmatpush1.bf16.msra.mxu0 0
      %1323 = vmatprep.subr.bf16.mxu0 0
      %1324 = vmatpush1.bf16.msra.mxu0 0
      %1325 = vmatprep.subr.bf16.mxu0 0
      %1326 = vmatpush1.bf16.msra.mxu0 0
      %1327 = vmatprep.subr.bf16.mxu0 0
      %1328 = vmatpush1.bf16.msra.mxu0 0
      %1329 = vmatprep.subr.bf16.mxu0 0
      %1330 = vmatpush1.bf16.msra.mxu0 0
      %1331 = vmatprep.subr.bf16.mxu0 0
      %1332 = vmatpush1.bf16.msra.mxu0 0
      %1333 = vmatprep.subr.bf16.mxu0 0
      %1334 = vmatpush1.bf16.msra.mxu0 0
      %1335 = vmatprep.subr.bf16.mxu0 0
      %1336 = vmatpush1.bf16.msra.mxu0 0
      %1337 = vmatprep.subr.bf16.mxu0 0
      %1338 = vmatpush1.bf16.msra.mxu0 0
      %1339 = vmatprep.subr.bf16.mxu0 0
      %1340 = vmatpush1.bf16.msra.mxu0 0
      %1341 = vmatprep.subr.bf16.mxu0 0
      %1342 = vmatpush1.bf16.msra.mxu0 0
      %1343 = vmatprep.subr.bf16.mxu0 0
      %1344 = vmatpush1.bf16.msra.mxu0 0
      %1345 = vmatprep.subr.bf16.mxu0 0
      %1346 = vmatpush1.bf16.msra.mxu0 0
      %1347 = vmatprep.subr.bf16.mxu0 0
      %1348 = vmatpush1.bf16.msra.mxu0 0
      %1349 = vmatprep.mubr.bf16.mxu0 0
      %1350 = vmatmul.mubr.bf16.gmra.mrb[0].mxu0 %v1312
      %v1351 = vpop.f32.mrb[0].mxu0
      %v1352 = vadd.f32 0.0, %v1351
      %v1353 = vpop.f32.mrb[0].mxu0
      %v1354 = vpop.f32.mrb[0].mxu0
      %v1355 = vpop.f32.mrb[0].mxu0
      %1356 = vdwg.mxu0
      %v1357 = vadd.f32 %v1196, %v1352
      %1358 = vrot.lane.b32.xlu0 %v873, 104
      %v1359 = vpop.permute.xlu0 %1358
      %1360 = vrot.lane.b32.xlu0 %v873, 72
      %v1361 = vpop.permute.xlu0 %1360
      %v1363 = vsel %vm877, %v1359, 0
      %v1366 = vsel %vm877, %v1361, 0
      %1368 = vmatprep.subr.bf16.mxu0 0
      %1369 = vmatpush1.bf16.xpose.msra.mxu0 %v1366
      %1370 = vmatprep.subr.bf16.mxu0 0
      %1371 = vmatpush1.bf16.xpose.msra.mxu0 0
      %1372 = vmatprep.subr.bf16.mxu0 0
      %1373 = vmatpush1.bf16.xpose.msra.mxu0 0
      %1374 = vmatprep.subr.bf16.mxu0 0
      %1375 = vmatpush1.bf16.xpose.msra.mxu0 0
      %1376 = vmatprep.subr.bf16.mxu0 0
      %1377 = vmatpush1.bf16.xpose.msra.mxu0 0
      %1378 = vmatprep.subr.bf16.mxu0 0
      %1379 = vmatpush1.bf16.xpose.msra.mxu0 0
      %1380 = vmatprep.subr.bf16.mxu0 0
      %1381 = vmatpush1.bf16.xpose.msra.mxu0 0
      %1382 = vmatprep.subr.bf16.mxu0 0
      %1383 = vmatpush1.bf16.xpose.msra.mxu0 0
      %1384 = vmatprep.subr.bf16.mxu0 0
      %1385 = vmatpush1.bf16.xpose.msra.mxu0 0
      %1386 = vmatprep.subr.bf16.mxu0 0
      %1387 = vmatpush1.bf16.xpose.msra.mxu0 0
      %1388 = vmatprep.subr.bf16.mxu0 0
      %1389 = vmatpush1.bf16.xpose.msra.mxu0 0
      %1390 = vmatprep.subr.bf16.mxu0 0
      %1391 = vmatpush1.bf16.xpose.msra.mxu0 0
      %1392 = vmatprep.subr.bf16.mxu0 0
      %1393 = vmatpush1.bf16.xpose.msra.mxu0 0
      %1394 = vmatprep.subr.bf16.mxu0 0
      %1395 = vmatpush1.bf16.xpose.msra.mxu0 0
      %1396 = vmatprep.subr.bf16.mxu0 0
      %1397 = vmatpush1.bf16.xpose.msra.mxu0 0
      %1398 = vmatprep.subr.bf16.mxu0 0
      %1399 = vmatpush1.bf16.xpose.msra.mxu0 0
      %1400 = vmatprep.mubr.bf16.mxu0 0
      %1401 = vmatmul.mubr.bf16.gmra.mrb[0].mxu0 %v1363
      %v1402 = vpop.f32.mrb[0].mxu0
      %v1403 = vadd.f32 0.0, %v1402
      %v1404 = vpop.f32.mrb[0].mxu0
      %v1405 = vpop.f32.mrb[0].mxu0
      %v1406 = vpop.f32.mrb[0].mxu0
      %1407 = vdwg.mxu0
      %v1408 = vmul.f32 %v1403, 0.35355338
      %v1409 = vsel %vm795, -1e+09, %v1408
      %v1410 = vsel %vm877, %v1409, -inf
      %1411 = vmax.xlane.f32.xlu0 %v1410
      %v1412 = vpop.xlane.xlu0 %1411
      %v1413 = vsub.f32 %v1409, %v1412
      %v1414 = vmul.f32 %v1413, 1.442695
      %v1415 = vpow.pop %v1414
      %v1416 = vsel %vm877, %v1415, 0.0
      %1417 = vadd.xlane.f32.xlu0 %v1416
      %v1418 = vpop.xlane.xlu0 %1417
      %v1419 = vrcp.pop %v1418
      %v1420 = vmul.f32 %v1415, %v1419
      %v1421 = vpack.c.bf16 %v1420, %v1420
      %1422 = vrot.lane.b32.xlu0 %v873, 40
      %v1423 = vpop.permute.xlu0 %1422
      %v1425 = vsel %vm877, %v1421, 0
      %v1428 = vsel %vm943, %v1423, 0
      %1430 = vmatprep.subr.bf16.mxu0 0
      %1431 = vmatpush1.bf16.msra.mxu0 %v1428
      %1432 = vmatprep.subr.bf16.mxu0 0
      %1433 = vmatpush1.bf16.msra.mxu0 0
      %1434 = vmatprep.subr.bf16.mxu0 0
      %1435 = vmatpush1.bf16.msra.mxu0 0
      %1436 = vmatprep.subr.bf16.mxu0 0
      %1437 = vmatpush1.bf16.msra.mxu0 0
      %1438 = vmatprep.subr.bf16.mxu0 0
      %1439 = vmatpush1.bf16.msra.mxu0 0
      %1440 = vmatprep.subr.bf16.mxu0 0
      %1441 = vmatpush1.bf16.msra.mxu0 0
      %1442 = vmatprep.subr.bf16.mxu0 0
      %1443 = vmatpush1.bf16.msra.mxu0 0
      %1444 = vmatprep.subr.bf16.mxu0 0
      %1445 = vmatpush1.bf16.msra.mxu0 0
      %1446 = vmatprep.subr.bf16.mxu0 0
      %1447 = vmatpush1.bf16.msra.mxu0 0
      %1448 = vmatprep.subr.bf16.mxu0 0
      %1449 = vmatpush1.bf16.msra.mxu0 0
      %1450 = vmatprep.subr.bf16.mxu0 0
      %1451 = vmatpush1.bf16.msra.mxu0 0
      %1452 = vmatprep.subr.bf16.mxu0 0
      %1453 = vmatpush1.bf16.msra.mxu0 0
      %1454 = vmatprep.subr.bf16.mxu0 0
      %1455 = vmatpush1.bf16.msra.mxu0 0
      %1456 = vmatprep.subr.bf16.mxu0 0
      %1457 = vmatpush1.bf16.msra.mxu0 0
      %1458 = vmatprep.subr.bf16.mxu0 0
      %1459 = vmatpush1.bf16.msra.mxu0 0
      %1460 = vmatprep.subr.bf16.mxu0 0
      %1461 = vmatpush1.bf16.msra.mxu0 0
      %1462 = vmatprep.mubr.bf16.mxu0 0
      %1463 = vmatmul.mubr.bf16.gmra.mrb[0].mxu0 %v1425
      %v1464 = vpop.f32.mrb[0].mxu0
      %v1465 = vadd.f32 0.0, %v1464
      %v1466 = vpop.f32.mrb[0].mxu0
      %v1467 = vpop.f32.mrb[0].mxu0
      %v1468 = vpop.f32.mrb[0].mxu0
      %1469 = vdwg.mxu0
      %v1470 = vpack.c.bf16 %v1465, %v1465
      %v1471 = vld [vmem:[%s6 + $0xc] sm:$0xf]
      %v1473 = vsel %vm877, %v1470, 0
      %v1476 = vsel %vm943, %v1471, 0
      %1478 = vmatprep.subr.bf16.mxu0 0
      %1479 = vmatpush1.bf16.msra.mxu0 %v1476
      %1480 = vmatprep.subr.bf16.mxu0 0
      %1481 = vmatpush1.bf16.msra.mxu0 0
      %1482 = vmatprep.subr.bf16.mxu0 0
      %1483 = vmatpush1.bf16.msra.mxu0 0
      %1484 = vmatprep.subr.bf16.mxu0 0
      %1485 = vmatpush1.bf16.msra.mxu0 0
      %1486 = vmatprep.subr.bf16.mxu0 0
      %1487 = vmatpush1.bf16.msra.mxu0 0
      %1488 = vmatprep.subr.bf16.mxu0 0
      %1489 = vmatpush1.bf16.msra.mxu0 0
      %1490 = vmatprep.subr.bf16.mxu0 0
      %1491 = vmatpush1.bf16.msra.mxu0 0
      %1492 = vmatprep.subr.bf16.mxu0 0
      %1493 = vmatpush1.bf16.msra.mxu0 0
      %1494 = vmatprep.subr.bf16.mxu0 0
      %1495 = vmatpush1.bf16.msra.mxu0 0
      %1496 = vmatprep.subr.bf16.mxu0 0
      %1497 = vmatpush1.bf16.msra.mxu0 0
      %1498 = vmatprep.subr.bf16.mxu0 0
      %1499 = vmatpush1.bf16.msra.mxu0 0
      %1500 = vmatprep.subr.bf16.mxu0 0
      %1501 = vmatpush1.bf16.msra.mxu0 0
      %1502 = vmatprep.subr.bf16.mxu0 0
      %1503 = vmatpush1.bf16.msra.mxu0 0
      %1504 = vmatprep.subr.bf16.mxu0 0
      %1505 = vmatpush1.bf16.msra.mxu0 0
      %1506 = vmatprep.subr.bf16.mxu0 0
      %1507 = vmatpush1.bf16.msra.mxu0 0
      %1508 = vmatprep.subr.bf16.mxu0 0
      %1509 = vmatpush1.bf16.msra.mxu0 0
      %1510 = vmatprep.mubr.bf16.mxu0 0
      %1511 = vmatmul.mubr.bf16.gmra.mrb[0].mxu0 %v1473
      %v1512 = vpop.f32.mrb[0].mxu0
      %v1513 = vadd.f32 0.0, %v1512
      %v1514 = vpop.f32.mrb[0].mxu0
      %v1515 = vpop.f32.mrb[0].mxu0
      %v1516 = vpop.f32.mrb[0].mxu0
      %1517 = vdwg.mxu0
      %v1518 = vadd.f32 %v1357, %v1513
      %v1519 = vadd.f32 %v1518, %v780
      %v1520 = vsel %vm821, %v1519, 0.0
      %1521 = vadd.xlane.f32.xlu0 %v1520
      %v1522 = vpop.xlane.xlu0 %1521
      %v1523 = vrcp.pop 32.0
      %v1524 = vmul.f32 %v1522, %v1523
      %v1525 = vsub.f32 %v1519, %v1524
      %v1526 = vmul.f32 %v1525, %v1525
      %v1527 = vsel %vm821, %v1526, 0.0
      %1528 = vadd.xlane.f32.xlu0 %v1527
      %v1529 = vpop.xlane.xlu0 %1528
      %v1530 = vrcp.pop 31.0
      %v1531 = vmul.f32 %v1529, %v1530
      %v1532 = vld [vmem:[%s8] sm:$0x1]
      %v1533 = vrsqrt.pop %v1531
      %v1534 = vmul.f32 %v1531, %v1533
      %vm1535 = vcmp.eq.f32.partialorder %v1531, inf
      %v1536 = vsel %vm1535, %v1531, %v1534
      %vm1537 = vcmp.eq.f32.partialorder %v1531, 0.0
      %v1538 = vand.u32 %v1531, 2147483648
      %v1539 = vsel %vm1537, %v1538, %v1536
      %v1540 = vadd.f32 %v1539, 1e-06
      %v1541 = vrcp.pop %v1540
      %v1542 = vmul.f32 %v1525, %v1541
      %v1544 = vlaneseq
      %v1545 = vshrl.u32 %v1544, 7
      %v1546 = vsub.s32 0, %v1545
      %v1547 = vrot.slane %v1532, %v1546
      %v1549 = vmul.f32 %v1547, %v1542
      %v1550 = vld [vmem:[%s9] sm:$0x1]
      %v1552 = vlaneseq
      %v1553 = vshrl.u32 %v1552, 7
      %v1554 = vsub.s32 0, %v1553
      %v1555 = vrot.slane %v1550, %v1554
      %v1557 = vadd.f32 %v1549, %v1555
      %v1558 = vpack.c.bf16 %v1557, %v1557
      %v1559 = vld [vmem:[%s10] sm:$0xf]
      %v1560 = vld [vmem:[%s10 + $0x4] sm:$0xf]
      %v1561 = vld [vmem:[%s10 + $0x8] sm:$0xf]
      %v1562 = vld [vmem:[%s10 + $0xc] sm:$0xf]
      %v1563 = vld [vmem:[%s11] sm:$0x1]
      %v1565 = vlaneseq
      %v1566 = vshrl.u32 %v1565, 7
      %v1567 = vsub.s32 0, %v1566
      %v1568 = vrot.slane %v1563, %v1567
      %v1574 = vunpack.c.l.b16 %v1559
      %v1575 = vunpack.c.l.b16 %v1560
      %v1576 = vunpack.c.l.b16 %v1561
      %v1577 = vunpack.c.l.b16 %v1562
      %v1578 = vpack.c.b16 %v1575, %v1574
      %v1579 = vpack.c.b16 %v1577, %v1576
      %v1583 = vsel %vm821, %v1558, 0
      %1585 = vmatprep.subr.bf16.mxu0 0
      %1586 = vmatpush1.bf16.msra.mxu0 %v1578
      %1587 = vmatprep.subr.bf16.mxu0 0
      %1588 = vmatpush1.bf16.msra.mxu0 %v1579
      %1589 = vmatprep.subr.bf16.mxu0 0
      %1590 = vmatpush1.bf16.msra.mxu0 0
      %1591 = vmatprep.subr.bf16.mxu0 0
      %1592 = vmatpush1.bf16.msra.mxu0 0
      %1593 = vmatprep.subr.bf16.mxu0 0
      %1594 = vmatpush1.bf16.msra.mxu0 0
      %1595 = vmatprep.subr.bf16.mxu0 0
      %1596 = vmatpush1.bf16.msra.mxu0 0
      %1597 = vmatprep.subr.bf16.mxu0 0
      %1598 = vmatpush1.bf16.msra.mxu0 0
      %1599 = vmatprep.subr.bf16.mxu0 0
      %1600 = vmatpush1.bf16.msra.mxu0 0
      %1601 = vmatprep.subr.bf16.mxu0 0
      %1602 = vmatpush1.bf16.msra.mxu0 0
      %1603 = vmatprep.subr.bf16.mxu0 0
      %1604 = vmatpush1.bf16.msra.mxu0 0
      %1605 = vmatprep.subr.bf16.mxu0 0
      %1606 = vmatpush1.bf16.msra.mxu0 0
      %1607 = vmatprep.subr.bf16.mxu0 0
      %1608 = vmatpush1.bf16.msra.mxu0 0
      %1609 = vmatprep.subr.bf16.mxu0 0
      %1610 = vmatpush1.bf16.msra.mxu0 0
      %1611 = vmatprep.subr.bf16.mxu0 0
      %1612 = vmatpush1.bf16.msra.mxu0 0
      %1613 = vmatprep.subr.bf16.mxu0 0
      %1614 = vmatpush1.bf16.msra.mxu0 0
      %1615 = vmatprep.subr.bf16.mxu0 0
      %1616 = vmatpush1.bf16.msra.mxu0 0
      %1617 = vmatprep.mubr.bf16.mxu0 0
      %1618 = vmatmul.mubr.bf16.gmra.mrb[0].mxu0 %v1583
      %v1619 = vpop.f32.mrb[0].mxu0
      %v1620 = vadd.f32 %v1568, %v1619
      %v1621 = vpop.f32.mrb[0].mxu0
      %v1622 = vpop.f32.mrb[0].mxu0
      %v1623 = vpop.f32.mrb[0].mxu0
      %1624 = vdwg.mxu0
      %v1625 = vld [vmem:[%s12] sm:$0xf]
      %v1626 = vld [vmem:[%s12 + $0x4] sm:$0xf]
      %v1627 = vld [vmem:[%s12 + $0x8] sm:$0xf]
      %v1628 = vld [vmem:[%s12 + $0xc] sm:$0xf]
      %v1629 = vld [vmem:[%s13] sm:$0x1]
      %v1631 = vlaneseq
      %v1632 = vshrl.u32 %v1631, 7
      %v1633 = vsub.s32 0, %v1632
      %v1634 = vrot.slane %v1629, %v1633
      %v1640 = vunpack.c.l.b16 %v1625
      %v1641 = vunpack.c.l.b16 %v1626
      %v1642 = vunpack.c.l.b16 %v1627
      %v1643 = vunpack.c.l.b16 %v1628
      %v1644 = vpack.c.b16 %v1641, %v1640
      %v1645 = vpack.c.b16 %v1643, %v1642
      %v1649 = vsel %vm821, %v781, 0
      %1651 = vmatprep.subr.bf16.mxu0 0
      %1652 = vmatpush1.bf16.msra.mxu0 %v1644
      %1653 = vmatprep.subr.bf16.mxu0 0
      %1654 = vmatpush1.bf16.msra.mxu0 %v1645
      %1655 = vmatprep.subr.bf16.mxu0 0
      %1656 = vmatpush1.bf16.msra.mxu0 0
      %1657 = vmatprep.subr.bf16.mxu0 0
      %1658 = vmatpush1.bf16.msra.mxu0 0
      %1659 = vmatprep.subr.bf16.mxu0 0
      %1660 = vmatpush1.bf16.msra.mxu0 0
      %1661 = vmatprep.subr.bf16.mxu0 0
      %1662 = vmatpush1.bf16.msra.mxu0 0
      %1663 = vmatprep.subr.bf16.mxu0 0
      %1664 = vmatpush1.bf16.msra.mxu0 0
      %1665 = vmatprep.subr.bf16.mxu0 0
      %1666 = vmatpush1.bf16.msra.mxu0 0
      %1667 = vmatprep.subr.bf16.mxu0 0
      %1668 = vmatpush1.bf16.msra.mxu0 0
      %1669 = vmatprep.subr.bf16.mxu0 0
      %1670 = vmatpush1.bf16.msra.mxu0 0
      %1671 = vmatprep.subr.bf16.mxu0 0
      %1672 = vmatpush1.bf16.msra.mxu0 0
      %1673 = vmatprep.subr.bf16.mxu0 0
      %1674 = vmatpush1.bf16.msra.mxu0 0
      %1675 = vmatprep.subr.bf16.mxu0 0
      %1676 = vmatpush1.bf16.msra.mxu0 0
      %1677 = vmatprep.subr.bf16.mxu0 0
      %1678 = vmatpush1.bf16.msra.mxu0 0
      %1679 = vmatprep.subr.bf16.mxu0 0
      %1680 = vmatpush1.bf16.msra.mxu0 0
      %1681 = vmatprep.subr.bf16.mxu0 0
      %1682 = vmatpush1.bf16.msra.mxu0 0
      %1683 = vmatprep.mubr.bf16.mxu0 0
      %1684 = vmatmul.mubr.bf16.gmra.mrb[0].mxu0 %v1649
      %v1685 = vpop.f32.mrb[0].mxu0
      %v1686 = vadd.f32 %v1634, %v1685
      %v1687 = vpop.f32.mrb[0].mxu0
      %v1688 = vpop.f32.mrb[0].mxu0
      %v1689 = vpop.f32.mrb[0].mxu0
      %1690 = vdwg.mxu0
      %v1691 = vld [vmem:[%s15] sm:$0x1]
      %v1693 = vlaneseq
      %v1694 = vshrl.u32 %v1693, 7
      %v1695 = vsub.s32 0, %v1694
      %v1696 = vrot.slane %v1691, %v1695
      %v1698 = vadd.f32 %v1696, 0.0
      %v1699 = vpack.c.bf16 %v1620, %v1620
      %v1700 = vpack.c.bf16 %v1686, %v1686
      %v1702 = vsel %vm877, %v1699, 0
      %v1705 = vsel %vm877, %v1700, 0
      %1707 = vmatprep.subr.bf16.mxu0 0
      %1708 = vmatpush1.bf16.xpose.msra.mxu0 %v1705
      %1709 = vmatprep.subr.bf16.mxu0 0
      %1710 = vmatpush1.bf16.xpose.msra.mxu0 0
      %1711 = vmatprep.subr.bf16.mxu0 0
      %1712 = vmatpush1.bf16.xpose.msra.mxu0 0
      %1713 = vmatprep.subr.bf16.mxu0 0
      %1714 = vmatpush1.bf16.xpose.msra.mxu0 0
      %1715 = vmatprep.subr.bf16.mxu0 0
      %1716 = vmatpush1.bf16.xpose.msra.mxu0 0
      %1717 = vmatprep.subr.bf16.mxu0 0
      %1718 = vmatpush1.bf16.xpose.msra.mxu0 0
      %1719 = vmatprep.subr.bf16.mxu0 0
      %1720 = vmatpush1.bf16.xpose.msra.mxu0 0
      %1721 = vmatprep.subr.bf16.mxu0 0
      %1722 = vmatpush1.bf16.xpose.msra.mxu0 0
      %1723 = vmatprep.subr.bf16.mxu0 0
      %1724 = vmatpush1.bf16.xpose.msra.mxu0 0
      %1725 = vmatprep.subr.bf16.mxu0 0
      %1726 = vmatpush1.bf16.xpose.msra.mxu0 0
      %1727 = vmatprep.subr.bf16.mxu0 0
      %1728 = vmatpush1.bf16.xpose.msra.mxu0 0
      %1729 = vmatprep.subr.bf16.mxu0 0
      %1730 = vmatpush1.bf16.xpose.msra.mxu0 0
      %1731 = vmatprep.subr.bf16.mxu0 0
      %1732 = vmatpush1.bf16.xpose.msra.mxu0 0
      %1733 = vmatprep.subr.bf16.mxu0 0
      %1734 = vmatpush1.bf16.xpose.msra.mxu0 0
      %1735 = vmatprep.subr.bf16.mxu0 0
      %1736 = vmatpush1.bf16.xpose.msra.mxu0 0
      %1737 = vmatprep.subr.bf16.mxu0 0
      %1738 = vmatpush1.bf16.xpose.msra.mxu0 0
      %1739 = vmatprep.mubr.bf16.mxu0 0
      %1740 = vmatmul.mubr.bf16.gmra.mrb[0].mxu0 %v1702
      %v1741 = vpop.f32.mrb[0].mxu0
      %v1742 = vadd.f32 0.0, %v1741
      %v1743 = vpop.f32.mrb[0].mxu0
      %v1744 = vpop.f32.mrb[0].mxu0
      %v1745 = vpop.f32.mrb[0].mxu0
      %1746 = vdwg.mxu0
      %v1747 = vmul.f32 %v1742, 0.35355338
      %v1748 = vsel %vm797, 1, 0
      %v1749 = vlaneseq
      %v1750 = vshrl.u32 %v1749, 7
      %v1751 = vsub.s32 0, %v1750
      %v1752 = vrot.slane %v1748, %v1751
      %vm1753 = vcmp.eq.s32.totalorder %v1752, 1
      %v1754 = vsel %vm1753, -1e+09, %v1747
      %v1755 = vsel %vm877, %v1754, -inf
      %1756 = vmax.xlane.f32.xlu0 %v1755
      %v1757 = vpop.xlane.xlu0 %1756
      %v1758 = vsub.f32 %v1754, %v1757
      %v1759 = vmul.f32 %v1758, 1.442695
      %v1760 = vpow.pop %v1759
      %v1761 = vsel %vm877, %v1760, 0.0
      %1762 = vadd.xlane.f32.xlu0 %v1761
      %v1763 = vpop.xlane.xlu0 %1762
      %v1764 = vrcp.pop %v1763
      %v1765 = vmul.f32 %v1760, %v1764
      %v1766 = vpack.c.bf16 %v1765, %v1765
      %1768 = vrot.lane.b32.xlu0 %v1700, 96
      %v1769 = vpop.permute.xlu0 %1768
      %v1771 = vsel %vm877, %v1766, 0
      %v1774 = vsel %vm943, %v1769, 0
      %1776 = vmatprep.subr.bf16.mxu0 0
      %1777 = vmatpush1.bf16.msra.mxu0 %v1774
      %1778 = vmatprep.subr.bf16.mxu0 0
      %1779 = vmatpush1.bf16.msra.mxu0 0
      %1780 = vmatprep.subr.bf16.mxu0 0
      %1781 = vmatpush1.bf16.msra.mxu0 0
      %1782 = vmatprep.subr.bf16.mxu0 0
      %1783 = vmatpush1.bf16.msra.mxu0 0
      %1784 = vmatprep.subr.bf16.mxu0 0
      %1785 = vmatpush1.bf16.msra.mxu0 0
      %1786 = vmatprep.subr.bf16.mxu0 0
      %1787 = vmatpush1.bf16.msra.mxu0 0
      %1788 = vmatprep.subr.bf16.mxu0 0
      %1789 = vmatpush1.bf16.msra.mxu0 0
      %1790 = vmatprep.subr.bf16.mxu0 0
      %1791 = vmatpush1.bf16.msra.mxu0 0
      %1792 = vmatprep.subr.bf16.mxu0 0
      %1793 = vmatpush1.bf16.msra.mxu0 0
      %1794 = vmatprep.subr.bf16.mxu0 0
      %1795 = vmatpush1.bf16.msra.mxu0 0
      %1796 = vmatprep.subr.bf16.mxu0 0
      %1797 = vmatpush1.bf16.msra.mxu0 0
      %1798 = vmatprep.subr.bf16.mxu0 0
      %1799 = vmatpush1.bf16.msra.mxu0 0
      %1800 = vmatprep.subr.bf16.mxu0 0
      %1801 = vmatpush1.bf16.msra.mxu0 0
      %1802 = vmatprep.subr.bf16.mxu0 0
      %1803 = vmatpush1.bf16.msra.mxu0 0
      %1804 = vmatprep.subr.bf16.mxu0 0
      %1805 = vmatpush1.bf16.msra.mxu0 0
      %1806 = vmatprep.subr.bf16.mxu0 0
      %1807 = vmatpush1.bf16.msra.mxu0 0
      %1808 = vmatprep.mubr.bf16.mxu0 0
      %1809 = vmatmul.mubr.bf16.gmra.mrb[0].mxu0 %v1771
      %v1810 = vpop.f32.mrb[0].mxu0
      %v1811 = vadd.f32 0.0, %v1810
      %v1812 = vpop.f32.mrb[0].mxu0
      %v1813 = vpop.f32.mrb[0].mxu0
      %v1814 = vpop.f32.mrb[0].mxu0
      %1815 = vdwg.mxu0
      %v1816 = vpack.c.bf16 %v1811, %v1811
      %v1817 = vld [vmem:[%s14] sm:$0xf]
      %v1819 = vsel %vm877, %v1816, 0
      %v1822 = vsel %vm943, %v1817, 0
      %1824 = vmatprep.subr.bf16.mxu0 0
      %1825 = vmatpush1.bf16.msra.mxu0 %v1822
      %1826 = vmatprep.subr.bf16.mxu0 0
      %1827 = vmatpush1.bf16.msra.mxu0 0
      %1828 = vmatprep.subr.bf16.mxu0 0
      %1829 = vmatpush1.bf16.msra.mxu0 0
      %1830 = vmatprep.subr.bf16.mxu0 0
      %1831 = vmatpush1.bf16.msra.mxu0 0
      %1832 = vmatprep.subr.bf16.mxu0 0
      %1833 = vmatpush1.bf16.msra.mxu0 0
      %1834 = vmatprep.subr.bf16.mxu0 0
      %1835 = vmatpush1.bf16.msra.mxu0 0
      %1836 = vmatprep.subr.bf16.mxu0 0
      %1837 = vmatpush1.bf16.msra.mxu0 0
      %1838 = vmatprep.subr.bf16.mxu0 0
      %1839 = vmatpush1.bf16.msra.mxu0 0
      %1840 = vmatprep.subr.bf16.mxu0 0
      %1841 = vmatpush1.bf16.msra.mxu0 0
      %1842 = vmatprep.subr.bf16.mxu0 0
      %1843 = vmatpush1.bf16.msra.mxu0 0
      %1844 = vmatprep.subr.bf16.mxu0 0
      %1845 = vmatpush1.bf16.msra.mxu0 0
      %1846 = vmatprep.subr.bf16.mxu0 0
      %1847 = vmatpush1.bf16.msra.mxu0 0
      %1848 = vmatprep.subr.bf16.mxu0 0
      %1849 = vmatpush1.bf16.msra.mxu0 0
      %1850 = vmatprep.subr.bf16.mxu0 0
      %1851 = vmatpush1.bf16.msra.mxu0 0
      %1852 = vmatprep.subr.bf16.mxu0 0
      %1853 = vmatpush1.bf16.msra.mxu0 0
      %1854 = vmatprep.subr.bf16.mxu0 0
      %1855 = vmatpush1.bf16.msra.mxu0 0
      %1856 = vmatprep.mubr.bf16.mxu0 0
      %1857 = vmatmul.mubr.bf16.gmra.mrb[0].mxu0 %v1819
      %v1858 = vpop.f32.mrb[0].mxu0
      %v1859 = vadd.f32 0.0, %v1858
      %v1860 = vpop.f32.mrb[0].mxu0
      %v1861 = vpop.f32.mrb[0].mxu0
      %v1862 = vpop.f32.mrb[0].mxu0
      %1863 = vdwg.mxu0
      %v1864 = vadd.f32 %v1698, %v1859
      %1866 = vrot.lane.b32.xlu0 %v1699, 120
      %v1867 = vpop.permute.xlu0 %1866
      %1868 = vrot.lane.b32.xlu0 %v1700, 120
      %v1869 = vpop.permute.xlu0 %1868
      %v1871 = vsel %vm877, %v1867, 0
      %v1874 = vsel %vm877, %v1869, 0
      %1876 = vmatprep.subr.bf16.mxu0 0
      %1877 = vmatpush1.bf16.xpose.msra.mxu0 %v1874
      %1878 = vmatprep.subr.bf16.mxu0 0
      %1879 = vmatpush1.bf16.xpose.msra.mxu0 0
      %1880 = vmatprep.subr.bf16.mxu0 0
      %1881 = vmatpush1.bf16.xpose.msra.mxu0 0
      %1882 = vmatprep.subr.bf16.mxu0 0
      %1883 = vmatpush1.bf16.xpose.msra.mxu0 0
      %1884 = vmatprep.subr.bf16.mxu0 0
      %1885 = vmatpush1.bf16.xpose.msra.mxu0 0
      %1886 = vmatprep.subr.bf16.mxu0 0
      %1887 = vmatpush1.bf16.xpose.msra.mxu0 0
      %1888 = vmatprep.subr.bf16.mxu0 0
      %1889 = vmatpush1.bf16.xpose.msra.mxu0 0
      %1890 = vmatprep.subr.bf16.mxu0 0
      %1891 = vmatpush1.bf16.xpose.msra.mxu0 0
      %1892 = vmatprep.subr.bf16.mxu0 0
      %1893 = vmatpush1.bf16.xpose.msra.mxu0 0
      %1894 = vmatprep.subr.bf16.mxu0 0
      %1895 = vmatpush1.bf16.xpose.msra.mxu0 0
      %1896 = vmatprep.subr.bf16.mxu0 0
      %1897 = vmatpush1.bf16.xpose.msra.mxu0 0
      %1898 = vmatprep.subr.bf16.mxu0 0
      %1899 = vmatpush1.bf16.xpose.msra.mxu0 0
      %1900 = vmatprep.subr.bf16.mxu0 0
      %1901 = vmatpush1.bf16.xpose.msra.mxu0 0
      %1902 = vmatprep.subr.bf16.mxu0 0
      %1903 = vmatpush1.bf16.xpose.msra.mxu0 0
      %1904 = vmatprep.subr.bf16.mxu0 0
      %1905 = vmatpush1.bf16.xpose.msra.mxu0 0
      %1906 = vmatprep.subr.bf16.mxu0 0
      %1907 = vmatpush1.bf16.xpose.msra.mxu0 0
      %1908 = vmatprep.mubr.bf16.mxu0 0
      %1909 = vmatmul.mubr.bf16.gmra.mrb[0].mxu0 %v1871
      %v1910 = vpop.f32.mrb[0].mxu0
      %v1911 = vadd.f32 0.0, %v1910
      %v1912 = vpop.f32.mrb[0].mxu0
      %v1913 = vpop.f32.mrb[0].mxu0
      %v1914 = vpop.f32.mrb[0].mxu0
      %1915 = vdwg.mxu0
      %v1916 = vmul.f32 %v1911, 0.35355338
      %v1917 = vsel %vm1753, -1e+09, %v1916
      %v1918 = vsel %vm877, %v1917, -inf
      %1919 = vmax.xlane.f32.xlu0 %v1918
      %v1920 = vpop.xlane.xlu0 %1919
      %v1921 = vsub.f32 %v1917, %v1920
      %v1922 = vmul.f32 %v1921, 1.442695
      %v1923 = vpow.pop %v1922
      %v1924 = vsel %vm877, %v1923, 0.0
      %1925 = vadd.xlane.f32.xlu0 %v1924
      %v1926 = vpop.xlane.xlu0 %1925
      %v1927 = vrcp.pop %v1926
      %v1928 = vmul.f32 %v1923, %v1927
      %v1929 = vpack.c.bf16 %v1928, %v1928
      %1930 = vrot.lane.b32.xlu0 %v1700, 88
      %v1931 = vpop.permute.xlu0 %1930
      %v1933 = vsel %vm877, %v1929, 0
      %v1936 = vsel %vm943, %v1931, 0
      %1938 = vmatprep.subr.bf16.mxu0 0
      %1939 = vmatpush1.bf16.msra.mxu0 %v1936
      %1940 = vmatprep.subr.bf16.mxu0 0
      %1941 = vmatpush1.bf16.msra.mxu0 0
      %1942 = vmatprep.subr.bf16.mxu0 0
      %1943 = vmatpush1.bf16.msra.mxu0 0
      %1944 = vmatprep.subr.bf16.mxu0 0
      %1945 = vmatpush1.bf16.msra.mxu0 0
      %1946 = vmatprep.subr.bf16.mxu0 0
      %1947 = vmatpush1.bf16.msra.mxu0 0
      %1948 = vmatprep.subr.bf16.mxu0 0
      %1949 = vmatpush1.bf16.msra.mxu0 0
      %1950 = vmatprep.subr.bf16.mxu0 0
      %1951 = vmatpush1.bf16.msra.mxu0 0
      %1952 = vmatprep.subr.bf16.mxu0 0
      %1953 = vmatpush1.bf16.msra.mxu0 0
      %1954 = vmatprep.subr.bf16.mxu0 0
      %1955 = vmatpush1.bf16.msra.mxu0 0
      %1956 = vmatprep.subr.bf16.mxu0 0
      %1957 = vmatpush1.bf16.msra.mxu0 0
      %1958 = vmatprep.subr.bf16.mxu0 0
      %1959 = vmatpush1.bf16.msra.mxu0 0
      %1960 = vmatprep.subr.bf16.mxu0 0
      %1961 = vmatpush1.bf16.msra.mxu0 0
      %1962 = vmatprep.subr.bf16.mxu0 0
      %1963 = vmatpush1.bf16.msra.mxu0 0
      %1964 = vmatprep.subr.bf16.mxu0 0
      %1965 = vmatpush1.bf16.msra.mxu0 0
      %1966 = vmatprep.subr.bf16.mxu0 0
      %1967 = vmatpush1.bf16.msra.mxu0 0
      %1968 = vmatprep.subr.bf16.mxu0 0
      %1969 = vmatpush1.bf16.msra.mxu0 0
      %1970 = vmatprep.mubr.bf16.mxu0 0
      %1971 = vmatmul.mubr.bf16.gmra.mrb[0].mxu0 %v1933
      %v1972 = vpop.f32.mrb[0].mxu0
      %v1973 = vadd.f32 0.0, %v1972
      %v1974 = vpop.f32.mrb[0].mxu0
      %v1975 = vpop.f32.mrb[0].mxu0
      %v1976 = vpop.f32.mrb[0].mxu0
      %1977 = vdwg.mxu0
      %v1978 = vpack.c.bf16 %v1973, %v1973
      %v1979 = vld [vmem:[%s14 + $0x4] sm:$0xf]
      %v1981 = vsel %vm877, %v1978, 0
      %v1984 = vsel %vm943, %v1979, 0
      %1986 = vmatprep.subr.bf16.mxu0 0
      %1987 = vmatpush1.bf16.msra.mxu0 %v1984
      %1988 = vmatprep.subr.bf16.mxu0 0
      %1989 = vmatpush1.bf16.msra.mxu0 0
      %1990 = vmatprep.subr.bf16.mxu0 0
      %1991 = vmatpush1.bf16.msra.mxu0 0
      %1992 = vmatprep.subr.bf16.mxu0 0
      %1993 = vmatpush1.bf16.msra.mxu0 0
      %1994 = vmatprep.subr.bf16.mxu0 0
      %1995 = vmatpush1.bf16.msra.mxu0 0
      %1996 = vmatprep.subr.bf16.mxu0 0
      %1997 = vmatpush1.bf16.msra.mxu0 0
      %1998 = vmatprep.subr.bf16.mxu0 0
      %1999 = vmatpush1.bf16.msra.mxu0 0
      %2000 = vmatprep.subr.bf16.mxu0 0
      %2001 = vmatpush1.bf16.msra.mxu0 0
      %2002 = vmatprep.subr.bf16.mxu0 0
      %2003 = vmatpush1.bf16.msra.mxu0 0
      %2004 = vmatprep.subr.bf16.mxu0 0
      %2005 = vmatpush1.bf16.msra.mxu0 0
      %2006 = vmatprep.subr.bf16.mxu0 0
      %2007 = vmatpush1.bf16.msra.mxu0 0
      %2008 = vmatprep.subr.bf16.mxu0 0
      %2009 = vmatpush1.bf16.msra.mxu0 0
      %2010 = vmatprep.subr.bf16.mxu0 0
      %2011 = vmatpush1.bf16.msra.mxu0 0
      %2012 = vmatprep.subr.bf16.mxu0 0
      %2013 = vmatpush1.bf16.msra.mxu0 0
      %2014 = vmatprep.subr.bf16.mxu0 0
      %2015 = vmatpush1.bf16.msra.mxu0 0
      %2016 = vmatprep.subr.bf16.mxu0 0
      %2017 = vmatpush1.bf16.msra.mxu0 0
      %2018 = vmatprep.mubr.bf16.mxu0 0
      %2019 = vmatmul.mubr.bf16.gmra.mrb[0].mxu0 %v1981
      %v2020 = vpop.f32.mrb[0].mxu0
      %v2021 = vadd.f32 0.0, %v2020
      %v2022 = vpop.f32.mrb[0].mxu0
      %v2023 = vpop.f32.mrb[0].mxu0
      %v2024 = vpop.f32.mrb[0].mxu0
      %2025 = vdwg.mxu0
      %v2026 = vadd.f32 %v1864, %v2021
      %2027 = vrot.lane.b32.xlu0 %v1699, 112
      %v2028 = vpop.permute.xlu0 %2027
      %2029 = vrot.lane.b32.xlu0 %v1700, 112
      %v2030 = vpop.permute.xlu0 %2029
      %v2032 = vsel %vm877, %v2028, 0
      %v2035 = vsel %vm877, %v2030, 0
      %2037 = vmatprep.subr.bf16.mxu0 0
      %2038 = vmatpush1.bf16.xpose.msra.mxu0 %v2035
      %2039 = vmatprep.subr.bf16.mxu0 0
      %2040 = vmatpush1.bf16.xpose.msra.mxu0 0
      %2041 = vmatprep.subr.bf16.mxu0 0
      %2042 = vmatpush1.bf16.xpose.msra.mxu0 0
      %2043 = vmatprep.subr.bf16.mxu0 0
      %2044 = vmatpush1.bf16.xpose.msra.mxu0 0
      %2045 = vmatprep.subr.bf16.mxu0 0
      %2046 = vmatpush1.bf16.xpose.msra.mxu0 0
      %2047 = vmatprep.subr.bf16.mxu0 0
      %2048 = vmatpush1.bf16.xpose.msra.mxu0 0
      %2049 = vmatprep.subr.bf16.mxu0 0
      %2050 = vmatpush1.bf16.xpose.msra.mxu0 0
      %2051 = vmatprep.subr.bf16.mxu0 0
      %2052 = vmatpush1.bf16.xpose.msra.mxu0 0
      %2053 = vmatprep.subr.bf16.mxu0 0
      %2054 = vmatpush1.bf16.xpose.msra.mxu0 0
      %2055 = vmatprep.subr.bf16.mxu0 0
      %2056 = vmatpush1.bf16.xpose.msra.mxu0 0
      %2057 = vmatprep.subr.bf16.mxu0 0
      %2058 = vmatpush1.bf16.xpose.msra.mxu0 0
      %2059 = vmatprep.subr.bf16.mxu0 0
      %2060 = vmatpush1.bf16.xpose.msra.mxu0 0
      %2061 = vmatprep.subr.bf16.mxu0 0
      %2062 = vmatpush1.bf16.xpose.msra.mxu0 0
      %2063 = vmatprep.subr.bf16.mxu0 0
      %2064 = vmatpush1.bf16.xpose.msra.mxu0 0
      %2065 = vmatprep.subr.bf16.mxu0 0
      %2066 = vmatpush1.bf16.xpose.msra.mxu0 0
      %2067 = vmatprep.subr.bf16.mxu0 0
      %2068 = vmatpush1.bf16.xpose.msra.mxu0 0
      %2069 = vmatprep.mubr.bf16.mxu0 0
      %2070 = vmatmul.mubr.bf16.gmra.mrb[0].mxu0 %v2032
      %v2071 = vpop.f32.mrb[0].mxu0
      %v2072 = vadd.f32 0.0, %v2071
      %v2073 = vpop.f32.mrb[0].mxu0
      %v2074 = vpop.f32.mrb[0].mxu0
      %v2075 = vpop.f32.mrb[0].mxu0
      %2076 = vdwg.mxu0
      %v2077 = vmul.f32 %v2072, 0.35355338
      %v2078 = vsel %vm1753, -1e+09, %v2077
      %v2079 = vsel %vm877, %v2078, -inf
      %2080 = vmax.xlane.f32.xlu0 %v2079
      %v2081 = vpop.xlane.xlu0 %2080
      %v2082 = vsub.f32 %v2078, %v2081
      %v2083 = vmul.f32 %v2082, 1.442695
      %v2084 = vpow.pop %v2083
      %v2085 = vsel %vm877, %v2084, 0.0
      %2086 = vadd.xlane.f32.xlu0 %v2085
      %v2087 = vpop.xlane.xlu0 %2086
      %v2088 = vrcp.pop %v2087
      %v2089 = vmul.f32 %v2084, %v2088
      %v2090 = vpack.c.bf16 %v2089, %v2089
      %2091 = vrot.lane.b32.xlu0 %v1700, 80
      %v2092 = vpop.permute.xlu0 %2091
      %v2094 = vsel %vm877, %v2090, 0
      %v2097 = vsel %vm943, %v2092, 0
      %2099 = vmatprep.subr.bf16.mxu0 0
      %2100 = vmatpush1.bf16.msra.mxu0 %v2097
      %2101 = vmatprep.subr.bf16.mxu0 0
      %2102 = vmatpush1.bf16.msra.mxu0 0
      %2103 = vmatprep.subr.bf16.mxu0 0
      %2104 = vmatpush1.bf16.msra.mxu0 0
      %2105 = vmatprep.subr.bf16.mxu0 0
      %2106 = vmatpush1.bf16.msra.mxu0 0
      %2107 = vmatprep.subr.bf16.mxu0 0
      %2108 = vmatpush1.bf16.msra.mxu0 0
      %2109 = vmatprep.subr.bf16.mxu0 0
      %2110 = vmatpush1.bf16.msra.mxu0 0
      %2111 = vmatprep.subr.bf16.mxu0 0
      %2112 = vmatpush1.bf16.msra.mxu0 0
      %2113 = vmatprep.subr.bf16.mxu0 0
      %2114 = vmatpush1.bf16.msra.mxu0 0
      %2115 = vmatprep.subr.bf16.mxu0 0
      %2116 = vmatpush1.bf16.msra.mxu0 0
      %2117 = vmatprep.subr.bf16.mxu0 0
      %2118 = vmatpush1.bf16.msra.mxu0 0
      %2119 = vmatprep.subr.bf16.mxu0 0
      %2120 = vmatpush1.bf16.msra.mxu0 0
      %2121 = vmatprep.subr.bf16.mxu0 0
      %2122 = vmatpush1.bf16.msra.mxu0 0
      %2123 = vmatprep.subr.bf16.mxu0 0
      %2124 = vmatpush1.bf16.msra.mxu0 0
      %2125 = vmatprep.subr.bf16.mxu0 0
      %2126 = vmatpush1.bf16.msra.mxu0 0
      %2127 = vmatprep.subr.bf16.mxu0 0
      %2128 = vmatpush1.bf16.msra.mxu0 0
      %2129 = vmatprep.subr.bf16.mxu0 0
      %2130 = vmatpush1.bf16.msra.mxu0 0
      %2131 = vmatprep.mubr.bf16.mxu0 0
      %2132 = vmatmul.mubr.bf16.gmra.mrb[0].mxu0 %v2094
      %v2133 = vpop.f32.mrb[0].mxu0
      %v2134 = vadd.f32 0.0, %v2133
      %v2135 = vpop.f32.mrb[0].mxu0
      %v2136 = vpop.f32.mrb[0].mxu0
      %v2137 = vpop.f32.mrb[0].mxu0
      %2138 = vdwg.mxu0
      %v2139 = vpack.c.bf16 %v2134, %v2134
      %v2140 = vld [vmem:[%s14 + $0x8] sm:$0xf]
      %v2142 = vsel %vm877, %v2139, 0
      %v2145 = vsel %vm943, %v2140, 0
      %2147 = vmatprep.subr.bf16.mxu0 0
      %2148 = vmatpush1.bf16.msra.mxu0 %v2145
      %2149 = vmatprep.subr.bf16.mxu0 0
      %2150 = vmatpush1.bf16.msra.mxu0 0
      %2151 = vmatprep.subr.bf16.mxu0 0
      %2152 = vmatpush1.bf16.msra.mxu0 0
      %2153 = vmatprep.subr.bf16.mxu0 0
      %2154 = vmatpush1.bf16.msra.mxu0 0
      %2155 = vmatprep.subr.bf16.mxu0 0
      %2156 = vmatpush1.bf16.msra.mxu0 0
      %2157 = vmatprep.subr.bf16.mxu0 0
      %2158 = vmatpush1.bf16.msra.mxu0 0
      %2159 = vmatprep.subr.bf16.mxu0 0
      %2160 = vmatpush1.bf16.msra.mxu0 0
      %2161 = vmatprep.subr.bf16.mxu0 0
      %2162 = vmatpush1.bf16.msra.mxu0 0
      %2163 = vmatprep.subr.bf16.mxu0 0
      %2164 = vmatpush1.bf16.msra.mxu0 0
      %2165 = vmatprep.subr.bf16.mxu0 0
      %2166 = vmatpush1.bf16.msra.mxu0 0
      %2167 = vmatprep.subr.bf16.mxu0 0
      %2168 = vmatpush1.bf16.msra.mxu0 0
      %2169 = vmatprep.subr.bf16.mxu0 0
      %2170 = vmatpush1.bf16.msra.mxu0 0
      %2171 = vmatprep.subr.bf16.mxu0 0
      %2172 = vmatpush1.bf16.msra.mxu0 0
      %2173 = vmatprep.subr.bf16.mxu0 0
      %2174 = vmatpush1.bf16.msra.mxu0 0
      %2175 = vmatprep.subr.bf16.mxu0 0
      %2176 = vmatpush1.bf16.msra.mxu0 0
      %2177 = vmatprep.subr.bf16.mxu0 0
      %2178 = vmatpush1.bf16.msra.mxu0 0
      %2179 = vmatprep.mubr.bf16.mxu0 0
      %2180 = vmatmul.mubr.bf16.gmra.mrb[0].mxu0 %v2142
      %v2181 = vpop.f32.mrb[0].mxu0
      %v2182 = vadd.f32 0.0, %v2181
      %v2183 = vpop.f32.mrb[0].mxu0
      %v2184 = vpop.f32.mrb[0].mxu0
      %v2185 = vpop.f32.mrb[0].mxu0
      %2186 = vdwg.mxu0
      %v2187 = vadd.f32 %v2026, %v2182
      %2188 = vrot.lane.b32.xlu0 %v1699, 104
      %v2189 = vpop.permute.xlu0 %2188
      %2190 = vrot.lane.b32.xlu0 %v1700, 104
      %v2191 = vpop.permute.xlu0 %2190
      %v2193 = vsel %vm877, %v2189, 0
      %v2196 = vsel %vm877, %v2191, 0
      %2198 = vmatprep.subr.bf16.mxu0 0
      %2199 = vmatpush1.bf16.xpose.msra.mxu0 %v2196
      %2200 = vmatprep.subr.bf16.mxu0 0
      %2201 = vmatpush1.bf16.xpose.msra.mxu0 0
      %2202 = vmatprep.subr.bf16.mxu0 0
      %2203 = vmatpush1.bf16.xpose.msra.mxu0 0
      %2204 = vmatprep.subr.bf16.mxu0 0
      %2205 = vmatpush1.bf16.xpose.msra.mxu0 0
      %2206 = vmatprep.subr.bf16.mxu0 0
      %2207 = vmatpush1.bf16.xpose.msra.mxu0 0
      %2208 = vmatprep.subr.bf16.mxu0 0
      %2209 = vmatpush1.bf16.xpose.msra.mxu0 0
      %2210 = vmatprep.subr.bf16.mxu0 0
      %2211 = vmatpush1.bf16.xpose.msra.mxu0 0
      %2212 = vmatprep.subr.bf16.mxu0 0
      %2213 = vmatpush1.bf16.xpose.msra.mxu0 0
      %2214 = vmatprep.subr.bf16.mxu0 0
      %2215 = vmatpush1.bf16.xpose.msra.mxu0 0
      %2216 = vmatprep.subr.bf16.mxu0 0
      %2217 = vmatpush1.bf16.xpose.msra.mxu0 0
      %2218 = vmatprep.subr.bf16.mxu0 0
      %2219 = vmatpush1.bf16.xpose.msra.mxu0 0
      %2220 = vmatprep.subr.bf16.mxu0 0
      %2221 = vmatpush1.bf16.xpose.msra.mxu0 0
      %2222 = vmatprep.subr.bf16.mxu0 0
      %2223 = vmatpush1.bf16.xpose.msra.mxu0 0
      %2224 = vmatprep.subr.bf16.mxu0 0
      %2225 = vmatpush1.bf16.xpose.msra.mxu0 0
      %2226 = vmatprep.subr.bf16.mxu0 0
      %2227 = vmatpush1.bf16.xpose.msra.mxu0 0
      %2228 = vmatprep.subr.bf16.mxu0 0
      %2229 = vmatpush1.bf16.xpose.msra.mxu0 0
      %2230 = vmatprep.mubr.bf16.mxu0 0
      %2231 = vmatmul.mubr.bf16.gmra.mrb[0].mxu0 %v2193
      %v2232 = vpop.f32.mrb[0].mxu0
      %v2233 = vadd.f32 0.0, %v2232
      %v2234 = vpop.f32.mrb[0].mxu0
      %v2235 = vpop.f32.mrb[0].mxu0
      %v2236 = vpop.f32.mrb[0].mxu0
      %2237 = vdwg.mxu0
      %v2238 = vmul.f32 %v2233, 0.35355338
      %v2239 = vsel %vm1753, -1e+09, %v2238
      %v2240 = vsel %vm877, %v2239, -inf
      %2241 = vmax.xlane.f32.xlu0 %v2240
      %v2242 = vpop.xlane.xlu0 %2241
      %v2243 = vsub.f32 %v2239, %v2242
      %v2244 = vmul.f32 %v2243, 1.442695
      %v2245 = vpow.pop %v2244
      %v2246 = vsel %vm877, %v2245, 0.0
      %2247 = vadd.xlane.f32.xlu0 %v2246
      %v2248 = vpop.xlane.xlu0 %2247
      %v2249 = vrcp.pop %v2248
      %v2250 = vmul.f32 %v2245, %v2249
      %v2251 = vpack.c.bf16 %v2250, %v2250
      %2252 = vrot.lane.b32.xlu0 %v1700, 72
      %v2253 = vpop.permute.xlu0 %2252
      %v2255 = vsel %vm877, %v2251, 0
      %v2258 = vsel %vm943, %v2253, 0
      %2260 = vmatprep.subr.bf16.mxu0 0
      %2261 = vmatpush1.bf16.msra.mxu0 %v2258
      %2262 = vmatprep.subr.bf16.mxu0 0
      %2263 = vmatpush1.bf16.msra.mxu0 0
      %2264 = vmatprep.subr.bf16.mxu0 0
      %2265 = vmatpush1.bf16.msra.mxu0 0
      %2266 = vmatprep.subr.bf16.mxu0 0
      %2267 = vmatpush1.bf16.msra.mxu0 0
      %2268 = vmatprep.subr.bf16.mxu0 0
      %2269 = vmatpush1.bf16.msra.mxu0 0
      %2270 = vmatprep.subr.bf16.mxu0 0
      %2271 = vmatpush1.bf16.msra.mxu0 0
      %2272 = vmatprep.subr.bf16.mxu0 0
      %2273 = vmatpush1.bf16.msra.mxu0 0
      %2274 = vmatprep.subr.bf16.mxu0 0
      %2275 = vmatpush1.bf16.msra.mxu0 0
      %2276 = vmatprep.subr.bf16.mxu0 0
      %2277 = vmatpush1.bf16.msra.mxu0 0
      %2278 = vmatprep.subr.bf16.mxu0 0
      %2279 = vmatpush1.bf16.msra.mxu0 0
      %2280 = vmatprep.subr.bf16.mxu0 0
      %2281 = vmatpush1.bf16.msra.mxu0 0
      %2282 = vmatprep.subr.bf16.mxu0 0
      %2283 = vmatpush1.bf16.msra.mxu0 0
      %2284 = vmatprep.subr.bf16.mxu0 0
      %2285 = vmatpush1.bf16.msra.mxu0 0
      %2286 = vmatprep.subr.bf16.mxu0 0
      %2287 = vmatpush1.bf16.msra.mxu0 0
      %2288 = vmatprep.subr.bf16.mxu0 0
      %2289 = vmatpush1.bf16.msra.mxu0 0
      %2290 = vmatprep.subr.bf16.mxu0 0
      %2291 = vmatpush1.bf16.msra.mxu0 0
      %2292 = vmatprep.mubr.bf16.mxu0 0
      %2293 = vmatmul.mubr.bf16.gmra.mrb[0].mxu0 %v2255
      %v2294 = vpop.f32.mrb[0].mxu0
      %v2295 = vadd.f32 0.0, %v2294
      %v2296 = vpop.f32.mrb[0].mxu0
      %v2297 = vpop.f32.mrb[0].mxu0
      %v2298 = vpop.f32.mrb[0].mxu0
      %2299 = vdwg.mxu0
      %v2300 = vpack.c.bf16 %v2295, %v2295
      %v2301 = vld [vmem:[%s14 + $0xc] sm:$0xf]
      %v2303 = vsel %vm877, %v2300, 0
      %v2306 = vsel %vm943, %v2301, 0
      %2308 = vmatprep.subr.bf16.mxu0 0
      %2309 = vmatpush1.bf16.msra.mxu0 %v2306
      %2310 = vmatprep.subr.bf16.mxu0 0
      %2311 = vmatpush1.bf16.msra.mxu0 0
      %2312 = vmatprep.subr.bf16.mxu0 0
      %2313 = vmatpush1.bf16.msra.mxu0 0
      %2314 = vmatprep.subr.bf16.mxu0 0
      %2315 = vmatpush1.bf16.msra.mxu0 0
      %2316 = vmatprep.subr.bf16.mxu0 0
      %2317 = vmatpush1.bf16.msra.mxu0 0
      %2318 = vmatprep.subr.bf16.mxu0 0
      %2319 = vmatpush1.bf16.msra.mxu0 0
      %2320 = vmatprep.subr.bf16.mxu0 0
      %2321 = vmatpush1.bf16.msra.mxu0 0
      %2322 = vmatprep.subr.bf16.mxu0 0
      %2323 = vmatpush1.bf16.msra.mxu0 0
      %2324 = vmatprep.subr.bf16.mxu0 0
      %2325 = vmatpush1.bf16.msra.mxu0 0
      %2326 = vmatprep.subr.bf16.mxu0 0
      %2327 = vmatpush1.bf16.msra.mxu0 0
      %2328 = vmatprep.subr.bf16.mxu0 0
      %2329 = vmatpush1.bf16.msra.mxu0 0
      %2330 = vmatprep.subr.bf16.mxu0 0
      %2331 = vmatpush1.bf16.msra.mxu0 0
      %2332 = vmatprep.subr.bf16.mxu0 0
      %2333 = vmatpush1.bf16.msra.mxu0 0
      %2334 = vmatprep.subr.bf16.mxu0 0
      %2335 = vmatpush1.bf16.msra.mxu0 0
      %2336 = vmatprep.subr.bf16.mxu0 0
      %2337 = vmatpush1.bf16.msra.mxu0 0
      %2338 = vmatprep.subr.bf16.mxu0 0
      %2339 = vmatpush1.bf16.msra.mxu0 0
      %2340 = vmatprep.mubr.bf16.mxu0 0
      %2341 = vmatmul.mubr.bf16.gmra.mrb[0].mxu0 %v2303
      %v2342 = vpop.f32.mrb[0].mxu0
      %v2343 = vadd.f32 0.0, %v2342
      %v2344 = vpop.f32.mrb[0].mxu0
      %v2345 = vpop.f32.mrb[0].mxu0
      %v2346 = vpop.f32.mrb[0].mxu0
      %2347 = vdwg.mxu0
      %v2348 = vadd.f32 %v2187, %v2343
      %v2349 = vadd.f32 %v2348, %v1557
      %v2350 = vsel %vm821, %v2349, 0.0
      %2351 = vadd.xlane.f32.xlu0 %v2350
      %v2352 = vpop.xlane.xlu0 %2351
      %v2353 = vmul.f32 %v2352, %v1523
      %v2354 = vsub.f32 %v2349, %v2353
      %v2355 = vmul.f32 %v2354, %v2354
      %v2356 = vsel %vm821, %v2355, 0.0
      %2357 = vadd.xlane.f32.xlu0 %v2356
      %v2358 = vpop.xlane.xlu0 %2357
      %v2359 = vmul.f32 %v2358, %v1530
      %v2360 = vld [vmem:[%s16] sm:$0x1]
      %v2361 = vrsqrt.pop %v2359
      %v2362 = vmul.f32 %v2359, %v2361
      %vm2363 = vcmp.eq.f32.partialorder %v2359, inf
      %v2364 = vsel %vm2363, %v2359, %v2362
      %vm2365 = vcmp.eq.f32.partialorder %v2359, 0.0
      %v2366 = vand.u32 %v2359, 2147483648
      %v2367 = vsel %vm2365, %v2366, %v2364
      %v2368 = vadd.f32 %v2367, 1e-06
      %v2369 = vrcp.pop %v2368
      %v2370 = vmul.f32 %v2354, %v2369
      %v2372 = vlaneseq
      %v2373 = vshrl.u32 %v2372, 7
      %v2374 = vsub.s32 0, %v2373
      %v2375 = vrot.slane %v2360, %v2374
      %v2377 = vmul.f32 %v2375, %v2370
      %v2378 = vld [vmem:[%s17] sm:$0x1]
      %v2380 = vlaneseq
      %v2381 = vshrl.u32 %v2380, 7
      %v2382 = vsub.s32 0, %v2381
      %v2383 = vrot.slane %v2378, %v2382
      %v2385 = vadd.f32 %v2377, %v2383
      %v2386 = vpack.c.bf16 %v2385, %v2385
      %v2387 = vld [vmem:[%s18] sm:$0xf]
      %v2388 = vld [vmem:[%s18 + $0x4] sm:$0xf]
      %v2389 = vld [vmem:[%s18 + $0x8] sm:$0xf]
      %v2390 = vld [vmem:[%s18 + $0xc] sm:$0xf]
      %v2391 = vld [vmem:[%s19] sm:$0x1]
      %v2393 = vlaneseq
      %v2394 = vshrl.u32 %v2393, 7
      %v2395 = vsub.s32 0, %v2394
      %v2396 = vrot.slane %v2391, %v2395
      %v2402 = vunpack.c.l.b16 %v2387
      %v2403 = vunpack.c.l.b16 %v2388
      %v2404 = vunpack.c.l.b16 %v2389
      %v2405 = vunpack.c.l.b16 %v2390
      %v2406 = vpack.c.b16 %v2403, %v2402
      %v2407 = vpack.c.b16 %v2405, %v2404
      %v2411 = vsel %vm821, %v2386, 0
      %2413 = vmatprep.subr.bf16.mxu0 0
      %2414 = vmatpush1.bf16.msra.mxu0 %v2406
      %2415 = vmatprep.subr.bf16.mxu0 0
      %2416 = vmatpush1.bf16.msra.mxu0 %v2407
      %2417 = vmatprep.subr.bf16.mxu0 0
      %2418 = vmatpush1.bf16.msra.mxu0 0
      %2419 = vmatprep.subr.bf16.mxu0 0
      %2420 = vmatpush1.bf16.msra.mxu0 0
      %2421 = vmatprep.subr.bf16.mxu0 0
      %2422 = vmatpush1.bf16.msra.mxu0 0
      %2423 = vmatprep.subr.bf16.mxu0 0
      %2424 = vmatpush1.bf16.msra.mxu0 0
      %2425 = vmatprep.subr.bf16.mxu0 0
      %2426 = vmatpush1.bf16.msra.mxu0 0
      %2427 = vmatprep.subr.bf16.mxu0 0
      %2428 = vmatpush1.bf16.msra.mxu0 0
      %2429 = vmatprep.subr.bf16.mxu0 0
      %2430 = vmatpush1.bf16.msra.mxu0 0
      %2431 = vmatprep.subr.bf16.mxu0 0
      %2432 = vmatpush1.bf16.msra.mxu0 0
      %2433 = vmatprep.subr.bf16.mxu0 0
      %2434 = vmatpush1.bf16.msra.mxu0 0
      %2435 = vmatprep.subr.bf16.mxu0 0
      %2436 = vmatpush1.bf16.msra.mxu0 0
      %2437 = vmatprep.subr.bf16.mxu0 0
      %2438 = vmatpush1.bf16.msra.mxu0 0
      %2439 = vmatprep.subr.bf16.mxu0 0
      %2440 = vmatpush1.bf16.msra.mxu0 0
      %2441 = vmatprep.subr.bf16.mxu0 0
      %2442 = vmatpush1.bf16.msra.mxu0 0
      %2443 = vmatprep.subr.bf16.mxu0 0
      %2444 = vmatpush1.bf16.msra.mxu0 0
      %2445 = vmatprep.mubr.bf16.mxu0 0
      %2446 = vmatmul.mubr.bf16.gmra.mrb[0].mxu0 %v2411
      %v2447 = vpop.f32.mrb[0].mxu0
      %v2448 = vadd.f32 %v2396, %v2447
      %v2449 = vpop.f32.mrb[0].mxu0
      %v2450 = vpop.f32.mrb[0].mxu0
      %v2451 = vpop.f32.mrb[0].mxu0
      %2452 = vdwg.mxu0
      %v2453 = vmax.f32 %v2448, 0.0
      %v2454 = vpack.c.bf16 %v2453, %v2453
      %v2455 = vld [vmem:[%s20] sm:$0xf]
      %v2456 = vld [vmem:[%s20 + $0x4] sm:$0xf]
      %v2457 = vld [vmem:[%s20 + $0x8] sm:$0xf]
      %v2458 = vld [vmem:[%s20 + $0xc] sm:$0xf]
      %v2459 = vld [vmem:[%s20 + $0x10] sm:$0xf]
      %v2460 = vld [vmem:[%s20 + $0x14] sm:$0xf]
      %v2461 = vld [vmem:[%s20 + $0x18] sm:$0xf]
      %v2462 = vld [vmem:[%s20 + $0x1c] sm:$0xf]
      %v2463 = vld [vmem:[%s21] sm:$0x1]
      %v2465 = vlaneseq
      %v2466 = vshrl.u32 %v2465, 7
      %v2467 = vsub.s32 0, %v2466
      %v2468 = vrot.slane %v2463, %v2467
      %v2478 = vunpack.c.l.b16 %v2455
      %v2479 = vunpack.c.l.b16 %v2456
      %v2480 = vunpack.c.l.b16 %v2457
      %v2481 = vunpack.c.l.b16 %v2458
      %v2482 = vunpack.c.l.b16 %v2459
      %v2483 = vunpack.c.l.b16 %v2460
      %v2484 = vunpack.c.l.b16 %v2461
      %v2485 = vunpack.c.l.b16 %v2462
      %v2486 = vpack.c.b16 %v2479, %v2478
      %v2487 = vpack.c.b16 %v2481, %v2480
      %v2488 = vpack.c.b16 %v2483, %v2482
      %v2489 = vpack.c.b16 %v2485, %v2484
      %vm2494 = vcmask 523264
      %v2496 = vsel %vm2494, %v2454, 0
      %2498 = vmatprep.subr.bf16.mxu0 0
      %2499 = vmatpush1.bf16.msra.mxu0 %v2486
      %2500 = vmatprep.subr.bf16.mxu0 0
      %2501 = vmatpush1.bf16.msra.mxu0 %v2487
      %2502 = vmatprep.subr.bf16.mxu0 0
      %2503 = vmatpush1.bf16.msra.mxu0 %v2488
      %2504 = vmatprep.subr.bf16.mxu0 0
      %2505 = vmatpush1.bf16.msra.mxu0 %v2489
      %2506 = vmatprep.subr.bf16.mxu0 0
      %2507 = vmatpush1.bf16.msra.mxu0 0
      %2508 = vmatprep.subr.bf16.mxu0 0
      %2509 = vmatpush1.bf16.msra.mxu0 0
      %2510 = vmatprep.subr.bf16.mxu0 0
      %2511 = vmatpush1.bf16.msra.mxu0 0
      %2512 = vmatprep.subr.bf16.mxu0 0
      %2513 = vmatpush1.bf16.msra.mxu0 0
      %2514 = vmatprep.subr.bf16.mxu0 0
      %2515 = vmatpush1.bf16.msra.mxu0 0
      %2516 = vmatprep.subr.bf16.mxu0 0
      %2517 = vmatpush1.bf16.msra.mxu0 0
      %2518 = vmatprep.subr.bf16.mxu0 0
      %2519 = vmatpush1.bf16.msra.mxu0 0
      %2520 = vmatprep.subr.bf16.mxu0 0
      %2521 = vmatpush1.bf16.msra.mxu0 0
      %2522 = vmatprep.subr.bf16.mxu0 0
      %2523 = vmatpush1.bf16.msra.mxu0 0
      %2524 = vmatprep.subr.bf16.mxu0 0
      %2525 = vmatpush1.bf16.msra.mxu0 0
      %2526 = vmatprep.subr.bf16.mxu0 0
      %2527 = vmatpush1.bf16.msra.mxu0 0
      %2528 = vmatprep.subr.bf16.mxu0 0
      %2529 = vmatpush1.bf16.msra.mxu0 0
      %2530 = vmatprep.mubr.bf16.mxu0 0
      %2531 = vmatmul.mubr.bf16.gmra.mrb[0].mxu0 %v2496
      %v2532 = vpop.f32.mrb[0].mxu0
      %v2533 = vadd.f32 %v2468, %v2532
      %v2534 = vpop.f32.mrb[0].mxu0
      %v2535 = vpop.f32.mrb[0].mxu0
      %v2536 = vpop.f32.mrb[0].mxu0
      %2537 = vdwg.mxu0
      %v2538 = vadd.f32 %v2533, %v2385
      %v2539 = vsel %vm821, %v2538, 0.0
      %2540 = vadd.xlane.f32.xlu0 %v2539
      %v2541 = vpop.xlane.xlu0 %2540
      %v2542 = vmul.f32 %v2541, %v1523
      %v2543 = vsub.f32 %v2538, %v2542
      %v2544 = vmul.f32 %v2543, %v2543
      %v2545 = vsel %vm821, %v2544, 0.0
      %2546 = vadd.xlane.f32.xlu0 %v2545
      %v2547 = vpop.xlane.xlu0 %2546
      %v2548 = vmul.f32 %v2547, %v1530
      %v2549 = vld [vmem:[%s22] sm:$0x1]
      %v2550 = vrsqrt.pop %v2548
      %v2551 = vmul.f32 %v2548, %v2550
      %vm2552 = vcmp.eq.f32.partialorder %v2548, inf
      %v2553 = vsel %vm2552, %v2548, %v2551
      %vm2554 = vcmp.eq.f32.partialorder %v2548, 0.0
      %v2555 = vand.u32 %v2548, 2147483648
      %v2556 = vsel %vm2554, %v2555, %v2553
      %v2557 = vadd.f32 %v2556, 1e-06
      %v2558 = vrcp.pop %v2557
      %v2559 = vmul.f32 %v2543, %v2558
      %v2561 = vlaneseq
      %v2562 = vshrl.u32 %v2561, 7
      %v2563 = vsub.s32 0, %v2562
      %v2564 = vrot.slane %v2549, %v2563
      %v2566 = vmul.f32 %v2564, %v2559
      %v2567 = vld [vmem:[%s23] sm:$0x1]
      %v2569 = vlaneseq
      %v2570 = vshrl.u32 %v2569, 7
      %v2571 = vsub.s32 0, %v2570
      %v2572 = vrot.slane %v2567, %v2571
      %v2574 = vadd.f32 %v2566, %v2572
      %v2575 = vpack.c.bf16 %v2574, %v2574
      %vm2576 = vcmask 257024
      %2577 = vst.msk [vmem:[%s777] sm:$0xf] %vm2576, %v2575
      %p2578 = scmp.lt.s32.totalorder %s35, 1
      %s2579 = scalar_select %p2578, %s35, 1
      %s2580 = smul.addr %s2579, 4
      %s2581 = scalar_lea.vmem %s24, %s2580
      // Predicated region
      $region117: #{fwd.7} parent=115 // pred_check
        %p2582 = pneg %p577
      $region118: #{fwd.7} parent=115 // pred_check_branch
        %2584 = sbr.rel (%p2582) target = $region120
      $region119: #{fwd.7} parent=115 // pred_region
        _
      $region120: #{fwd.7} parent=115 // pred_fallthru
        _
    $region116: #{fwd.7} parent=5 // pred_fallthru
      _
    %p2585 = scmp.le.s32.totalorder 2, %s30
    // Predicated region
    $region121: #{fwd.7} parent=5 // pred_check
      %p2586 = pneg %p2585
    $region122: #{fwd.7} parent=5 // pred_check_branch
      %2588 = sbr.rel (%p2586) target = $region124
    $region123: #{fwd.7} parent=5 // pred_region
      %s2589 = ssub.s32 %s30, 2
      // Predicated region
      $region125: #{fwd.7} parent=123 // pred_check
        %p2590 = pneg %p583
      $region126: #{fwd.7} parent=123 // pred_check_branch
        %2592 = sbr.rel (%p2590) target = $region128
      $region127: #{fwd.7} parent=123 // pred_region
        %p2593 = scmp.lt.s32.totalorder %s36, 1
        %s2594 = scalar_select %p2593, %s36, 1
        %s2595 = smul.addr %s2594, 4
        %s2596 = scalar_lea.vmem %s24, %s2595
      $region128: #{fwd.7} parent=123 // pred_fallthru
        _
    $region124: #{fwd.7} parent=5 // pred_fallthru
      _
  $region6: #{fwd.7} parent=0 // loop_footer
    %s34 = sadd.s32 1, %s30
  $region7: #{fwd.7} parent=0 // loop_footer_branch
    %29 = sbr.rel target = $region3
  $region8: #{fwd.7} parent=0 // loop_exit
    _

// kernel: fwd.8
$region0: #{fwd.8}
  #allocation0 [shape = 'u32[]', space=smem, size = 0x4, offset = 0x4, fixed_abs, tag = 'smem constant byte address 0x4 - core index']
  #allocation1 [shape = 'u32[144,128]{1,0:T(1,128)}', space=vmem, size = 0x12000, scoped, tag = 'internal scratch']
  %s0 = inlined_call_operand.vmem [shape: bf16[2,8,32], index: 0, kind: input, shape index: {}]
  %s1 = inlined_call_operand.vmem [shape: bf16[2,8,32], index: 1, kind: input, shape index: {}]
  %s2 = inlined_call_operand.vmem [shape: f32[2,1,8], index: 2, kind: input, shape index: {}]
  %s3 = inlined_call_operand.vmem [shape: f32[2,1,8], index: 3, kind: input, shape index: {}]
  %s4 = inlined_call_operand.vmem [shape: bf16[32,96], index: 4, kind: input, shape index: {}]
  %s5 = inlined_call_operand.vmem [shape: f32[1,96], index: 5, kind: input, shape index: {}]
  %s6 = inlined_call_operand.vmem [shape: bf16[32,32], index: 6, kind: input, shape index: {}]
  %s7 = inlined_call_operand.vmem [shape: f32[1,32], index: 7, kind: input, shape index: {}]
  %s8 = inlined_call_operand.vmem [shape: f32[1,32], index: 8, kind: input, shape index: {}]
  %s9 = inlined_call_operand.vmem [shape: f32[1,32], index: 9, kind: input, shape index: {}]
  %s10 = inlined_call_operand.vmem [shape: bf16[32,32], index: 10, kind: input, shape index: {}]
  %s11 = inlined_call_operand.vmem [shape: f32[1,32], index: 11, kind: input, shape index: {}]
  %s12 = inlined_call_operand.vmem [shape: bf16[32,64], index: 12, kind: input, shape index: {}]
  %s13 = inlined_call_operand.vmem [shape: f32[1,64], index: 13, kind: input, shape index: {}]
  %s14 = inlined_call_operand.vmem [shape: bf16[32,32], index: 14, kind: input, shape index: {}]
  %s15 = inlined_call_operand.vmem [shape: f32[1,32], index: 15, kind: input, shape index: {}]
  %s16 = inlined_call_operand.vmem [shape: f32[1,32], index: 16, kind: input, shape index: {}]
  %s17 = inlined_call_operand.vmem [shape: f32[1,32], index: 17, kind: input, shape index: {}]
  %s18 = inlined_call_operand.vmem [shape: bf16[32,64], index: 18, kind: input, shape index: {}]
  %s19 = inlined_call_operand.vmem [shape: f32[1,64], index: 19, kind: input, shape index: {}]
  %s20 = inlined_call_operand.vmem [shape: bf16[64,32], index: 20, kind: input, shape index: {}]
  %s21 = inlined_call_operand.vmem [shape: f32[1,32], index: 21, kind: input, shape index: {}]
  %s22 = inlined_call_operand.vmem [shape: f32[1,32], index: 22, kind: input, shape index: {}]
  %s23 = inlined_call_operand.hbm [shape: f32[1,32], index: 23, kind: input, shape index: {}]
  %s24 = inlined_call_operand.vmem [shape: bf16[2,8,32], index: 24, kind: output, shape index: {}]
  %s25 = sld [smem:[#allocation0]]
  $region133: #{fwd.8} parent=0
    _
  %s27 = ssub.s32 1, %s25
  %s28 = scalar_select 0, %s27, %s25
  $region1: #{fwd.8} parent=0
    #allocation2 [shape = 'u8[512]{0}', space=vmem, size = 0x400, scoped, tag = 'input window, operand 23, single buffered']
    #allocation3 [shape = 's32[2]{0}', space=sflag, size = 0x8, scoped, tag = 'scoped memory for fwd.8']
    %29 = vsyncpa [#allocation3], 0
    loop: start=0, step=1, limit=4
    $region2: #{fwd.8} parent=1 // loop_pre_header
      _
    $region3: #{fwd.8} parent=1 // loop_header
      %s31 = sphi 0, %s35
      %p32 = scmp.ge.s32.totalorder %s31, 4
      %s41 = sphi 0, %s43
      %s44 = sphi 0, %s41
      %s45 = sphi 0, %s44
      %s61 = sphi 0, %s45
      %s67 = sphi 0, %s69
      %s70 = sphi 0, %s67
      %s71 = sphi 0, %s70
      %s87 = sphi 0, %s71
      %s93 = sphi 0, %s95
      %s96 = sphi 0, %s93
      %s97 = sphi 0, %s96
      %s113 = sphi 0, %s97
      %s119 = sphi 0, %s121
      %s122 = sphi 0, %s119
      %s123 = sphi 0, %s122
      %s139 = sphi 0, %s123
      %s143 = sphi 0, %s143
      %s145 = sphi 0, %s143
      %s146 = sphi 0, %s145
      %s160 = sphi 0, %s146
      %s164 = sphi 0, %s164
      %s166 = sphi 0, %s164
      %s167 = sphi 0, %s166
      %s181 = sphi 0, %s167
      %s185 = sphi 0, %s185
      %s187 = sphi 0, %s185
      %s188 = sphi 0, %s187
      %s202 = sphi 0, %s188
      %s206 = sphi 0, %s206
      %s208 = sphi 0, %s206
      %s209 = sphi 0, %s208
      %s223 = sphi 0, %s209
      %s227 = sphi 0, %s227
      %s229 = sphi 0, %s227
      %s230 = sphi 0, %s229
      %s244 = sphi 0, %s230
      %s248 = sphi 0, %s248
      %s250 = sphi 0, %s248
      %s251 = sphi 0, %s250
      %s265 = sphi 0, %s251
      %s269 = sphi 0, %s269
      %s271 = sphi 0, %s269
      %s272 = sphi 0, %s271
      %s286 = sphi 0, %s272
      %s290 = sphi 0, %s290
      %s292 = sphi 0, %s290
      %s293 = sphi 0, %s292
      %s307 = sphi 0, %s293
      %s311 = sphi 0, %s311
      %s313 = sphi 0, %s311
      %s314 = sphi 0, %s313
      %s328 = sphi 0, %s314
      %s332 = sphi 0, %s332
      %s334 = sphi 0, %s332
      %s335 = sphi 0, %s334
      %s349 = sphi 0, %s335
      %s353 = sphi 0, %s353
      %s355 = sphi 0, %s353
      %s356 = sphi 0, %s355
      %s370 = sphi 0, %s356
      %s374 = sphi 0, %s374
      %s376 = sphi 0, %s374
      %s377 = sphi 0, %s376
      %s391 = sphi 0, %s377
      %s395 = sphi 0, %s395
      %s397 = sphi 0, %s395
      %s398 = sphi 0, %s397
      %s412 = sphi 0, %s398
      %s416 = sphi 0, %s416
      %s418 = sphi 0, %s416
      %s419 = sphi 0, %s418
      %s433 = sphi 0, %s419
      %s437 = sphi 0, %s437
      %s439 = sphi 0, %s437
      %s440 = sphi 0, %s439
      %s454 = sphi 0, %s440
      %s458 = sphi 0, %s458
      %s460 = sphi 0, %s458
      %s461 = sphi 0, %s460
      %s475 = sphi 0, %s461
      %s479 = sphi 0, %s479
      %s481 = sphi 0, %s479
      %s482 = sphi 0, %s481
      %s496 = sphi 0, %s482
      %s500 = sphi 0, %s500
      %s502 = sphi 0, %s500
      %s503 = sphi 0, %s502
      %s517 = sphi 0, %s503
      %s521 = sphi 0, %s521
      %s523 = sphi 0, %s521
      %s524 = sphi 0, %s523
      %s538 = sphi 0, %s524
      %s542 = sphi 0, %s542
      %s544 = sphi 0, %s542
      %s545 = sphi 0, %s544
      %s559 = sphi 0, %s545
      %s565 = sphi 0, %s567
      %s568 = sphi 0, %s565
      %s569 = sphi 0, %s568
      %s585 = sphi 0, %s569
    $region4: #{fwd.8} parent=1 // loop_header_branch
      %34 = sbr.rel (%p32) target = $region8
    $region5: #{fwd.8} parent=1 // loop_body
      %s36 = ssub.s32 %s31, 1
      %s37 = ssub.s32 %s31, 2
      %s38 = sadd.s32 %s31, 1
      %s39 = ssub.s32 %s31, %s38
      %p40 = scmp.eq.s32.totalorder %s39, 0
      %s42 = sadd.s32 %s41, 1
      %s43 = scalar_select %p40, %s41, %s42
      %p46 = pneg %p40
      %p47 = scmp.eq.s32.totalorder %s31, 1
      %p48 = por %p46, %p47
      %p49 = scmp.ne.s32.totalorder %s41, %s44
      %p50 = scmp.eq.s32.totalorder %s31, 0
      %p51 = por %p49, %p50
      %p52 = scmp.ne.s32.totalorder %s41, %s44
      %p53 = scmp.eq.s32.totalorder %s36, 1
      %p54 = por %p52, %p53
      %p55 = scmp.ne.s32.totalorder %s44, %s45
      %p56 = scmp.eq.s32.totalorder %s36, 0
      %p57 = por %p55, %p56
      %p58 = scmp.ne.s32.totalorder %s44, %s45
      %p59 = scmp.eq.s32.totalorder %s37, 1
      %p60 = por %p58, %p59
      %p62 = scmp.ne.s32.totalorder %s45, %s61
      %p63 = scmp.eq.s32.totalorder %s37, 0
      %p64 = por %p62, %p63
      %s65 = ssub.s32 %s31, %s38
      %p66 = scmp.eq.s32.totalorder %s65, 0
      %s68 = sadd.s32 %s67, 1
      %s69 = scalar_select %p66, %s67, %s68
      %p72 = pneg %p66
      %p73 = scmp.eq.s32.totalorder %s31, 1
      %p74 = por %p72, %p73
      %p75 = scmp.ne.s32.totalorder %s67, %s70
      %p76 = scmp.eq.s32.totalorder %s31, 0
      %p77 = por %p75, %p76
      %p78 = scmp.ne.s32.totalorder %s67, %s70
      %p79 = scmp.eq.s32.totalorder %s36, 1
      %p80 = por %p78, %p79
      %p81 = scmp.ne.s32.totalorder %s70, %s71
      %p82 = scmp.eq.s32.totalorder %s36, 0
      %p83 = por %p81, %p82
      %p84 = scmp.ne.s32.totalorder %s70, %s71
      %p85 = scmp.eq.s32.totalorder %s37, 1
      %p86 = por %p84, %p85
      %p88 = scmp.ne.s32.totalorder %s71, %s87
      %p89 = scmp.eq.s32.totalorder %s37, 0
      %p90 = por %p88, %p89
      %s91 = ssub.s32 %s31, %s38
      %p92 = scmp.eq.s32.totalorder %s91, 0
      %s94 = sadd.s32 %s93, 1
      %s95 = scalar_select %p92, %s93, %s94
      %p98 = pneg %p92
      %p99 = scmp.eq.s32.totalorder %s31, 1
      %p100 = por %p98, %p99
      %p101 = scmp.ne.s32.totalorder %s93, %s96
      %p102 = scmp.eq.s32.totalorder %s31, 0
      %p103 = por %p101, %p102
      %p104 = scmp.ne.s32.totalorder %s93, %s96
      %p105 = scmp.eq.s32.totalorder %s36, 1
      %p106 = por %p104, %p105
      %p107 = scmp.ne.s32.totalorder %s96, %s97
      %p108 = scmp.eq.s32.totalorder %s36, 0
      %p109 = por %p107, %p108
      %p110 = scmp.ne.s32.totalorder %s96, %s97
      %p111 = scmp.eq.s32.totalorder %s37, 1
      %p112 = por %p110, %p111
      %p114 = scmp.ne.s32.totalorder %s97, %s113
      %p115 = scmp.eq.s32.totalorder %s37, 0
      %p116 = por %p114, %p115
      %s117 = ssub.s32 %s31, %s38
      %p118 = scmp.eq.s32.totalorder %s117, 0
      %s120 = sadd.s32 %s119, 1
      %s121 = scalar_select %p118, %s119, %s120
      %p124 = pneg %p118
      %p125 = scmp.eq.s32.totalorder %s31, 1
      %p126 = por %p124, %p125
      %p127 = scmp.ne.s32.totalorder %s119, %s122
      %p128 = scmp.eq.s32.totalorder %s31, 0
      %p129 = por %p127, %p128
      %p130 = scmp.ne.s32.totalorder %s119, %s122
      %p131 = scmp.eq.s32.totalorder %s36, 1
      %p132 = por %p130, %p131
      %p133 = scmp.ne.s32.totalorder %s122, %s123
      %p134 = scmp.eq.s32.totalorder %s36, 0
      %p135 = por %p133, %p134
      %p136 = scmp.ne.s32.totalorder %s122, %s123
      %p137 = scmp.eq.s32.totalorder %s37, 1
      %p138 = por %p136, %p137
      %p140 = scmp.ne.s32.totalorder %s123, %s139
      %p141 = scmp.eq.s32.totalorder %s37, 0
      %p142 = por %p140, %p141
      %s144 = sadd.s32 %s143, 1
      %p147 = scmp.eq.s32.totalorder %s31, 1
      %p148 = scmp.ne.s32.totalorder %s143, %s145
      %p149 = scmp.eq.s32.totalorder %s31, 0
      %p150 = por %p148, %p149
      %p151 = scmp.ne.s32.totalorder %s143, %s145
      %p152 = scmp.eq.s32.totalorder %s36, 1
      %p153 = por %p151, %p152
      %p154 = scmp.ne.s32.totalorder %s145, %s146
      %p155 = scmp.eq.s32.totalorder %s36, 0
      %p156 = por %p154, %p155
      %p157 = scmp.ne.s32.totalorder %s145, %s146
      %p158 = scmp.eq.s32.totalorder %s37, 1
      %p159 = por %p157, %p158
      %p161 = scmp.ne.s32.totalorder %s146, %s160
      %p162 = scmp.eq.s32.totalorder %s37, 0
      %p163 = por %p161, %p162
      %s165 = sadd.s32 %s164, 1
      %p168 = scmp.eq.s32.totalorder %s31, 1
      %p169 = scmp.ne.s32.totalorder %s164, %s166
      %p170 = scmp.eq.s32.totalorder %s31, 0
      %p171 = por %p169, %p170
      %p172 = scmp.ne.s32.totalorder %s164, %s166
      %p173 = scmp.eq.s32.totalorder %s36, 1
      %p174 = por %p172, %p173
      %p175 = scmp.ne.s32.totalorder %s166, %s167
      %p176 = scmp.eq.s32.totalorder %s36, 0
      %p177 = por %p175, %p176
      %p178 = scmp.ne.s32.totalorder %s166, %s167
      %p179 = scmp.eq.s32.totalorder %s37, 1
      %p180 = por %p178, %p179
      %p182 = scmp.ne.s32.totalorder %s167, %s181
      %p183 = scmp.eq.s32.totalorder %s37, 0
      %p184 = por %p182, %p183
      %s186 = sadd.s32 %s185, 1
      %p189 = scmp.eq.s32.totalorder %s31, 1
      %p190 = scmp.ne.s32.totalorder %s185, %s187
      %p191 = scmp.eq.s32.totalorder %s31, 0
      %p192 = por %p190, %p191
      %p193 = scmp.ne.s32.totalorder %s185, %s187
      %p194 = scmp.eq.s32.totalorder %s36, 1
      %p195 = por %p193, %p194
      %p196 = scmp.ne.s32.totalorder %s187, %s188
      %p197 = scmp.eq.s32.totalorder %s36, 0
      %p198 = por %p196, %p197
      %p199 = scmp.ne.s32.totalorder %s187, %s188
      %p200 = scmp.eq.s32.totalorder %s37, 1
      %p201 = por %p199, %p200
      %p203 = scmp.ne.s32.totalorder %s188, %s202
      %p204 = scmp.eq.s32.totalorder %s37, 0
      %p205 = por %p203, %p204
      %s207 = sadd.s32 %s206, 1
      %p210 = scmp.eq.s32.totalorder %s31, 1
      %p211 = scmp.ne.s32.totalorder %s206, %s208
      %p212 = scmp.eq.s32.totalorder %s31, 0
      %p213 = por %p211, %p212
      %p214 = scmp.ne.s32.totalorder %s206, %s208
      %p215 = scmp.eq.s32.totalorder %s36, 1
      %p216 = por %p214, %p215
      %p217 = scmp.ne.s32.totalorder %s208, %s209
      %p218 = scmp.eq.s32.totalorder %s36, 0
      %p219 = por %p217, %p218
      %p220 = scmp.ne.s32.totalorder %s208, %s209
      %p221 = scmp.eq.s32.totalorder %s37, 1
      %p222 = por %p220, %p221
      %p224 = scmp.ne.s32.totalorder %s209, %s223
      %p225 = scmp.eq.s32.totalorder %s37, 0
      %p226 = por %p224, %p225
      %s228 = sadd.s32 %s227, 1
      %p231 = scmp.eq.s32.totalorder %s31, 1
      %p232 = scmp.ne.s32.totalorder %s227, %s229
      %p233 = scmp.eq.s32.totalorder %s31, 0
      %p234 = por %p232, %p233
      %p235 = scmp.ne.s32.totalorder %s227, %s229
      %p236 = scmp.eq.s32.totalorder %s36, 1
      %p237 = por %p235, %p236
      %p238 = scmp.ne.s32.totalorder %s229, %s230
      %p239 = scmp.eq.s32.totalorder %s36, 0
      %p240 = por %p238, %p239
      %p241 = scmp.ne.s32.totalorder %s229, %s230
      %p242 = scmp.eq.s32.totalorder %s37, 1
      %p243 = por %p241, %p242
      %p245 = scmp.ne.s32.totalorder %s230, %s244
      %p246 = scmp.eq.s32.totalorder %s37, 0
      %p247 = por %p245, %p246
      %s249 = sadd.s32 %s248, 1
      %p252 = scmp.eq.s32.totalorder %s31, 1
      %p253 = scmp.ne.s32.totalorder %s248, %s250
      %p254 = scmp.eq.s32.totalorder %s31, 0
      %p255 = por %p253, %p254
      %p256 = scmp.ne.s32.totalorder %s248, %s250
      %p257 = scmp.eq.s32.totalorder %s36, 1
      %p258 = por %p256, %p257
      %p259 = scmp.ne.s32.totalorder %s250, %s251
      %p260 = scmp.eq.s32.totalorder %s36, 0
      %p261 = por %p259, %p260
      %p262 = scmp.ne.s32.totalorder %s250, %s251
      %p263 = scmp.eq.s32.totalorder %s37, 1
      %p264 = por %p262, %p263
      %p266 = scmp.ne.s32.totalorder %s251, %s265
      %p267 = scmp.eq.s32.totalorder %s37, 0
      %p268 = por %p266, %p267
      %s270 = sadd.s32 %s269, 1
      %p273 = scmp.eq.s32.totalorder %s31, 1
      %p274 = scmp.ne.s32.totalorder %s269, %s271
      %p275 = scmp.eq.s32.totalorder %s31, 0
      %p276 = por %p274, %p275
      %p277 = scmp.ne.s32.totalorder %s269, %s271
      %p278 = scmp.eq.s32.totalorder %s36, 1
      %p279 = por %p277, %p278
      %p280 = scmp.ne.s32.totalorder %s271, %s272
      %p281 = scmp.eq.s32.totalorder %s36, 0
      %p282 = por %p280, %p281
      %p283 = scmp.ne.s32.totalorder %s271, %s272
      %p284 = scmp.eq.s32.totalorder %s37, 1
      %p285 = por %p283, %p284
      %p287 = scmp.ne.s32.totalorder %s272, %s286
      %p288 = scmp.eq.s32.totalorder %s37, 0
      %p289 = por %p287, %p288
      %s291 = sadd.s32 %s290, 1
      %p294 = scmp.eq.s32.totalorder %s31, 1
      %p295 = scmp.ne.s32.totalorder %s290, %s292
      %p296 = scmp.eq.s32.totalorder %s31, 0
      %p297 = por %p295, %p296
      %p298 = scmp.ne.s32.totalorder %s290, %s292
      %p299 = scmp.eq.s32.totalorder %s36, 1
      %p300 = por %p298, %p299
      %p301 = scmp.ne.s32.totalorder %s292, %s293
      %p302 = scmp.eq.s32.totalorder %s36, 0
      %p303 = por %p301, %p302
      %p304 = scmp.ne.s32.totalorder %s292, %s293
      %p305 = scmp.eq.s32.totalorder %s37, 1
      %p306 = por %p304, %p305
      %p308 = scmp.ne.s32.totalorder %s293, %s307
      %p309 = scmp.eq.s32.totalorder %s37, 0
      %p310 = por %p308, %p309
      %s312 = sadd.s32 %s311, 1
      %p315 = scmp.eq.s32.totalorder %s31, 1
      %p316 = scmp.ne.s32.totalorder %s311, %s313
      %p317 = scmp.eq.s32.totalorder %s31, 0
      %p318 = por %p316, %p317
      %p319 = scmp.ne.s32.totalorder %s311, %s313
      %p320 = scmp.eq.s32.totalorder %s36, 1
      %p321 = por %p319, %p320
      %p322 = scmp.ne.s32.totalorder %s313, %s314
      %p323 = scmp.eq.s32.totalorder %s36, 0
      %p324 = por %p322, %p323
      %p325 = scmp.ne.s32.totalorder %s313, %s314
      %p326 = scmp.eq.s32.totalorder %s37, 1
      %p327 = por %p325, %p326
      %p329 = scmp.ne.s32.totalorder %s314, %s328
      %p330 = scmp.eq.s32.totalorder %s37, 0
      %p331 = por %p329, %p330
      %s333 = sadd.s32 %s332, 1
      %p336 = scmp.eq.s32.totalorder %s31, 1
      %p337 = scmp.ne.s32.totalorder %s332, %s334
      %p338 = scmp.eq.s32.totalorder %s31, 0
      %p339 = por %p337, %p338
      %p340 = scmp.ne.s32.totalorder %s332, %s334
      %p341 = scmp.eq.s32.totalorder %s36, 1
      %p342 = por %p340, %p341
      %p343 = scmp.ne.s32.totalorder %s334, %s335
      %p344 = scmp.eq.s32.totalorder %s36, 0
      %p345 = por %p343, %p344
      %p346 = scmp.ne.s32.totalorder %s334, %s335
      %p347 = scmp.eq.s32.totalorder %s37, 1
      %p348 = por %p346, %p347
      %p350 = scmp.ne.s32.totalorder %s335, %s349
      %p351 = scmp.eq.s32.totalorder %s37, 0
      %p352 = por %p350, %p351
      %s354 = sadd.s32 %s353, 1
      %p357 = scmp.eq.s32.totalorder %s31, 1
      %p358 = scmp.ne.s32.totalorder %s353, %s355
      %p359 = scmp.eq.s32.totalorder %s31, 0
      %p360 = por %p358, %p359
      %p361 = scmp.ne.s32.totalorder %s353, %s355
      %p362 = scmp.eq.s32.totalorder %s36, 1
      %p363 = por %p361, %p362
      %p364 = scmp.ne.s32.totalorder %s355, %s356
      %p365 = scmp.eq.s32.totalorder %s36, 0
      %p366 = por %p364, %p365
      %p367 = scmp.ne.s32.totalorder %s355, %s356
      %p368 = scmp.eq.s32.totalorder %s37, 1
      %p369 = por %p367, %p368
      %p371 = scmp.ne.s32.totalorder %s356, %s370
      %p372 = scmp.eq.s32.totalorder %s37, 0
      %p373 = por %p371, %p372
      %s375 = sadd.s32 %s374, 1
      %p378 = scmp.eq.s32.totalorder %s31, 1
      %p379 = scmp.ne.s32.totalorder %s374, %s376
      %p380 = scmp.eq.s32.totalorder %s31, 0
      %p381 = por %p379, %p380
      %p382 = scmp.ne.s32.totalorder %s374, %s376
      %p383 = scmp.eq.s32.totalorder %s36, 1
      %p384 = por %p382, %p383
      %p385 = scmp.ne.s32.totalorder %s376, %s377
      %p386 = scmp.eq.s32.totalorder %s36, 0
      %p387 = por %p385, %p386
      %p388 = scmp.ne.s32.totalorder %s376, %s377
      %p389 = scmp.eq.s32.totalorder %s37, 1
      %p390 = por %p388, %p389
      %p392 = scmp.ne.s32.totalorder %s377, %s391
      %p393 = scmp.eq.s32.totalorder %s37, 0
      %p394 = por %p392, %p393
      %s396 = sadd.s32 %s395, 1
      %p399 = scmp.eq.s32.totalorder %s31, 1
      %p400 = scmp.ne.s32.totalorder %s395, %s397
      %p401 = scmp.eq.s32.totalorder %s31, 0
      %p402 = por %p400, %p401
      %p403 = scmp.ne.s32.totalorder %s395, %s397
      %p404 = scmp.eq.s32.totalorder %s36, 1
      %p405 = por %p403, %p404
      %p406 = scmp.ne.s32.totalorder %s397, %s398
      %p407 = scmp.eq.s32.totalorder %s36, 0
      %p408 = por %p406, %p407
      %p409 = scmp.ne.s32.totalorder %s397, %s398
      %p410 = scmp.eq.s32.totalorder %s37, 1
      %p411 = por %p409, %p410
      %p413 = scmp.ne.s32.totalorder %s398, %s412
      %p414 = scmp.eq.s32.totalorder %s37, 0
      %p415 = por %p413, %p414
      %s417 = sadd.s32 %s416, 1
      %p420 = scmp.eq.s32.totalorder %s31, 1
      %p421 = scmp.ne.s32.totalorder %s416, %s418
      %p422 = scmp.eq.s32.totalorder %s31, 0
      %p423 = por %p421, %p422
      %p424 = scmp.ne.s32.totalorder %s416, %s418
      %p425 = scmp.eq.s32.totalorder %s36, 1
      %p426 = por %p424, %p425
      %p427 = scmp.ne.s32.totalorder %s418, %s419
      %p428 = scmp.eq.s32.totalorder %s36, 0
      %p429 = por %p427, %p428
      %p430 = scmp.ne.s32.totalorder %s418, %s419
      %p431 = scmp.eq.s32.totalorder %s37, 1
      %p432 = por %p430, %p431
      %p434 = scmp.ne.s32.totalorder %s419, %s433
      %p435 = scmp.eq.s32.totalorder %s37, 0
      %p436 = por %p434, %p435
      %s438 = sadd.s32 %s437, 1
      %p441 = scmp.eq.s32.totalorder %s31, 1
      %p442 = scmp.ne.s32.totalorder %s437, %s439
      %p443 = scmp.eq.s32.totalorder %s31, 0
      %p444 = por %p442, %p443
      %p445 = scmp.ne.s32.totalorder %s437, %s439
      %p446 = scmp.eq.s32.totalorder %s36, 1
      %p447 = por %p445, %p446
      %p448 = scmp.ne.s32.totalorder %s439, %s440
      %p449 = scmp.eq.s32.totalorder %s36, 0
      %p450 = por %p448, %p449
      %p451 = scmp.ne.s32.totalorder %s439, %s440
      %p452 = scmp.eq.s32.totalorder %s37, 1
      %p453 = por %p451, %p452
      %p455 = scmp.ne.s32.totalorder %s440, %s454
      %p456 = scmp.eq.s32.totalorder %s37, 0
      %p457 = por %p455, %p456
      %s459 = sadd.s32 %s458, 1
      %p462 = scmp.eq.s32.totalorder %s31, 1
      %p463 = scmp.ne.s32.totalorder %s458, %s460
      %p464 = scmp.eq.s32.totalorder %s31, 0
      %p465 = por %p463, %p464
      %p466 = scmp.ne.s32.totalorder %s458, %s460
      %p467 = scmp.eq.s32.totalorder %s36, 1
      %p468 = por %p466, %p467
      %p469 = scmp.ne.s32.totalorder %s460, %s461
      %p470 = scmp.eq.s32.totalorder %s36, 0
      %p471 = por %p469, %p470
      %p472 = scmp.ne.s32.totalorder %s460, %s461
      %p473 = scmp.eq.s32.totalorder %s37, 1
      %p474 = por %p472, %p473
      %p476 = scmp.ne.s32.totalorder %s461, %s475
      %p477 = scmp.eq.s32.totalorder %s37, 0
      %p478 = por %p476, %p477
      %s480 = sadd.s32 %s479, 1
      %p483 = scmp.eq.s32.totalorder %s31, 1
      %p484 = scmp.ne.s32.totalorder %s479, %s481
      %p485 = scmp.eq.s32.totalorder %s31, 0
      %p486 = por %p484, %p485
      %p487 = scmp.ne.s32.totalorder %s479, %s481
      %p488 = scmp.eq.s32.totalorder %s36, 1
      %p489 = por %p487, %p488
      %p490 = scmp.ne.s32.totalorder %s481, %s482
      %p491 = scmp.eq.s32.totalorder %s36, 0
      %p492 = por %p490, %p491
      %p493 = scmp.ne.s32.totalorder %s481, %s482
      %p494 = scmp.eq.s32.totalorder %s37, 1
      %p495 = por %p493, %p494
      %p497 = scmp.ne.s32.totalorder %s482, %s496
      %p498 = scmp.eq.s32.totalorder %s37, 0
      %p499 = por %p497, %p498
      %s501 = sadd.s32 %s500, 1
      %p504 = scmp.eq.s32.totalorder %s31, 1
      %p505 = scmp.ne.s32.totalorder %s500, %s502
      %p506 = scmp.eq.s32.totalorder %s31, 0
      %p507 = por %p505, %p506
      %p508 = scmp.ne.s32.totalorder %s500, %s502
      %p509 = scmp.eq.s32.totalorder %s36, 1
      %p510 = por %p508, %p509
      %p511 = scmp.ne.s32.totalorder %s502, %s503
      %p512 = scmp.eq.s32.totalorder %s36, 0
      %p513 = por %p511, %p512
      %p514 = scmp.ne.s32.totalorder %s502, %s503
      %p515 = scmp.eq.s32.totalorder %s37, 1
      %p516 = por %p514, %p515
      %p518 = scmp.ne.s32.totalorder %s503, %s517
      %p519 = scmp.eq.s32.totalorder %s37, 0
      %p520 = por %p518, %p519
      %s522 = sadd.s32 %s521, 1
      %p525 = scmp.eq.s32.totalorder %s31, 1
      %p526 = scmp.ne.s32.totalorder %s521, %s523
      %p527 = scmp.eq.s32.totalorder %s31, 0
      %p528 = por %p526, %p527
      %p529 = scmp.ne.s32.totalorder %s521, %s523
      %p530 = scmp.eq.s32.totalorder %s36, 1
      %p531 = por %p529, %p530
      %p532 = scmp.ne.s32.totalorder %s523, %s524
      %p533 = scmp.eq.s32.totalorder %s36, 0
      %p534 = por %p532, %p533
      %p535 = scmp.ne.s32.totalorder %s523, %s524
      %p536 = scmp.eq.s32.totalorder %s37, 1
      %p537 = por %p535, %p536
      %p539 = scmp.ne.s32.totalorder %s524, %s538
      %p540 = scmp.eq.s32.totalorder %s37, 0
      %p541 = por %p539, %p540
      %s543 = sadd.s32 %s542, 1
      %p546 = scmp.eq.s32.totalorder %s31, 1
      %p547 = scmp.ne.s32.totalorder %s542, %s544
      %p548 = scmp.eq.s32.totalorder %s31, 0
      %p549 = por %p547, %p548
      %p550 = scmp.ne.s32.totalorder %s542, %s544
      %p551 = scmp.eq.s32.totalorder %s36, 1
      %p552 = por %p550, %p551
      %p553 = scmp.ne.s32.totalorder %s544, %s545
      %p554 = scmp.eq.s32.totalorder %s36, 0
      %p555 = por %p553, %p554
      %p556 = scmp.ne.s32.totalorder %s544, %s545
      %p557 = scmp.eq.s32.totalorder %s37, 1
      %p558 = por %p556, %p557
      %p560 = scmp.ne.s32.totalorder %s545, %s559
      %p561 = scmp.eq.s32.totalorder %s37, 0
      %p562 = por %p560, %p561
      %s563 = ssub.s32 %s31, %s38
      %p564 = scmp.eq.s32.totalorder %s563, 0
      %s566 = sadd.s32 %s565, 1
      %s567 = scalar_select %p564, %s565, %s566
      %p570 = pneg %p564
      %p571 = scmp.eq.s32.totalorder %s31, 1
      %p572 = por %p570, %p571
      %p573 = scmp.ne.s32.totalorder %s565, %s568
      %p574 = scmp.eq.s32.totalorder %s31, 0
      %p575 = por %p573, %p574
      %p576 = scmp.ne.s32.totalorder %s565, %s568
      %p577 = scmp.eq.s32.totalorder %s36, 1
      %p578 = por %p576, %p577
      %p579 = scmp.ne.s32.totalorder %s568, %s569
      %p580 = scmp.eq.s32.totalorder %s36, 0
      %p581 = por %p579, %p580
      %p582 = scmp.ne.s32.totalorder %s568, %s569
      %p583 = scmp.eq.s32.totalorder %s37, 1
      %p584 = por %p582, %p583
      %p586 = scmp.ne.s32.totalorder %s569, %s585
      %p587 = scmp.eq.s32.totalorder %s37, 0
      %p588 = por %p586, %p587
      %p589 = scmp.le.s32.totalorder 1, %s31
      %p590 = scmp.lt.s32.totalorder %s31, 3
      %p591 = pnand %p589, %p590
      %p592 = pneg %p591
      // Predicated region
      $region9: #{fwd.8} parent=5 // pred_check
        _
      $region10: #{fwd.8} parent=5 // pred_check_branch
        %594 = sbr.rel (%p591) target = $region12
      $region11: #{fwd.8} parent=5 // pred_region
        %s595 = ssub.s32 %s31, 1
        // Predicated region
        $region13: #{fwd.8} parent=11 // pred_check
          %p596 = pneg %p156
        $region14: #{fwd.8} parent=11 // pred_check_branch
          %598 = sbr.rel (%p596) target = $region16
        $region15: #{fwd.8} parent=11 // pred_region
          _
        $region16: #{fwd.8} parent=11 // pred_fallthru
          _
        // Predicated region
        $region17: #{fwd.8} parent=11 // pred_check
          %p599 = pneg %p177
        $region18: #{fwd.8} parent=11 // pred_check_branch
          %601 = sbr.rel (%p599) target = $region20
        $region19: #{fwd.8} parent=11 // pred_region
          _
        $region20: #{fwd.8} parent=11 // pred_fallthru
          _
        // Predicated region
        $region21: #{fwd.8} parent=11 // pred_check
          %p602 = pneg %p198
        $region22: #{fwd.8} parent=11 // pred_check_branch
          %604 = sbr.rel (%p602) target = $region24
        $region23: #{fwd.8} parent=11 // pred_region
          _
        $region24: #{fwd.8} parent=11 // pred_fallthru
          _
        // Predicated region
        $region25: #{fwd.8} parent=11 // pred_check
          %p605 = pneg %p219
        $region26: #{fwd.8} parent=11 // pred_check_branch
          %607 = sbr.rel (%p605) target = $region28
        $region27: #{fwd.8} parent=11 // pred_region
          _
        $region28: #{fwd.8} parent=11 // pred_fallthru
          _
        // Predicated region
        $region29: #{fwd.8} parent=11 // pred_check
          %p608 = pneg %p240
        $region30: #{fwd.8} parent=11 // pred_check_branch
          %610 = sbr.rel (%p608) target = $region32
        $region31: #{fwd.8} parent=11 // pred_region
          _
        $region32: #{fwd.8} parent=11 // pred_fallthru
          _
        // Predicated region
        $region33: #{fwd.8} parent=11 // pred_check
          %p611 = pneg %p261
        $region34: #{fwd.8} parent=11 // pred_check_branch
          %613 = sbr.rel (%p611) target = $region36
        $region35: #{fwd.8} parent=11 // pred_region
          _
        $region36: #{fwd.8} parent=11 // pred_fallthru
          _
        // Predicated region
        $region37: #{fwd.8} parent=11 // pred_check
          %p614 = pneg %p282
        $region38: #{fwd.8} parent=11 // pred_check_branch
          %616 = sbr.rel (%p614) target = $region40
        $region39: #{fwd.8} parent=11 // pred_region
          _
        $region40: #{fwd.8} parent=11 // pred_fallthru
          _
        // Predicated region
        $region41: #{fwd.8} parent=11 // pred_check
          %p617 = pneg %p303
        $region42: #{fwd.8} parent=11 // pred_check_branch
          %619 = sbr.rel (%p617) target = $region44
        $region43: #{fwd.8} parent=11 // pred_region
          _
        $region44: #{fwd.8} parent=11 // pred_fallthru
          _
        // Predicated region
        $region45: #{fwd.8} parent=11 // pred_check
          %p620 = pneg %p324
        $region46: #{fwd.8} parent=11 // pred_check_branch
          %622 = sbr.rel (%p620) target = $region48
        $region47: #{fwd.8} parent=11 // pred_region
          _
        $region48: #{fwd.8} parent=11 // pred_fallthru
          _
        // Predicated region
        $region49: #{fwd.8} parent=11 // pred_check
          %p623 = pneg %p345
        $region50: #{fwd.8} parent=11 // pred_check_branch
          %625 = sbr.rel (%p623) target = $region52
        $region51: #{fwd.8} parent=11 // pred_region
          _
        $region52: #{fwd.8} parent=11 // pred_fallthru
          _
        // Predicated region
        $region53: #{fwd.8} parent=11 // pred_check
          %p626 = pneg %p366
        $region54: #{fwd.8} parent=11 // pred_check_branch
          %628 = sbr.rel (%p626) target = $region56
        $region55: #{fwd.8} parent=11 // pred_region
          _
        $region56: #{fwd.8} parent=11 // pred_fallthru
          _
        // Predicated region
        $region57: #{fwd.8} parent=11 // pred_check
          %p629 = pneg %p387
        $region58: #{fwd.8} parent=11 // pred_check_branch
          %631 = sbr.rel (%p629) target = $region60
        $region59: #{fwd.8} parent=11 // pred_region
          _
        $region60: #{fwd.8} parent=11 // pred_fallthru
          _
        // Predicated region
        $region61: #{fwd.8} parent=11 // pred_check
          %p632 = pneg %p408
        $region62: #{fwd.8} parent=11 // pred_check_branch
          %634 = sbr.rel (%p632) target = $region64
        $region63: #{fwd.8} parent=11 // pred_region
          _
        $region64: #{fwd.8} parent=11 // pred_fallthru
          _
        // Predicated region
        $region65: #{fwd.8} parent=11 // pred_check
          %p635 = pneg %p429
        $region66: #{fwd.8} parent=11 // pred_check_branch
          %637 = sbr.rel (%p635) target = $region68
        $region67: #{fwd.8} parent=11 // pred_region
          _
        $region68: #{fwd.8} parent=11 // pred_fallthru
          _
        // Predicated region
        $region69: #{fwd.8} parent=11 // pred_check
          %p638 = pneg %p450
        $region70: #{fwd.8} parent=11 // pred_check_branch
          %640 = sbr.rel (%p638) target = $region72
        $region71: #{fwd.8} parent=11 // pred_region
          _
        $region72: #{fwd.8} parent=11 // pred_fallthru
          _
        // Predicated region
        $region73: #{fwd.8} parent=11 // pred_check
          %p641 = pneg %p471
        $region74: #{fwd.8} parent=11 // pred_check_branch
          %643 = sbr.rel (%p641) target = $region76
        $region75: #{fwd.8} parent=11 // pred_region
          _
        $region76: #{fwd.8} parent=11 // pred_fallthru
          _
        // Predicated region
        $region77: #{fwd.8} parent=11 // pred_check
          %p644 = pneg %p492
        $region78: #{fwd.8} parent=11 // pred_check_branch
          %646 = sbr.rel (%p644) target = $region80
        $region79: #{fwd.8} parent=11 // pred_region
          _
        $region80: #{fwd.8} parent=11 // pred_fallthru
          _
        // Predicated region
        $region81: #{fwd.8} parent=11 // pred_check
          %p647 = pneg %p513
        $region82: #{fwd.8} parent=11 // pred_check_branch
          %649 = sbr.rel (%p647) target = $region84
        $region83: #{fwd.8} parent=11 // pred_region
          _
        $region84: #{fwd.8} parent=11 // pred_fallthru
          _
        // Predicated region
        $region85: #{fwd.8} parent=11 // pred_check
          %p650 = pneg %p534
        $region86: #{fwd.8} parent=11 // pred_check_branch
          %652 = sbr.rel (%p650) target = $region88
        $region87: #{fwd.8} parent=11 // pred_region
          _
        $region88: #{fwd.8} parent=11 // pred_fallthru
          _
        // Predicated region
        $region89: #{fwd.8} parent=11 // pred_check
          %p653 = pneg %p555
        $region90: #{fwd.8} parent=11 // pred_check_branch
          %655 = sbr.rel (%p653) target = $region92
        $region91: #{fwd.8} parent=11 // pred_region
          %s657 = ssub.s32 16, 16
          %658 = vsyncadd [#allocation3], %s657
          %s660 = sshll.u32 [#allocation2], 4
          %s661 = int_to_ptr.vmem [resolvable:$true] %s660
          %663 = dma.hbm_to_vmem [thread:$0]  %s23, 16, %s661, [#allocation3]
        $region92: #{fwd.8} parent=11 // pred_fallthru
          _
      $region12: #{fwd.8} parent=5 // pred_fallthru
        _
      %p664 = scmp.lt.s32.totalorder %s31, 2
      // Predicated region
      $region93: #{fwd.8} parent=5 // pred_check
        %p665 = pneg %p664
      $region94: #{fwd.8} parent=5 // pred_check_branch
        %667 = sbr.rel (%p665) target = $region96
      $region95: #{fwd.8} parent=5 // pred_region
        // Predicated region
        $region97: #{fwd.8} parent=95 // pred_check
          %p668 = pneg %p51
        $region98: #{fwd.8} parent=95 // pred_check_branch
          %670 = sbr.rel (%p668) target = $region100
        $region99: #{fwd.8} parent=95 // pred_region
          %p671 = scmp.lt.s32.totalorder %s31, 1
          %s672 = scalar_select %p671, %s31, 1
          %s673 = smul.addr %s672, 4
          %s674 = scalar_lea.vmem %s0, %s673
        $region100: #{fwd.8} parent=95 // pred_fallthru
          _
        // Predicated region
        $region101: #{fwd.8} parent=95 // pred_check
          %p675 = pneg %p77
        $region102: #{fwd.8} parent=95 // pred_check_branch
          %677 = sbr.rel (%p675) target = $region104
        $region103: #{fwd.8} parent=95 // pred_region
          %p678 = scmp.lt.s32.totalorder %s31, 1
          %s679 = scalar_select %p678, %s31, 1
          %s680 = smul.addr %s679, 4
          %s681 = scalar_lea.vmem %s1, %s680
        $region104: #{fwd.8} parent=95 // pred_fallthru
          _
        // Predicated region
        $region105: #{fwd.8} parent=95 // pred_check
          %p682 = pneg %p103
        $region106: #{fwd.8} parent=95 // pred_check_branch
          %684 = sbr.rel (%p682) target = $region108
        $region107: #{fwd.8} parent=95 // pred_region
          %p685 = scmp.lt.s32.totalorder %s31, 1
          %s686 = scalar_select %p685, %s31, 1
          %s687 = scalar_lea.vmem %s2, %s686
        $region108: #{fwd.8} parent=95 // pred_fallthru
          _
        // Predicated region
        $region109: #{fwd.8} parent=95 // pred_check
          %p688 = pneg %p129
        $region110: #{fwd.8} parent=95 // pred_check_branch
          %690 = sbr.rel (%p688) target = $region112
        $region111: #{fwd.8} parent=95 // pred_region
          %p691 = scmp.lt.s32.totalorder %s31, 1
          %s692 = scalar_select %p691, %s31, 1
          %s693 = scalar_lea.vmem %s3, %s692
        $region112: #{fwd.8} parent=95 // pred_fallthru
          _
      $region96: #{fwd.8} parent=5 // pred_fallthru
        _
      %p694 = scmp.le.s32.totalorder 1, %s31
      %p695 = scmp.lt.s32.totalorder %s31, 3
      %p696 = pnand %p694, %p695
      %p697 = pneg %p696
      // Predicated region
      $region113: #{fwd.8} parent=5 // pred_check
        _
      $region114: #{fwd.8} parent=5 // pred_check_branch
        %699 = sbr.rel (%p696) target = $region116
      $region115: #{fwd.8} parent=5 // pred_region
        %s700 = ssub.s32 %s31, 1
        // Predicated region
        $region117: #{fwd.8} parent=115 // pred_check
          %p701 = pneg %p555
        $region118: #{fwd.8} parent=115 // pred_check_branch
          %703 = sbr.rel (%p701) target = $region120
        $region119: #{fwd.8} parent=115 // pred_region
          %704 = dma.done [#allocation3], 16
        $region120: #{fwd.8} parent=115 // pred_fallthru
          _
        %p705 = scmp.lt.s32.totalorder %s36, 1
        %s706 = scalar_select %p705, %s36, 1
        %s707 = smul.addr %s706, 4
        %s708 = scalar_lea.vmem %s0, %s707
        %p709 = pneg %p57
        %p710 = pneg %p54
        %p711 = scmp.lt.s32.totalorder %s36, 1
        %s712 = scalar_select %p711, %s36, 1
        %s713 = smul.addr %s712, 4
        %s714 = scalar_lea.vmem %s1, %s713
        %p715 = pneg %p83
        %p716 = pneg %p80
        %p717 = scmp.lt.s32.totalorder %s36, 1
        %s718 = scalar_select %p717, %s36, 1
        %s719 = scalar_lea.vmem %s2, %s718
        %p720 = pneg %p109
        %p721 = pneg %p106
        %p722 = scmp.lt.s32.totalorder %s36, 1
        %s723 = scalar_select %p722, %s36, 1
        %s724 = scalar_lea.vmem %s3, %s723
        %p725 = pneg %p135
        %p726 = pneg %p132
        %p727 = pneg %p156
        %p728 = pneg %p153
        %p729 = pneg %p177
        %p730 = pneg %p174
        %p731 = pneg %p198
        %p732 = pneg %p195
        %p733 = pneg %p219
        %p734 = pneg %p216
        %p735 = pneg %p240
        %p736 = pneg %p237
        %p737 = pneg %p261
        %p738 = pneg %p258
        %p739 = pneg %p282
        %p740 = pneg %p279
        %p741 = pneg %p303
        %p742 = pneg %p300
        %p743 = pneg %p324
        %p744 = pneg %p321
        %p745 = pneg %p345
        %p746 = pneg %p342
        %p747 = pneg %p366
        %p748 = pneg %p363
        %p749 = pneg %p387
        %p750 = pneg %p384
        %p751 = pneg %p408
        %p752 = pneg %p405
        %p753 = pneg %p429
        %p754 = pneg %p426
        %p755 = pneg %p450
        %p756 = pneg %p447
        %p757 = pneg %p471
        %p758 = pneg %p468
        %p759 = pneg %p492
        %p760 = pneg %p489
        %p761 = pneg %p513
        %p762 = pneg %p510
        %p763 = pneg %p534
        %p764 = pneg %p531
        %p765 = pneg %p555
        %p766 = pneg %p552
        %p767 = pneg %p581
        %p768 = pneg %p578
        %p769 = scmp.lt.s32.totalorder %s36, 1
        %s770 = scalar_select %p769, %s36, 1
        %s771 = smul.addr %s770, 4
        %s772 = scalar_lea.vmem %s24, %s771
        %p773 = scmp.lt.s32.totalorder %s36, 1
        %s774 = scalar_select %p773, %s36, 1
        %s775 = smul.addr %s774, 4
        %s776 = scalar_lea.vmem %s0, %s775
        %p777 = scmp.lt.s32.totalorder %s36, 1
        %s778 = scalar_select %p777, %s36, 1
        %s779 = smul.addr %s778, 4
        %s780 = scalar_lea.vmem %s1, %s779
        %p781 = scmp.lt.s32.totalorder %s36, 1
        %s782 = scalar_select %p781, %s36, 1
        %s783 = scalar_lea.vmem %s2, %s782
        %p784 = scmp.lt.s32.totalorder %s36, 1
        %s785 = scalar_select %p784, %s36, 1
        %s786 = scalar_lea.vmem %s3, %s785
        %p787 = scmp.lt.s32.totalorder %s36, 1
        %s788 = scalar_select %p787, %s36, 1
        %s789 = smul.addr %s788, 4
        %s790 = scalar_lea.vmem %s24, %s789
        %v792 = vld [vmem:[%s776] sm:$0xf]
        %v793 = vunpack.c.l.bf16 %v792
        %v794 = vld [vmem:[%s780] sm:$0xf]
        %v795 = vlaneseq
        %v796 = vshrl.u32 %v795, 7
        %v797 = vlaneseq
        %v798 = vand.u32 %v797, 127
        %v799 = vld [vmem:[%s783] sm:$0x1]
        %vm800 = vcmp.gt.f32.partialorder %v799, 0.5
        %vm801 = vcmp.gt.s32.totalorder %v798, %v796
        %v802 = vsel %vm800, 1, 0
        %v803 = vlaneseq
        %v804 = vshrl.u32 %v803, 7
        %v805 = vsub.s32 0, %v804
        %v806 = vrot.slane %v802, %v805
        %vm807 = vcmp.eq.s32.totalorder %v806, 1
        %vm808 = vmor %vm807, %vm801
        %v809 = vld [vmem:[%s786] sm:$0x1]
        %vm810 = vcmp.gt.f32.partialorder %v809, 0.5
        %v811 = vld [vmem:[%s4] sm:$0xf]
        %v812 = vld [vmem:[%s4 + $0x4] sm:$0xf]
        %v813 = vld [vmem:[%s4 + $0x8] sm:$0xf]
        %v814 = vld [vmem:[%s4 + $0xc] sm:$0xf]
        %v815 = vld [vmem:[%s5] sm:$0x1]
        %v817 = vlaneseq
        %v818 = vshrl.u32 %v817, 7
        %v819 = vsub.s32 0, %v818
        %v820 = vrot.slane %v815, %v819
        %v826 = vunpack.c.l.b16 %v811
        %v827 = vunpack.c.l.b16 %v812
        %v828 = vunpack.c.l.b16 %v813
        %v829 = vunpack.c.l.b16 %v814
        %v830 = vpack.c.b16 %v827, %v826
        %v831 = vpack.c.b16 %v829, %v828
        %vm834 = vcmask 261120
        %v836 = vsel %vm834, %v792, 0
        %838 = vmatprep.subr.bf16.mxu0 0
        %839 = vmatpush1.bf16.msra.mxu0 %v830
        %840 = vmatprep.subr.bf16.mxu0 0
        %841 = vmatpush1.bf16.msra.mxu0 %v831
        %842 = vmatprep.subr.bf16.mxu0 0
        %843 = vmatpush1.bf16.msra.mxu0 0
        %844 = vmatprep.subr.bf16.mxu0 0
        %845 = vmatpush1.bf16.msra.mxu0 0
        %846 = vmatprep.subr.bf16.mxu0 0
        %847 = vmatpush1.bf16.msra.mxu0 0
        %848 = vmatprep.subr.bf16.mxu0 0
        %849 = vmatpush1.bf16.msra.mxu0 0
        %850 = vmatprep.subr.bf16.mxu0 0
        %851 = vmatpush1.bf16.msra.mxu0 0
        %852 = vmatprep.subr.bf16.mxu0 0
        %853 = vmatpush1.bf16.msra.mxu0 0
        %854 = vmatprep.subr.bf16.mxu0 0
        %855 = vmatpush1.bf16.msra.mxu0 0
        %856 = vmatprep.subr.bf16.mxu0 0
        %857 = vmatpush1.bf16.msra.mxu0 0
        %858 = vmatprep.subr.bf16.mxu0 0
        %859 = vmatpush1.bf16.msra.mxu0 0
        %860 = vmatprep.subr.bf16.mxu0 0
        %861 = vmatpush1.bf16.msra.mxu0 0
        %862 = vmatprep.subr.bf16.mxu0 0
        %863 = vmatpush1.bf16.msra.mxu0 0
        %864 = vmatprep.subr.bf16.mxu0 0
        %865 = vmatpush1.bf16.msra.mxu0 0
        %866 = vmatprep.subr.bf16.mxu0 0
        %867 = vmatpush1.bf16.msra.mxu0 0
        %868 = vmatprep.subr.bf16.mxu0 0
        %869 = vmatpush1.bf16.msra.mxu0 0
        %870 = vmatprep.mubr.bf16.mxu0 0
        %871 = vmatmul.mubr.bf16.gmra.mrb[0].mxu0 %v836
        %v872 = vpop.f32.mrb[0].mxu0
        %v873 = vadd.f32 %v820, %v872
        %v874 = vpop.f32.mrb[0].mxu0
        %v875 = vpop.f32.mrb[0].mxu0
        %v876 = vpop.f32.mrb[0].mxu0
        %877 = vdwg.mxu0
        %v878 = vld [vmem:[%s7] sm:$0x1]
        %v880 = vlaneseq
        %v881 = vshrl.u32 %v880, 7
        %v882 = vsub.s32 0, %v881
        %v883 = vrot.slane %v878, %v882
        %v885 = vadd.f32 %v883, 0.0
        %v886 = vpack.c.bf16 %v873, %v873
        %888 = vrot.lane.b32.xlu0 %v886, 96
        %v889 = vpop.permute.xlu0 %888
        %vm890 = vcmask 64512
        %v892 = vsel %vm890, %v886, 0
        %v895 = vsel %vm890, %v889, 0
        %897 = vmatprep.subr.bf16.mxu0 0
        %898 = vmatpush1.bf16.xpose.msra.mxu0 %v895
        %899 = vmatprep.subr.bf16.mxu0 0
        %900 = vmatpush1.bf16.xpose.msra.mxu0 0
        %901 = vmatprep.subr.bf16.mxu0 0
        %902 = vmatpush1.bf16.xpose.msra.mxu0 0
        %903 = vmatprep.subr.bf16.mxu0 0
        %904 = vmatpush1.bf16.xpose.msra.mxu0 0
        %905 = vmatprep.subr.bf16.mxu0 0
        %906 = vmatpush1.bf16.xpose.msra.mxu0 0
        %907 = vmatprep.subr.bf16.mxu0 0
        %908 = vmatpush1.bf16.xpose.msra.mxu0 0
        %909 = vmatprep.subr.bf16.mxu0 0
        %910 = vmatpush1.bf16.xpose.msra.mxu0 0
        %911 = vmatprep.subr.bf16.mxu0 0
        %912 = vmatpush1.bf16.xpose.msra.mxu0 0
        %913 = vmatprep.subr.bf16.mxu0 0
        %914 = vmatpush1.bf16.xpose.msra.mxu0 0
        %915 = vmatprep.subr.bf16.mxu0 0
        %916 = vmatpush1.bf16.xpose.msra.mxu0 0
        %917 = vmatprep.subr.bf16.mxu0 0
        %918 = vmatpush1.bf16.xpose.msra.mxu0 0
        %919 = vmatprep.subr.bf16.mxu0 0
        %920 = vmatpush1.bf16.xpose.msra.mxu0 0
        %921 = vmatprep.subr.bf16.mxu0 0
        %922 = vmatpush1.bf16.xpose.msra.mxu0 0
        %923 = vmatprep.subr.bf16.mxu0 0
        %924 = vmatpush1.bf16.xpose.msra.mxu0 0
        %925 = vmatprep.subr.bf16.mxu0 0
        %926 = vmatpush1.bf16.xpose.msra.mxu0 0
        %927 = vmatprep.subr.bf16.mxu0 0
        %928 = vmatpush1.bf16.xpose.msra.mxu0 0
        %929 = vmatprep.mubr.bf16.mxu0 0
        %930 = vmatmul.mubr.bf16.gmra.mrb[0].mxu0 %v892
        %v931 = vpop.f32.mrb[0].mxu0
        %v932 = vadd.f32 0.0, %v931
        %v933 = vpop.f32.mrb[0].mxu0
        %v934 = vpop.f32.mrb[0].mxu0
        %v935 = vpop.f32.mrb[0].mxu0
        %936 = vdwg.mxu0
        %v937 = vmul.f32 %v932, 0.35355338
        %v938 = vsel %vm808, -1e+09, %v937
        %v939 = vsel %vm890, %v938, -inf
        %940 = vmax.xlane.f32.xlu0 %v939
        %v941 = vpop.xlane.xlu0 %940
        %v942 = vsub.f32 %v938, %v941
        %v943 = vmul.f32 %v942, 1.442695
        %v944 = vpow.pop %v943
        %v945 = vsel %vm890, %v944, 0.0
        %946 = vadd.xlane.f32.xlu0 %v945
        %v947 = vpop.xlane.xlu0 %946
        %v948 = vrcp.pop %v947
        %v949 = vmul.f32 %v944, %v948
        %v950 = vpack.c.bf16 %v949, %v949
        %951 = vrot.lane.b32.xlu0 %v886, 64
        %v952 = vpop.permute.xlu0 %951
        %v954 = vsel %vm890, %v950, 0
        %vm956 = vcmask 1043456
        %v958 = vsel %vm956, %v952, 0
        %960 = vmatprep.subr.bf16.mxu0 0
        %961 = vmatpush1.bf16.msra.mxu0 %v958
        %962 = vmatprep.subr.bf16.mxu0 0
        %963 = vmatpush1.bf16.msra.mxu0 0
        %964 = vmatprep.subr.bf16.mxu0 0
        %965 = vmatpush1.bf16.msra.mxu0 0
        %966 = vmatprep.subr.bf16.mxu0 0
        %967 = vmatpush1.bf16.msra.mxu0 0
        %968 = vmatprep.subr.bf16.mxu0 0
        %969 = vmatpush1.bf16.msra.mxu0 0
        %970 = vmatprep.subr.bf16.mxu0 0
        %971 = vmatpush1.bf16.msra.mxu0 0
        %972 = vmatprep.subr.bf16.mxu0 0
        %973 = vmatpush1.bf16.msra.mxu0 0
        %974 = vmatprep.subr.bf16.mxu0 0
        %975 = vmatpush1.bf16.msra.mxu0 0
        %976 = vmatprep.subr.bf16.mxu0 0
        %977 = vmatpush1.bf16.msra.mxu0 0
        %978 = vmatprep.subr.bf16.mxu0 0
        %979 = vmatpush1.bf16.msra.mxu0 0
        %980 = vmatprep.subr.bf16.mxu0 0
        %981 = vmatpush1.bf16.msra.mxu0 0
        %982 = vmatprep.subr.bf16.mxu0 0
        %983 = vmatpush1.bf16.msra.mxu0 0
        %984 = vmatprep.subr.bf16.mxu0 0
        %985 = vmatpush1.bf16.msra.mxu0 0
        %986 = vmatprep.subr.bf16.mxu0 0
        %987 = vmatpush1.bf16.msra.mxu0 0
        %988 = vmatprep.subr.bf16.mxu0 0
        %989 = vmatpush1.bf16.msra.mxu0 0
        %990 = vmatprep.subr.bf16.mxu0 0
        %991 = vmatpush1.bf16.msra.mxu0 0
        %992 = vmatprep.mubr.bf16.mxu0 0
        %993 = vmatmul.mubr.bf16.gmra.mrb[0].mxu0 %v954
        %v994 = vpop.f32.mrb[0].mxu0
        %v995 = vadd.f32 0.0, %v994
        %v996 = vpop.f32.mrb[0].mxu0
        %v997 = vpop.f32.mrb[0].mxu0
        %v998 = vpop.f32.mrb[0].mxu0
        %999 = vdwg.mxu0
        %v1000 = vpack.c.bf16 %v995, %v995
        %v1001 = vld [vmem:[%s6] sm:$0xf]
        %v1003 = vsel %vm890, %v1000, 0
        %v1006 = vsel %vm956, %v1001, 0
        %1008 = vmatprep.subr.bf16.mxu0 0
        %1009 = vmatpush1.bf16.msra.mxu0 %v1006
        %1010 = vmatprep.subr.bf16.mxu0 0
        %1011 = vmatpush1.bf16.msra.mxu0 0
        %1012 = vmatprep.subr.bf16.mxu0 0
        %1013 = vmatpush1.bf16.msra.mxu0 0
        %1014 = vmatprep.subr.bf16.mxu0 0
        %1015 = vmatpush1.bf16.msra.mxu0 0
        %1016 = vmatprep.subr.bf16.mxu0 0
        %1017 = vmatpush1.bf16.msra.mxu0 0
        %1018 = vmatprep.subr.bf16.mxu0 0
        %1019 = vmatpush1.bf16.msra.mxu0 0
        %1020 = vmatprep.subr.bf16.mxu0 0
        %1021 = vmatpush1.bf16.msra.mxu0 0
        %1022 = vmatprep.subr.bf16.mxu0 0
        %1023 = vmatpush1.bf16.msra.mxu0 0
        %1024 = vmatprep.subr.bf16.mxu0 0
        %1025 = vmatpush1.bf16.msra.mxu0 0
        %1026 = vmatprep.subr.bf16.mxu0 0
        %1027 = vmatpush1.bf16.msra.mxu0 0
        %1028 = vmatprep.subr.bf16.mxu0 0
        %1029 = vmatpush1.bf16.msra.mxu0 0
        %1030 = vmatprep.subr.bf16.mxu0 0
        %1031 = vmatpush1.bf16.msra.mxu0 0
        %1032 = vmatprep.subr.bf16.mxu0 0
        %1033 = vmatpush1.bf16.msra.mxu0 0
        %1034 = vmatprep.subr.bf16.mxu0 0
        %1035 = vmatpush1.bf16.msra.mxu0 0
        %1036 = vmatprep.subr.bf16.mxu0 0
        %1037 = vmatpush1.bf16.msra.mxu0 0
        %1038 = vmatprep.subr.bf16.mxu0 0
        %1039 = vmatpush1.bf16.msra.mxu0 0
        %1040 = vmatprep.mubr.bf16.mxu0 0
        %1041 = vmatmul.mubr.bf16.gmra.mrb[0].mxu0 %v1003
        %v1042 = vpop.f32.mrb[0].mxu0
        %v1043 = vadd.f32 0.0, %v1042
        %v1044 = vpop.f32.mrb[0].mxu0
        %v1045 = vpop.f32.mrb[0].mxu0
        %v1046 = vpop.f32.mrb[0].mxu0
        %1047 = vdwg.mxu0
        %v1048 = vadd.f32 %v885, %v1043
        %1049 = vrot.lane.b32.xlu0 %v886, 120
        %v1050 = vpop.permute.xlu0 %1049
        %1051 = vrot.lane.b32.xlu0 %v886, 88
        %v1052 = vpop.permute.xlu0 %1051
        %v1054 = vsel %vm890, %v1050, 0
        %v1057 = vsel %vm890, %v1052, 0
        %1059 = vmatprep.subr.bf16.mxu0 0
        %1060 = vmatpush1.bf16.xpose.msra.mxu0 %v1057
        %1061 = vmatprep.subr.bf16.mxu0 0
        %1062 = vmatpush1.bf16.xpose.msra.mxu0 0
        %1063 = vmatprep.subr.bf16.mxu0 0
        %1064 = vmatpush1.bf16.xpose.msra.mxu0 0
        %1065 = vmatprep.subr.bf16.mxu0 0
        %1066 = vmatpush1.bf16.xpose.msra.mxu0 0
        %1067 = vmatprep.subr.bf16.mxu0 0
        %1068 = vmatpush1.bf16.xpose.msra.mxu0 0
        %1069 = vmatprep.subr.bf16.mxu0 0
        %1070 = vmatpush1.bf16.xpose.msra.mxu0 0
        %1071 = vmatprep.subr.bf16.mxu0 0
        %1072 = vmatpush1.bf16.xpose.msra.mxu0 0
        %1073 = vmatprep.subr.bf16.mxu0 0
        %1074 = vmatpush1.bf16.xpose.msra.mxu0 0
        %1075 = vmatprep.subr.bf16.mxu0 0
        %1076 = vmatpush1.bf16.xpose.msra.mxu0 0
        %1077 = vmatprep.subr.bf16.mxu0 0
        %1078 = vmatpush1.bf16.xpose.msra.mxu0 0
        %1079 = vmatprep.subr.bf16.mxu0 0
        %1080 = vmatpush1.bf16.xpose.msra.mxu0 0
        %1081 = vmatprep.subr.bf16.mxu0 0
        %1082 = vmatpush1.bf16.xpose.msra.mxu0 0
        %1083 = vmatprep.subr.bf16.mxu0 0
        %1084 = vmatpush1.bf16.xpose.msra.mxu0 0
        %1085 = vmatprep.subr.bf16.mxu0 0
        %1086 = vmatpush1.bf16.xpose.msra.mxu0 0
        %1087 = vmatprep.subr.bf16.mxu0 0
        %1088 = vmatpush1.bf16.xpose.msra.mxu0 0
        %1089 = vmatprep.subr.bf16.mxu0 0
        %1090 = vmatpush1.bf16.xpose.msra.mxu0 0
        %1091 = vmatprep.mubr.bf16.mxu0 0
        %1092 = vmatmul.mubr.bf16.gmra.mrb[0].mxu0 %v1054
        %v1093 = vpop.f32.mrb[0].mxu0
        %v1094 = vadd.f32 0.0, %v1093
        %v1095 = vpop.f32.mrb[0].mxu0
        %v1096 = vpop.f32.mrb[0].mxu0
        %v1097 = vpop.f32.mrb[0].mxu0
        %1098 = vdwg.mxu0
        %v1099 = vmul.f32 %v1094, 0.35355338
        %v1100 = vsel %vm808, -1e+09, %v1099
        %v1101 = vsel %vm890, %v1100, -inf
        %1102 = vmax.xlane.f32.xlu0 %v1101
        %v1103 = vpop.xlane.xlu0 %1102
        %v1104 = vsub.f32 %v1100, %v1103
        %v1105 = vmul.f32 %v1104, 1.442695
        %v1106 = vpow.pop %v1105
        %v1107 = vsel %vm890, %v1106, 0.0
        %1108 = vadd.xlane.f32.xlu0 %v1107
        %v1109 = vpop.xlane.xlu0 %1108
        %v1110 = vrcp.pop %v1109
        %v1111 = vmul.f32 %v1106, %v1110
        %v1112 = vpack.c.bf16 %v1111, %v1111
        %1113 = vrot.lane.b32.xlu0 %v886, 56
        %v1114 = vpop.permute.xlu0 %1113
        %v1116 = vsel %vm890, %v1112, 0
        %v1119 = vsel %vm956, %v1114, 0
        %1121 = vmatprep.subr.bf16.mxu0 0
        %1122 = vmatpush1.bf16.msra.mxu0 %v1119
        %1123 = vmatprep.subr.bf16.mxu0 0
        %1124 = vmatpush1.bf16.msra.mxu0 0
        %1125 = vmatprep.subr.bf16.mxu0 0
        %1126 = vmatpush1.bf16.msra.mxu0 0
        %1127 = vmatprep.subr.bf16.mxu0 0
        %1128 = vmatpush1.bf16.msra.mxu0 0
        %1129 = vmatprep.subr.bf16.mxu0 0
        %1130 = vmatpush1.bf16.msra.mxu0 0
        %1131 = vmatprep.subr.bf16.mxu0 0
        %1132 = vmatpush1.bf16.msra.mxu0 0
        %1133 = vmatprep.subr.bf16.mxu0 0
        %1134 = vmatpush1.bf16.msra.mxu0 0
        %1135 = vmatprep.subr.bf16.mxu0 0
        %1136 = vmatpush1.bf16.msra.mxu0 0
        %1137 = vmatprep.subr.bf16.mxu0 0
        %1138 = vmatpush1.bf16.msra.mxu0 0
        %1139 = vmatprep.subr.bf16.mxu0 0
        %1140 = vmatpush1.bf16.msra.mxu0 0
        %1141 = vmatprep.subr.bf16.mxu0 0
        %1142 = vmatpush1.bf16.msra.mxu0 0
        %1143 = vmatprep.subr.bf16.mxu0 0
        %1144 = vmatpush1.bf16.msra.mxu0 0
        %1145 = vmatprep.subr.bf16.mxu0 0
        %1146 = vmatpush1.bf16.msra.mxu0 0
        %1147 = vmatprep.subr.bf16.mxu0 0
        %1148 = vmatpush1.bf16.msra.mxu0 0
        %1149 = vmatprep.subr.bf16.mxu0 0
        %1150 = vmatpush1.bf16.msra.mxu0 0
        %1151 = vmatprep.subr.bf16.mxu0 0
        %1152 = vmatpush1.bf16.msra.mxu0 0
        %1153 = vmatprep.mubr.bf16.mxu0 0
        %1154 = vmatmul.mubr.bf16.gmra.mrb[0].mxu0 %v1116
        %v1155 = vpop.f32.mrb[0].mxu0
        %v1156 = vadd.f32 0.0, %v1155
        %v1157 = vpop.f32.mrb[0].mxu0
        %v1158 = vpop.f32.mrb[0].mxu0
        %v1159 = vpop.f32.mrb[0].mxu0
        %1160 = vdwg.mxu0
        %v1161 = vpack.c.bf16 %v1156, %v1156
        %v1162 = vld [vmem:[%s6 + $0x4] sm:$0xf]
        %v1164 = vsel %vm890, %v1161, 0
        %v1167 = vsel %vm956, %v1162, 0
        %1169 = vmatprep.subr.bf16.mxu0 0
        %1170 = vmatpush1.bf16.msra.mxu0 %v1167
        %1171 = vmatprep.subr.bf16.mxu0 0
        %1172 = vmatpush1.bf16.msra.mxu0 0
        %1173 = vmatprep.subr.bf16.mxu0 0
        %1174 = vmatpush1.bf16.msra.mxu0 0
        %1175 = vmatprep.subr.bf16.mxu0 0
        %1176 = vmatpush1.bf16.msra.mxu0 0
        %1177 = vmatprep.subr.bf16.mxu0 0
        %1178 = vmatpush1.bf16.msra.mxu0 0
        %1179 = vmatprep.subr.bf16.mxu0 0
        %1180 = vmatpush1.bf16.msra.mxu0 0
        %1181 = vmatprep.subr.bf16.mxu0 0
        %1182 = vmatpush1.bf16.msra.mxu0 0
        %1183 = vmatprep.subr.bf16.mxu0 0
        %1184 = vmatpush1.bf16.msra.mxu0 0
        %1185 = vmatprep.subr.bf16.mxu0 0
        %1186 = vmatpush1.bf16.msra.mxu0 0
        %1187 = vmatprep.subr.bf16.mxu0 0
        %1188 = vmatpush1.bf16.msra.mxu0 0
        %1189 = vmatprep.subr.bf16.mxu0 0
        %1190 = vmatpush1.bf16.msra.mxu0 0
        %1191 = vmatprep.subr.bf16.mxu0 0
        %1192 = vmatpush1.bf16.msra.mxu0 0
        %1193 = vmatprep.subr.bf16.mxu0 0
        %1194 = vmatpush1.bf16.msra.mxu0 0
        %1195 = vmatprep.subr.bf16.mxu0 0
        %1196 = vmatpush1.bf16.msra.mxu0 0
        %1197 = vmatprep.subr.bf16.mxu0 0
        %1198 = vmatpush1.bf16.msra.mxu0 0
        %1199 = vmatprep.subr.bf16.mxu0 0
        %1200 = vmatpush1.bf16.msra.mxu0 0
        %1201 = vmatprep.mubr.bf16.mxu0 0
        %1202 = vmatmul.mubr.bf16.gmra.mrb[0].mxu0 %v1164
        %v1203 = vpop.f32.mrb[0].mxu0
        %v1204 = vadd.f32 0.0, %v1203
        %v1205 = vpop.f32.mrb[0].mxu0
        %v1206 = vpop.f32.mrb[0].mxu0
        %v1207 = vpop.f32.mrb[0].mxu0
        %1208 = vdwg.mxu0
        %v1209 = vadd.f32 %v1048, %v1204
        %1210 = vrot.lane.b32.xlu0 %v886, 112
        %v1211 = vpop.permute.xlu0 %1210
        %1212 = vrot.lane.b32.xlu0 %v886, 80
        %v1213 = vpop.permute.xlu0 %1212
        %v1215 = vsel %vm890, %v1211, 0
        %v1218 = vsel %vm890, %v1213, 0
        %1220 = vmatprep.subr.bf16.mxu0 0
        %1221 = vmatpush1.bf16.xpose.msra.mxu0 %v1218
        %1222 = vmatprep.subr.bf16.mxu0 0
        %1223 = vmatpush1.bf16.xpose.msra.mxu0 0
        %1224 = vmatprep.subr.bf16.mxu0 0
        %1225 = vmatpush1.bf16.xpose.msra.mxu0 0
        %1226 = vmatprep.subr.bf16.mxu0 0
        %1227 = vmatpush1.bf16.xpose.msra.mxu0 0
        %1228 = vmatprep.subr.bf16.mxu0 0
        %1229 = vmatpush1.bf16.xpose.msra.mxu0 0
        %1230 = vmatprep.subr.bf16.mxu0 0
        %1231 = vmatpush1.bf16.xpose.msra.mxu0 0
        %1232 = vmatprep.subr.bf16.mxu0 0
        %1233 = vmatpush1.bf16.xpose.msra.mxu0 0
        %1234 = vmatprep.subr.bf16.mxu0 0
        %1235 = vmatpush1.bf16.xpose.msra.mxu0 0
        %1236 = vmatprep.subr.bf16.mxu0 0
        %1237 = vmatpush1.bf16.xpose.msra.mxu0 0
        %1238 = vmatprep.subr.bf16.mxu0 0
        %1239 = vmatpush1.bf16.xpose.msra.mxu0 0
        %1240 = vmatprep.subr.bf16.mxu0 0
        %1241 = vmatpush1.bf16.xpose.msra.mxu0 0
        %1242 = vmatprep.subr.bf16.mxu0 0
        %1243 = vmatpush1.bf16.xpose.msra.mxu0 0
        %1244 = vmatprep.subr.bf16.mxu0 0
        %1245 = vmatpush1.bf16.xpose.msra.mxu0 0
        %1246 = vmatprep.subr.bf16.mxu0 0
        %1247 = vmatpush1.bf16.xpose.msra.mxu0 0
        %1248 = vmatprep.subr.bf16.mxu0 0
        %1249 = vmatpush1.bf16.xpose.msra.mxu0 0
        %1250 = vmatprep.subr.bf16.mxu0 0
        %1251 = vmatpush1.bf16.xpose.msra.mxu0 0
        %1252 = vmatprep.mubr.bf16.mxu0 0
        %1253 = vmatmul.mubr.bf16.gmra.mrb[0].mxu0 %v1215
        %v1254 = vpop.f32.mrb[0].mxu0
        %v1255 = vadd.f32 0.0, %v1254
        %v1256 = vpop.f32.mrb[0].mxu0
        %v1257 = vpop.f32.mrb[0].mxu0
        %v1258 = vpop.f32.mrb[0].mxu0
        %1259 = vdwg.mxu0
        %v1260 = vmul.f32 %v1255, 0.35355338
        %v1261 = vsel %vm808, -1e+09, %v1260
        %v1262 = vsel %vm890, %v1261, -inf
        %1263 = vmax.xlane.f32.xlu0 %v1262
        %v1264 = vpop.xlane.xlu0 %1263
        %v1265 = vsub.f32 %v1261, %v1264
        %v1266 = vmul.f32 %v1265, 1.442695
        %v1267 = vpow.pop %v1266
        %v1268 = vsel %vm890, %v1267, 0.0
        %1269 = vadd.xlane.f32.xlu0 %v1268
        %v1270 = vpop.xlane.xlu0 %1269
        %v1271 = vrcp.pop %v1270
        %v1272 = vmul.f32 %v1267, %v1271
        %v1273 = vpack.c.bf16 %v1272, %v1272
        %1274 = vrot.lane.b32.xlu0 %v886, 48
        %v1275 = vpop.permute.xlu0 %1274
        %v1277 = vsel %vm890, %v1273, 0
        %v1280 = vsel %vm956, %v1275, 0
        %1282 = vmatprep.subr.bf16.mxu0 0
        %1283 = vmatpush1.bf16.msra.mxu0 %v1280
        %1284 = vmatprep.subr.bf16.mxu0 0
        %1285 = vmatpush1.bf16.msra.mxu0 0
        %1286 = vmatprep.subr.bf16.mxu0 0
        %1287 = vmatpush1.bf16.msra.mxu0 0
        %1288 = vmatprep.subr.bf16.mxu0 0
        %1289 = vmatpush1.bf16.msra.mxu0 0
        %1290 = vmatprep.subr.bf16.mxu0 0
        %1291 = vmatpush1.bf16.msra.mxu0 0
        %1292 = vmatprep.subr.bf16.mxu0 0
        %1293 = vmatpush1.bf16.msra.mxu0 0
        %1294 = vmatprep.subr.bf16.mxu0 0
        %1295 = vmatpush1.bf16.msra.mxu0 0
        %1296 = vmatprep.subr.bf16.mxu0 0
        %1297 = vmatpush1.bf16.msra.mxu0 0
        %1298 = vmatprep.subr.bf16.mxu0 0
        %1299 = vmatpush1.bf16.msra.mxu0 0
        %1300 = vmatprep.subr.bf16.mxu0 0
        %1301 = vmatpush1.bf16.msra.mxu0 0
        %1302 = vmatprep.subr.bf16.mxu0 0
        %1303 = vmatpush1.bf16.msra.mxu0 0
        %1304 = vmatprep.subr.bf16.mxu0 0
        %1305 = vmatpush1.bf16.msra.mxu0 0
        %1306 = vmatprep.subr.bf16.mxu0 0
        %1307 = vmatpush1.bf16.msra.mxu0 0
        %1308 = vmatprep.subr.bf16.mxu0 0
        %1309 = vmatpush1.bf16.msra.mxu0 0
        %1310 = vmatprep.subr.bf16.mxu0 0
        %1311 = vmatpush1.bf16.msra.mxu0 0
        %1312 = vmatprep.subr.bf16.mxu0 0
        %1313 = vmatpush1.bf16.msra.mxu0 0
        %1314 = vmatprep.mubr.bf16.mxu0 0
        %1315 = vmatmul.mubr.bf16.gmra.mrb[0].mxu0 %v1277
        %v1316 = vpop.f32.mrb[0].mxu0
        %v1317 = vadd.f32 0.0, %v1316
        %v1318 = vpop.f32.mrb[0].mxu0
        %v1319 = vpop.f32.mrb[0].mxu0
        %v1320 = vpop.f32.mrb[0].mxu0
        %1321 = vdwg.mxu0
        %v1322 = vpack.c.bf16 %v1317, %v1317
        %v1323 = vld [vmem:[%s6 + $0x8] sm:$0xf]
        %v1325 = vsel %vm890, %v1322, 0
        %v1328 = vsel %vm956, %v1323, 0
        %1330 = vmatprep.subr.bf16.mxu0 0
        %1331 = vmatpush1.bf16.msra.mxu0 %v1328
        %1332 = vmatprep.subr.bf16.mxu0 0
        %1333 = vmatpush1.bf16.msra.mxu0 0
        %1334 = vmatprep.subr.bf16.mxu0 0
        %1335 = vmatpush1.bf16.msra.mxu0 0
        %1336 = vmatprep.subr.bf16.mxu0 0
        %1337 = vmatpush1.bf16.msra.mxu0 0
        %1338 = vmatprep.subr.bf16.mxu0 0
        %1339 = vmatpush1.bf16.msra.mxu0 0
        %1340 = vmatprep.subr.bf16.mxu0 0
        %1341 = vmatpush1.bf16.msra.mxu0 0
        %1342 = vmatprep.subr.bf16.mxu0 0
        %1343 = vmatpush1.bf16.msra.mxu0 0
        %1344 = vmatprep.subr.bf16.mxu0 0
        %1345 = vmatpush1.bf16.msra.mxu0 0
        %1346 = vmatprep.subr.bf16.mxu0 0
        %1347 = vmatpush1.bf16.msra.mxu0 0
        %1348 = vmatprep.subr.bf16.mxu0 0
        %1349 = vmatpush1.bf16.msra.mxu0 0
        %1350 = vmatprep.subr.bf16.mxu0 0
        %1351 = vmatpush1.bf16.msra.mxu0 0
        %1352 = vmatprep.subr.bf16.mxu0 0
        %1353 = vmatpush1.bf16.msra.mxu0 0
        %1354 = vmatprep.subr.bf16.mxu0 0
        %1355 = vmatpush1.bf16.msra.mxu0 0
        %1356 = vmatprep.subr.bf16.mxu0 0
        %1357 = vmatpush1.bf16.msra.mxu0 0
        %1358 = vmatprep.subr.bf16.mxu0 0
        %1359 = vmatpush1.bf16.msra.mxu0 0
        %1360 = vmatprep.subr.bf16.mxu0 0
        %1361 = vmatpush1.bf16.msra.mxu0 0
        %1362 = vmatprep.mubr.bf16.mxu0 0
        %1363 = vmatmul.mubr.bf16.gmra.mrb[0].mxu0 %v1325
        %v1364 = vpop.f32.mrb[0].mxu0
        %v1365 = vadd.f32 0.0, %v1364
        %v1366 = vpop.f32.mrb[0].mxu0
        %v1367 = vpop.f32.mrb[0].mxu0
        %v1368 = vpop.f32.mrb[0].mxu0
        %1369 = vdwg.mxu0
        %v1370 = vadd.f32 %v1209, %v1365
        %1371 = vrot.lane.b32.xlu0 %v886, 104
        %v1372 = vpop.permute.xlu0 %1371
        %1373 = vrot.lane.b32.xlu0 %v886, 72
        %v1374 = vpop.permute.xlu0 %1373
        %v1376 = vsel %vm890, %v1372, 0
        %v1379 = vsel %vm890, %v1374, 0
        %1381 = vmatprep.subr.bf16.mxu0 0
        %1382 = vmatpush1.bf16.xpose.msra.mxu0 %v1379
        %1383 = vmatprep.subr.bf16.mxu0 0
        %1384 = vmatpush1.bf16.xpose.msra.mxu0 0
        %1385 = vmatprep.subr.bf16.mxu0 0
        %1386 = vmatpush1.bf16.xpose.msra.mxu0 0
        %1387 = vmatprep.subr.bf16.mxu0 0
        %1388 = vmatpush1.bf16.xpose.msra.mxu0 0
        %1389 = vmatprep.subr.bf16.mxu0 0
        %1390 = vmatpush1.bf16.xpose.msra.mxu0 0
        %1391 = vmatprep.subr.bf16.mxu0 0
        %1392 = vmatpush1.bf16.xpose.msra.mxu0 0
        %1393 = vmatprep.subr.bf16.mxu0 0
        %1394 = vmatpush1.bf16.xpose.msra.mxu0 0
        %1395 = vmatprep.subr.bf16.mxu0 0
        %1396 = vmatpush1.bf16.xpose.msra.mxu0 0
        %1397 = vmatprep.subr.bf16.mxu0 0
        %1398 = vmatpush1.bf16.xpose.msra.mxu0 0
        %1399 = vmatprep.subr.bf16.mxu0 0
        %1400 = vmatpush1.bf16.xpose.msra.mxu0 0
        %1401 = vmatprep.subr.bf16.mxu0 0
        %1402 = vmatpush1.bf16.xpose.msra.mxu0 0
        %1403 = vmatprep.subr.bf16.mxu0 0
        %1404 = vmatpush1.bf16.xpose.msra.mxu0 0
        %1405 = vmatprep.subr.bf16.mxu0 0
        %1406 = vmatpush1.bf16.xpose.msra.mxu0 0
        %1407 = vmatprep.subr.bf16.mxu0 0
        %1408 = vmatpush1.bf16.xpose.msra.mxu0 0
        %1409 = vmatprep.subr.bf16.mxu0 0
        %1410 = vmatpush1.bf16.xpose.msra.mxu0 0
        %1411 = vmatprep.subr.bf16.mxu0 0
        %1412 = vmatpush1.bf16.xpose.msra.mxu0 0
        %1413 = vmatprep.mubr.bf16.mxu0 0
        %1414 = vmatmul.mubr.bf16.gmra.mrb[0].mxu0 %v1376
        %v1415 = vpop.f32.mrb[0].mxu0
        %v1416 = vadd.f32 0.0, %v1415
        %v1417 = vpop.f32.mrb[0].mxu0
        %v1418 = vpop.f32.mrb[0].mxu0
        %v1419 = vpop.f32.mrb[0].mxu0
        %1420 = vdwg.mxu0
        %v1421 = vmul.f32 %v1416, 0.35355338
        %v1422 = vsel %vm808, -1e+09, %v1421
        %v1423 = vsel %vm890, %v1422, -inf
        %1424 = vmax.xlane.f32.xlu0 %v1423
        %v1425 = vpop.xlane.xlu0 %1424
        %v1426 = vsub.f32 %v1422, %v1425
        %v1427 = vmul.f32 %v1426, 1.442695
        %v1428 = vpow.pop %v1427
        %v1429 = vsel %vm890, %v1428, 0.0
        %1430 = vadd.xlane.f32.xlu0 %v1429
        %v1431 = vpop.xlane.xlu0 %1430
        %v1432 = vrcp.pop %v1431
        %v1433 = vmul.f32 %v1428, %v1432
        %v1434 = vpack.c.bf16 %v1433, %v1433
        %1435 = vrot.lane.b32.xlu0 %v886, 40
        %v1436 = vpop.permute.xlu0 %1435
        %v1438 = vsel %vm890, %v1434, 0
        %v1441 = vsel %vm956, %v1436, 0
        %1443 = vmatprep.subr.bf16.mxu0 0
        %1444 = vmatpush1.bf16.msra.mxu0 %v1441
        %1445 = vmatprep.subr.bf16.mxu0 0
        %1446 = vmatpush1.bf16.msra.mxu0 0
        %1447 = vmatprep.subr.bf16.mxu0 0
        %1448 = vmatpush1.bf16.msra.mxu0 0
        %1449 = vmatprep.subr.bf16.mxu0 0
        %1450 = vmatpush1.bf16.msra.mxu0 0
        %1451 = vmatprep.subr.bf16.mxu0 0
        %1452 = vmatpush1.bf16.msra.mxu0 0
        %1453 = vmatprep.subr.bf16.mxu0 0
        %1454 = vmatpush1.bf16.msra.mxu0 0
        %1455 = vmatprep.subr.bf16.mxu0 0
        %1456 = vmatpush1.bf16.msra.mxu0 0
        %1457 = vmatprep.subr.bf16.mxu0 0
        %1458 = vmatpush1.bf16.msra.mxu0 0
        %1459 = vmatprep.subr.bf16.mxu0 0
        %1460 = vmatpush1.bf16.msra.mxu0 0
        %1461 = vmatprep.subr.bf16.mxu0 0
        %1462 = vmatpush1.bf16.msra.mxu0 0
        %1463 = vmatprep.subr.bf16.mxu0 0
        %1464 = vmatpush1.bf16.msra.mxu0 0
        %1465 = vmatprep.subr.bf16.mxu0 0
        %1466 = vmatpush1.bf16.msra.mxu0 0
        %1467 = vmatprep.subr.bf16.mxu0 0
        %1468 = vmatpush1.bf16.msra.mxu0 0
        %1469 = vmatprep.subr.bf16.mxu0 0
        %1470 = vmatpush1.bf16.msra.mxu0 0
        %1471 = vmatprep.subr.bf16.mxu0 0
        %1472 = vmatpush1.bf16.msra.mxu0 0
        %1473 = vmatprep.subr.bf16.mxu0 0
        %1474 = vmatpush1.bf16.msra.mxu0 0
        %1475 = vmatprep.mubr.bf16.mxu0 0
        %1476 = vmatmul.mubr.bf16.gmra.mrb[0].mxu0 %v1438
        %v1477 = vpop.f32.mrb[0].mxu0
        %v1478 = vadd.f32 0.0, %v1477
        %v1479 = vpop.f32.mrb[0].mxu0
        %v1480 = vpop.f32.mrb[0].mxu0
        %v1481 = vpop.f32.mrb[0].mxu0
        %1482 = vdwg.mxu0
        %v1483 = vpack.c.bf16 %v1478, %v1478
        %v1484 = vld [vmem:[%s6 + $0xc] sm:$0xf]
        %v1486 = vsel %vm890, %v1483, 0
        %v1489 = vsel %vm956, %v1484, 0
        %1491 = vmatprep.subr.bf16.mxu0 0
        %1492 = vmatpush1.bf16.msra.mxu0 %v1489
        %1493 = vmatprep.subr.bf16.mxu0 0
        %1494 = vmatpush1.bf16.msra.mxu0 0
        %1495 = vmatprep.subr.bf16.mxu0 0
        %1496 = vmatpush1.bf16.msra.mxu0 0
        %1497 = vmatprep.subr.bf16.mxu0 0
        %1498 = vmatpush1.bf16.msra.mxu0 0
        %1499 = vmatprep.subr.bf16.mxu0 0
        %1500 = vmatpush1.bf16.msra.mxu0 0
        %1501 = vmatprep.subr.bf16.mxu0 0
        %1502 = vmatpush1.bf16.msra.mxu0 0
        %1503 = vmatprep.subr.bf16.mxu0 0
        %1504 = vmatpush1.bf16.msra.mxu0 0
        %1505 = vmatprep.subr.bf16.mxu0 0
        %1506 = vmatpush1.bf16.msra.mxu0 0
        %1507 = vmatprep.subr.bf16.mxu0 0
        %1508 = vmatpush1.bf16.msra.mxu0 0
        %1509 = vmatprep.subr.bf16.mxu0 0
        %1510 = vmatpush1.bf16.msra.mxu0 0
        %1511 = vmatprep.subr.bf16.mxu0 0
        %1512 = vmatpush1.bf16.msra.mxu0 0
        %1513 = vmatprep.subr.bf16.mxu0 0
        %1514 = vmatpush1.bf16.msra.mxu0 0
        %1515 = vmatprep.subr.bf16.mxu0 0
        %1516 = vmatpush1.bf16.msra.mxu0 0
        %1517 = vmatprep.subr.bf16.mxu0 0
        %1518 = vmatpush1.bf16.msra.mxu0 0
        %1519 = vmatprep.subr.bf16.mxu0 0
        %1520 = vmatpush1.bf16.msra.mxu0 0
        %1521 = vmatprep.subr.bf16.mxu0 0
        %1522 = vmatpush1.bf16.msra.mxu0 0
        %1523 = vmatprep.mubr.bf16.mxu0 0
        %1524 = vmatmul.mubr.bf16.gmra.mrb[0].mxu0 %v1486
        %v1525 = vpop.f32.mrb[0].mxu0
        %v1526 = vadd.f32 0.0, %v1525
        %v1527 = vpop.f32.mrb[0].mxu0
        %v1528 = vpop.f32.mrb[0].mxu0
        %v1529 = vpop.f32.mrb[0].mxu0
        %1530 = vdwg.mxu0
        %v1531 = vadd.f32 %v1370, %v1526
        %v1532 = vadd.f32 %v1531, %v793
        %v1533 = vsel %vm834, %v1532, 0.0
        %1534 = vadd.xlane.f32.xlu0 %v1533
        %v1535 = vpop.xlane.xlu0 %1534
        %v1536 = vrcp.pop 32.0
        %v1537 = vmul.f32 %v1535, %v1536
        %v1538 = vsub.f32 %v1532, %v1537
        %v1539 = vmul.f32 %v1538, %v1538
        %v1540 = vsel %vm834, %v1539, 0.0
        %1541 = vadd.xlane.f32.xlu0 %v1540
        %v1542 = vpop.xlane.xlu0 %1541
        %v1543 = vrcp.pop 31.0
        %v1544 = vmul.f32 %v1542, %v1543
        %v1545 = vld [vmem:[%s8] sm:$0x1]
        %v1546 = vrsqrt.pop %v1544
        %v1547 = vmul.f32 %v1544, %v1546
        %vm1548 = vcmp.eq.f32.partialorder %v1544, inf
        %v1549 = vsel %vm1548, %v1544, %v1547
        %vm1550 = vcmp.eq.f32.partialorder %v1544, 0.0
        %v1551 = vand.u32 %v1544, 2147483648
        %v1552 = vsel %vm1550, %v1551, %v1549
        %v1553 = vadd.f32 %v1552, 1e-06
        %v1554 = vrcp.pop %v1553
        %v1555 = vmul.f32 %v1538, %v1554
        %v1557 = vlaneseq
        %v1558 = vshrl.u32 %v1557, 7
        %v1559 = vsub.s32 0, %v1558
        %v1560 = vrot.slane %v1545, %v1559
        %v1562 = vmul.f32 %v1560, %v1555
        %v1563 = vld [vmem:[%s9] sm:$0x1]
        %v1565 = vlaneseq
        %v1566 = vshrl.u32 %v1565, 7
        %v1567 = vsub.s32 0, %v1566
        %v1568 = vrot.slane %v1563, %v1567
        %v1570 = vadd.f32 %v1562, %v1568
        %v1571 = vpack.c.bf16 %v1570, %v1570
        %v1572 = vld [vmem:[%s10] sm:$0xf]
        %v1573 = vld [vmem:[%s10 + $0x4] sm:$0xf]
        %v1574 = vld [vmem:[%s10 + $0x8] sm:$0xf]
        %v1575 = vld [vmem:[%s10 + $0xc] sm:$0xf]
        %v1576 = vld [vmem:[%s11] sm:$0x1]
        %v1578 = vlaneseq
        %v1579 = vshrl.u32 %v1578, 7
        %v1580 = vsub.s32 0, %v1579
        %v1581 = vrot.slane %v1576, %v1580
        %v1587 = vunpack.c.l.b16 %v1572
        %v1588 = vunpack.c.l.b16 %v1573
        %v1589 = vunpack.c.l.b16 %v1574
        %v1590 = vunpack.c.l.b16 %v1575
        %v1591 = vpack.c.b16 %v1588, %v1587
        %v1592 = vpack.c.b16 %v1590, %v1589
        %v1596 = vsel %vm834, %v1571, 0
        %1598 = vmatprep.subr.bf16.mxu0 0
        %1599 = vmatpush1.bf16.msra.mxu0 %v1591
        %1600 = vmatprep.subr.bf16.mxu0 0
        %1601 = vmatpush1.bf16.msra.mxu0 %v1592
        %1602 = vmatprep.subr.bf16.mxu0 0
        %1603 = vmatpush1.bf16.msra.mxu0 0
        %1604 = vmatprep.subr.bf16.mxu0 0
        %1605 = vmatpush1.bf16.msra.mxu0 0
        %1606 = vmatprep.subr.bf16.mxu0 0
        %1607 = vmatpush1.bf16.msra.mxu0 0
        %1608 = vmatprep.subr.bf16.mxu0 0
        %1609 = vmatpush1.bf16.msra.mxu0 0
        %1610 = vmatprep.subr.bf16.mxu0 0
        %1611 = vmatpush1.bf16.msra.mxu0 0
        %1612 = vmatprep.subr.bf16.mxu0 0
        %1613 = vmatpush1.bf16.msra.mxu0 0
        %1614 = vmatprep.subr.bf16.mxu0 0
        %1615 = vmatpush1.bf16.msra.mxu0 0
        %1616 = vmatprep.subr.bf16.mxu0 0
        %1617 = vmatpush1.bf16.msra.mxu0 0
        %1618 = vmatprep.subr.bf16.mxu0 0
        %1619 = vmatpush1.bf16.msra.mxu0 0
        %1620 = vmatprep.subr.bf16.mxu0 0
        %1621 = vmatpush1.bf16.msra.mxu0 0
        %1622 = vmatprep.subr.bf16.mxu0 0
        %1623 = vmatpush1.bf16.msra.mxu0 0
        %1624 = vmatprep.subr.bf16.mxu0 0
        %1625 = vmatpush1.bf16.msra.mxu0 0
        %1626 = vmatprep.subr.bf16.mxu0 0
        %1627 = vmatpush1.bf16.msra.mxu0 0
        %1628 = vmatprep.subr.bf16.mxu0 0
        %1629 = vmatpush1.bf16.msra.mxu0 0
        %1630 = vmatprep.mubr.bf16.mxu0 0
        %1631 = vmatmul.mubr.bf16.gmra.mrb[0].mxu0 %v1596
        %v1632 = vpop.f32.mrb[0].mxu0
        %v1633 = vadd.f32 %v1581, %v1632
        %v1634 = vpop.f32.mrb[0].mxu0
        %v1635 = vpop.f32.mrb[0].mxu0
        %v1636 = vpop.f32.mrb[0].mxu0
        %1637 = vdwg.mxu0
        %v1638 = vld [vmem:[%s12] sm:$0xf]
        %v1639 = vld [vmem:[%s12 + $0x4] sm:$0xf]
        %v1640 = vld [vmem:[%s12 + $0x8] sm:$0xf]
        %v1641 = vld [vmem:[%s12 + $0xc] sm:$0xf]
        %v1642 = vld [vmem:[%s13] sm:$0x1]
        %v1644 = vlaneseq
        %v1645 = vshrl.u32 %v1644, 7
        %v1646 = vsub.s32 0, %v1645
        %v1647 = vrot.slane %v1642, %v1646
        %v1653 = vunpack.c.l.b16 %v1638
        %v1654 = vunpack.c.l.b16 %v1639
        %v1655 = vunpack.c.l.b16 %v1640
        %v1656 = vunpack.c.l.b16 %v1641
        %v1657 = vpack.c.b16 %v1654, %v1653
        %v1658 = vpack.c.b16 %v1656, %v1655
        %v1662 = vsel %vm834, %v794, 0
        %1664 = vmatprep.subr.bf16.mxu0 0
        %1665 = vmatpush1.bf16.msra.mxu0 %v1657
        %1666 = vmatprep.subr.bf16.mxu0 0
        %1667 = vmatpush1.bf16.msra.mxu0 %v1658
        %1668 = vmatprep.subr.bf16.mxu0 0
        %1669 = vmatpush1.bf16.msra.mxu0 0
        %1670 = vmatprep.subr.bf16.mxu0 0
        %1671 = vmatpush1.bf16.msra.mxu0 0
        %1672 = vmatprep.subr.bf16.mxu0 0
        %1673 = vmatpush1.bf16.msra.mxu0 0
        %1674 = vmatprep.subr.bf16.mxu0 0
        %1675 = vmatpush1.bf16.msra.mxu0 0
        %1676 = vmatprep.subr.bf16.mxu0 0
        %1677 = vmatpush1.bf16.msra.mxu0 0
        %1678 = vmatprep.subr.bf16.mxu0 0
        %1679 = vmatpush1.bf16.msra.mxu0 0
        %1680 = vmatprep.subr.bf16.mxu0 0
        %1681 = vmatpush1.bf16.msra.mxu0 0
        %1682 = vmatprep.subr.bf16.mxu0 0
        %1683 = vmatpush1.bf16.msra.mxu0 0
        %1684 = vmatprep.subr.bf16.mxu0 0
        %1685 = vmatpush1.bf16.msra.mxu0 0
        %1686 = vmatprep.subr.bf16.mxu0 0
        %1687 = vmatpush1.bf16.msra.mxu0 0
        %1688 = vmatprep.subr.bf16.mxu0 0
        %1689 = vmatpush1.bf16.msra.mxu0 0
        %1690 = vmatprep.subr.bf16.mxu0 0
        %1691 = vmatpush1.bf16.msra.mxu0 0
        %1692 = vmatprep.subr.bf16.mxu0 0
        %1693 = vmatpush1.bf16.msra.mxu0 0
        %1694 = vmatprep.subr.bf16.mxu0 0
        %1695 = vmatpush1.bf16.msra.mxu0 0
        %1696 = vmatprep.mubr.bf16.mxu0 0
        %1697 = vmatmul.mubr.bf16.gmra.mrb[0].mxu0 %v1662
        %v1698 = vpop.f32.mrb[0].mxu0
        %v1699 = vadd.f32 %v1647, %v1698
        %v1700 = vpop.f32.mrb[0].mxu0
        %v1701 = vpop.f32.mrb[0].mxu0
        %v1702 = vpop.f32.mrb[0].mxu0
        %1703 = vdwg.mxu0
        %v1704 = vld [vmem:[%s15] sm:$0x1]
        %v1706 = vlaneseq
        %v1707 = vshrl.u32 %v1706, 7
        %v1708 = vsub.s32 0, %v1707
        %v1709 = vrot.slane %v1704, %v1708
        %v1711 = vadd.f32 %v1709, 0.0
        %v1712 = vpack.c.bf16 %v1633, %v1633
        %v1713 = vpack.c.bf16 %v1699, %v1699
        %v1715 = vsel %vm890, %v1712, 0
        %v1718 = vsel %vm890, %v1713, 0
        %1720 = vmatprep.subr.bf16.mxu0 0
        %1721 = vmatpush1.bf16.xpose.msra.mxu0 %v1718
        %1722 = vmatprep.subr.bf16.mxu0 0
        %1723 = vmatpush1.bf16.xpose.msra.mxu0 0
        %1724 = vmatprep.subr.bf16.mxu0 0
        %1725 = vmatpush1.bf16.xpose.msra.mxu0 0
        %1726 = vmatprep.subr.bf16.mxu0 0
        %1727 = vmatpush1.bf16.xpose.msra.mxu0 0
        %1728 = vmatprep.subr.bf16.mxu0 0
        %1729 = vmatpush1.bf16.xpose.msra.mxu0 0
        %1730 = vmatprep.subr.bf16.mxu0 0
        %1731 = vmatpush1.bf16.xpose.msra.mxu0 0
        %1732 = vmatprep.subr.bf16.mxu0 0
        %1733 = vmatpush1.bf16.xpose.msra.mxu0 0
        %1734 = vmatprep.subr.bf16.mxu0 0
        %1735 = vmatpush1.bf16.xpose.msra.mxu0 0
        %1736 = vmatprep.subr.bf16.mxu0 0
        %1737 = vmatpush1.bf16.xpose.msra.mxu0 0
        %1738 = vmatprep.subr.bf16.mxu0 0
        %1739 = vmatpush1.bf16.xpose.msra.mxu0 0
        %1740 = vmatprep.subr.bf16.mxu0 0
        %1741 = vmatpush1.bf16.xpose.msra.mxu0 0
        %1742 = vmatprep.subr.bf16.mxu0 0
        %1743 = vmatpush1.bf16.xpose.msra.mxu0 0
        %1744 = vmatprep.subr.bf16.mxu0 0
        %1745 = vmatpush1.bf16.xpose.msra.mxu0 0
        %1746 = vmatprep.subr.bf16.mxu0 0
        %1747 = vmatpush1.bf16.xpose.msra.mxu0 0
        %1748 = vmatprep.subr.bf16.mxu0 0
        %1749 = vmatpush1.bf16.xpose.msra.mxu0 0
        %1750 = vmatprep.subr.bf16.mxu0 0
        %1751 = vmatpush1.bf16.xpose.msra.mxu0 0
        %1752 = vmatprep.mubr.bf16.mxu0 0
        %1753 = vmatmul.mubr.bf16.gmra.mrb[0].mxu0 %v1715
        %v1754 = vpop.f32.mrb[0].mxu0
        %v1755 = vadd.f32 0.0, %v1754
        %v1756 = vpop.f32.mrb[0].mxu0
        %v1757 = vpop.f32.mrb[0].mxu0
        %v1758 = vpop.f32.mrb[0].mxu0
        %1759 = vdwg.mxu0
        %v1760 = vmul.f32 %v1755, 0.35355338
        %v1761 = vsel %vm810, 1, 0
        %v1762 = vlaneseq
        %v1763 = vshrl.u32 %v1762, 7
        %v1764 = vsub.s32 0, %v1763
        %v1765 = vrot.slane %v1761, %v1764
        %vm1766 = vcmp.eq.s32.totalorder %v1765, 1
        %v1767 = vsel %vm1766, -1e+09, %v1760
        %v1768 = vsel %vm890, %v1767, -inf
        %1769 = vmax.xlane.f32.xlu0 %v1768
        %v1770 = vpop.xlane.xlu0 %1769
        %v1771 = vsub.f32 %v1767, %v1770
        %v1772 = vmul.f32 %v1771, 1.442695
        %v1773 = vpow.pop %v1772
        %v1774 = vsel %vm890, %v1773, 0.0
        %1775 = vadd.xlane.f32.xlu0 %v1774
        %v1776 = vpop.xlane.xlu0 %1775
        %v1777 = vrcp.pop %v1776
        %v1778 = vmul.f32 %v1773, %v1777
        %v1779 = vpack.c.bf16 %v1778, %v1778
        %1781 = vrot.lane.b32.xlu0 %v1713, 96
        %v1782 = vpop.permute.xlu0 %1781
        %v1784 = vsel %vm890, %v1779, 0
        %v1787 = vsel %vm956, %v1782, 0
        %1789 = vmatprep.subr.bf16.mxu0 0
        %1790 = vmatpush1.bf16.msra.mxu0 %v1787
        %1791 = vmatprep.subr.bf16.mxu0 0
        %1792 = vmatpush1.bf16.msra.mxu0 0
        %1793 = vmatprep.subr.bf16.mxu0 0
        %1794 = vmatpush1.bf16.msra.mxu0 0
        %1795 = vmatprep.subr.bf16.mxu0 0
        %1796 = vmatpush1.bf16.msra.mxu0 0
        %1797 = vmatprep.subr.bf16.mxu0 0
        %1798 = vmatpush1.bf16.msra.mxu0 0
        %1799 = vmatprep.subr.bf16.mxu0 0
        %1800 = vmatpush1.bf16.msra.mxu0 0
        %1801 = vmatprep.subr.bf16.mxu0 0
        %1802 = vmatpush1.bf16.msra.mxu0 0
        %1803 = vmatprep.subr.bf16.mxu0 0
        %1804 = vmatpush1.bf16.msra.mxu0 0
        %1805 = vmatprep.subr.bf16.mxu0 0
        %1806 = vmatpush1.bf16.msra.mxu0 0
        %1807 = vmatprep.subr.bf16.mxu0 0
        %1808 = vmatpush1.bf16.msra.mxu0 0
        %1809 = vmatprep.subr.bf16.mxu0 0
        %1810 = vmatpush1.bf16.msra.mxu0 0
        %1811 = vmatprep.subr.bf16.mxu0 0
        %1812 = vmatpush1.bf16.msra.mxu0 0
        %1813 = vmatprep.subr.bf16.mxu0 0
        %1814 = vmatpush1.bf16.msra.mxu0 0
        %1815 = vmatprep.subr.bf16.mxu0 0
        %1816 = vmatpush1.bf16.msra.mxu0 0
        %1817 = vmatprep.subr.bf16.mxu0 0
        %1818 = vmatpush1.bf16.msra.mxu0 0
        %1819 = vmatprep.subr.bf16.mxu0 0
        %1820 = vmatpush1.bf16.msra.mxu0 0
        %1821 = vmatprep.mubr.bf16.mxu0 0
        %1822 = vmatmul.mubr.bf16.gmra.mrb[0].mxu0 %v1784
        %v1823 = vpop.f32.mrb[0].mxu0
        %v1824 = vadd.f32 0.0, %v1823
        %v1825 = vpop.f32.mrb[0].mxu0
        %v1826 = vpop.f32.mrb[0].mxu0
        %v1827 = vpop.f32.mrb[0].mxu0
        %1828 = vdwg.mxu0
        %v1829 = vpack.c.bf16 %v1824, %v1824
        %v1830 = vld [vmem:[%s14] sm:$0xf]
        %v1832 = vsel %vm890, %v1829, 0
        %v1835 = vsel %vm956, %v1830, 0
        %1837 = vmatprep.subr.bf16.mxu0 0
        %1838 = vmatpush1.bf16.msra.mxu0 %v1835
        %1839 = vmatprep.subr.bf16.mxu0 0
        %1840 = vmatpush1.bf16.msra.mxu0 0
        %1841 = vmatprep.subr.bf16.mxu0 0
        %1842 = vmatpush1.bf16.msra.mxu0 0
        %1843 = vmatprep.subr.bf16.mxu0 0
        %1844 = vmatpush1.bf16.msra.mxu0 0
        %1845 = vmatprep.subr.bf16.mxu0 0
        %1846 = vmatpush1.bf16.msra.mxu0 0
        %1847 = vmatprep.subr.bf16.mxu0 0
        %1848 = vmatpush1.bf16.msra.mxu0 0
        %1849 = vmatprep.subr.bf16.mxu0 0
        %1850 = vmatpush1.bf16.msra.mxu0 0
        %1851 = vmatprep.subr.bf16.mxu0 0
        %1852 = vmatpush1.bf16.msra.mxu0 0
        %1853 = vmatprep.subr.bf16.mxu0 0
        %1854 = vmatpush1.bf16.msra.mxu0 0
        %1855 = vmatprep.subr.bf16.mxu0 0
        %1856 = vmatpush1.bf16.msra.mxu0 0
        %1857 = vmatprep.subr.bf16.mxu0 0
        %1858 = vmatpush1.bf16.msra.mxu0 0
        %1859 = vmatprep.subr.bf16.mxu0 0
        %1860 = vmatpush1.bf16.msra.mxu0 0
        %1861 = vmatprep.subr.bf16.mxu0 0
        %1862 = vmatpush1.bf16.msra.mxu0 0
        %1863 = vmatprep.subr.bf16.mxu0 0
        %1864 = vmatpush1.bf16.msra.mxu0 0
        %1865 = vmatprep.subr.bf16.mxu0 0
        %1866 = vmatpush1.bf16.msra.mxu0 0
        %1867 = vmatprep.subr.bf16.mxu0 0
        %1868 = vmatpush1.bf16.msra.mxu0 0
        %1869 = vmatprep.mubr.bf16.mxu0 0
        %1870 = vmatmul.mubr.bf16.gmra.mrb[0].mxu0 %v1832
        %v1871 = vpop.f32.mrb[0].mxu0
        %v1872 = vadd.f32 0.0, %v1871
        %v1873 = vpop.f32.mrb[0].mxu0
        %v1874 = vpop.f32.mrb[0].mxu0
        %v1875 = vpop.f32.mrb[0].mxu0
        %1876 = vdwg.mxu0
        %v1877 = vadd.f32 %v1711, %v1872
        %1879 = vrot.lane.b32.xlu0 %v1712, 120
        %v1880 = vpop.permute.xlu0 %1879
        %1881 = vrot.lane.b32.xlu0 %v1713, 120
        %v1882 = vpop.permute.xlu0 %1881
        %v1884 = vsel %vm890, %v1880, 0
        %v1887 = vsel %vm890, %v1882, 0
        %1889 = vmatprep.subr.bf16.mxu0 0
        %1890 = vmatpush1.bf16.xpose.msra.mxu0 %v1887
        %1891 = vmatprep.subr.bf16.mxu0 0
        %1892 = vmatpush1.bf16.xpose.msra.mxu0 0
        %1893 = vmatprep.subr.bf16.mxu0 0
        %1894 = vmatpush1.bf16.xpose.msra.mxu0 0
        %1895 = vmatprep.subr.bf16.mxu0 0
        %1896 = vmatpush1.bf16.xpose.msra.mxu0 0
        %1897 = vmatprep.subr.bf16.mxu0 0
        %1898 = vmatpush1.bf16.xpose.msra.mxu0 0
        %1899 = vmatprep.subr.bf16.mxu0 0
        %1900 = vmatpush1.bf16.xpose.msra.mxu0 0
        %1901 = vmatprep.subr.bf16.mxu0 0
        %1902 = vmatpush1.bf16.xpose.msra.mxu0 0
        %1903 = vmatprep.subr.bf16.mxu0 0
        %1904 = vmatpush1.bf16.xpose.msra.mxu0 0
        %1905 = vmatprep.subr.bf16.mxu0 0
        %1906 = vmatpush1.bf16.xpose.msra.mxu0 0
        %1907 = vmatprep.subr.bf16.mxu0 0
        %1908 = vmatpush1.bf16.xpose.msra.mxu0 0
        %1909 = vmatprep.subr.bf16.mxu0 0
        %1910 = vmatpush1.bf16.xpose.msra.mxu0 0
        %1911 = vmatprep.subr.bf16.mxu0 0
        %1912 = vmatpush1.bf16.xpose.msra.mxu0 0
        %1913 = vmatprep.subr.bf16.mxu0 0
        %1914 = vmatpush1.bf16.xpose.msra.mxu0 0
        %1915 = vmatprep.subr.bf16.mxu0 0
        %1916 = vmatpush1.bf16.xpose.msra.mxu0 0
        %1917 = vmatprep.subr.bf16.mxu0 0
        %1918 = vmatpush1.bf16.xpose.msra.mxu0 0
        %1919 = vmatprep.subr.bf16.mxu0 0
        %1920 = vmatpush1.bf16.xpose.msra.mxu0 0
        %1921 = vmatprep.mubr.bf16.mxu0 0
        %1922 = vmatmul.mubr.bf16.gmra.mrb[0].mxu0 %v1884
        %v1923 = vpop.f32.mrb[0].mxu0
        %v1924 = vadd.f32 0.0, %v1923
        %v1925 = vpop.f32.mrb[0].mxu0
        %v1926 = vpop.f32.mrb[0].mxu0
        %v1927 = vpop.f32.mrb[0].mxu0
        %1928 = vdwg.mxu0
        %v1929 = vmul.f32 %v1924, 0.35355338
        %v1930 = vsel %vm1766, -1e+09, %v1929
        %v1931 = vsel %vm890, %v1930, -inf
        %1932 = vmax.xlane.f32.xlu0 %v1931
        %v1933 = vpop.xlane.xlu0 %1932
        %v1934 = vsub.f32 %v1930, %v1933
        %v1935 = vmul.f32 %v1934, 1.442695
        %v1936 = vpow.pop %v1935
        %v1937 = vsel %vm890, %v1936, 0.0
        %1938 = vadd.xlane.f32.xlu0 %v1937
        %v1939 = vpop.xlane.xlu0 %1938
        %v1940 = vrcp.pop %v1939
        %v1941 = vmul.f32 %v1936, %v1940
        %v1942 = vpack.c.bf16 %v1941, %v1941
        %1943 = vrot.lane.b32.xlu0 %v1713, 88
        %v1944 = vpop.permute.xlu0 %1943
        %v1946 = vsel %vm890, %v1942, 0
        %v1949 = vsel %vm956, %v1944, 0
        %1951 = vmatprep.subr.bf16.mxu0 0
        %1952 = vmatpush1.bf16.msra.mxu0 %v1949
        %1953 = vmatprep.subr.bf16.mxu0 0
        %1954 = vmatpush1.bf16.msra.mxu0 0
        %1955 = vmatprep.subr.bf16.mxu0 0
        %1956 = vmatpush1.bf16.msra.mxu0 0
        %1957 = vmatprep.subr.bf16.mxu0 0
        %1958 = vmatpush1.bf16.msra.mxu0 0
        %1959 = vmatprep.subr.bf16.mxu0 0
        %1960 = vmatpush1.bf16.msra.mxu0 0
        %1961 = vmatprep.subr.bf16.mxu0 0
        %1962 = vmatpush1.bf16.msra.mxu0 0
        %1963 = vmatprep.subr.bf16.mxu0 0
        %1964 = vmatpush1.bf16.msra.mxu0 0
        %1965 = vmatprep.subr.bf16.mxu0 0
        %1966 = vmatpush1.bf16.msra.mxu0 0
        %1967 = vmatprep.subr.bf16.mxu0 0
        %1968 = vmatpush1.bf16.msra.mxu0 0
        %1969 = vmatprep.subr.bf16.mxu0 0
        %1970 = vmatpush1.bf16.msra.mxu0 0
        %1971 = vmatprep.subr.bf16.mxu0 0
        %1972 = vmatpush1.bf16.msra.mxu0 0
        %1973 = vmatprep.subr.bf16.mxu0 0
        %1974 = vmatpush1.bf16.msra.mxu0 0
        %1975 = vmatprep.subr.bf16.mxu0 0
        %1976 = vmatpush1.bf16.msra.mxu0 0
        %1977 = vmatprep.subr.bf16.mxu0 0
        %1978 = vmatpush1.bf16.msra.mxu0 0
        %1979 = vmatprep.subr.bf16.mxu0 0
        %1980 = vmatpush1.bf16.msra.mxu0 0
        %1981 = vmatprep.subr.bf16.mxu0 0
        %1982 = vmatpush1.bf16.msra.mxu0 0
        %1983 = vmatprep.mubr.bf16.mxu0 0
        %1984 = vmatmul.mubr.bf16.gmra.mrb[0].mxu0 %v1946
        %v1985 = vpop.f32.mrb[0].mxu0
        %v1986 = vadd.f32 0.0, %v1985
        %v1987 = vpop.f32.mrb[0].mxu0
        %v1988 = vpop.f32.mrb[0].mxu0
        %v1989 = vpop.f32.mrb[0].mxu0
        %1990 = vdwg.mxu0
        %v1991 = vpack.c.bf16 %v1986, %v1986
        %v1992 = vld [vmem:[%s14 + $0x4] sm:$0xf]
        %v1994 = vsel %vm890, %v1991, 0
        %v1997 = vsel %vm956, %v1992, 0
        %1999 = vmatprep.subr.bf16.mxu0 0
        %2000 = vmatpush1.bf16.msra.mxu0 %v1997
        %2001 = vmatprep.subr.bf16.mxu0 0
        %2002 = vmatpush1.bf16.msra.mxu0 0
        %2003 = vmatprep.subr.bf16.mxu0 0
        %2004 = vmatpush1.bf16.msra.mxu0 0
        %2005 = vmatprep.subr.bf16.mxu0 0
        %2006 = vmatpush1.bf16.msra.mxu0 0
        %2007 = vmatprep.subr.bf16.mxu0 0
        %2008 = vmatpush1.bf16.msra.mxu0 0
        %2009 = vmatprep.subr.bf16.mxu0 0
        %2010 = vmatpush1.bf16.msra.mxu0 0
        %2011 = vmatprep.subr.bf16.mxu0 0
        %2012 = vmatpush1.bf16.msra.mxu0 0
        %2013 = vmatprep.subr.bf16.mxu0 0
        %2014 = vmatpush1.bf16.msra.mxu0 0
        %2015 = vmatprep.subr.bf16.mxu0 0
        %2016 = vmatpush1.bf16.msra.mxu0 0
        %2017 = vmatprep.subr.bf16.mxu0 0
        %2018 = vmatpush1.bf16.msra.mxu0 0
        %2019 = vmatprep.subr.bf16.mxu0 0
        %2020 = vmatpush1.bf16.msra.mxu0 0
        %2021 = vmatprep.subr.bf16.mxu0 0
        %2022 = vmatpush1.bf16.msra.mxu0 0
        %2023 = vmatprep.subr.bf16.mxu0 0
        %2024 = vmatpush1.bf16.msra.mxu0 0
        %2025 = vmatprep.subr.bf16.mxu0 0
        %2026 = vmatpush1.bf16.msra.mxu0 0
        %2027 = vmatprep.subr.bf16.mxu0 0
        %2028 = vmatpush1.bf16.msra.mxu0 0
        %2029 = vmatprep.subr.bf16.mxu0 0
        %2030 = vmatpush1.bf16.msra.mxu0 0
        %2031 = vmatprep.mubr.bf16.mxu0 0
        %2032 = vmatmul.mubr.bf16.gmra.mrb[0].mxu0 %v1994
        %v2033 = vpop.f32.mrb[0].mxu0
        %v2034 = vadd.f32 0.0, %v2033
        %v2035 = vpop.f32.mrb[0].mxu0
        %v2036 = vpop.f32.mrb[0].mxu0
        %v2037 = vpop.f32.mrb[0].mxu0
        %2038 = vdwg.mxu0
        %v2039 = vadd.f32 %v1877, %v2034
        %2040 = vrot.lane.b32.xlu0 %v1712, 112
        %v2041 = vpop.permute.xlu0 %2040
        %2042 = vrot.lane.b32.xlu0 %v1713, 112
        %v2043 = vpop.permute.xlu0 %2042
        %v2045 = vsel %vm890, %v2041, 0
        %v2048 = vsel %vm890, %v2043, 0
        %2050 = vmatprep.subr.bf16.mxu0 0
        %2051 = vmatpush1.bf16.xpose.msra.mxu0 %v2048
        %2052 = vmatprep.subr.bf16.mxu0 0
        %2053 = vmatpush1.bf16.xpose.msra.mxu0 0
        %2054 = vmatprep.subr.bf16.mxu0 0
        %2055 = vmatpush1.bf16.xpose.msra.mxu0 0
        %2056 = vmatprep.subr.bf16.mxu0 0
        %2057 = vmatpush1.bf16.xpose.msra.mxu0 0
        %2058 = vmatprep.subr.bf16.mxu0 0
        %2059 = vmatpush1.bf16.xpose.msra.mxu0 0
        %2060 = vmatprep.subr.bf16.mxu0 0
        %2061 = vmatpush1.bf16.xpose.msra.mxu0 0
        %2062 = vmatprep.subr.bf16.mxu0 0
        %2063 = vmatpush1.bf16.xpose.msra.mxu0 0
        %2064 = vmatprep.subr.bf16.mxu0 0
        %2065 = vmatpush1.bf16.xpose.msra.mxu0 0
        %2066 = vmatprep.subr.bf16.mxu0 0
        %2067 = vmatpush1.bf16.xpose.msra.mxu0 0
        %2068 = vmatprep.subr.bf16.mxu0 0
        %2069 = vmatpush1.bf16.xpose.msra.mxu0 0
        %2070 = vmatprep.subr.bf16.mxu0 0
        %2071 = vmatpush1.bf16.xpose.msra.mxu0 0
        %2072 = vmatprep.subr.bf16.mxu0 0
        %2073 = vmatpush1.bf16.xpose.msra.mxu0 0
        %2074 = vmatprep.subr.bf16.mxu0 0
        %2075 = vmatpush1.bf16.xpose.msra.mxu0 0
        %2076 = vmatprep.subr.bf16.mxu0 0
        %2077 = vmatpush1.bf16.xpose.msra.mxu0 0
        %2078 = vmatprep.subr.bf16.mxu0 0
        %2079 = vmatpush1.bf16.xpose.msra.mxu0 0
        %2080 = vmatprep.subr.bf16.mxu0 0
        %2081 = vmatpush1.bf16.xpose.msra.mxu0 0
        %2082 = vmatprep.mubr.bf16.mxu0 0
        %2083 = vmatmul.mubr.bf16.gmra.mrb[0].mxu0 %v2045
        %v2084 = vpop.f32.mrb[0].mxu0
        %v2085 = vadd.f32 0.0, %v2084
        %v2086 = vpop.f32.mrb[0].mxu0
        %v2087 = vpop.f32.mrb[0].mxu0
        %v2088 = vpop.f32.mrb[0].mxu0
        %2089 = vdwg.mxu0
        %v2090 = vmul.f32 %v2085, 0.35355338
        %v2091 = vsel %vm1766, -1e+09, %v2090
        %v2092 = vsel %vm890, %v2091, -inf
        %2093 = vmax.xlane.f32.xlu0 %v2092
        %v2094 = vpop.xlane.xlu0 %2093
        %v2095 = vsub.f32 %v2091, %v2094
        %v2096 = vmul.f32 %v2095, 1.442695
        %v2097 = vpow.pop %v2096
        %v2098 = vsel %vm890, %v2097, 0.0
        %2099 = vadd.xlane.f32.xlu0 %v2098
        %v2100 = vpop.xlane.xlu0 %2099
        %v2101 = vrcp.pop %v2100
        %v2102 = vmul.f32 %v2097, %v2101
        %v2103 = vpack.c.bf16 %v2102, %v2102
        %2104 = vrot.lane.b32.xlu0 %v1713, 80
        %v2105 = vpop.permute.xlu0 %2104
        %v2107 = vsel %vm890, %v2103, 0
        %v2110 = vsel %vm956, %v2105, 0
        %2112 = vmatprep.subr.bf16.mxu0 0
        %2113 = vmatpush1.bf16.msra.mxu0 %v2110
        %2114 = vmatprep.subr.bf16.mxu0 0
        %2115 = vmatpush1.bf16.msra.mxu0 0
        %2116 = vmatprep.subr.bf16.mxu0 0
        %2117 = vmatpush1.bf16.msra.mxu0 0
        %2118 = vmatprep.subr.bf16.mxu0 0
        %2119 = vmatpush1.bf16.msra.mxu0 0
        %2120 = vmatprep.subr.bf16.mxu0 0
        %2121 = vmatpush1.bf16.msra.mxu0 0
        %2122 = vmatprep.subr.bf16.mxu0 0
        %2123 = vmatpush1.bf16.msra.mxu0 0
        %2124 = vmatprep.subr.bf16.mxu0 0
        %2125 = vmatpush1.bf16.msra.mxu0 0
        %2126 = vmatprep.subr.bf16.mxu0 0
        %2127 = vmatpush1.bf16.msra.mxu0 0
        %2128 = vmatprep.subr.bf16.mxu0 0
        %2129 = vmatpush1.bf16.msra.mxu0 0
        %2130 = vmatprep.subr.bf16.mxu0 0
        %2131 = vmatpush1.bf16.msra.mxu0 0
        %2132 = vmatprep.subr.bf16.mxu0 0
        %2133 = vmatpush1.bf16.msra.mxu0 0
        %2134 = vmatprep.subr.bf16.mxu0 0
        %2135 = vmatpush1.bf16.msra.mxu0 0
        %2136 = vmatprep.subr.bf16.mxu0 0
        %2137 = vmatpush1.bf16.msra.mxu0 0
        %2138 = vmatprep.subr.bf16.mxu0 0
        %2139 = vmatpush1.bf16.msra.mxu0 0
        %2140 = vmatprep.subr.bf16.mxu0 0
        %2141 = vmatpush1.bf16.msra.mxu0 0
        %2142 = vmatprep.subr.bf16.mxu0 0
        %2143 = vmatpush1.bf16.msra.mxu0 0
        %2144 = vmatprep.mubr.bf16.mxu0 0
        %2145 = vmatmul.mubr.bf16.gmra.mrb[0].mxu0 %v2107
        %v2146 = vpop.f32.mrb[0].mxu0
        %v2147 = vadd.f32 0.0, %v2146
        %v2148 = vpop.f32.mrb[0].mxu0
        %v2149 = vpop.f32.mrb[0].mxu0
        %v2150 = vpop.f32.mrb[0].mxu0
        %2151 = vdwg.mxu0
        %v2152 = vpack.c.bf16 %v2147, %v2147
        %v2153 = vld [vmem:[%s14 + $0x8] sm:$0xf]
        %v2155 = vsel %vm890, %v2152, 0
        %v2158 = vsel %vm956, %v2153, 0
        %2160 = vmatprep.subr.bf16.mxu0 0
        %2161 = vmatpush1.bf16.msra.mxu0 %v2158
        %2162 = vmatprep.subr.bf16.mxu0 0
        %2163 = vmatpush1.bf16.msra.mxu0 0
        %2164 = vmatprep.subr.bf16.mxu0 0
        %2165 = vmatpush1.bf16.msra.mxu0 0
        %2166 = vmatprep.subr.bf16.mxu0 0
        %2167 = vmatpush1.bf16.msra.mxu0 0
        %2168 = vmatprep.subr.bf16.mxu0 0
        %2169 = vmatpush1.bf16.msra.mxu0 0
        %2170 = vmatprep.subr.bf16.mxu0 0
        %2171 = vmatpush1.bf16.msra.mxu0 0
        %2172 = vmatprep.subr.bf16.mxu0 0
        %2173 = vmatpush1.bf16.msra.mxu0 0
        %2174 = vmatprep.subr.bf16.mxu0 0
        %2175 = vmatpush1.bf16.msra.mxu0 0
        %2176 = vmatprep.subr.bf16.mxu0 0
        %2177 = vmatpush1.bf16.msra.mxu0 0
        %2178 = vmatprep.subr.bf16.mxu0 0
        %2179 = vmatpush1.bf16.msra.mxu0 0
        %2180 = vmatprep.subr.bf16.mxu0 0
        %2181 = vmatpush1.bf16.msra.mxu0 0
        %2182 = vmatprep.subr.bf16.mxu0 0
        %2183 = vmatpush1.bf16.msra.mxu0 0
        %2184 = vmatprep.subr.bf16.mxu0 0
        %2185 = vmatpush1.bf16.msra.mxu0 0
        %2186 = vmatprep.subr.bf16.mxu0 0
        %2187 = vmatpush1.bf16.msra.mxu0 0
        %2188 = vmatprep.subr.bf16.mxu0 0
        %2189 = vmatpush1.bf16.msra.mxu0 0
        %2190 = vmatprep.subr.bf16.mxu0 0
        %2191 = vmatpush1.bf16.msra.mxu0 0
        %2192 = vmatprep.mubr.bf16.mxu0 0
        %2193 = vmatmul.mubr.bf16.gmra.mrb[0].mxu0 %v2155
        %v2194 = vpop.f32.mrb[0].mxu0
        %v2195 = vadd.f32 0.0, %v2194
        %v2196 = vpop.f32.mrb[0].mxu0
        %v2197 = vpop.f32.mrb[0].mxu0
        %v2198 = vpop.f32.mrb[0].mxu0
        %2199 = vdwg.mxu0
        %v2200 = vadd.f32 %v2039, %v2195
        %2201 = vrot.lane.b32.xlu0 %v1712, 104
        %v2202 = vpop.permute.xlu0 %2201
        %2203 = vrot.lane.b32.xlu0 %v1713, 104
        %v2204 = vpop.permute.xlu0 %2203
        %v2206 = vsel %vm890, %v2202, 0
        %v2209 = vsel %vm890, %v2204, 0
        %2211 = vmatprep.subr.bf16.mxu0 0
        %2212 = vmatpush1.bf16.xpose.msra.mxu0 %v2209
        %2213 = vmatprep.subr.bf16.mxu0 0
        %2214 = vmatpush1.bf16.xpose.msra.mxu0 0
        %2215 = vmatprep.subr.bf16.mxu0 0
        %2216 = vmatpush1.bf16.xpose.msra.mxu0 0
        %2217 = vmatprep.subr.bf16.mxu0 0
        %2218 = vmatpush1.bf16.xpose.msra.mxu0 0
        %2219 = vmatprep.subr.bf16.mxu0 0
        %2220 = vmatpush1.bf16.xpose.msra.mxu0 0
        %2221 = vmatprep.subr.bf16.mxu0 0
        %2222 = vmatpush1.bf16.xpose.msra.mxu0 0
        %2223 = vmatprep.subr.bf16.mxu0 0
        %2224 = vmatpush1.bf16.xpose.msra.mxu0 0
        %2225 = vmatprep.subr.bf16.mxu0 0
        %2226 = vmatpush1.bf16.xpose.msra.mxu0 0
        %2227 = vmatprep.subr.bf16.mxu0 0
        %2228 = vmatpush1.bf16.xpose.msra.mxu0 0
        %2229 = vmatprep.subr.bf16.mxu0 0
        %2230 = vmatpush1.bf16.xpose.msra.mxu0 0
        %2231 = vmatprep.subr.bf16.mxu0 0
        %2232 = vmatpush1.bf16.xpose.msra.mxu0 0
        %2233 = vmatprep.subr.bf16.mxu0 0
        %2234 = vmatpush1.bf16.xpose.msra.mxu0 0
        %2235 = vmatprep.subr.bf16.mxu0 0
        %2236 = vmatpush1.bf16.xpose.msra.mxu0 0
        %2237 = vmatprep.subr.bf16.mxu0 0
        %2238 = vmatpush1.bf16.xpose.msra.mxu0 0
        %2239 = vmatprep.subr.bf16.mxu0 0
        %2240 = vmatpush1.bf16.xpose.msra.mxu0 0
        %2241 = vmatprep.subr.bf16.mxu0 0
        %2242 = vmatpush1.bf16.xpose.msra.mxu0 0
        %2243 = vmatprep.mubr.bf16.mxu0 0
        %2244 = vmatmul.mubr.bf16.gmra.mrb[0].mxu0 %v2206
        %v2245 = vpop.f32.mrb[0].mxu0
        %v2246 = vadd.f32 0.0, %v2245
        %v2247 = vpop.f32.mrb[0].mxu0
        %v2248 = vpop.f32.mrb[0].mxu0
        %v2249 = vpop.f32.mrb[0].mxu0
        %2250 = vdwg.mxu0
        %v2251 = vmul.f32 %v2246, 0.35355338
        %v2252 = vsel %vm1766, -1e+09, %v2251
        %v2253 = vsel %vm890, %v2252, -inf
        %2254 = vmax.xlane.f32.xlu0 %v2253
        %v2255 = vpop.xlane.xlu0 %2254
        %v2256 = vsub.f32 %v2252, %v2255
        %v2257 = vmul.f32 %v2256, 1.442695
        %v2258 = vpow.pop %v2257
        %v2259 = vsel %vm890, %v2258, 0.0
        %2260 = vadd.xlane.f32.xlu0 %v2259
        %v2261 = vpop.xlane.xlu0 %2260
        %v2262 = vrcp.pop %v2261
        %v2263 = vmul.f32 %v2258, %v2262
        %v2264 = vpack.c.bf16 %v2263, %v2263
        %2265 = vrot.lane.b32.xlu0 %v1713, 72
        %v2266 = vpop.permute.xlu0 %2265
        %v2268 = vsel %vm890, %v2264, 0
        %v2271 = vsel %vm956, %v2266, 0
        %2273 = vmatprep.subr.bf16.mxu0 0
        %2274 = vmatpush1.bf16.msra.mxu0 %v2271
        %2275 = vmatprep.subr.bf16.mxu0 0
        %2276 = vmatpush1.bf16.msra.mxu0 0
        %2277 = vmatprep.subr.bf16.mxu0 0
        %2278 = vmatpush1.bf16.msra.mxu0 0
        %2279 = vmatprep.subr.bf16.mxu0 0
        %2280 = vmatpush1.bf16.msra.mxu0 0
        %2281 = vmatprep.subr.bf16.mxu0 0
        %2282 = vmatpush1.bf16.msra.mxu0 0
        %2283 = vmatprep.subr.bf16.mxu0 0
        %2284 = vmatpush1.bf16.msra.mxu0 0
        %2285 = vmatprep.subr.bf16.mxu0 0
        %2286 = vmatpush1.bf16.msra.mxu0 0
        %2287 = vmatprep.subr.bf16.mxu0 0
        %2288 = vmatpush1.bf16.msra.mxu0 0
        %2289 = vmatprep.subr.bf16.mxu0 0
        %2290 = vmatpush1.bf16.msra.mxu0 0
        %2291 = vmatprep.subr.bf16.mxu0 0
        %2292 = vmatpush1.bf16.msra.mxu0 0
        %2293 = vmatprep.subr.bf16.mxu0 0
        %2294 = vmatpush1.bf16.msra.mxu0 0
        %2295 = vmatprep.subr.bf16.mxu0 0
        %2296 = vmatpush1.bf16.msra.mxu0 0
        %2297 = vmatprep.subr.bf16.mxu0 0
        %2298 = vmatpush1.bf16.msra.mxu0 0
        %2299 = vmatprep.subr.bf16.mxu0 0
        %2300 = vmatpush1.bf16.msra.mxu0 0
        %2301 = vmatprep.subr.bf16.mxu0 0
        %2302 = vmatpush1.bf16.msra.mxu0 0
        %2303 = vmatprep.subr.bf16.mxu0 0
        %2304 = vmatpush1.bf16.msra.mxu0 0
        %2305 = vmatprep.mubr.bf16.mxu0 0
        %2306 = vmatmul.mubr.bf16.gmra.mrb[0].mxu0 %v2268
        %v2307 = vpop.f32.mrb[0].mxu0
        %v2308 = vadd.f32 0.0, %v2307
        %v2309 = vpop.f32.mrb[0].mxu0
        %v2310 = vpop.f32.mrb[0].mxu0
        %v2311 = vpop.f32.mrb[0].mxu0
        %2312 = vdwg.mxu0
        %v2313 = vpack.c.bf16 %v2308, %v2308
        %v2314 = vld [vmem:[%s14 + $0xc] sm:$0xf]
        %v2316 = vsel %vm890, %v2313, 0
        %v2319 = vsel %vm956, %v2314, 0
        %2321 = vmatprep.subr.bf16.mxu0 0
        %2322 = vmatpush1.bf16.msra.mxu0 %v2319
        %2323 = vmatprep.subr.bf16.mxu0 0
        %2324 = vmatpush1.bf16.msra.mxu0 0
        %2325 = vmatprep.subr.bf16.mxu0 0
        %2326 = vmatpush1.bf16.msra.mxu0 0
        %2327 = vmatprep.subr.bf16.mxu0 0
        %2328 = vmatpush1.bf16.msra.mxu0 0
        %2329 = vmatprep.subr.bf16.mxu0 0
        %2330 = vmatpush1.bf16.msra.mxu0 0
        %2331 = vmatprep.subr.bf16.mxu0 0
        %2332 = vmatpush1.bf16.msra.mxu0 0
        %2333 = vmatprep.subr.bf16.mxu0 0
        %2334 = vmatpush1.bf16.msra.mxu0 0
        %2335 = vmatprep.subr.bf16.mxu0 0
        %2336 = vmatpush1.bf16.msra.mxu0 0
        %2337 = vmatprep.subr.bf16.mxu0 0
        %2338 = vmatpush1.bf16.msra.mxu0 0
        %2339 = vmatprep.subr.bf16.mxu0 0
        %2340 = vmatpush1.bf16.msra.mxu0 0
        %2341 = vmatprep.subr.bf16.mxu0 0
        %2342 = vmatpush1.bf16.msra.mxu0 0
        %2343 = vmatprep.subr.bf16.mxu0 0
        %2344 = vmatpush1.bf16.msra.mxu0 0
        %2345 = vmatprep.subr.bf16.mxu0 0
        %2346 = vmatpush1.bf16.msra.mxu0 0
        %2347 = vmatprep.subr.bf16.mxu0 0
        %2348 = vmatpush1.bf16.msra.mxu0 0
        %2349 = vmatprep.subr.bf16.mxu0 0
        %2350 = vmatpush1.bf16.msra.mxu0 0
        %2351 = vmatprep.subr.bf16.mxu0 0
        %2352 = vmatpush1.bf16.msra.mxu0 0
        %2353 = vmatprep.mubr.bf16.mxu0 0
        %2354 = vmatmul.mubr.bf16.gmra.mrb[0].mxu0 %v2316
        %v2355 = vpop.f32.mrb[0].mxu0
        %v2356 = vadd.f32 0.0, %v2355
        %v2357 = vpop.f32.mrb[0].mxu0
        %v2358 = vpop.f32.mrb[0].mxu0
        %v2359 = vpop.f32.mrb[0].mxu0
        %2360 = vdwg.mxu0
        %v2361 = vadd.f32 %v2200, %v2356
        %v2362 = vadd.f32 %v2361, %v1570
        %v2363 = vsel %vm834, %v2362, 0.0
        %2364 = vadd.xlane.f32.xlu0 %v2363
        %v2365 = vpop.xlane.xlu0 %2364
        %v2366 = vmul.f32 %v2365, %v1536
        %v2367 = vsub.f32 %v2362, %v2366
        %v2368 = vmul.f32 %v2367, %v2367
        %v2369 = vsel %vm834, %v2368, 0.0
        %2370 = vadd.xlane.f32.xlu0 %v2369
        %v2371 = vpop.xlane.xlu0 %2370
        %v2372 = vmul.f32 %v2371, %v1543
        %v2373 = vld [vmem:[%s16] sm:$0x1]
        %v2374 = vrsqrt.pop %v2372
        %v2375 = vmul.f32 %v2372, %v2374
        %vm2376 = vcmp.eq.f32.partialorder %v2372, inf
        %v2377 = vsel %vm2376, %v2372, %v2375
        %vm2378 = vcmp.eq.f32.partialorder %v2372, 0.0
        %v2379 = vand.u32 %v2372, 2147483648
        %v2380 = vsel %vm2378, %v2379, %v2377
        %v2381 = vadd.f32 %v2380, 1e-06
        %v2382 = vrcp.pop %v2381
        %v2383 = vmul.f32 %v2367, %v2382
        %v2385 = vlaneseq
        %v2386 = vshrl.u32 %v2385, 7
        %v2387 = vsub.s32 0, %v2386
        %v2388 = vrot.slane %v2373, %v2387
        %v2390 = vmul.f32 %v2388, %v2383
        %v2391 = vld [vmem:[%s17] sm:$0x1]
        %v2393 = vlaneseq
        %v2394 = vshrl.u32 %v2393, 7
        %v2395 = vsub.s32 0, %v2394
        %v2396 = vrot.slane %v2391, %v2395
        %v2398 = vadd.f32 %v2390, %v2396
        %v2399 = vpack.c.bf16 %v2398, %v2398
        %v2400 = vld [vmem:[%s18] sm:$0xf]
        %v2401 = vld [vmem:[%s18 + $0x4] sm:$0xf]
        %v2402 = vld [vmem:[%s18 + $0x8] sm:$0xf]
        %v2403 = vld [vmem:[%s18 + $0xc] sm:$0xf]
        %v2404 = vld [vmem:[%s19] sm:$0x1]
        %v2406 = vlaneseq
        %v2407 = vshrl.u32 %v2406, 7
        %v2408 = vsub.s32 0, %v2407
        %v2409 = vrot.slane %v2404, %v2408
        %v2415 = vunpack.c.l.b16 %v2400
        %v2416 = vunpack.c.l.b16 %v2401
        %v2417 = vunpack.c.l.b16 %v2402
        %v2418 = vunpack.c.l.b16 %v2403
        %v2419 = vpack.c.b16 %v2416, %v2415
        %v2420 = vpack.c.b16 %v2418, %v2417
        %v2424 = vsel %vm834, %v2399, 0
        %2426 = vmatprep.subr.bf16.mxu0 0
        %2427 = vmatpush1.bf16.msra.mxu0 %v2419
        %2428 = vmatprep.subr.bf16.mxu0 0
        %2429 = vmatpush1.bf16.msra.mxu0 %v2420
        %2430 = vmatprep.subr.bf16.mxu0 0
        %2431 = vmatpush1.bf16.msra.mxu0 0
        %2432 = vmatprep.subr.bf16.mxu0 0
        %2433 = vmatpush1.bf16.msra.mxu0 0
        %2434 = vmatprep.subr.bf16.mxu0 0
        %2435 = vmatpush1.bf16.msra.mxu0 0
        %2436 = vmatprep.subr.bf16.mxu0 0
        %2437 = vmatpush1.bf16.msra.mxu0 0
        %2438 = vmatprep.subr.bf16.mxu0 0
        %2439 = vmatpush1.bf16.msra.mxu0 0
        %2440 = vmatprep.subr.bf16.mxu0 0
        %2441 = vmatpush1.bf16.msra.mxu0 0
        %2442 = vmatprep.subr.bf16.mxu0 0
        %2443 = vmatpush1.bf16.msra.mxu0 0
        %2444 = vmatprep.subr.bf16.mxu0 0
        %2445 = vmatpush1.bf16.msra.mxu0 0
        %2446 = vmatprep.subr.bf16.mxu0 0
        %2447 = vmatpush1.bf16.msra.mxu0 0
        %2448 = vmatprep.subr.bf16.mxu0 0
        %2449 = vmatpush1.bf16.msra.mxu0 0
        %2450 = vmatprep.subr.bf16.mxu0 0
        %2451 = vmatpush1.bf16.msra.mxu0 0
        %2452 = vmatprep.subr.bf16.mxu0 0
        %2453 = vmatpush1.bf16.msra.mxu0 0
        %2454 = vmatprep.subr.bf16.mxu0 0
        %2455 = vmatpush1.bf16.msra.mxu0 0
        %2456 = vmatprep.subr.bf16.mxu0 0
        %2457 = vmatpush1.bf16.msra.mxu0 0
        %2458 = vmatprep.mubr.bf16.mxu0 0
        %2459 = vmatmul.mubr.bf16.gmra.mrb[0].mxu0 %v2424
        %v2460 = vpop.f32.mrb[0].mxu0
        %v2461 = vadd.f32 %v2409, %v2460
        %v2462 = vpop.f32.mrb[0].mxu0
        %v2463 = vpop.f32.mrb[0].mxu0
        %v2464 = vpop.f32.mrb[0].mxu0
        %2465 = vdwg.mxu0
        %v2466 = vmax.f32 %v2461, 0.0
        %v2467 = vpack.c.bf16 %v2466, %v2466
        %v2468 = vld [vmem:[%s20] sm:$0xf]
        %v2469 = vld [vmem:[%s20 + $0x4] sm:$0xf]
        %v2470 = vld [vmem:[%s20 + $0x8] sm:$0xf]
        %v2471 = vld [vmem:[%s20 + $0xc] sm:$0xf]
        %v2472 = vld [vmem:[%s20 + $0x10] sm:$0xf]
        %v2473 = vld [vmem:[%s20 + $0x14] sm:$0xf]
        %v2474 = vld [vmem:[%s20 + $0x18] sm:$0xf]
        %v2475 = vld [vmem:[%s20 + $0x1c] sm:$0xf]
        %v2476 = vld [vmem:[%s21] sm:$0x1]
        %v2478 = vlaneseq
        %v2479 = vshrl.u32 %v2478, 7
        %v2480 = vsub.s32 0, %v2479
        %v2481 = vrot.slane %v2476, %v2480
        %v2491 = vunpack.c.l.b16 %v2468
        %v2492 = vunpack.c.l.b16 %v2469
        %v2493 = vunpack.c.l.b16 %v2470
        %v2494 = vunpack.c.l.b16 %v2471
        %v2495 = vunpack.c.l.b16 %v2472
        %v2496 = vunpack.c.l.b16 %v2473
        %v2497 = vunpack.c.l.b16 %v2474
        %v2498 = vunpack.c.l.b16 %v2475
        %v2499 = vpack.c.b16 %v2492, %v2491
        %v2500 = vpack.c.b16 %v2494, %v2493
        %v2501 = vpack.c.b16 %v2496, %v2495
        %v2502 = vpack.c.b16 %v2498, %v2497
        %vm2507 = vcmask 523264
        %v2509 = vsel %vm2507, %v2467, 0
        %2511 = vmatprep.subr.bf16.mxu0 0
        %2512 = vmatpush1.bf16.msra.mxu0 %v2499
        %2513 = vmatprep.subr.bf16.mxu0 0
        %2514 = vmatpush1.bf16.msra.mxu0 %v2500
        %2515 = vmatprep.subr.bf16.mxu0 0
        %2516 = vmatpush1.bf16.msra.mxu0 %v2501
        %2517 = vmatprep.subr.bf16.mxu0 0
        %2518 = vmatpush1.bf16.msra.mxu0 %v2502
        %2519 = vmatprep.subr.bf16.mxu0 0
        %2520 = vmatpush1.bf16.msra.mxu0 0
        %2521 = vmatprep.subr.bf16.mxu0 0
        %2522 = vmatpush1.bf16.msra.mxu0 0
        %2523 = vmatprep.subr.bf16.mxu0 0
        %2524 = vmatpush1.bf16.msra.mxu0 0
        %2525 = vmatprep.subr.bf16.mxu0 0
        %2526 = vmatpush1.bf16.msra.mxu0 0
        %2527 = vmatprep.subr.bf16.mxu0 0
        %2528 = vmatpush1.bf16.msra.mxu0 0
        %2529 = vmatprep.subr.bf16.mxu0 0
        %2530 = vmatpush1.bf16.msra.mxu0 0
        %2531 = vmatprep.subr.bf16.mxu0 0
        %2532 = vmatpush1.bf16.msra.mxu0 0
        %2533 = vmatprep.subr.bf16.mxu0 0
        %2534 = vmatpush1.bf16.msra.mxu0 0
        %2535 = vmatprep.subr.bf16.mxu0 0
        %2536 = vmatpush1.bf16.msra.mxu0 0
        %2537 = vmatprep.subr.bf16.mxu0 0
        %2538 = vmatpush1.bf16.msra.mxu0 0
        %2539 = vmatprep.subr.bf16.mxu0 0
        %2540 = vmatpush1.bf16.msra.mxu0 0
        %2541 = vmatprep.subr.bf16.mxu0 0
        %2542 = vmatpush1.bf16.msra.mxu0 0
        %2543 = vmatprep.mubr.bf16.mxu0 0
        %2544 = vmatmul.mubr.bf16.gmra.mrb[0].mxu0 %v2509
        %v2545 = vpop.f32.mrb[0].mxu0
        %v2546 = vadd.f32 %v2481, %v2545
        %v2547 = vpop.f32.mrb[0].mxu0
        %v2548 = vpop.f32.mrb[0].mxu0
        %v2549 = vpop.f32.mrb[0].mxu0
        %2550 = vdwg.mxu0
        %v2551 = vadd.f32 %v2546, %v2398
        %v2552 = vsel %vm834, %v2551, 0.0
        %2553 = vadd.xlane.f32.xlu0 %v2552
        %v2554 = vpop.xlane.xlu0 %2553
        %v2555 = vmul.f32 %v2554, %v1536
        %v2556 = vsub.f32 %v2551, %v2555
        %v2557 = vmul.f32 %v2556, %v2556
        %v2558 = vsel %vm834, %v2557, 0.0
        %2559 = vadd.xlane.f32.xlu0 %v2558
        %v2560 = vpop.xlane.xlu0 %2559
        %v2561 = vmul.f32 %v2560, %v1543
        %v2562 = vld [vmem:[%s22] sm:$0x1]
        %v2563 = vrsqrt.pop %v2561
        %v2564 = vmul.f32 %v2561, %v2563
        %vm2565 = vcmp.eq.f32.partialorder %v2561, inf
        %v2566 = vsel %vm2565, %v2561, %v2564
        %vm2567 = vcmp.eq.f32.partialorder %v2561, 0.0
        %v2568 = vand.u32 %v2561, 2147483648
        %v2569 = vsel %vm2567, %v2568, %v2566
        %v2570 = vadd.f32 %v2569, 1e-06
        %v2571 = vrcp.pop %v2570
        %v2572 = vmul.f32 %v2556, %v2571
        %v2574 = vlaneseq
        %v2575 = vshrl.u32 %v2574, 7
        %v2576 = vsub.s32 0, %v2575
        %v2577 = vrot.slane %v2562, %v2576
        %v2579 = vmul.f32 %v2577, %v2572
        %v2580 = vld [vmem:[#allocation2] sm:$0x1]
        %v2582 = vlaneseq
        %v2583 = vshrl.u32 %v2582, 7
        %v2584 = vsub.s32 0, %v2583
        %v2585 = vrot.slane %v2580, %v2584
        %v2587 = vadd.f32 %v2579, %v2585
        %v2588 = vpack.c.bf16 %v2587, %v2587
        %vm2589 = vcmask 257024
        %2590 = vst.msk [vmem:[%s790] sm:$0xf] %vm2589, %v2588
        %p2591 = scmp.lt.s32.totalorder %s36, 1
        %s2592 = scalar_select %p2591, %s36, 1
        %s2593 = smul.addr %s2592, 4
        %s2594 = scalar_lea.vmem %s24, %s2593
        // Predicated region
        $region121: #{fwd.8} parent=115 // pred_check
          %p2595 = pneg %p578
        $region122: #{fwd.8} parent=115 // pred_check_branch
          %2597 = sbr.rel (%p2595) target = $region124
        $region123: #{fwd.8} parent=115 // pred_region
          _
        $region124: #{fwd.8} parent=115 // pred_fallthru
          _
      $region116: #{fwd.8} parent=5 // pred_fallthru
        _
      %p2598 = scmp.le.s32.totalorder 2, %s31
      // Predicated region
      $region125: #{fwd.8} parent=5 // pred_check
        %p2599 = pneg %p2598
      $region126: #{fwd.8} parent=5 // pred_check_branch
        %2601 = sbr.rel (%p2599) target = $region128
      $region127: #{fwd.8} parent=5 // pred_region
        %s2602 = ssub.s32 %s31, 2
        // Predicated region
        $region129: #{fwd.8} parent=127 // pred_check
          %p2603 = pneg %p584
        $region130: #{fwd.8} parent=127 // pred_check_branch
          %2605 = sbr.rel (%p2603) target = $region132
        $region131: #{fwd.8} parent=127 // pred_region
          %p2606 = scmp.lt.s32.totalorder %s37, 1
          %s2607 = scalar_select %p2606, %s37, 1
          %s2608 = smul.addr %s2607, 4
          %s2609 = scalar_lea.vmem %s24, %s2608
        $region132: #{fwd.8} parent=127 // pred_fallthru
          _
      $region128: #{fwd.8} parent=5 // pred_fallthru
        _
    $region6: #{fwd.8} parent=1 // loop_footer
      %s35 = sadd.s32 1, %s31
    $region7: #{fwd.8} parent=1 // loop_footer_branch
      %30 = sbr.rel target = $region3
    $region8: #{fwd.8} parent=1 // loop_exit
      _
    %2610 = vsyncpa [#allocation3], 1
    %s2611 = scalar_lea.sflag [#allocation3], 1
    %2612 = vsyncpa %s2611, 1

</llo_original>
